<compile_context>
chip_gen: v7x
topology: tpu7x:2x2x1
jax: 0.10.0
libtpu: 0.0.40
codegen_flags: <defaults>
</compile_context>

<pallas_src>
import math
import functools

import jax
import jax.numpy as jnp
from jax.experimental import pallas as pl
from jax.experimental.pallas import tpu as pltpu


def _round_up(x, m):
    return -(-x // m) * m


# ----------------------------------------------------------------------------
# Pallas kernel: one batch-block (Bb elements, rows = Bb*N packed rows) per step.
# ----------------------------------------------------------------------------
def causal_mtf_kernel(
    x_ref, ctx_ref, a_blk_ref,
    w_in_ref, b_in_ref, w_g_ref, w_out_ref, b_out_ref,
    out_ref,
):
    f32, bf16 = jnp.float32, jnp.bfloat16

    Bb, N, LF2 = x_ref.shape
    H2 = w_in_ref.shape[1]            # 2 * hidden
    H = H2 // 2
    Dout2 = w_out_ref.shape[1]        # 2 * (horizon * F)
    rows = Bb * N
    Wpad = out_ref.shape[1]
    Wtot = Dout2 + 2 * N

    x = x_ref[...].reshape(rows, LF2)                    # bf16, lanes = [xm | xn]

    # ---- fused per-mode embedding: one block-diagonal GEMM -> [h_m | h_n] -----
    h = jnp.dot(x, w_in_ref[...], preferred_element_type=f32) + b_in_ref[...]
    h = jnp.maximum(h, 0.0)

    # ---- context add (single hoisted broadcast; ctx already 2H-lane tiled) ----
    ctx_b = jnp.broadcast_to(ctx_ref[...], (Bb, N, H2)).reshape(rows, H2)
    h = h + ctx_b

    # ---- graph convolution with the predefined adjacency as ONE dense GEMM ----
    # a_blk = kron(I_Bb, adj): no per-batch adj broadcast, no tiny batched matmuls.
    g = jnp.dot(a_blk_ref[...], h.astype(bf16), preferred_element_type=f32)
    g = jnp.dot(g.astype(bf16), w_g_ref[...], preferred_element_type=f32)
    g = jnp.maximum(g, 0.0)                              # (rows, 2H), [gm | gn]

    g3 = g.reshape(Bb, N, H2)
    gm16 = g3[:, :, 0:H].astype(bf16)
    gn16 = g3[:, :, H:H2].astype(bf16)

    # ---- cross-modal causal interaction graphs (scaled row softmax, f32) ------
    scale = 1.0 / math.sqrt(H)
    s_m2n = jnp.einsum('bnh,bmh->bnm', gm16, gn16, preferred_element_type=f32) * scale
    s_n2m = jnp.einsum('bnh,bmh->bnm', gn16, gm16, preferred_element_type=f32) * scale

    def softmax_rows(s):
        s = s - jnp.max(s, axis=-1, keepdims=True)
        e = jnp.exp(s)
        return e / jnp.sum(e, axis=-1, keepdims=True)    # exact reciprocal

    i_m2n = softmax_rows(s_m2n)                          # (Bb, N, N) f32
    i_n2m = softmax_rows(s_n2m)                          # (Bb, N, N) f32

    # ---- cross-modal fusion; rebuild the lane-fused [z_m | z_n] layout --------
    a_m = jnp.einsum('bnm,bmh->bnh', i_n2m.astype(bf16), gn16,
                     preferred_element_type=f32)
    a_n = jnp.einsum('bnm,bmh->bnh', i_m2n.astype(bf16), gm16,
                     preferred_element_type=f32)
    z = g + jnp.concatenate([a_m, a_n], axis=-1).reshape(rows, H2)

    # ---- fused readout (block-diagonal) -> [out_m | out_n] --------------------
    out = jnp.dot(z.astype(bf16), w_out_ref[...],
                  preferred_element_type=f32) + b_out_ref[...]

    # ---- direct region stores into the lane-dense output slab -----------------
    out_ref[:, 0:Dout2] = out
    out_ref[:, Dout2:Dout2 + N] = i_m2n.reshape(rows, N)
    out_ref[:, Dout2 + N:Wtot] = i_n2m.reshape(rows, N)
    if Wpad > Wtot:  # static
        out_ref[:, Wtot:Wpad] = jnp.zeros((rows, Wpad - Wtot), f32)


# ----------------------------------------------------------------------------
# Rough per-step VMEM estimate (bytes) used to clamp the batch-block size.
# ----------------------------------------------------------------------------
def _vmem_estimate(Bb, N, LF2, H2, Dout2, Wpad):
    rows = Bb * N
    lane = lambda c: _round_up(c, 128)
    sub = lambda r: _round_up(r, 8)
    # double-buffered pipelined blocks (inputs + output)
    dbuf = 2 * (sub(rows) * lane(LF2) * 2            # x slab (bf16)
                + sub(Bb) * lane(H2) * 4             # ctx (f32)
                + sub(rows) * lane(Wpad) * 4)        # output slab (f32)
    # resident constant slabs (conservatively assume 2 buffers each)
    resident = 2 * (sub(rows) * lane(rows) * 2       # kron(I, adj) bf16
                    + sub(LF2) * lane(H2) * 2
                    + 8 * lane(H2) * 4
                    + sub(H2) * lane(H2) * 2
                    + sub(H2) * lane(Dout2) * 2
                    + 8 * lane(Dout2) * 4)
    # live f32 temporaries in the body
    temps = (6 * sub(rows) * lane(H2) * 4
             + 4 * Bb * sub(N) * lane(N) * 4
             + sub(rows) * lane(Dout2) * 4)
    return dbuf + resident + temps


# ----------------------------------------------------------------------------
# Wrapper: glue reshapes / weight packing in plain JAX, fused compute in kernel.
# ----------------------------------------------------------------------------
@functools.partial(jax.jit, static_argnames=("horizon",))
def causal_mtf_forward(x_m, x_n, time_x, weather_x, adj, params, *, horizon):
    B, L, N, F = x_m.shape
    LF = L * F
    LF2 = 2 * LF
    H = params["w_in_m"].shape[1]
    H2 = 2 * H
    Dout = horizon * F
    Dout2 = 2 * Dout
    f32, bf16 = jnp.float32, jnp.bfloat16

    # node-major flatten + lane-concat both modes into ONE input slab (B, N, 2LF)
    xm_flat = jnp.transpose(x_m, (0, 2, 1, 3)).reshape(B, N, LF)
    xn_flat = jnp.transpose(x_n, (0, 2, 1, 3)).reshape(B, N, LF)
    x_cat = jnp.concatenate([xm_flat, xn_flat], axis=-1).astype(bf16)

    # context projection hoisted to one XLA GEMM; duplicated across the 2H lanes
    ctx_in = jnp.concatenate([time_x, weather_x], axis=-1).reshape(B, -1)
    ctx = jnp.maximum(ctx_in @ params["w_ctx"] + params["b_ctx"], 0.0)      # (B, H)
    ctx2 = jnp.concatenate([ctx, ctx], axis=-1).reshape(B, 1, H2).astype(f32)

    # block-diagonal per-mode weight fusion
    def blkdiag(a, b):
        ra, ca = a.shape
        rb, cb = b.shape
        top = jnp.concatenate([a, jnp.zeros((ra, cb), a.dtype)], axis=1)
        bot = jnp.concatenate([jnp.zeros((rb, ca), b.dtype), b], axis=1)
        return jnp.concatenate([top, bot], axis=0)

    w_in = blkdiag(params["w_in_m"], params["w_in_n"]).astype(bf16)          # (2LF, 2H)
    b_in = jnp.concatenate([params["b_in_m"], params["b_in_n"]], -1).astype(f32)   # (1, 2H)
    w_g = blkdiag(params["w_g_m"], params["w_g_n"]).astype(bf16)             # (2H, 2H)
    w_out = blkdiag(params["w_out_m"], params["w_out_n"]).astype(bf16)       # (2H, 2Dout)
    b_out = jnp.concatenate([params["b_out_m"], params["b_out_n"]], -1).astype(f32)  # (1, 2Dout)

    # ---- batch-block sizing: guaranteed MXU row fill + >= 2 grid steps --------
    # rows = Bb*N >= 256 (v6e/v7x), multiple of 128 (v5e), multiple of 16 (bf16).
    target_rows = 256
    Bb = max(1, -(-target_rows // N))
    while (Bb * N) % 16 != 0:
        Bb += 1
    Wtot = Dout2 + 2 * N
    Wpad = _round_up(Wtot, 128)
    budget = 24 * 1024 * 1024             # stays portable to v7x's 64 MiB VMEM
    while Bb > 1 and _vmem_estimate(Bb, N, LF2, H2, Dout2, Wpad) > budget:
        Bb = max(1, Bb // 2)
    steps = max(2, -(-B // Bb))           # >= 2 steps: pipelining + v7x 2 TCs
    B_pad = steps * Bb
    rows = Bb * N

    if B_pad > B:                         # zero-pad batch; padded rows are discarded
        padw = ((0, B_pad - B), (0, 0), (0, 0))
        x_cat = jnp.pad(x_cat, padw)
        ctx2 = jnp.pad(ctx2, padw)

    # block-diagonal adjacency: graph conv becomes one dense (rows x rows) GEMM
    a_blk = jnp.kron(jnp.eye(Bb, dtype=f32), adj.astype(f32)).astype(bf16)   # (rows, rows)

    def const_spec(arr):
        nd = arr.ndim
        return pl.BlockSpec(arr.shape, lambda g, _nd=nd: (0,) * _nd)

    in_specs = [
        pl.BlockSpec((Bb, N, LF2), lambda g: (g, 0, 0)),   # x slab
        pl.BlockSpec((Bb, 1, H2), lambda g: (g, 0, 0)),    # ctx (2H lanes)
        const_spec(a_blk),
        const_spec(w_in), const_spec(b_in),
        const_spec(w_g), const_spec(w_out), const_spec(b_out),
    ]
    out_specs = pl.BlockSpec((rows, Wpad), lambda g: (g, 0))
    out_shape = jax.ShapeDtypeStruct((B_pad * N, Wpad), f32)

    packed = pl.pallas_call(
        causal_mtf_kernel,
        out_shape=out_shape,
        grid_spec=pltpu.PrefetchScalarGridSpec(
            num_scalar_prefetch=0,
            grid=(steps,),
            in_specs=in_specs,
            out_specs=out_specs,
        ),
        compiler_params=pltpu.CompilerParams(
            dimension_semantics=("parallel",),
            vmem_limit_bytes=48 * 1024 * 1024,
        ),
    )(x_cat, ctx2, a_blk, w_in, b_in, w_g, w_out, b_out)

    packed = packed.reshape(B_pad, N, Wpad)[:B]
    out_m = packed[:, :, 0:Dout]
    out_n = packed[:, :, Dout:Dout2]
    i_m2n = packed[:, :, Dout2:Dout2 + N]
    i_n2m = packed[:, :, Dout2 + N:Wtot]

    # (B, N, horizon*F) -> (B, horizon, N, F)
    out_m = out_m.reshape(B, N, horizon, F).transpose(0, 2, 1, 3)
    out_n = out_n.reshape(B, N, horizon, F).transpose(0, 2, 1, 3)
    return out_m, out_n, i_m2n, i_n2m


# ----------------------------------------------------------------------------
# Deterministic parameter init (mirrors Trainer.network_init: xavier_uniform
# for dim > 1, uniform for dim == 1 -- biases kept 2-D (1, d) for TPU layout).
# ----------------------------------------------------------------------------
def xavier_uniform(key, shape):
    fan_in, fan_out = shape
    limit = math.sqrt(6.0 / (fan_in + fan_out))
    return jax.random.uniform(key, shape, jnp.float32, -limit, limit)


def init_params(key, *, L, N, F, H, horizon, Tt, Tw):
    LF = L * F
    Dctx = L * (Tt + Tw)
    Dout = horizon * F
    keys = jax.random.split(key, 12)
    return {
        "w_in_m":  xavier_uniform(keys[0], (LF, H)),
        "b_in_m":  jax.random.uniform(keys[1], (1, H), jnp.float32, 0.0, 1.0),
        "w_in_n":  xavier_uniform(keys[2], (LF, H)),
        "b_in_n":  jax.random.uniform(keys[3], (1, H), jnp.float32, 0.0, 1.0),
        "w_ctx":   xavier_uniform(keys[4], (Dctx, H)),
        "b_ctx":   jax.random.uniform(keys[5], (1, H), jnp.float32, 0.0, 1.0),
        "w_g_m":   xavier_uniform(keys[6], (H, H)),
        "w_g_n":   xavier_uniform(keys[7], (H, H)),
        "w_out_m": xavier_uniform(keys[8], (H, Dout)),
        "b_out_m": jax.random.uniform(keys[9], (1, Dout), jnp.float32, 0.0, 1.0),
        "w_out_n": xavier_uniform(keys[10], (H, Dout)),
        "b_out_n": jax.random.uniform(keys[11], (1, Dout), jnp.float32, 0.0, 1.0),
    }


if __name__ == "__main__":
    # small, forward-consistent shapes
    B, L, N, F = 2, 8, 8, 2         # batch, seq_len, num nodes, feats per mode
    H = 32                          # hidden_dim
    horizon = 4                     # prediction horizon
    Tt, Tw = 4, 3                   # time / weather feature widths

    key = jax.random.PRNGKey(0)
    k_xm, k_xn, k_t, k_w, k_adj, k_p = jax.random.split(key, 6)

    x_m = jax.random.normal(k_xm, (B, L, N, F), jnp.float32)
    x_n = jax.random.normal(k_xn, (B, L, N, F), jnp.float32)
    time_x = jax.random.normal(k_t, (B, L, Tt), jnp.float32)
    weather_x = jax.random.normal(k_w, (B, L, Tw), jnp.float32)

    # predefined adjacency, row-normalized
    adj_raw = jnp.abs(jax.random.normal(k_adj, (N, N), jnp.float32)) + jnp.eye(N)
    adj = adj_raw / jnp.sum(adj_raw, axis=-1, keepdims=True)

    params = init_params(k_p, L=L, N=N, F=F, H=H, horizon=horizon, Tt=Tt, Tw=Tw)

    out_m, out_n, i_m2n, i_n2m = causal_mtf_forward(
        x_m, x_n, time_x, weather_x, adj, params, horizon=horizon)
    jax.block_until_ready((out_m, out_n, i_m2n, i_n2m))

    assert out_m.shape == (B, horizon, N, F)
    assert out_n.shape == (B, horizon, N, F)
    assert i_m2n.shape == (B, N, N)
    assert i_n2m.shape == (B, N, N)
    assert bool(jnp.all(jnp.isfinite(out_m))) and bool(jnp.all(jnp.isfinite(out_n)))
    # interaction graphs are row-stochastic (exact softmax reciprocal now)
    assert jnp.allclose(jnp.sum(i_m2n, axis=-1), 1.0, atol=1e-3)
    assert jnp.allclose(jnp.sum(i_n2m, axis=-1), 1.0, atol=1e-3)

    print("KERNEL_OK")
</pallas_src>

<mosaic_0001>
module attributes {stable_mosaic.version = 11 : i64} {
  func.func @causal_mtf_kernel(%arg0: i32, %arg1: memref<32x8x32xbf16, #tpu.memory_space<vmem>>, %arg2: memref<32x1x64xf32, #tpu.memory_space<vmem>>, %arg3: memref<256x256xbf16, #tpu.memory_space<vmem>>, %arg4: memref<32x64xbf16, #tpu.memory_space<vmem>>, %arg5: memref<1x64xf32, #tpu.memory_space<vmem>>, %arg6: memref<64x64xbf16, #tpu.memory_space<vmem>>, %arg7: memref<64x16xbf16, #tpu.memory_space<vmem>>, %arg8: memref<1x16xf32, #tpu.memory_space<vmem>>, %arg9: memref<256x128xf32, #tpu.memory_space<vmem>>) attributes {dimension_semantics = [#tpu.dimension_semantics<parallel>], iteration_bounds = array<i64: 2>, scalar_prefetch = 0 : i64, scratch_operands = 0 : i64, tpu.core_type = #tpu.core_type<tc>, window_params = [{transform_indices = @transform_0, window_bounds = array<i64: 32, 8, 32>}, {transform_indices = @transform_1, window_bounds = array<i64: 32, 1, 64>}, {pipeline_mode = #tpu.pipeline_mode<synchronous>, transform_indices = @transform_2, window_bounds = array<i64: 256, 256>}, {pipeline_mode = #tpu.pipeline_mode<synchronous>, transform_indices = @transform_3, window_bounds = array<i64: 32, 64>}, {pipeline_mode = #tpu.pipeline_mode<synchronous>, transform_indices = @transform_4, window_bounds = array<i64: 1, 64>}, {pipeline_mode = #tpu.pipeline_mode<synchronous>, transform_indices = @transform_5, window_bounds = array<i64: 64, 64>}, {pipeline_mode = #tpu.pipeline_mode<synchronous>, transform_indices = @transform_6, window_bounds = array<i64: 64, 16>}, {pipeline_mode = #tpu.pipeline_mode<synchronous>, transform_indices = @transform_7, window_bounds = array<i64: 1, 16>}, {transform_indices = @transform_8, window_bounds = array<i64: 256, 128>}]} {
    %c0 = arith.constant 0 : index
    %c0_0 = arith.constant 0 : index
    %c0_1 = arith.constant 0 : index
    %0 = vector.load %arg1[%c0, %c0_0, %c0_1] : memref<32x8x32xbf16, #tpu.memory_space<vmem>>, vector<32x8x32xbf16>
    %1 = vector.shape_cast %0 : vector<32x8x32xbf16> to vector<256x32xbf16>
    %c0_2 = arith.constant 0 : index
    %c0_3 = arith.constant 0 : index
    %2 = vector.load %arg4[%c0_2, %c0_3] : memref<32x64xbf16, #tpu.memory_space<vmem>>, vector<32x64xbf16>
    %cst = arith.constant dense<0.000000e+00> : vector<256x64xf32>
    %3 = tpu.matmul %1, %2, %cst {dimension_numbers = #tpu.dot_dimension_numbers<[1], [0], [0], [1], [0, 0, 1, 1], [], []>} : vector<256x32xbf16>, vector<32x64xbf16>, vector<256x64xf32> -> vector<256x64xf32>
    %c0_4 = arith.constant 0 : index
    %c0_5 = arith.constant 0 : index
    %4 = vector.load %arg5[%c0_4, %c0_5] : memref<1x64xf32, #tpu.memory_space<vmem>>, vector<1x64xf32>
    %5 = vector.broadcast %4 : vector<1x64xf32> to vector<256x64xf32>
    %6 = arith.addf %3, %5 : vector<256x64xf32>
    %cst_6 = arith.constant 0.000000e+00 : f32
    %7 = vector.broadcast %cst_6 : f32 to vector<256x64xf32>
    %8 = arith.maximumf %6, %7 : vector<256x64xf32>
    %c0_7 = arith.constant 0 : index
    %c0_8 = arith.constant 0 : index
    %c0_9 = arith.constant 0 : index
    %9 = vector.load %arg2[%c0_7, %c0_8, %c0_9] : memref<32x1x64xf32, #tpu.memory_space<vmem>>, vector<32x1x64xf32>
    %10 = vector.shape_cast %9 : vector<32x1x64xf32> to vector<32x1x64xf32>
    %11 = vector.broadcast %10 : vector<32x1x64xf32> to vector<32x8x64xf32>
    %12 = vector.shape_cast %11 : vector<32x8x64xf32> to vector<256x64xf32>
    %13 = arith.addf %8, %12 : vector<256x64xf32>
    %c0_10 = arith.constant 0 : index
    %c0_11 = arith.constant 0 : index
    %14 = vector.load %arg3[%c0_10, %c0_11] : memref<256x256xbf16, #tpu.memory_space<vmem>>, vector<256x256xbf16>
    %15 = arith.truncf %13 : vector<256x64xf32> to vector<256x64xbf16>
    %cst_12 = arith.constant dense<0.000000e+00> : vector<256x64xf32>
    %16 = tpu.matmul %14, %15, %cst_12 {dimension_numbers = #tpu.dot_dimension_numbers<[1], [0], [0], [1], [0, 0, 1, 1], [], []>} : vector<256x256xbf16>, vector<256x64xbf16>, vector<256x64xf32> -> vector<256x64xf32>
    %17 = arith.truncf %16 : vector<256x64xf32> to vector<256x64xbf16>
    %c0_13 = arith.constant 0 : index
    %c0_14 = arith.constant 0 : index
    %18 = vector.load %arg6[%c0_13, %c0_14] : memref<64x64xbf16, #tpu.memory_space<vmem>>, vector<64x64xbf16>
    %cst_15 = arith.constant dense<0.000000e+00> : vector<256x64xf32>
    %19 = tpu.matmul %17, %18, %cst_15 {dimension_numbers = #tpu.dot_dimension_numbers<[1], [0], [0], [1], [0, 0, 1, 1], [], []>} : vector<256x64xbf16>, vector<64x64xbf16>, vector<256x64xf32> -> vector<256x64xf32>
    %cst_16 = arith.constant 0.000000e+00 : f32
    %20 = vector.broadcast %cst_16 : f32 to vector<256x64xf32>
    %21 = arith.maximumf %19, %20 : vector<256x64xf32>
    %22 = vector.shape_cast %21 : vector<256x64xf32> to vector<32x8x64xf32>
    %23 = vector.extract_strided_slice %22 {offsets = [0, 0, 0], sizes = [32, 8, 32], strides = [1, 1, 1]} : vector<32x8x64xf32> to vector<32x8x32xf32>
    %24 = arith.truncf %23 : vector<32x8x32xf32> to vector<32x8x32xbf16>
    %25 = vector.extract_strided_slice %22 {offsets = [0, 0, 32], sizes = [32, 8, 32], strides = [1, 1, 1]} : vector<32x8x64xf32> to vector<32x8x32xf32>
    %26 = arith.truncf %25 : vector<32x8x32xf32> to vector<32x8x32xbf16>
    "tpu.trace_start"() <{level = 10 : i32, message = "bnh,bmh->bnm"}> : () -> ()
    %cst_17 = arith.constant dense<0.000000e+00> : vector<32x8x8xf32>
    %27 = tpu.matmul %24, %26, %cst_17 {dimension_numbers = #tpu.dot_dimension_numbers<[2], [2], [1], [1], [0, 0, 0, 1, 1, 1], [0], [0]>} : vector<32x8x32xbf16>, vector<32x8x32xbf16>, vector<32x8x8xf32> -> vector<32x8x8xf32>
    "tpu.trace_stop"() : () -> ()
    %cst_18 = arith.constant 0.176776692 : f32
    %28 = vector.broadcast %cst_18 : f32 to vector<32x8x8xf32>
    %29 = arith.mulf %27, %28 : vector<32x8x8xf32>
    "tpu.trace_start"() <{level = 10 : i32, message = "bnh,bmh->bnm"}> : () -> ()
    %cst_19 = arith.constant dense<0.000000e+00> : vector<32x8x8xf32>
    %30 = tpu.matmul %26, %24, %cst_19 {dimension_numbers = #tpu.dot_dimension_numbers<[2], [2], [1], [1], [0, 0, 0, 1, 1, 1], [0], [0]>} : vector<32x8x32xbf16>, vector<32x8x32xbf16>, vector<32x8x8xf32> -> vector<32x8x8xf32>
    "tpu.trace_stop"() : () -> ()
    %cst_20 = arith.constant 0.176776692 : f32
    %31 = vector.broadcast %cst_20 : f32 to vector<32x8x8xf32>
    %32 = arith.mulf %30, %31 : vector<32x8x8xf32>
    %cst_21 = arith.constant dense<0xFF800000> : vector<32x8xf32>
    %33 = vector.multi_reduction <maximumf>, %29, %cst_21 [2] : vector<32x8x8xf32> to vector<32x8xf32>
    %34 = vector.shape_cast %33 : vector<32x8xf32> to vector<32x8x1xf32>
    %35 = vector.broadcast %34 : vector<32x8x1xf32> to vector<32x8x8xf32>
    %36 = arith.subf %29, %35 : vector<32x8x8xf32>
    %37 = math.exp %36 : vector<32x8x8xf32>
    %cst_22 = arith.constant dense<0.000000e+00> : vector<32x8xf32>
    %38 = vector.multi_reduction <add>, %37, %cst_22 [2] : vector<32x8x8xf32> to vector<32x8xf32>
    %39 = vector.shape_cast %38 : vector<32x8xf32> to vector<32x8x1xf32>
    %40 = vector.broadcast %39 : vector<32x8x1xf32> to vector<32x8x8xf32>
    %41 = arith.divf %37, %40 : vector<32x8x8xf32>
    %cst_23 = arith.constant dense<0xFF800000> : vector<32x8xf32>
    %42 = vector.multi_reduction <maximumf>, %32, %cst_23 [2] : vector<32x8x8xf32> to vector<32x8xf32>
    %43 = vector.shape_cast %42 : vector<32x8xf32> to vector<32x8x1xf32>
    %44 = vector.broadcast %43 : vector<32x8x1xf32> to vector<32x8x8xf32>
    %45 = arith.subf %32, %44 : vector<32x8x8xf32>
    %46 = math.exp %45 : vector<32x8x8xf32>
    %cst_24 = arith.constant dense<0.000000e+00> : vector<32x8xf32>
    %47 = vector.multi_reduction <add>, %46, %cst_24 [2] : vector<32x8x8xf32> to vector<32x8xf32>
    %48 = vector.shape_cast %47 : vector<32x8xf32> to vector<32x8x1xf32>
    %49 = vector.broadcast %48 : vector<32x8x1xf32> to vector<32x8x8xf32>
    %50 = arith.divf %46, %49 : vector<32x8x8xf32>
    %51 = arith.truncf %50 : vector<32x8x8xf32> to vector<32x8x8xbf16>
    "tpu.trace_start"() <{level = 10 : i32, message = "bnm,bmh->bnh"}> : () -> ()
    %cst_25 = arith.constant dense<0.000000e+00> : vector<32x8x32xf32>
    %52 = tpu.matmul %51, %26, %cst_25 {dimension_numbers = #tpu.dot_dimension_numbers<[2], [1], [1], [2], [0, 0, 0, 1, 1, 2], [0], [0]>} : vector<32x8x8xbf16>, vector<32x8x32xbf16>, vector<32x8x32xf32> -> vector<32x8x32xf32>
    "tpu.trace_stop"() : () -> ()
    %53 = arith.truncf %41 : vector<32x8x8xf32> to vector<32x8x8xbf16>
    "tpu.trace_start"() <{level = 10 : i32, message = "bnm,bmh->bnh"}> : () -> ()
    %cst_26 = arith.constant dense<0.000000e+00> : vector<32x8x32xf32>
    %54 = tpu.matmul %53, %24, %cst_26 {dimension_numbers = #tpu.dot_dimension_numbers<[2], [1], [1], [2], [0, 0, 0, 1, 1, 2], [0], [0]>} : vector<32x8x8xbf16>, vector<32x8x32xbf16>, vector<32x8x32xf32> -> vector<32x8x32xf32>
    "tpu.trace_stop"() : () -> ()
    %55 = tpu.concatenate %52, %54 in 2 : vector<32x8x32xf32>, vector<32x8x32xf32> -> vector<32x8x64xf32>
    %56 = vector.shape_cast %55 : vector<32x8x64xf32> to vector<256x64xf32>
    %57 = arith.addf %21, %56 : vector<256x64xf32>
    %58 = arith.truncf %57 : vector<256x64xf32> to vector<256x64xbf16>
    %c0_27 = arith.constant 0 : index
    %c0_28 = arith.constant 0 : index
    %59 = vector.load %arg7[%c0_27, %c0_28] : memref<64x16xbf16, #tpu.memory_space<vmem>>, vector<64x16xbf16>
    %cst_29 = arith.constant dense<0.000000e+00> : vector<256x16xf32>
    %60 = tpu.matmul %58, %59, %cst_29 {dimension_numbers = #tpu.dot_dimension_numbers<[1], [0], [0], [1], [0, 0, 1, 1], [], []>} : vector<256x64xbf16>, vector<64x16xbf16>, vector<256x16xf32> -> vector<256x16xf32>
    %c0_30 = arith.constant 0 : index
    %c0_31 = arith.constant 0 : index
    %61 = vector.load %arg8[%c0_30, %c0_31] : memref<1x16xf32, #tpu.memory_space<vmem>>, vector<1x16xf32>
    %62 = vector.broadcast %61 : vector<1x16xf32> to vector<256x16xf32>
    %63 = arith.addf %60, %62 : vector<256x16xf32>
    %c0_32 = arith.constant 0 : index
    %c0_33 = arith.constant 0 : index
    %64 = vector.load %arg9[%c0_32, %c0_33] : memref<256x128xf32, #tpu.memory_space<vmem>>, vector<256x16xf32>
    tpu.vector_store %arg9[%c0_32, %c0_33], %63 {strides = array<i32>} : memref<256x128xf32, #tpu.memory_space<vmem>>, vector<256x16xf32>,
    %65 = vector.shape_cast %41 : vector<32x8x8xf32> to vector<256x8xf32>
    %c0_34 = arith.constant 0 : index
    %c16 = arith.constant 16 : index
    %66 = vector.load %arg9[%c0_34, %c16] : memref<256x128xf32, #tpu.memory_space<vmem>>, vector<256x8xf32>
    tpu.vector_store %arg9[%c0_34, %c16], %65 {strides = array<i32>} : memref<256x128xf32, #tpu.memory_space<vmem>>, vector<256x8xf32>,
    %67 = vector.shape_cast %50 : vector<32x8x8xf32> to vector<256x8xf32>
    %c0_35 = arith.constant 0 : index
    %c24 = arith.constant 24 : index
    %68 = vector.load %arg9[%c0_35, %c24] : memref<256x128xf32, #tpu.memory_space<vmem>>, vector<256x8xf32>
    tpu.vector_store %arg9[%c0_35, %c24], %67 {strides = array<i32>} : memref<256x128xf32, #tpu.memory_space<vmem>>, vector<256x8xf32>,
    %cst_36 = arith.constant 0.000000e+00 : f32
    %69 = vector.broadcast %cst_36 : f32 to vector<256x96xf32>
    %c0_37 = arith.constant 0 : index
    %c32 = arith.constant 32 : index
    %70 = vector.load %arg9[%c0_37, %c32] : memref<256x128xf32, #tpu.memory_space<vmem>>, vector<256x96xf32>
    tpu.vector_store %arg9[%c0_37, %c32], %69 {strides = array<i32>} : memref<256x128xf32, #tpu.memory_space<vmem>>, vector<256x96xf32>,
    return
  }
  func.func @transform_0(%arg0: i32) -> (i32, i32, i32) {
    %c0_i32 = arith.constant 0 : i32
    %c0_i32_0 = arith.constant 0 : i32
    %c0_i32_1 = arith.constant 0 : i32
    return %arg0, %c0_i32, %c0_i32_0 : i32, i32, i32
  }
  func.func @transform_1(%arg0: i32) -> (i32, i32, i32) {
    %c0_i32 = arith.constant 0 : i32
    %c0_i32_0 = arith.constant 0 : i32
    %c0_i32_1 = arith.constant 0 : i32
    return %arg0, %c0_i32, %c0_i32_0 : i32, i32, i32
  }
  func.func @transform_2(%arg0: i32) -> (i32, i32) {
    %c0_i32 = arith.constant 0 : i32
    %c0_i32_0 = arith.constant 0 : i32
    %c0_i32_1 = arith.constant 0 : i32
    return %c0_i32, %c0_i32_0 : i32, i32
  }
  func.func @transform_3(%arg0: i32) -> (i32, i32) {
    %c0_i32 = arith.constant 0 : i32
    %c0_i32_0 = arith.constant 0 : i32
    %c0_i32_1 = arith.constant 0 : i32
    return %c0_i32, %c0_i32_0 : i32, i32
  }
  func.func @transform_4(%arg0: i32) -> (i32, i32) {
    %c0_i32 = arith.constant 0 : i32
    %c0_i32_0 = arith.constant 0 : i32
    %c0_i32_1 = arith.constant 0 : i32
    return %c0_i32, %c0_i32_0 : i32, i32
  }
  func.func @transform_5(%arg0: i32) -> (i32, i32) {
    %c0_i32 = arith.constant 0 : i32
    %c0_i32_0 = arith.constant 0 : i32
    %c0_i32_1 = arith.constant 0 : i32
    return %c0_i32, %c0_i32_0 : i32, i32
  }
  func.func @transform_6(%arg0: i32) -> (i32, i32) {
    %c0_i32 = arith.constant 0 : i32
    %c0_i32_0 = arith.constant 0 : i32
    %c0_i32_1 = arith.constant 0 : i32
    return %c0_i32, %c0_i32_0 : i32, i32
  }
  func.func @transform_7(%arg0: i32) -> (i32, i32) {
    %c0_i32 = arith.constant 0 : i32
    %c0_i32_0 = arith.constant 0 : i32
    %c0_i32_1 = arith.constant 0 : i32
    return %c0_i32, %c0_i32_0 : i32, i32
  }
  func.func @transform_8(%arg0: i32) -> (i32, i32) {
    %c0_i32 = arith.constant 0 : i32
    %c0_i32_0 = arith.constant 0 : i32
    return %arg0, %c0_i32 : i32, i32
  }
}

</mosaic_0001>

<llo_original>
// kernel: causal_mtf_forward.1
$region0: #{causal_mtf_forward.1}
  #allocation0 [shape = 'u32[]', space=smem, size = 0x4, offset = 0x4, fixed_abs, tag = 'smem constant byte address 0x4 - core index']
  #allocation1 [shape = 'u32[144,128]{1,0:T(1,128)}', space=vmem, size = 0x12000, scoped, tag = 'internal scratch']
  %s0 = inlined_call_operand.vmem [shape: bf16[64,8,32], index: 0, kind: input, shape index: {}]
  %s1 = inlined_call_operand.vmem [shape: f32[64,1,64], index: 1, kind: input, shape index: {}]
  %s2 = inlined_call_operand.vmem [shape: bf16[256,256], index: 2, kind: input, shape index: {}]
  %s3 = inlined_call_operand.vmem [shape: bf16[32,64], index: 3, kind: input, shape index: {}]
  %s4 = inlined_call_operand.vmem [shape: f32[1,64], index: 4, kind: input, shape index: {}]
  %s5 = inlined_call_operand.vmem [shape: bf16[64,64], index: 5, kind: input, shape index: {}]
  %s6 = inlined_call_operand.vmem [shape: bf16[64,16], index: 6, kind: input, shape index: {}]
  %s7 = inlined_call_operand.vmem [shape: f32[1,16], index: 7, kind: input, shape index: {}]
  %s8 = inlined_call_operand.vmem [shape: f32[512,128], index: 8, kind: output, shape index: {}]
  %s9 = sld [smem:[#allocation0]]
  $region65: #{causal_mtf_forward.1} parent=0
    _
  %s11 = ssub.s32 1, %s9
  %s12 = scalar_select 0, %s11, %s9
  loop: start=0, step=1, limit=4
  $region2: #{causal_mtf_forward.1} parent=0 // loop_pre_header
    _
  $region3: #{causal_mtf_forward.1} parent=0 // loop_header
    %s14 = sphi 0, %s18
    %p15 = scmp.ge.s32.totalorder %s14, 4
    %s24 = sphi 0, %s26
    %s27 = sphi 0, %s24
    %s28 = sphi 0, %s27
    %s44 = sphi 0, %s28
    %s50 = sphi 0, %s52
    %s53 = sphi 0, %s50
    %s54 = sphi 0, %s53
    %s70 = sphi 0, %s54
    %s74 = sphi 0, %s74
    %s76 = sphi 0, %s74
    %s77 = sphi 0, %s76
    %s91 = sphi 0, %s77
    %s95 = sphi 0, %s95
    %s97 = sphi 0, %s95
    %s98 = sphi 0, %s97
    %s112 = sphi 0, %s98
    %s116 = sphi 0, %s116
    %s118 = sphi 0, %s116
    %s119 = sphi 0, %s118
    %s133 = sphi 0, %s119
    %s137 = sphi 0, %s137
    %s139 = sphi 0, %s137
    %s140 = sphi 0, %s139
    %s154 = sphi 0, %s140
    %s158 = sphi 0, %s158
    %s160 = sphi 0, %s158
    %s161 = sphi 0, %s160
    %s175 = sphi 0, %s161
    %s179 = sphi 0, %s179
    %s181 = sphi 0, %s179
    %s182 = sphi 0, %s181
    %s196 = sphi 0, %s182
    %s202 = sphi 0, %s204
    %s205 = sphi 0, %s202
    %s206 = sphi 0, %s205
    %s222 = sphi 0, %s206
  $region4: #{causal_mtf_forward.1} parent=0 // loop_header_branch
    %17 = sbr.rel (%p15) target = $region8
  $region5: #{causal_mtf_forward.1} parent=0 // loop_body
    %s19 = ssub.s32 %s14, 1
    %s20 = ssub.s32 %s14, 2
    %s21 = sadd.s32 %s14, 1
    %s22 = ssub.s32 %s14, %s21
    %p23 = scmp.eq.s32.totalorder %s22, 0
    %s25 = sadd.s32 %s24, 1
    %s26 = scalar_select %p23, %s24, %s25
    %p29 = pneg %p23
    %p30 = scmp.eq.s32.totalorder %s14, 1
    %p31 = por %p29, %p30
    %p32 = scmp.ne.s32.totalorder %s24, %s27
    %p33 = scmp.eq.s32.totalorder %s14, 0
    %p34 = por %p32, %p33
    %p35 = scmp.ne.s32.totalorder %s24, %s27
    %p36 = scmp.eq.s32.totalorder %s19, 1
    %p37 = por %p35, %p36
    %p38 = scmp.ne.s32.totalorder %s27, %s28
    %p39 = scmp.eq.s32.totalorder %s19, 0
    %p40 = por %p38, %p39
    %p41 = scmp.ne.s32.totalorder %s27, %s28
    %p42 = scmp.eq.s32.totalorder %s20, 1
    %p43 = por %p41, %p42
    %p45 = scmp.ne.s32.totalorder %s28, %s44
    %p46 = scmp.eq.s32.totalorder %s20, 0
    %p47 = por %p45, %p46
    %s48 = ssub.s32 %s14, %s21
    %p49 = scmp.eq.s32.totalorder %s48, 0
    %s51 = sadd.s32 %s50, 1
    %s52 = scalar_select %p49, %s50, %s51
    %p55 = pneg %p49
    %p56 = scmp.eq.s32.totalorder %s14, 1
    %p57 = por %p55, %p56
    %p58 = scmp.ne.s32.totalorder %s50, %s53
    %p59 = scmp.eq.s32.totalorder %s14, 0
    %p60 = por %p58, %p59
    %p61 = scmp.ne.s32.totalorder %s50, %s53
    %p62 = scmp.eq.s32.totalorder %s19, 1
    %p63 = por %p61, %p62
    %p64 = scmp.ne.s32.totalorder %s53, %s54
    %p65 = scmp.eq.s32.totalorder %s19, 0
    %p66 = por %p64, %p65
    %p67 = scmp.ne.s32.totalorder %s53, %s54
    %p68 = scmp.eq.s32.totalorder %s20, 1
    %p69 = por %p67, %p68
    %p71 = scmp.ne.s32.totalorder %s54, %s70
    %p72 = scmp.eq.s32.totalorder %s20, 0
    %p73 = por %p71, %p72
    %s75 = sadd.s32 %s74, 1
    %p78 = scmp.eq.s32.totalorder %s14, 1
    %p79 = scmp.ne.s32.totalorder %s74, %s76
    %p80 = scmp.eq.s32.totalorder %s14, 0
    %p81 = por %p79, %p80
    %p82 = scmp.ne.s32.totalorder %s74, %s76
    %p83 = scmp.eq.s32.totalorder %s19, 1
    %p84 = por %p82, %p83
    %p85 = scmp.ne.s32.totalorder %s76, %s77
    %p86 = scmp.eq.s32.totalorder %s19, 0
    %p87 = por %p85, %p86
    %p88 = scmp.ne.s32.totalorder %s76, %s77
    %p89 = scmp.eq.s32.totalorder %s20, 1
    %p90 = por %p88, %p89
    %p92 = scmp.ne.s32.totalorder %s77, %s91
    %p93 = scmp.eq.s32.totalorder %s20, 0
    %p94 = por %p92, %p93
    %s96 = sadd.s32 %s95, 1
    %p99 = scmp.eq.s32.totalorder %s14, 1
    %p100 = scmp.ne.s32.totalorder %s95, %s97
    %p101 = scmp.eq.s32.totalorder %s14, 0
    %p102 = por %p100, %p101
    %p103 = scmp.ne.s32.totalorder %s95, %s97
    %p104 = scmp.eq.s32.totalorder %s19, 1
    %p105 = por %p103, %p104
    %p106 = scmp.ne.s32.totalorder %s97, %s98
    %p107 = scmp.eq.s32.totalorder %s19, 0
    %p108 = por %p106, %p107
    %p109 = scmp.ne.s32.totalorder %s97, %s98
    %p110 = scmp.eq.s32.totalorder %s20, 1
    %p111 = por %p109, %p110
    %p113 = scmp.ne.s32.totalorder %s98, %s112
    %p114 = scmp.eq.s32.totalorder %s20, 0
    %p115 = por %p113, %p114
    %s117 = sadd.s32 %s116, 1
    %p120 = scmp.eq.s32.totalorder %s14, 1
    %p121 = scmp.ne.s32.totalorder %s116, %s118
    %p122 = scmp.eq.s32.totalorder %s14, 0
    %p123 = por %p121, %p122
    %p124 = scmp.ne.s32.totalorder %s116, %s118
    %p125 = scmp.eq.s32.totalorder %s19, 1
    %p126 = por %p124, %p125
    %p127 = scmp.ne.s32.totalorder %s118, %s119
    %p128 = scmp.eq.s32.totalorder %s19, 0
    %p129 = por %p127, %p128
    %p130 = scmp.ne.s32.totalorder %s118, %s119
    %p131 = scmp.eq.s32.totalorder %s20, 1
    %p132 = por %p130, %p131
    %p134 = scmp.ne.s32.totalorder %s119, %s133
    %p135 = scmp.eq.s32.totalorder %s20, 0
    %p136 = por %p134, %p135
    %s138 = sadd.s32 %s137, 1
    %p141 = scmp.eq.s32.totalorder %s14, 1
    %p142 = scmp.ne.s32.totalorder %s137, %s139
    %p143 = scmp.eq.s32.totalorder %s14, 0
    %p144 = por %p142, %p143
    %p145 = scmp.ne.s32.totalorder %s137, %s139
    %p146 = scmp.eq.s32.totalorder %s19, 1
    %p147 = por %p145, %p146
    %p148 = scmp.ne.s32.totalorder %s139, %s140
    %p149 = scmp.eq.s32.totalorder %s19, 0
    %p150 = por %p148, %p149
    %p151 = scmp.ne.s32.totalorder %s139, %s140
    %p152 = scmp.eq.s32.totalorder %s20, 1
    %p153 = por %p151, %p152
    %p155 = scmp.ne.s32.totalorder %s140, %s154
    %p156 = scmp.eq.s32.totalorder %s20, 0
    %p157 = por %p155, %p156
    %s159 = sadd.s32 %s158, 1
    %p162 = scmp.eq.s32.totalorder %s14, 1
    %p163 = scmp.ne.s32.totalorder %s158, %s160
    %p164 = scmp.eq.s32.totalorder %s14, 0
    %p165 = por %p163, %p164
    %p166 = scmp.ne.s32.totalorder %s158, %s160
    %p167 = scmp.eq.s32.totalorder %s19, 1
    %p168 = por %p166, %p167
    %p169 = scmp.ne.s32.totalorder %s160, %s161
    %p170 = scmp.eq.s32.totalorder %s19, 0
    %p171 = por %p169, %p170
    %p172 = scmp.ne.s32.totalorder %s160, %s161
    %p173 = scmp.eq.s32.totalorder %s20, 1
    %p174 = por %p172, %p173
    %p176 = scmp.ne.s32.totalorder %s161, %s175
    %p177 = scmp.eq.s32.totalorder %s20, 0
    %p178 = por %p176, %p177
    %s180 = sadd.s32 %s179, 1
    %p183 = scmp.eq.s32.totalorder %s14, 1
    %p184 = scmp.ne.s32.totalorder %s179, %s181
    %p185 = scmp.eq.s32.totalorder %s14, 0
    %p186 = por %p184, %p185
    %p187 = scmp.ne.s32.totalorder %s179, %s181
    %p188 = scmp.eq.s32.totalorder %s19, 1
    %p189 = por %p187, %p188
    %p190 = scmp.ne.s32.totalorder %s181, %s182
    %p191 = scmp.eq.s32.totalorder %s19, 0
    %p192 = por %p190, %p191
    %p193 = scmp.ne.s32.totalorder %s181, %s182
    %p194 = scmp.eq.s32.totalorder %s20, 1
    %p195 = por %p193, %p194
    %p197 = scmp.ne.s32.totalorder %s182, %s196
    %p198 = scmp.eq.s32.totalorder %s20, 0
    %p199 = por %p197, %p198
    %s200 = ssub.s32 %s14, %s21
    %p201 = scmp.eq.s32.totalorder %s200, 0
    %s203 = sadd.s32 %s202, 1
    %s204 = scalar_select %p201, %s202, %s203
    %p207 = pneg %p201
    %p208 = scmp.eq.s32.totalorder %s14, 1
    %p209 = por %p207, %p208
    %p210 = scmp.ne.s32.totalorder %s202, %s205
    %p211 = scmp.eq.s32.totalorder %s14, 0
    %p212 = por %p210, %p211
    %p213 = scmp.ne.s32.totalorder %s202, %s205
    %p214 = scmp.eq.s32.totalorder %s19, 1
    %p215 = por %p213, %p214
    %p216 = scmp.ne.s32.totalorder %s205, %s206
    %p217 = scmp.eq.s32.totalorder %s19, 0
    %p218 = por %p216, %p217
    %p219 = scmp.ne.s32.totalorder %s205, %s206
    %p220 = scmp.eq.s32.totalorder %s20, 1
    %p221 = por %p219, %p220
    %p223 = scmp.ne.s32.totalorder %s206, %s222
    %p224 = scmp.eq.s32.totalorder %s20, 0
    %p225 = por %p223, %p224
    %p226 = scmp.le.s32.totalorder 1, %s14
    %p227 = scmp.lt.s32.totalorder %s14, 3
    %p228 = pnand %p226, %p227
    %p229 = pneg %p228
    // Predicated region
    $region9: #{causal_mtf_forward.1} parent=5 // pred_check
      _
    $region10: #{causal_mtf_forward.1} parent=5 // pred_check_branch
      %231 = sbr.rel (%p228) target = $region12
    $region11: #{causal_mtf_forward.1} parent=5 // pred_region
      %s232 = ssub.s32 %s14, 1
      // Predicated region
      $region13: #{causal_mtf_forward.1} parent=11 // pred_check
        %p233 = pneg %p87
      $region14: #{causal_mtf_forward.1} parent=11 // pred_check_branch
        %235 = sbr.rel (%p233) target = $region16
      $region15: #{causal_mtf_forward.1} parent=11 // pred_region
        _
      $region16: #{causal_mtf_forward.1} parent=11 // pred_fallthru
        _
      // Predicated region
      $region17: #{causal_mtf_forward.1} parent=11 // pred_check
        %p236 = pneg %p108
      $region18: #{causal_mtf_forward.1} parent=11 // pred_check_branch
        %238 = sbr.rel (%p236) target = $region20
      $region19: #{causal_mtf_forward.1} parent=11 // pred_region
        _
      $region20: #{causal_mtf_forward.1} parent=11 // pred_fallthru
        _
      // Predicated region
      $region21: #{causal_mtf_forward.1} parent=11 // pred_check
        %p239 = pneg %p129
      $region22: #{causal_mtf_forward.1} parent=11 // pred_check_branch
        %241 = sbr.rel (%p239) target = $region24
      $region23: #{causal_mtf_forward.1} parent=11 // pred_region
        _
      $region24: #{causal_mtf_forward.1} parent=11 // pred_fallthru
        _
      // Predicated region
      $region25: #{causal_mtf_forward.1} parent=11 // pred_check
        %p242 = pneg %p150
      $region26: #{causal_mtf_forward.1} parent=11 // pred_check_branch
        %244 = sbr.rel (%p242) target = $region28
      $region27: #{causal_mtf_forward.1} parent=11 // pred_region
        _
      $region28: #{causal_mtf_forward.1} parent=11 // pred_fallthru
        _
      // Predicated region
      $region29: #{causal_mtf_forward.1} parent=11 // pred_check
        %p245 = pneg %p171
      $region30: #{causal_mtf_forward.1} parent=11 // pred_check_branch
        %247 = sbr.rel (%p245) target = $region32
      $region31: #{causal_mtf_forward.1} parent=11 // pred_region
        _
      $region32: #{causal_mtf_forward.1} parent=11 // pred_fallthru
        _
      // Predicated region
      $region33: #{causal_mtf_forward.1} parent=11 // pred_check
        %p248 = pneg %p192
      $region34: #{causal_mtf_forward.1} parent=11 // pred_check_branch
        %250 = sbr.rel (%p248) target = $region36
      $region35: #{causal_mtf_forward.1} parent=11 // pred_region
        _
      $region36: #{causal_mtf_forward.1} parent=11 // pred_fallthru
        _
    $region12: #{causal_mtf_forward.1} parent=5 // pred_fallthru
      _
    %p251 = scmp.lt.s32.totalorder %s14, 2
    // Predicated region
    $region37: #{causal_mtf_forward.1} parent=5 // pred_check
      %p252 = pneg %p251
    $region38: #{causal_mtf_forward.1} parent=5 // pred_check_branch
      %254 = sbr.rel (%p252) target = $region40
    $region39: #{causal_mtf_forward.1} parent=5 // pred_region
      // Predicated region
      $region41: #{causal_mtf_forward.1} parent=39 // pred_check
        %p255 = pneg %p34
      $region42: #{causal_mtf_forward.1} parent=39 // pred_check_branch
        %257 = sbr.rel (%p255) target = $region44
      $region43: #{causal_mtf_forward.1} parent=39 // pred_region
        %s258 = smul.u32 32, %s14
        %p259 = scmp.lt.s32.totalorder %s258, 63
        %s260 = scalar_select %p259, %s258, 63
        %s261 = smul.addr %s260, 4
        %s262 = scalar_lea.vmem %s0, %s261
        %s263 = smul.u32 32, %s14
      $region44: #{causal_mtf_forward.1} parent=39 // pred_fallthru
        _
      // Predicated region
      $region45: #{causal_mtf_forward.1} parent=39 // pred_check
        %p264 = pneg %p60
      $region46: #{causal_mtf_forward.1} parent=39 // pred_check_branch
        %266 = sbr.rel (%p264) target = $region48
      $region47: #{causal_mtf_forward.1} parent=39 // pred_region
        %s267 = smul.u32 32, %s14
        %p268 = scmp.lt.s32.totalorder %s267, 63
        %s269 = scalar_select %p268, %s267, 63
        %s270 = scalar_lea.vmem %s1, %s269
        %s271 = smul.u32 32, %s14
      $region48: #{causal_mtf_forward.1} parent=39 // pred_fallthru
        _
    $region40: #{causal_mtf_forward.1} parent=5 // pred_fallthru
      _
    %p272 = scmp.le.s32.totalorder 1, %s14
    %p273 = scmp.lt.s32.totalorder %s14, 3
    %p274 = pnand %p272, %p273
    %p275 = pneg %p274
    // Predicated region
    $region49: #{causal_mtf_forward.1} parent=5 // pred_check
      _
    $region50: #{causal_mtf_forward.1} parent=5 // pred_check_branch
      %277 = sbr.rel (%p274) target = $region52
    $region51: #{causal_mtf_forward.1} parent=5 // pred_region
      %s278 = ssub.s32 %s14, 1
      %s279 = smul.u32 32, %s19
      %p280 = scmp.lt.s32.totalorder %s279, 63
      %s281 = scalar_select %p280, %s279, 63
      %s282 = smul.addr %s281, 4
      %s283 = scalar_lea.vmem %s0, %s282
      %p284 = pneg %p40
      %p285 = pneg %p37
      %s286 = smul.u32 32, %s19
      %p287 = scmp.lt.s32.totalorder %s286, 63
      %s288 = scalar_select %p287, %s286, 63
      %s289 = scalar_lea.vmem %s1, %s288
      %p290 = pneg %p66
      %p291 = pneg %p63
      %p292 = pneg %p87
      %p293 = pneg %p84
      %p294 = pneg %p108
      %p295 = pneg %p105
      %p296 = pneg %p129
      %p297 = pneg %p126
      %p298 = pneg %p150
      %p299 = pneg %p147
      %p300 = pneg %p171
      %p301 = pneg %p168
      %p302 = pneg %p192
      %p303 = pneg %p189
      %p304 = pneg %p218
      %p305 = pneg %p215
      %s306 = smul.u32 32, %s19
      %p307 = scmp.lt.s32.totalorder %s306, 63
      %s308 = scalar_select %p307, %s306, 63
      %s309 = smul.addr %s308, 8
      %s310 = scalar_lea.vmem %s8, %s309
      %s311 = smul.u32 32, %s19
      %p312 = scmp.lt.s32.totalorder %s311, 63
      %s313 = scalar_select %p312, %s311, 63
      %s314 = smul.addr %s313, 4
      %s315 = scalar_lea.vmem %s0, %s314
      %s316 = smul.u32 32, %s19
      %s317 = smul.u32 32, %s19
      %p318 = scmp.lt.s32.totalorder %s317, 63
      %s319 = scalar_select %p318, %s317, 63
      %s320 = scalar_lea.vmem %s1, %s319
      %s321 = smul.u32 32, %s19
      %s322 = smul.u32 32, %s19
      %p323 = scmp.lt.s32.totalorder %s322, 63
      %s324 = scalar_select %p323, %s322, 63
      %s325 = smul.addr %s324, 8
      %s326 = scalar_lea.vmem %s8, %s325
      %s327 = smul.u32 32, %s19
      %v329 = vld [vmem:[%s315] sm:$0xf]
      %v330 = vld [vmem:[%s315 + $0x4] sm:$0xf]
      %v331 = vld [vmem:[%s315 + $0x8] sm:$0xf]
      %v332 = vld [vmem:[%s315 + $0xc] sm:$0xf]
      %v333 = vld [vmem:[%s315 + $0x10] sm:$0xf]
      %v334 = vld [vmem:[%s315 + $0x14] sm:$0xf]
      %v335 = vld [vmem:[%s315 + $0x18] sm:$0xf]
      %v336 = vld [vmem:[%s315 + $0x1c] sm:$0xf]
      %v337 = vld [vmem:[%s315 + $0x20] sm:$0xf]
      %v338 = vld [vmem:[%s315 + $0x24] sm:$0xf]
      %v339 = vld [vmem:[%s315 + $0x28] sm:$0xf]
      %v340 = vld [vmem:[%s315 + $0x2c] sm:$0xf]
      %v341 = vld [vmem:[%s315 + $0x30] sm:$0xf]
      %v342 = vld [vmem:[%s315 + $0x34] sm:$0xf]
      %v343 = vld [vmem:[%s315 + $0x38] sm:$0xf]
      %v344 = vld [vmem:[%s315 + $0x3c] sm:$0xf]
      %v345 = vld [vmem:[%s315 + $0x40] sm:$0xf]
      %v346 = vld [vmem:[%s315 + $0x44] sm:$0xf]
      %v347 = vld [vmem:[%s315 + $0x48] sm:$0xf]
      %v348 = vld [vmem:[%s315 + $0x4c] sm:$0xf]
      %v349 = vld [vmem:[%s315 + $0x50] sm:$0xf]
      %v350 = vld [vmem:[%s315 + $0x54] sm:$0xf]
      %v351 = vld [vmem:[%s315 + $0x58] sm:$0xf]
      %v352 = vld [vmem:[%s315 + $0x5c] sm:$0xf]
      %v353 = vld [vmem:[%s315 + $0x60] sm:$0xf]
      %v354 = vld [vmem:[%s315 + $0x64] sm:$0xf]
      %v355 = vld [vmem:[%s315 + $0x68] sm:$0xf]
      %v356 = vld [vmem:[%s315 + $0x6c] sm:$0xf]
      %v357 = vld [vmem:[%s315 + $0x70] sm:$0xf]
      %v358 = vld [vmem:[%s315 + $0x74] sm:$0xf]
      %v359 = vld [vmem:[%s315 + $0x78] sm:$0xf]
      %v360 = vld [vmem:[%s315 + $0x7c] sm:$0xf]
      %v361 = vld [vmem:[%s3] sm:$0xf]
      %v362 = vld [vmem:[%s3 + $0x4] sm:$0xf]
      %v363 = vld [vmem:[%s3 + $0x8] sm:$0xf]
      %v364 = vld [vmem:[%s3 + $0xc] sm:$0xf]
      %v365 = vld [vmem:[%s4] sm:$0x1]
      %v367 = vlaneseq
      %v368 = vshrl.u32 %v367, 7
      %v369 = vsub.s32 0, %v368
      %v370 = vrot.slane %v365, %v369
      %v404 = vunpack.c.l.b16 %v329
      %v405 = vunpack.c.l.b16 %v330
      %v406 = vunpack.c.l.b16 %v331
      %v407 = vunpack.c.l.b16 %v332
      %v408 = vunpack.c.l.b16 %v333
      %v409 = vunpack.c.l.b16 %v334
      %v410 = vunpack.c.l.b16 %v335
      %v411 = vunpack.c.l.b16 %v336
      %v412 = vunpack.c.l.b16 %v337
      %v413 = vunpack.c.l.b16 %v338
      %v414 = vunpack.c.l.b16 %v339
      %v415 = vunpack.c.l.b16 %v340
      %v416 = vunpack.c.l.b16 %v341
      %v417 = vunpack.c.l.b16 %v342
      %v418 = vunpack.c.l.b16 %v343
      %v419 = vunpack.c.l.b16 %v344
      %v420 = vunpack.c.l.b16 %v345
      %v421 = vunpack.c.l.b16 %v346
      %v422 = vunpack.c.l.b16 %v347
      %v423 = vunpack.c.l.b16 %v348
      %v424 = vunpack.c.l.b16 %v349
      %v425 = vunpack.c.l.b16 %v350
      %v426 = vunpack.c.l.b16 %v351
      %v427 = vunpack.c.l.b16 %v352
      %v428 = vunpack.c.l.b16 %v353
      %v429 = vunpack.c.l.b16 %v354
      %v430 = vunpack.c.l.b16 %v355
      %v431 = vunpack.c.l.b16 %v356
      %v432 = vunpack.c.l.b16 %v357
      %v433 = vunpack.c.l.b16 %v358
      %v434 = vunpack.c.l.b16 %v359
      %v435 = vunpack.c.l.b16 %v360
      %v436 = vpack.c.b16 %v405, %v404
      %v437 = vpack.c.b16 %v407, %v406
      %v438 = vpack.c.b16 %v409, %v408
      %v439 = vpack.c.b16 %v411, %v410
      %v440 = vpack.c.b16 %v413, %v412
      %v441 = vpack.c.b16 %v415, %v414
      %v442 = vpack.c.b16 %v417, %v416
      %v443 = vpack.c.b16 %v419, %v418
      %v444 = vpack.c.b16 %v421, %v420
      %v445 = vpack.c.b16 %v423, %v422
      %v446 = vpack.c.b16 %v425, %v424
      %v447 = vpack.c.b16 %v427, %v426
      %v448 = vpack.c.b16 %v429, %v428
      %v449 = vpack.c.b16 %v431, %v430
      %v450 = vpack.c.b16 %v433, %v432
      %v451 = vpack.c.b16 %v435, %v434
      %v456 = vunpack.c.l.b16 %v361
      %v457 = vunpack.c.l.b16 %v362
      %v458 = vunpack.c.l.b16 %v363
      %v459 = vunpack.c.l.b16 %v364
      %v460 = vpack.c.b16 %v457, %v456
      %v461 = vpack.c.b16 %v459, %v458
      %vm464 = vcmask 261120
      %v466 = vsel %vm464, %v436, 0
      %v469 = vsel %vm464, %v437, 0
      %v472 = vsel %vm464, %v438, 0
      %v475 = vsel %vm464, %v439, 0
      %v478 = vsel %vm464, %v440, 0
      %v481 = vsel %vm464, %v441, 0
      %v484 = vsel %vm464, %v442, 0
      %v487 = vsel %vm464, %v443, 0
      %v490 = vsel %vm464, %v444, 0
      %v493 = vsel %vm464, %v445, 0
      %v496 = vsel %vm464, %v446, 0
      %v499 = vsel %vm464, %v447, 0
      %v502 = vsel %vm464, %v448, 0
      %v505 = vsel %vm464, %v449, 0
      %v508 = vsel %vm464, %v450, 0
      %v511 = vsel %vm464, %v451, 0
      %513 = vmatprep.subr.bf16.mxu0 0
      %514 = vmatpush1.bf16.msra.mxu0 %v460
      %515 = vmatprep.subr.bf16.mxu0 0
      %516 = vmatpush1.bf16.msra.mxu0 %v461
      %517 = vmatprep.subr.bf16.mxu0 0
      %518 = vmatpush1.bf16.msra.mxu0 0
      %519 = vmatprep.subr.bf16.mxu0 0
      %520 = vmatpush1.bf16.msra.mxu0 0
      %521 = vmatprep.subr.bf16.mxu0 0
      %522 = vmatpush1.bf16.msra.mxu0 0
      %523 = vmatprep.subr.bf16.mxu0 0
      %524 = vmatpush1.bf16.msra.mxu0 0
      %525 = vmatprep.subr.bf16.mxu0 0
      %526 = vmatpush1.bf16.msra.mxu0 0
      %527 = vmatprep.subr.bf16.mxu0 0
      %528 = vmatpush1.bf16.msra.mxu0 0
      %529 = vmatprep.subr.bf16.mxu0 0
      %530 = vmatpush1.bf16.msra.mxu0 0
      %531 = vmatprep.subr.bf16.mxu0 0
      %532 = vmatpush1.bf16.msra.mxu0 0
      %533 = vmatprep.subr.bf16.mxu0 0
      %534 = vmatpush1.bf16.msra.mxu0 0
      %535 = vmatprep.subr.bf16.mxu0 0
      %536 = vmatpush1.bf16.msra.mxu0 0
      %537 = vmatprep.subr.bf16.mxu0 0
      %538 = vmatpush1.bf16.msra.mxu0 0
      %539 = vmatprep.subr.bf16.mxu0 0
      %540 = vmatpush1.bf16.msra.mxu0 0
      %541 = vmatprep.subr.bf16.mxu0 0
      %542 = vmatpush1.bf16.msra.mxu0 0
      %543 = vmatprep.subr.bf16.mxu0 0
      %544 = vmatpush1.bf16.msra.mxu0 0
      %545 = vmatprep.mubr.bf16.mxu0 0
      %546 = vmatmul.mubr.bf16.gmra.mrb[0].mxu0 %v466
      %v547 = vpop.f32.mrb[0].mxu0
      %v548 = vadd.f32 %v370, %v547
      %v549 = vpop.f32.mrb[0].mxu0
      %v550 = vpop.f32.mrb[0].mxu0
      %v551 = vadd.f32 %v370, %v550
      %v552 = vpop.f32.mrb[0].mxu0
      %553 = vmatprep.mubr.bf16.mxu0 0
      %554 = vmatmul.mubr.bf16.gmra.mrb[0].mxu0 %v469
      %v555 = vpop.f32.mrb[0].mxu0
      %v556 = vadd.f32 %v370, %v555
      %v557 = vpop.f32.mrb[0].mxu0
      %v558 = vpop.f32.mrb[0].mxu0
      %v559 = vadd.f32 %v370, %v558
      %v560 = vpop.f32.mrb[0].mxu0
      %561 = vmatprep.mubr.bf16.mxu0 0
      %562 = vmatmul.mubr.bf16.gmra.mrb[0].mxu0 %v472
      %v563 = vpop.f32.mrb[0].mxu0
      %v564 = vadd.f32 %v370, %v563
      %v565 = vpop.f32.mrb[0].mxu0
      %v566 = vpop.f32.mrb[0].mxu0
      %v567 = vadd.f32 %v370, %v566
      %v568 = vpop.f32.mrb[0].mxu0
      %569 = vmatprep.mubr.bf16.mxu0 0
      %570 = vmatmul.mubr.bf16.gmra.mrb[0].mxu0 %v475
      %v571 = vpop.f32.mrb[0].mxu0
      %v572 = vadd.f32 %v370, %v571
      %v573 = vpop.f32.mrb[0].mxu0
      %v574 = vpop.f32.mrb[0].mxu0
      %v575 = vadd.f32 %v370, %v574
      %v576 = vpop.f32.mrb[0].mxu0
      %577 = vmatprep.mubr.bf16.mxu0 0
      %578 = vmatmul.mubr.bf16.gmra.mrb[0].mxu0 %v478
      %v579 = vpop.f32.mrb[0].mxu0
      %v580 = vadd.f32 %v370, %v579
      %v581 = vpop.f32.mrb[0].mxu0
      %v582 = vpop.f32.mrb[0].mxu0
      %v583 = vadd.f32 %v370, %v582
      %v584 = vpop.f32.mrb[0].mxu0
      %585 = vmatprep.mubr.bf16.mxu0 0
      %586 = vmatmul.mubr.bf16.gmra.mrb[0].mxu0 %v481
      %v587 = vpop.f32.mrb[0].mxu0
      %v588 = vadd.f32 %v370, %v587
      %v589 = vpop.f32.mrb[0].mxu0
      %v590 = vpop.f32.mrb[0].mxu0
      %v591 = vadd.f32 %v370, %v590
      %v592 = vpop.f32.mrb[0].mxu0
      %593 = vmatprep.mubr.bf16.mxu0 0
      %594 = vmatmul.mubr.bf16.gmra.mrb[0].mxu0 %v484
      %v595 = vpop.f32.mrb[0].mxu0
      %v596 = vadd.f32 %v370, %v595
      %v597 = vpop.f32.mrb[0].mxu0
      %v598 = vpop.f32.mrb[0].mxu0
      %v599 = vadd.f32 %v370, %v598
      %v600 = vpop.f32.mrb[0].mxu0
      %601 = vmatprep.mubr.bf16.mxu0 0
      %602 = vmatmul.mubr.bf16.gmra.mrb[0].mxu0 %v487
      %v603 = vpop.f32.mrb[0].mxu0
      %v604 = vadd.f32 %v370, %v603
      %v605 = vpop.f32.mrb[0].mxu0
      %v606 = vpop.f32.mrb[0].mxu0
      %v607 = vadd.f32 %v370, %v606
      %v608 = vpop.f32.mrb[0].mxu0
      %609 = vmatprep.mubr.bf16.mxu0 0
      %610 = vmatmul.mubr.bf16.gmra.mrb[0].mxu0 %v490
      %v611 = vpop.f32.mrb[0].mxu0
      %v612 = vadd.f32 %v370, %v611
      %v613 = vpop.f32.mrb[0].mxu0
      %v614 = vpop.f32.mrb[0].mxu0
      %v615 = vadd.f32 %v370, %v614
      %v616 = vpop.f32.mrb[0].mxu0
      %617 = vmatprep.mubr.bf16.mxu0 0
      %618 = vmatmul.mubr.bf16.gmra.mrb[0].mxu0 %v493
      %v619 = vpop.f32.mrb[0].mxu0
      %v620 = vadd.f32 %v370, %v619
      %v621 = vpop.f32.mrb[0].mxu0
      %v622 = vpop.f32.mrb[0].mxu0
      %v623 = vadd.f32 %v370, %v622
      %v624 = vpop.f32.mrb[0].mxu0
      %625 = vmatprep.mubr.bf16.mxu0 0
      %626 = vmatmul.mubr.bf16.gmra.mrb[0].mxu0 %v496
      %v627 = vpop.f32.mrb[0].mxu0
      %v628 = vadd.f32 %v370, %v627
      %v629 = vpop.f32.mrb[0].mxu0
      %v630 = vpop.f32.mrb[0].mxu0
      %v631 = vadd.f32 %v370, %v630
      %v632 = vpop.f32.mrb[0].mxu0
      %633 = vmatprep.mubr.bf16.mxu0 0
      %634 = vmatmul.mubr.bf16.gmra.mrb[0].mxu0 %v499
      %v635 = vpop.f32.mrb[0].mxu0
      %v636 = vadd.f32 %v370, %v635
      %v637 = vpop.f32.mrb[0].mxu0
      %v638 = vpop.f32.mrb[0].mxu0
      %v639 = vadd.f32 %v370, %v638
      %v640 = vpop.f32.mrb[0].mxu0
      %641 = vmatprep.mubr.bf16.mxu0 0
      %642 = vmatmul.mubr.bf16.gmra.mrb[0].mxu0 %v502
      %v643 = vpop.f32.mrb[0].mxu0
      %v644 = vadd.f32 %v370, %v643
      %v645 = vpop.f32.mrb[0].mxu0
      %v646 = vpop.f32.mrb[0].mxu0
      %v647 = vadd.f32 %v370, %v646
      %v648 = vpop.f32.mrb[0].mxu0
      %649 = vmatprep.mubr.bf16.mxu0 0
      %650 = vmatmul.mubr.bf16.gmra.mrb[0].mxu0 %v505
      %v651 = vpop.f32.mrb[0].mxu0
      %v652 = vadd.f32 %v370, %v651
      %v653 = vpop.f32.mrb[0].mxu0
      %v654 = vpop.f32.mrb[0].mxu0
      %v655 = vadd.f32 %v370, %v654
      %v656 = vpop.f32.mrb[0].mxu0
      %657 = vmatprep.mubr.bf16.mxu0 0
      %658 = vmatmul.mubr.bf16.gmra.mrb[0].mxu0 %v508
      %v659 = vpop.f32.mrb[0].mxu0
      %v660 = vadd.f32 %v370, %v659
      %v661 = vpop.f32.mrb[0].mxu0
      %v662 = vpop.f32.mrb[0].mxu0
      %v663 = vadd.f32 %v370, %v662
      %v664 = vpop.f32.mrb[0].mxu0
      %665 = vmatprep.mubr.bf16.mxu0 0
      %666 = vmatmul.mubr.bf16.gmra.mrb[0].mxu0 %v511
      %v667 = vpop.f32.mrb[0].mxu0
      %v668 = vadd.f32 %v370, %v667
      %v669 = vpop.f32.mrb[0].mxu0
      %v670 = vpop.f32.mrb[0].mxu0
      %v671 = vadd.f32 %v370, %v670
      %v672 = vpop.f32.mrb[0].mxu0
      %673 = vdwg.mxu0
      %v674 = vmax.f32 %v548, 0.0
      %v675 = vmax.f32 %v551, 0.0
      %v676 = vmax.f32 %v556, 0.0
      %v677 = vmax.f32 %v559, 0.0
      %v678 = vmax.f32 %v564, 0.0
      %v679 = vmax.f32 %v567, 0.0
      %v680 = vmax.f32 %v572, 0.0
      %v681 = vmax.f32 %v575, 0.0
      %v682 = vmax.f32 %v580, 0.0
      %v683 = vmax.f32 %v583, 0.0
      %v684 = vmax.f32 %v588, 0.0
      %v685 = vmax.f32 %v591, 0.0
      %v686 = vmax.f32 %v596, 0.0
      %v687 = vmax.f32 %v599, 0.0
      %v688 = vmax.f32 %v604, 0.0
      %v689 = vmax.f32 %v607, 0.0
      %v690 = vmax.f32 %v612, 0.0
      %v691 = vmax.f32 %v615, 0.0
      %v692 = vmax.f32 %v620, 0.0
      %v693 = vmax.f32 %v623, 0.0
      %v694 = vmax.f32 %v628, 0.0
      %v695 = vmax.f32 %v631, 0.0
      %v696 = vmax.f32 %v636, 0.0
      %v697 = vmax.f32 %v639, 0.0
      %v698 = vmax.f32 %v644, 0.0
      %v699 = vmax.f32 %v647, 0.0
      %v700 = vmax.f32 %v652, 0.0
      %v701 = vmax.f32 %v655, 0.0
      %v702 = vmax.f32 %v660, 0.0
      %v703 = vmax.f32 %v663, 0.0
      %v704 = vmax.f32 %v668, 0.0
      %v705 = vmax.f32 %v671, 0.0
      %v706 = vld [vmem:[%s320] sm:$0x1]
      %v707 = vld [vmem:[%s320 + $0x1] sm:$0x1]
      %v708 = vld [vmem:[%s320 + $0x2] sm:$0x1]
      %v709 = vld [vmem:[%s320 + $0x3] sm:$0x1]
      %v710 = vld [vmem:[%s320 + $0x4] sm:$0x1]
      %v711 = vld [vmem:[%s320 + $0x5] sm:$0x1]
      %v712 = vld [vmem:[%s320 + $0x6] sm:$0x1]
      %v713 = vld [vmem:[%s320 + $0x7] sm:$0x1]
      %v714 = vld [vmem:[%s320 + $0x8] sm:$0x1]
      %v715 = vld [vmem:[%s320 + $0x9] sm:$0x1]
      %v716 = vld [vmem:[%s320 + $0xa] sm:$0x1]
      %v717 = vld [vmem:[%s320 + $0xb] sm:$0x1]
      %v718 = vld [vmem:[%s320 + $0xc] sm:$0x1]
      %v719 = vld [vmem:[%s320 + $0xd] sm:$0x1]
      %v720 = vld [vmem:[%s320 + $0xe] sm:$0x1]
      %v721 = vld [vmem:[%s320 + $0xf] sm:$0x1]
      %v722 = vld [vmem:[%s320 + $0x10] sm:$0x1]
      %v723 = vld [vmem:[%s320 + $0x11] sm:$0x1]
      %v724 = vld [vmem:[%s320 + $0x12] sm:$0x1]
      %v725 = vld [vmem:[%s320 + $0x13] sm:$0x1]
      %v726 = vld [vmem:[%s320 + $0x14] sm:$0x1]
      %v727 = vld [vmem:[%s320 + $0x15] sm:$0x1]
      %v728 = vld [vmem:[%s320 + $0x16] sm:$0x1]
      %v729 = vld [vmem:[%s320 + $0x17] sm:$0x1]
      %v730 = vld [vmem:[%s320 + $0x18] sm:$0x1]
      %v731 = vld [vmem:[%s320 + $0x19] sm:$0x1]
      %v732 = vld [vmem:[%s320 + $0x1a] sm:$0x1]
      %v733 = vld [vmem:[%s320 + $0x1b] sm:$0x1]
      %v734 = vld [vmem:[%s320 + $0x1c] sm:$0x1]
      %v735 = vld [vmem:[%s320 + $0x1d] sm:$0x1]
      %v736 = vld [vmem:[%s320 + $0x1e] sm:$0x1]
      %v737 = vld [vmem:[%s320 + $0x1f] sm:$0x1]
      %v770 = vlaneseq
      %v771 = vshrl.u32 %v770, 7
      %v772 = vsub.s32 0, %v771
      %v773 = vrot.slane %v706, %v772
      %v774 = vlaneseq
      %v775 = vshrl.u32 %v774, 7
      %v776 = vsub.s32 0, %v775
      %v777 = vrot.slane %v707, %v776
      %v778 = vlaneseq
      %v779 = vshrl.u32 %v778, 7
      %v780 = vsub.s32 0, %v779
      %v781 = vrot.slane %v708, %v780
      %v782 = vlaneseq
      %v783 = vshrl.u32 %v782, 7
      %v784 = vsub.s32 0, %v783
      %v785 = vrot.slane %v709, %v784
      %v786 = vlaneseq
      %v787 = vshrl.u32 %v786, 7
      %v788 = vsub.s32 0, %v787
      %v789 = vrot.slane %v710, %v788
      %v790 = vlaneseq
      %v791 = vshrl.u32 %v790, 7
      %v792 = vsub.s32 0, %v791
      %v793 = vrot.slane %v711, %v792
      %v794 = vlaneseq
      %v795 = vshrl.u32 %v794, 7
      %v796 = vsub.s32 0, %v795
      %v797 = vrot.slane %v712, %v796
      %v798 = vlaneseq
      %v799 = vshrl.u32 %v798, 7
      %v800 = vsub.s32 0, %v799
      %v801 = vrot.slane %v713, %v800
      %v802 = vlaneseq
      %v803 = vshrl.u32 %v802, 7
      %v804 = vsub.s32 0, %v803
      %v805 = vrot.slane %v714, %v804
      %v806 = vlaneseq
      %v807 = vshrl.u32 %v806, 7
      %v808 = vsub.s32 0, %v807
      %v809 = vrot.slane %v715, %v808
      %v810 = vlaneseq
      %v811 = vshrl.u32 %v810, 7
      %v812 = vsub.s32 0, %v811
      %v813 = vrot.slane %v716, %v812
      %v814 = vlaneseq
      %v815 = vshrl.u32 %v814, 7
      %v816 = vsub.s32 0, %v815
      %v817 = vrot.slane %v717, %v816
      %v818 = vlaneseq
      %v819 = vshrl.u32 %v818, 7
      %v820 = vsub.s32 0, %v819
      %v821 = vrot.slane %v718, %v820
      %v822 = vlaneseq
      %v823 = vshrl.u32 %v822, 7
      %v824 = vsub.s32 0, %v823
      %v825 = vrot.slane %v719, %v824
      %v826 = vlaneseq
      %v827 = vshrl.u32 %v826, 7
      %v828 = vsub.s32 0, %v827
      %v829 = vrot.slane %v720, %v828
      %v830 = vlaneseq
      %v831 = vshrl.u32 %v830, 7
      %v832 = vsub.s32 0, %v831
      %v833 = vrot.slane %v721, %v832
      %v834 = vlaneseq
      %v835 = vshrl.u32 %v834, 7
      %v836 = vsub.s32 0, %v835
      %v837 = vrot.slane %v722, %v836
      %v838 = vlaneseq
      %v839 = vshrl.u32 %v838, 7
      %v840 = vsub.s32 0, %v839
      %v841 = vrot.slane %v723, %v840
      %v842 = vlaneseq
      %v843 = vshrl.u32 %v842, 7
      %v844 = vsub.s32 0, %v843
      %v845 = vrot.slane %v724, %v844
      %v846 = vlaneseq
      %v847 = vshrl.u32 %v846, 7
      %v848 = vsub.s32 0, %v847
      %v849 = vrot.slane %v725, %v848
      %v850 = vlaneseq
      %v851 = vshrl.u32 %v850, 7
      %v852 = vsub.s32 0, %v851
      %v853 = vrot.slane %v726, %v852
      %v854 = vlaneseq
      %v855 = vshrl.u32 %v854, 7
      %v856 = vsub.s32 0, %v855
      %v857 = vrot.slane %v727, %v856
      %v858 = vlaneseq
      %v859 = vshrl.u32 %v858, 7
      %v860 = vsub.s32 0, %v859
      %v861 = vrot.slane %v728, %v860
      %v862 = vlaneseq
      %v863 = vshrl.u32 %v862, 7
      %v864 = vsub.s32 0, %v863
      %v865 = vrot.slane %v729, %v864
      %v866 = vlaneseq
      %v867 = vshrl.u32 %v866, 7
      %v868 = vsub.s32 0, %v867
      %v869 = vrot.slane %v730, %v868
      %v870 = vlaneseq
      %v871 = vshrl.u32 %v870, 7
      %v872 = vsub.s32 0, %v871
      %v873 = vrot.slane %v731, %v872
      %v874 = vlaneseq
      %v875 = vshrl.u32 %v874, 7
      %v876 = vsub.s32 0, %v875
      %v877 = vrot.slane %v732, %v876
      %v878 = vlaneseq
      %v879 = vshrl.u32 %v878, 7
      %v880 = vsub.s32 0, %v879
      %v881 = vrot.slane %v733, %v880
      %v882 = vlaneseq
      %v883 = vshrl.u32 %v882, 7
      %v884 = vsub.s32 0, %v883
      %v885 = vrot.slane %v734, %v884
      %v886 = vlaneseq
      %v887 = vshrl.u32 %v886, 7
      %v888 = vsub.s32 0, %v887
      %v889 = vrot.slane %v735, %v888
      %v890 = vlaneseq
      %v891 = vshrl.u32 %v890, 7
      %v892 = vsub.s32 0, %v891
      %v893 = vrot.slane %v736, %v892
      %v894 = vlaneseq
      %v895 = vshrl.u32 %v894, 7
      %v896 = vsub.s32 0, %v895
      %v897 = vrot.slane %v737, %v896
      %v930 = vadd.f32 %v674, %v773
      %v931 = vadd.f32 %v675, %v777
      %v932 = vadd.f32 %v676, %v781
      %v933 = vadd.f32 %v677, %v785
      %v934 = vadd.f32 %v678, %v789
      %v935 = vadd.f32 %v679, %v793
      %v936 = vadd.f32 %v680, %v797
      %v937 = vadd.f32 %v681, %v801
      %v938 = vadd.f32 %v682, %v805
      %v939 = vadd.f32 %v683, %v809
      %v940 = vadd.f32 %v684, %v813
      %v941 = vadd.f32 %v685, %v817
      %v942 = vadd.f32 %v686, %v821
      %v943 = vadd.f32 %v687, %v825
      %v944 = vadd.f32 %v688, %v829
      %v945 = vadd.f32 %v689, %v833
      %v946 = vadd.f32 %v690, %v837
      %v947 = vadd.f32 %v691, %v841
      %v948 = vadd.f32 %v692, %v845
      %v949 = vadd.f32 %v693, %v849
      %v950 = vadd.f32 %v694, %v853
      %v951 = vadd.f32 %v695, %v857
      %v952 = vadd.f32 %v696, %v861
      %v953 = vadd.f32 %v697, %v865
      %v954 = vadd.f32 %v698, %v869
      %v955 = vadd.f32 %v699, %v873
      %v956 = vadd.f32 %v700, %v877
      %v957 = vadd.f32 %v701, %v881
      %v958 = vadd.f32 %v702, %v885
      %v959 = vadd.f32 %v703, %v889
      %v960 = vadd.f32 %v704, %v893
      %v961 = vadd.f32 %v705, %v897
      %v962 = vld [vmem:[%s2] sm:$0xff]
      %v963 = vld [vmem:[%s2 + $0x8] sm:$0xff]
      %v964 = vld [vmem:[%s2 + $0x10] sm:$0xff]
      %v965 = vld [vmem:[%s2 + $0x18] sm:$0xff]
      %v966 = vld [vmem:[%s2 + $0x20] sm:$0xff]
      %v967 = vld [vmem:[%s2 + $0x28] sm:$0xff]
      %v968 = vld [vmem:[%s2 + $0x30] sm:$0xff]
      %v969 = vld [vmem:[%s2 + $0x38] sm:$0xff]
      %v970 = vld [vmem:[%s2 + $0x40] sm:$0xff]
      %v971 = vld [vmem:[%s2 + $0x48] sm:$0xff]
      %v972 = vld [vmem:[%s2 + $0x50] sm:$0xff]
      %v973 = vld [vmem:[%s2 + $0x58] sm:$0xff]
      %v974 = vld [vmem:[%s2 + $0x60] sm:$0xff]
      %v975 = vld [vmem:[%s2 + $0x68] sm:$0xff]
      %v976 = vld [vmem:[%s2 + $0x70] sm:$0xff]
      %v977 = vld [vmem:[%s2 + $0x78] sm:$0xff]
      %v978 = vld [vmem:[%s2 + $0x80] sm:$0xff]
      %v979 = vld [vmem:[%s2 + $0x88] sm:$0xff]
      %v980 = vld [vmem:[%s2 + $0x90] sm:$0xff]
      %v981 = vld [vmem:[%s2 + $0x98] sm:$0xff]
      %v982 = vld [vmem:[%s2 + $0xa0] sm:$0xff]
      %v983 = vld [vmem:[%s2 + $0xa8] sm:$0xff]
      %v984 = vld [vmem:[%s2 + $0xb0] sm:$0xff]
      %v985 = vld [vmem:[%s2 + $0xb8] sm:$0xff]
      %v986 = vld [vmem:[%s2 + $0xc0] sm:$0xff]
      %v987 = vld [vmem:[%s2 + $0xc8] sm:$0xff]
      %v988 = vld [vmem:[%s2 + $0xd0] sm:$0xff]
      %v989 = vld [vmem:[%s2 + $0xd8] sm:$0xff]
      %v990 = vld [vmem:[%s2 + $0xe0] sm:$0xff]
      %v991 = vld [vmem:[%s2 + $0xe8] sm:$0xff]
      %v992 = vld [vmem:[%s2 + $0xf0] sm:$0xff]
      %v993 = vld [vmem:[%s2 + $0xf8] sm:$0xff]
      %v994 = vpack.c.bf16 %v931, %v930
      %v995 = vpack.c.bf16 %v933, %v932
      %v996 = vpack.c.bf16 %v935, %v934
      %v997 = vpack.c.bf16 %v937, %v936
      %v998 = vpack.c.bf16 %v939, %v938
      %v999 = vpack.c.bf16 %v941, %v940
      %v1000 = vpack.c.bf16 %v943, %v942
      %v1001 = vpack.c.bf16 %v945, %v944
      %v1002 = vpack.c.bf16 %v947, %v946
      %v1003 = vpack.c.bf16 %v949, %v948
      %v1004 = vpack.c.bf16 %v951, %v950
      %v1005 = vpack.c.bf16 %v953, %v952
      %v1006 = vpack.c.bf16 %v955, %v954
      %v1007 = vpack.c.bf16 %v957, %v956
      %v1008 = vpack.c.bf16 %v959, %v958
      %v1009 = vpack.c.bf16 %v961, %v960
      %v1042 = vunpack.c.l.b16 %v962
      %v1043 = vunpack.c.h.b16 %v962
      %v1044 = vunpack.c.l.b16 %v963
      %v1045 = vunpack.c.h.b16 %v963
      %v1046 = vunpack.c.l.b16 %v964
      %v1047 = vunpack.c.h.b16 %v964
      %v1048 = vunpack.c.l.b16 %v965
      %v1049 = vunpack.c.h.b16 %v965
      %v1050 = vunpack.c.l.b16 %v966
      %v1051 = vunpack.c.h.b16 %v966
      %v1052 = vunpack.c.l.b16 %v967
      %v1053 = vunpack.c.h.b16 %v967
      %v1054 = vunpack.c.l.b16 %v968
      %v1055 = vunpack.c.h.b16 %v968
      %v1056 = vunpack.c.l.b16 %v969
      %v1057 = vunpack.c.h.b16 %v969
      %v1058 = vunpack.c.l.b16 %v970
      %v1059 = vunpack.c.h.b16 %v970
      %v1060 = vunpack.c.l.b16 %v971
      %v1061 = vunpack.c.h.b16 %v971
      %v1062 = vunpack.c.l.b16 %v972
      %v1063 = vunpack.c.h.b16 %v972
      %v1064 = vunpack.c.l.b16 %v973
      %v1065 = vunpack.c.h.b16 %v973
      %v1066 = vunpack.c.l.b16 %v974
      %v1067 = vunpack.c.h.b16 %v974
      %v1068 = vunpack.c.l.b16 %v975
      %v1069 = vunpack.c.h.b16 %v975
      %v1070 = vunpack.c.l.b16 %v976
      %v1071 = vunpack.c.h.b16 %v976
      %v1072 = vunpack.c.l.b16 %v977
      %v1073 = vunpack.c.h.b16 %v977
      %v1074 = vunpack.c.l.b16 %v978
      %v1075 = vunpack.c.h.b16 %v978
      %v1076 = vunpack.c.l.b16 %v979
      %v1077 = vunpack.c.h.b16 %v979
      %v1078 = vunpack.c.l.b16 %v980
      %v1079 = vunpack.c.h.b16 %v980
      %v1080 = vunpack.c.l.b16 %v981
      %v1081 = vunpack.c.h.b16 %v981
      %v1082 = vunpack.c.l.b16 %v982
      %v1083 = vunpack.c.h.b16 %v982
      %v1084 = vunpack.c.l.b16 %v983
      %v1085 = vunpack.c.h.b16 %v983
      %v1086 = vunpack.c.l.b16 %v984
      %v1087 = vunpack.c.h.b16 %v984
      %v1088 = vunpack.c.l.b16 %v985
      %v1089 = vunpack.c.h.b16 %v985
      %v1090 = vunpack.c.l.b16 %v986
      %v1091 = vunpack.c.h.b16 %v986
      %v1092 = vunpack.c.l.b16 %v987
      %v1093 = vunpack.c.h.b16 %v987
      %v1094 = vunpack.c.l.b16 %v988
      %v1095 = vunpack.c.h.b16 %v988
      %v1096 = vunpack.c.l.b16 %v989
      %v1097 = vunpack.c.h.b16 %v989
      %v1098 = vunpack.c.l.b16 %v990
      %v1099 = vunpack.c.h.b16 %v990
      %v1100 = vunpack.c.l.b16 %v991
      %v1101 = vunpack.c.h.b16 %v991
      %v1102 = vunpack.c.l.b16 %v992
      %v1103 = vunpack.c.h.b16 %v992
      %v1104 = vunpack.c.l.b16 %v993
      %v1105 = vunpack.c.h.b16 %v993
      %v1106 = vpack.c.b16 %v1044, %v1042
      %v1107 = vpack.c.b16 %v1045, %v1043
      %v1108 = vpack.c.b16 %v1048, %v1046
      %v1109 = vpack.c.b16 %v1049, %v1047
      %v1110 = vpack.c.b16 %v1052, %v1050
      %v1111 = vpack.c.b16 %v1053, %v1051
      %v1112 = vpack.c.b16 %v1056, %v1054
      %v1113 = vpack.c.b16 %v1057, %v1055
      %v1114 = vpack.c.b16 %v1060, %v1058
      %v1115 = vpack.c.b16 %v1061, %v1059
      %v1116 = vpack.c.b16 %v1064, %v1062
      %v1117 = vpack.c.b16 %v1065, %v1063
      %v1118 = vpack.c.b16 %v1068, %v1066
      %v1119 = vpack.c.b16 %v1069, %v1067
      %v1120 = vpack.c.b16 %v1072, %v1070
      %v1121 = vpack.c.b16 %v1073, %v1071
      %v1122 = vpack.c.b16 %v1076, %v1074
      %v1123 = vpack.c.b16 %v1077, %v1075
      %v1124 = vpack.c.b16 %v1080, %v1078
      %v1125 = vpack.c.b16 %v1081, %v1079
      %v1126 = vpack.c.b16 %v1084, %v1082
      %v1127 = vpack.c.b16 %v1085, %v1083
      %v1128 = vpack.c.b16 %v1088, %v1086
      %v1129 = vpack.c.b16 %v1089, %v1087
      %v1130 = vpack.c.b16 %v1092, %v1090
      %v1131 = vpack.c.b16 %v1093, %v1091
      %v1132 = vpack.c.b16 %v1096, %v1094
      %v1133 = vpack.c.b16 %v1097, %v1095
      %v1134 = vpack.c.b16 %v1100, %v1098
      %v1135 = vpack.c.b16 %v1101, %v1099
      %v1136 = vpack.c.b16 %v1104, %v1102
      %v1137 = vpack.c.b16 %v1105, %v1103
      %1170 = vmatprep.subr.bf16.mxu0 0
      %1171 = vmatpush1.bf16.msra.mxu0 %v994
      %1172 = vmatprep.subr.bf16.mxu0 0
      %1173 = vmatpush1.bf16.msra.mxu0 %v995
      %1174 = vmatprep.subr.bf16.mxu0 0
      %1175 = vmatpush1.bf16.msra.mxu0 %v996
      %1176 = vmatprep.subr.bf16.mxu0 0
      %1177 = vmatpush1.bf16.msra.mxu0 %v997
      %1178 = vmatprep.subr.bf16.mxu0 0
      %1179 = vmatpush1.bf16.msra.mxu0 %v998
      %1180 = vmatprep.subr.bf16.mxu0 0
      %1181 = vmatpush1.bf16.msra.mxu0 %v999
      %1182 = vmatprep.subr.bf16.mxu0 0
      %1183 = vmatpush1.bf16.msra.mxu0 %v1000
      %1184 = vmatprep.subr.bf16.mxu0 0
      %1185 = vmatpush1.bf16.msra.mxu0 %v1001
      %1186 = vmatprep.subr.bf16.mxu0 0
      %1187 = vmatpush1.bf16.msra.mxu0 %v1002
      %1188 = vmatprep.subr.bf16.mxu0 0
      %1189 = vmatpush1.bf16.msra.mxu0 %v1003
      %1190 = vmatprep.subr.bf16.mxu0 0
      %1191 = vmatpush1.bf16.msra.mxu0 %v1004
      %1192 = vmatprep.subr.bf16.mxu0 0
      %1193 = vmatpush1.bf16.msra.mxu0 %v1005
      %1194 = vmatprep.subr.bf16.mxu0 0
      %1195 = vmatpush1.bf16.msra.mxu0 %v1006
      %1196 = vmatprep.subr.bf16.mxu0 0
      %1197 = vmatpush1.bf16.msra.mxu0 %v1007
      %1198 = vmatprep.subr.bf16.mxu0 0
      %1199 = vmatpush1.bf16.msra.mxu0 %v1008
      %1200 = vmatprep.subr.bf16.mxu0 0
      %1201 = vmatpush1.bf16.msra.mxu0 %v1009
      %1202 = vmatprep.mubr.bf16.mxu0 %v1107
      %1203 = vmatmul.mubr.bf16.gmra.mrb[0].mxu0 %v1106
      %v1204 = vpop.f32.mrb[0].mxu0
      %v1205 = vadd.f32 0.0, %v1204
      %v1206 = vpop.f32.mrb[0].mxu0
      %v1207 = vpop.f32.mrb[0].mxu0
      %v1208 = vadd.f32 0.0, %v1207
      %v1209 = vpop.f32.mrb[0].mxu0
      %1210 = vmatprep.mubr.bf16.mxu0 %v1109
      %1211 = vmatmul.mubr.bf16.gmra.mrb[0].mxu0 %v1108
      %v1212 = vpop.f32.mrb[0].mxu0
      %v1213 = vadd.f32 0.0, %v1212
      %v1214 = vpop.f32.mrb[0].mxu0
      %v1215 = vpop.f32.mrb[0].mxu0
      %v1216 = vadd.f32 0.0, %v1215
      %v1217 = vpop.f32.mrb[0].mxu0
      %1218 = vmatprep.mubr.bf16.mxu0 %v1111
      %1219 = vmatmul.mubr.bf16.gmra.mrb[0].mxu0 %v1110
      %v1220 = vpop.f32.mrb[0].mxu0
      %v1221 = vadd.f32 0.0, %v1220
      %v1222 = vpop.f32.mrb[0].mxu0
      %v1223 = vpop.f32.mrb[0].mxu0
      %v1224 = vadd.f32 0.0, %v1223
      %v1225 = vpop.f32.mrb[0].mxu0
      %1226 = vmatprep.mubr.bf16.mxu0 %v1113
      %1227 = vmatmul.mubr.bf16.gmra.mrb[0].mxu0 %v1112
      %v1228 = vpop.f32.mrb[0].mxu0
      %v1229 = vadd.f32 0.0, %v1228
      %v1230 = vpop.f32.mrb[0].mxu0
      %v1231 = vpop.f32.mrb[0].mxu0
      %v1232 = vadd.f32 0.0, %v1231
      %v1233 = vpop.f32.mrb[0].mxu0
      %1234 = vmatprep.mubr.bf16.mxu0 %v1115
      %1235 = vmatmul.mubr.bf16.gmra.mrb[0].mxu0 %v1114
      %v1236 = vpop.f32.mrb[0].mxu0
      %v1237 = vadd.f32 0.0, %v1236
      %v1238 = vpop.f32.mrb[0].mxu0
      %v1239 = vpop.f32.mrb[0].mxu0
      %v1240 = vadd.f32 0.0, %v1239
      %v1241 = vpop.f32.mrb[0].mxu0
      %1242 = vmatprep.mubr.bf16.mxu0 %v1117
      %1243 = vmatmul.mubr.bf16.gmra.mrb[0].mxu0 %v1116
      %v1244 = vpop.f32.mrb[0].mxu0
      %v1245 = vadd.f32 0.0, %v1244
      %v1246 = vpop.f32.mrb[0].mxu0
      %v1247 = vpop.f32.mrb[0].mxu0
      %v1248 = vadd.f32 0.0, %v1247
      %v1249 = vpop.f32.mrb[0].mxu0
      %1250 = vmatprep.mubr.bf16.mxu0 %v1119
      %1251 = vmatmul.mubr.bf16.gmra.mrb[0].mxu0 %v1118
      %v1252 = vpop.f32.mrb[0].mxu0
      %v1253 = vadd.f32 0.0, %v1252
      %v1254 = vpop.f32.mrb[0].mxu0
      %v1255 = vpop.f32.mrb[0].mxu0
      %v1256 = vadd.f32 0.0, %v1255
      %v1257 = vpop.f32.mrb[0].mxu0
      %1258 = vmatprep.mubr.bf16.mxu0 %v1121
      %1259 = vmatmul.mubr.bf16.gmra.mrb[0].mxu0 %v1120
      %v1260 = vpop.f32.mrb[0].mxu0
      %v1261 = vadd.f32 0.0, %v1260
      %v1262 = vpop.f32.mrb[0].mxu0
      %v1263 = vpop.f32.mrb[0].mxu0
      %v1264 = vadd.f32 0.0, %v1263
      %v1265 = vpop.f32.mrb[0].mxu0
      %1266 = vmatprep.mubr.bf16.mxu0 %v1123
      %1267 = vmatmul.mubr.bf16.gmra.mrb[0].mxu0 %v1122
      %v1268 = vpop.f32.mrb[0].mxu0
      %v1269 = vadd.f32 0.0, %v1268
      %v1270 = vpop.f32.mrb[0].mxu0
      %v1271 = vpop.f32.mrb[0].mxu0
      %v1272 = vadd.f32 0.0, %v1271
      %v1273 = vpop.f32.mrb[0].mxu0
      %1274 = vmatprep.mubr.bf16.mxu0 %v1125
      %1275 = vmatmul.mubr.bf16.gmra.mrb[0].mxu0 %v1124
      %v1276 = vpop.f32.mrb[0].mxu0
      %v1277 = vadd.f32 0.0, %v1276
      %v1278 = vpop.f32.mrb[0].mxu0
      %v1279 = vpop.f32.mrb[0].mxu0
      %v1280 = vadd.f32 0.0, %v1279
      %v1281 = vpop.f32.mrb[0].mxu0
      %1282 = vmatprep.mubr.bf16.mxu0 %v1127
      %1283 = vmatmul.mubr.bf16.gmra.mrb[0].mxu0 %v1126
      %v1284 = vpop.f32.mrb[0].mxu0
      %v1285 = vadd.f32 0.0, %v1284
      %v1286 = vpop.f32.mrb[0].mxu0
      %v1287 = vpop.f32.mrb[0].mxu0
      %v1288 = vadd.f32 0.0, %v1287
      %v1289 = vpop.f32.mrb[0].mxu0
      %1290 = vmatprep.mubr.bf16.mxu0 %v1129
      %1291 = vmatmul.mubr.bf16.gmra.mrb[0].mxu0 %v1128
      %v1292 = vpop.f32.mrb[0].mxu0
      %v1293 = vadd.f32 0.0, %v1292
      %v1294 = vpop.f32.mrb[0].mxu0
      %v1295 = vpop.f32.mrb[0].mxu0
      %v1296 = vadd.f32 0.0, %v1295
      %v1297 = vpop.f32.mrb[0].mxu0
      %1298 = vmatprep.mubr.bf16.mxu0 %v1131
      %1299 = vmatmul.mubr.bf16.gmra.mrb[0].mxu0 %v1130
      %v1300 = vpop.f32.mrb[0].mxu0
      %v1301 = vadd.f32 0.0, %v1300
      %v1302 = vpop.f32.mrb[0].mxu0
      %v1303 = vpop.f32.mrb[0].mxu0
      %v1304 = vadd.f32 0.0, %v1303
      %v1305 = vpop.f32.mrb[0].mxu0
      %1306 = vmatprep.mubr.bf16.mxu0 %v1133
      %1307 = vmatmul.mubr.bf16.gmra.mrb[0].mxu0 %v1132
      %v1308 = vpop.f32.mrb[0].mxu0
      %v1309 = vadd.f32 0.0, %v1308
      %v1310 = vpop.f32.mrb[0].mxu0
      %v1311 = vpop.f32.mrb[0].mxu0
      %v1312 = vadd.f32 0.0, %v1311
      %v1313 = vpop.f32.mrb[0].mxu0
      %1314 = vmatprep.mubr.bf16.mxu0 %v1135
      %1315 = vmatmul.mubr.bf16.gmra.mrb[0].mxu0 %v1134
      %v1316 = vpop.f32.mrb[0].mxu0
      %v1317 = vadd.f32 0.0, %v1316
      %v1318 = vpop.f32.mrb[0].mxu0
      %v1319 = vpop.f32.mrb[0].mxu0
      %v1320 = vadd.f32 0.0, %v1319
      %v1321 = vpop.f32.mrb[0].mxu0
      %1322 = vmatprep.mubr.bf16.mxu0 %v1137
      %1323 = vmatmul.mubr.bf16.gmra.mrb[0].mxu0 %v1136
      %v1324 = vpop.f32.mrb[0].mxu0
      %v1325 = vadd.f32 0.0, %v1324
      %v1326 = vpop.f32.mrb[0].mxu0
      %v1327 = vpop.f32.mrb[0].mxu0
      %v1328 = vadd.f32 0.0, %v1327
      %v1329 = vpop.f32.mrb[0].mxu0
      %1330 = vdwg.mxu0
      %v1331 = vpack.c.bf16 %v1208, %v1205
      %v1332 = vpack.c.bf16 %v1216, %v1213
      %v1333 = vpack.c.bf16 %v1224, %v1221
      %v1334 = vpack.c.bf16 %v1232, %v1229
      %v1335 = vpack.c.bf16 %v1240, %v1237
      %v1336 = vpack.c.bf16 %v1248, %v1245
      %v1337 = vpack.c.bf16 %v1256, %v1253
      %v1338 = vpack.c.bf16 %v1264, %v1261
      %v1339 = vpack.c.bf16 %v1272, %v1269
      %v1340 = vpack.c.bf16 %v1280, %v1277
      %v1341 = vpack.c.bf16 %v1288, %v1285
      %v1342 = vpack.c.bf16 %v1296, %v1293
      %v1343 = vpack.c.bf16 %v1304, %v1301
      %v1344 = vpack.c.bf16 %v1312, %v1309
      %v1345 = vpack.c.bf16 %v1320, %v1317
      %v1346 = vpack.c.bf16 %v1328, %v1325
      %v1347 = vld [vmem:[%s5] sm:$0xf]
      %v1348 = vld [vmem:[%s5 + $0x4] sm:$0xf]
      %v1349 = vld [vmem:[%s5 + $0x8] sm:$0xf]
      %v1350 = vld [vmem:[%s5 + $0xc] sm:$0xf]
      %v1351 = vld [vmem:[%s5 + $0x10] sm:$0xf]
      %v1352 = vld [vmem:[%s5 + $0x14] sm:$0xf]
      %v1353 = vld [vmem:[%s5 + $0x18] sm:$0xf]
      %v1354 = vld [vmem:[%s5 + $0x1c] sm:$0xf]
      %v1363 = vunpack.c.l.b16 %v1347
      %v1364 = vunpack.c.l.b16 %v1348
      %v1365 = vunpack.c.l.b16 %v1349
      %v1366 = vunpack.c.l.b16 %v1350
      %v1367 = vunpack.c.l.b16 %v1351
      %v1368 = vunpack.c.l.b16 %v1352
      %v1369 = vunpack.c.l.b16 %v1353
      %v1370 = vunpack.c.l.b16 %v1354
      %v1371 = vpack.c.b16 %v1364, %v1363
      %v1372 = vpack.c.b16 %v1366, %v1365
      %v1373 = vpack.c.b16 %v1368, %v1367
      %v1374 = vpack.c.b16 %v1370, %v1369
      %vm1379 = vcmask 523264
      %v1381 = vsel %vm1379, %v1331, 0
      %v1384 = vsel %vm1379, %v1332, 0
      %v1387 = vsel %vm1379, %v1333, 0
      %v1390 = vsel %vm1379, %v1334, 0
      %v1393 = vsel %vm1379, %v1335, 0
      %v1396 = vsel %vm1379, %v1336, 0
      %v1399 = vsel %vm1379, %v1337, 0
      %v1402 = vsel %vm1379, %v1338, 0
      %v1405 = vsel %vm1379, %v1339, 0
      %v1408 = vsel %vm1379, %v1340, 0
      %v1411 = vsel %vm1379, %v1341, 0
      %v1414 = vsel %vm1379, %v1342, 0
      %v1417 = vsel %vm1379, %v1343, 0
      %v1420 = vsel %vm1379, %v1344, 0
      %v1423 = vsel %vm1379, %v1345, 0
      %v1426 = vsel %vm1379, %v1346, 0
      %1428 = vmatprep.subr.bf16.mxu0 0
      %1429 = vmatpush1.bf16.msra.mxu0 %v1371
      %1430 = vmatprep.subr.bf16.mxu0 0
      %1431 = vmatpush1.bf16.msra.mxu0 %v1372
      %1432 = vmatprep.subr.bf16.mxu0 0
      %1433 = vmatpush1.bf16.msra.mxu0 %v1373
      %1434 = vmatprep.subr.bf16.mxu0 0
      %1435 = vmatpush1.bf16.msra.mxu0 %v1374
      %1436 = vmatprep.subr.bf16.mxu0 0
      %1437 = vmatpush1.bf16.msra.mxu0 0
      %1438 = vmatprep.subr.bf16.mxu0 0
      %1439 = vmatpush1.bf16.msra.mxu0 0
      %1440 = vmatprep.subr.bf16.mxu0 0
      %1441 = vmatpush1.bf16.msra.mxu0 0
      %1442 = vmatprep.subr.bf16.mxu0 0
      %1443 = vmatpush1.bf16.msra.mxu0 0
      %1444 = vmatprep.subr.bf16.mxu0 0
      %1445 = vmatpush1.bf16.msra.mxu0 0
      %1446 = vmatprep.subr.bf16.mxu0 0
      %1447 = vmatpush1.bf16.msra.mxu0 0
      %1448 = vmatprep.subr.bf16.mxu0 0
      %1449 = vmatpush1.bf16.msra.mxu0 0
      %1450 = vmatprep.subr.bf16.mxu0 0
      %1451 = vmatpush1.bf16.msra.mxu0 0
      %1452 = vmatprep.subr.bf16.mxu0 0
      %1453 = vmatpush1.bf16.msra.mxu0 0
      %1454 = vmatprep.subr.bf16.mxu0 0
      %1455 = vmatpush1.bf16.msra.mxu0 0
      %1456 = vmatprep.subr.bf16.mxu0 0
      %1457 = vmatpush1.bf16.msra.mxu0 0
      %1458 = vmatprep.subr.bf16.mxu0 0
      %1459 = vmatpush1.bf16.msra.mxu0 0
      %1460 = vmatprep.mubr.bf16.mxu0 0
      %1461 = vmatmul.mubr.bf16.gmra.mrb[0].mxu0 %v1381
      %v1462 = vpop.f32.mrb[0].mxu0
      %v1463 = vadd.f32 0.0, %v1462
      %v1464 = vpop.f32.mrb[0].mxu0
      %v1465 = vpop.f32.mrb[0].mxu0
      %v1466 = vadd.f32 0.0, %v1465
      %v1467 = vpop.f32.mrb[0].mxu0
      %1468 = vmatprep.mubr.bf16.mxu0 0
      %1469 = vmatmul.mubr.bf16.gmra.mrb[0].mxu0 %v1384
      %v1470 = vpop.f32.mrb[0].mxu0
      %v1471 = vadd.f32 0.0, %v1470
      %v1472 = vpop.f32.mrb[0].mxu0
      %v1473 = vpop.f32.mrb[0].mxu0
      %v1474 = vadd.f32 0.0, %v1473
      %v1475 = vpop.f32.mrb[0].mxu0
      %1476 = vmatprep.mubr.bf16.mxu0 0
      %1477 = vmatmul.mubr.bf16.gmra.mrb[0].mxu0 %v1387
      %v1478 = vpop.f32.mrb[0].mxu0
      %v1479 = vadd.f32 0.0, %v1478
      %v1480 = vpop.f32.mrb[0].mxu0
      %v1481 = vpop.f32.mrb[0].mxu0
      %v1482 = vadd.f32 0.0, %v1481
      %v1483 = vpop.f32.mrb[0].mxu0
      %1484 = vmatprep.mubr.bf16.mxu0 0
      %1485 = vmatmul.mubr.bf16.gmra.mrb[0].mxu0 %v1390
      %v1486 = vpop.f32.mrb[0].mxu0
      %v1487 = vadd.f32 0.0, %v1486
      %v1488 = vpop.f32.mrb[0].mxu0
      %v1489 = vpop.f32.mrb[0].mxu0
      %v1490 = vadd.f32 0.0, %v1489
      %v1491 = vpop.f32.mrb[0].mxu0
      %1492 = vmatprep.mubr.bf16.mxu0 0
      %1493 = vmatmul.mubr.bf16.gmra.mrb[0].mxu0 %v1393
      %v1494 = vpop.f32.mrb[0].mxu0
      %v1495 = vadd.f32 0.0, %v1494
      %v1496 = vpop.f32.mrb[0].mxu0
      %v1497 = vpop.f32.mrb[0].mxu0
      %v1498 = vadd.f32 0.0, %v1497
      %v1499 = vpop.f32.mrb[0].mxu0
      %1500 = vmatprep.mubr.bf16.mxu0 0
      %1501 = vmatmul.mubr.bf16.gmra.mrb[0].mxu0 %v1396
      %v1502 = vpop.f32.mrb[0].mxu0
      %v1503 = vadd.f32 0.0, %v1502
      %v1504 = vpop.f32.mrb[0].mxu0
      %v1505 = vpop.f32.mrb[0].mxu0
      %v1506 = vadd.f32 0.0, %v1505
      %v1507 = vpop.f32.mrb[0].mxu0
      %1508 = vmatprep.mubr.bf16.mxu0 0
      %1509 = vmatmul.mubr.bf16.gmra.mrb[0].mxu0 %v1399
      %v1510 = vpop.f32.mrb[0].mxu0
      %v1511 = vadd.f32 0.0, %v1510
      %v1512 = vpop.f32.mrb[0].mxu0
      %v1513 = vpop.f32.mrb[0].mxu0
      %v1514 = vadd.f32 0.0, %v1513
      %v1515 = vpop.f32.mrb[0].mxu0
      %1516 = vmatprep.mubr.bf16.mxu0 0
      %1517 = vmatmul.mubr.bf16.gmra.mrb[0].mxu0 %v1402
      %v1518 = vpop.f32.mrb[0].mxu0
      %v1519 = vadd.f32 0.0, %v1518
      %v1520 = vpop.f32.mrb[0].mxu0
      %v1521 = vpop.f32.mrb[0].mxu0
      %v1522 = vadd.f32 0.0, %v1521
      %v1523 = vpop.f32.mrb[0].mxu0
      %1524 = vmatprep.mubr.bf16.mxu0 0
      %1525 = vmatmul.mubr.bf16.gmra.mrb[0].mxu0 %v1405
      %v1526 = vpop.f32.mrb[0].mxu0
      %v1527 = vadd.f32 0.0, %v1526
      %v1528 = vpop.f32.mrb[0].mxu0
      %v1529 = vpop.f32.mrb[0].mxu0
      %v1530 = vadd.f32 0.0, %v1529
      %v1531 = vpop.f32.mrb[0].mxu0
      %1532 = vmatprep.mubr.bf16.mxu0 0
      %1533 = vmatmul.mubr.bf16.gmra.mrb[0].mxu0 %v1408
      %v1534 = vpop.f32.mrb[0].mxu0
      %v1535 = vadd.f32 0.0, %v1534
      %v1536 = vpop.f32.mrb[0].mxu0
      %v1537 = vpop.f32.mrb[0].mxu0
      %v1538 = vadd.f32 0.0, %v1537
      %v1539 = vpop.f32.mrb[0].mxu0
      %1540 = vmatprep.mubr.bf16.mxu0 0
      %1541 = vmatmul.mubr.bf16.gmra.mrb[0].mxu0 %v1411
      %v1542 = vpop.f32.mrb[0].mxu0
      %v1543 = vadd.f32 0.0, %v1542
      %v1544 = vpop.f32.mrb[0].mxu0
      %v1545 = vpop.f32.mrb[0].mxu0
      %v1546 = vadd.f32 0.0, %v1545
      %v1547 = vpop.f32.mrb[0].mxu0
      %1548 = vmatprep.mubr.bf16.mxu0 0
      %1549 = vmatmul.mubr.bf16.gmra.mrb[0].mxu0 %v1414
      %v1550 = vpop.f32.mrb[0].mxu0
      %v1551 = vadd.f32 0.0, %v1550
      %v1552 = vpop.f32.mrb[0].mxu0
      %v1553 = vpop.f32.mrb[0].mxu0
      %v1554 = vadd.f32 0.0, %v1553
      %v1555 = vpop.f32.mrb[0].mxu0
      %1556 = vmatprep.mubr.bf16.mxu0 0
      %1557 = vmatmul.mubr.bf16.gmra.mrb[0].mxu0 %v1417
      %v1558 = vpop.f32.mrb[0].mxu0
      %v1559 = vadd.f32 0.0, %v1558
      %v1560 = vpop.f32.mrb[0].mxu0
      %v1561 = vpop.f32.mrb[0].mxu0
      %v1562 = vadd.f32 0.0, %v1561
      %v1563 = vpop.f32.mrb[0].mxu0
      %1564 = vmatprep.mubr.bf16.mxu0 0
      %1565 = vmatmul.mubr.bf16.gmra.mrb[0].mxu0 %v1420
      %v1566 = vpop.f32.mrb[0].mxu0
      %v1567 = vadd.f32 0.0, %v1566
      %v1568 = vpop.f32.mrb[0].mxu0
      %v1569 = vpop.f32.mrb[0].mxu0
      %v1570 = vadd.f32 0.0, %v1569
      %v1571 = vpop.f32.mrb[0].mxu0
      %1572 = vmatprep.mubr.bf16.mxu0 0
      %1573 = vmatmul.mubr.bf16.gmra.mrb[0].mxu0 %v1423
      %v1574 = vpop.f32.mrb[0].mxu0
      %v1575 = vadd.f32 0.0, %v1574
      %v1576 = vpop.f32.mrb[0].mxu0
      %v1577 = vpop.f32.mrb[0].mxu0
      %v1578 = vadd.f32 0.0, %v1577
      %v1579 = vpop.f32.mrb[0].mxu0
      %1580 = vmatprep.mubr.bf16.mxu0 0
      %1581 = vmatmul.mubr.bf16.gmra.mrb[0].mxu0 %v1426
      %v1582 = vpop.f32.mrb[0].mxu0
      %v1583 = vadd.f32 0.0, %v1582
      %v1584 = vpop.f32.mrb[0].mxu0
      %v1585 = vpop.f32.mrb[0].mxu0
      %v1586 = vadd.f32 0.0, %v1585
      %v1587 = vpop.f32.mrb[0].mxu0
      %1588 = vdwg.mxu0
      %v1589 = vmax.f32 %v1463, 0.0
      %v1590 = vmax.f32 %v1466, 0.0
      %v1591 = vmax.f32 %v1471, 0.0
      %v1592 = vmax.f32 %v1474, 0.0
      %v1593 = vmax.f32 %v1479, 0.0
      %v1594 = vmax.f32 %v1482, 0.0
      %v1595 = vmax.f32 %v1487, 0.0
      %v1596 = vmax.f32 %v1490, 0.0
      %v1597 = vmax.f32 %v1495, 0.0
      %v1598 = vmax.f32 %v1498, 0.0
      %v1599 = vmax.f32 %v1503, 0.0
      %v1600 = vmax.f32 %v1506, 0.0
      %v1601 = vmax.f32 %v1511, 0.0
      %v1602 = vmax.f32 %v1514, 0.0
      %v1603 = vmax.f32 %v1519, 0.0
      %v1604 = vmax.f32 %v1522, 0.0
      %v1605 = vmax.f32 %v1527, 0.0
      %v1606 = vmax.f32 %v1530, 0.0
      %v1607 = vmax.f32 %v1535, 0.0
      %v1608 = vmax.f32 %v1538, 0.0
      %v1609 = vmax.f32 %v1543, 0.0
      %v1610 = vmax.f32 %v1546, 0.0
      %v1611 = vmax.f32 %v1551, 0.0
      %v1612 = vmax.f32 %v1554, 0.0
      %v1613 = vmax.f32 %v1559, 0.0
      %v1614 = vmax.f32 %v1562, 0.0
      %v1615 = vmax.f32 %v1567, 0.0
      %v1616 = vmax.f32 %v1570, 0.0
      %v1617 = vmax.f32 %v1575, 0.0
      %v1618 = vmax.f32 %v1578, 0.0
      %v1619 = vmax.f32 %v1583, 0.0
      %v1620 = vmax.f32 %v1586, 0.0
      %v1621 = vpack.c.bf16 %v1589, %v1589
      %v1622 = vpack.c.bf16 %v1590, %v1590
      %v1623 = vpack.c.bf16 %v1591, %v1591
      %v1624 = vpack.c.bf16 %v1592, %v1592
      %v1625 = vpack.c.bf16 %v1593, %v1593
      %v1626 = vpack.c.bf16 %v1594, %v1594
      %v1627 = vpack.c.bf16 %v1595, %v1595
      %v1628 = vpack.c.bf16 %v1596, %v1596
      %v1629 = vpack.c.bf16 %v1597, %v1597
      %v1630 = vpack.c.bf16 %v1598, %v1598
      %v1631 = vpack.c.bf16 %v1599, %v1599
      %v1632 = vpack.c.bf16 %v1600, %v1600
      %v1633 = vpack.c.bf16 %v1601, %v1601
      %v1634 = vpack.c.bf16 %v1602, %v1602
      %v1635 = vpack.c.bf16 %v1603, %v1603
      %v1636 = vpack.c.bf16 %v1604, %v1604
      %v1637 = vpack.c.bf16 %v1605, %v1605
      %v1638 = vpack.c.bf16 %v1606, %v1606
      %v1639 = vpack.c.bf16 %v1607, %v1607
      %v1640 = vpack.c.bf16 %v1608, %v1608
      %v1641 = vpack.c.bf16 %v1609, %v1609
      %v1642 = vpack.c.bf16 %v1610, %v1610
      %v1643 = vpack.c.bf16 %v1611, %v1611
      %v1644 = vpack.c.bf16 %v1612, %v1612
      %v1645 = vpack.c.bf16 %v1613, %v1613
      %v1646 = vpack.c.bf16 %v1614, %v1614
      %v1647 = vpack.c.bf16 %v1615, %v1615
      %v1648 = vpack.c.bf16 %v1616, %v1616
      %v1649 = vpack.c.bf16 %v1617, %v1617
      %v1650 = vpack.c.bf16 %v1618, %v1618
      %v1651 = vpack.c.bf16 %v1619, %v1619
      %v1652 = vpack.c.bf16 %v1620, %v1620
      %1654 = vrot.lane.b32.xlu0 %v1621, 96
      %v1655 = vpop.permute.xlu0 %1654
      %v1657 = vsel %vm464, %v1621, 0
      %v1660 = vsel %vm464, %v1655, 0
      %1662 = vmatprep.subr.bf16.mxu0 0
      %1663 = vmatpush1.bf16.xpose.msra.mxu0 %v1660
      %1664 = vmatprep.subr.bf16.mxu0 0
      %1665 = vmatpush1.bf16.xpose.msra.mxu0 0
      %1666 = vmatprep.subr.bf16.mxu0 0
      %1667 = vmatpush1.bf16.xpose.msra.mxu0 0
      %1668 = vmatprep.subr.bf16.mxu0 0
      %1669 = vmatpush1.bf16.xpose.msra.mxu0 0
      %1670 = vmatprep.subr.bf16.mxu0 0
      %1671 = vmatpush1.bf16.xpose.msra.mxu0 0
      %1672 = vmatprep.subr.bf16.mxu0 0
      %1673 = vmatpush1.bf16.xpose.msra.mxu0 0
      %1674 = vmatprep.subr.bf16.mxu0 0
      %1675 = vmatpush1.bf16.xpose.msra.mxu0 0
      %1676 = vmatprep.subr.bf16.mxu0 0
      %1677 = vmatpush1.bf16.xpose.msra.mxu0 0
      %1678 = vmatprep.subr.bf16.mxu0 0
      %1679 = vmatpush1.bf16.xpose.msra.mxu0 0
      %1680 = vmatprep.subr.bf16.mxu0 0
      %1681 = vmatpush1.bf16.xpose.msra.mxu0 0
      %1682 = vmatprep.subr.bf16.mxu0 0
      %1683 = vmatpush1.bf16.xpose.msra.mxu0 0
      %1684 = vmatprep.subr.bf16.mxu0 0
      %1685 = vmatpush1.bf16.xpose.msra.mxu0 0
      %1686 = vmatprep.subr.bf16.mxu0 0
      %1687 = vmatpush1.bf16.xpose.msra.mxu0 0
      %1688 = vmatprep.subr.bf16.mxu0 0
      %1689 = vmatpush1.bf16.xpose.msra.mxu0 0
      %1690 = vmatprep.subr.bf16.mxu0 0
      %1691 = vmatpush1.bf16.xpose.msra.mxu0 0
      %1692 = vmatprep.subr.bf16.mxu0 0
      %1693 = vmatpush1.bf16.xpose.msra.mxu0 0
      %1694 = vmatprep.mubr.bf16.mxu0 0
      %1695 = vmatmul.mubr.bf16.gmra.mrb[0].mxu0 %v1657
      %v1696 = vpop.f32.mrb[0].mxu0
      %v1697 = vadd.f32 0.0, %v1696
      %v1698 = vpop.f32.mrb[0].mxu0
      %v1699 = vpop.f32.mrb[0].mxu0
      %v1700 = vpop.f32.mrb[0].mxu0
      %1701 = vdwg.mxu0
      %1703 = vrot.lane.b32.xlu0 %v1622, 96
      %v1704 = vpop.permute.xlu0 %1703
      %v1706 = vsel %vm464, %v1622, 0
      %v1709 = vsel %vm464, %v1704, 0
      %1711 = vmatprep.subr.bf16.mxu0 0
      %1712 = vmatpush1.bf16.xpose.msra.mxu0 %v1709
      %1713 = vmatprep.subr.bf16.mxu0 0
      %1714 = vmatpush1.bf16.xpose.msra.mxu0 0
      %1715 = vmatprep.subr.bf16.mxu0 0
      %1716 = vmatpush1.bf16.xpose.msra.mxu0 0
      %1717 = vmatprep.subr.bf16.mxu0 0
      %1718 = vmatpush1.bf16.xpose.msra.mxu0 0
      %1719 = vmatprep.subr.bf16.mxu0 0
      %1720 = vmatpush1.bf16.xpose.msra.mxu0 0
      %1721 = vmatprep.subr.bf16.mxu0 0
      %1722 = vmatpush1.bf16.xpose.msra.mxu0 0
      %1723 = vmatprep.subr.bf16.mxu0 0
      %1724 = vmatpush1.bf16.xpose.msra.mxu0 0
      %1725 = vmatprep.subr.bf16.mxu0 0
      %1726 = vmatpush1.bf16.xpose.msra.mxu0 0
      %1727 = vmatprep.subr.bf16.mxu0 0
      %1728 = vmatpush1.bf16.xpose.msra.mxu0 0
      %1729 = vmatprep.subr.bf16.mxu0 0
      %1730 = vmatpush1.bf16.xpose.msra.mxu0 0
      %1731 = vmatprep.subr.bf16.mxu0 0
      %1732 = vmatpush1.bf16.xpose.msra.mxu0 0
      %1733 = vmatprep.subr.bf16.mxu0 0
      %1734 = vmatpush1.bf16.xpose.msra.mxu0 0
      %1735 = vmatprep.subr.bf16.mxu0 0
      %1736 = vmatpush1.bf16.xpose.msra.mxu0 0
      %1737 = vmatprep.subr.bf16.mxu0 0
      %1738 = vmatpush1.bf16.xpose.msra.mxu0 0
      %1739 = vmatprep.subr.bf16.mxu0 0
      %1740 = vmatpush1.bf16.xpose.msra.mxu0 0
      %1741 = vmatprep.subr.bf16.mxu0 0
      %1742 = vmatpush1.bf16.xpose.msra.mxu0 0
      %1743 = vmatprep.mubr.bf16.mxu0 0
      %1744 = vmatmul.mubr.bf16.gmra.mrb[0].mxu0 %v1706
      %v1745 = vpop.f32.mrb[0].mxu0
      %v1746 = vadd.f32 0.0, %v1745
      %v1747 = vpop.f32.mrb[0].mxu0
      %v1748 = vpop.f32.mrb[0].mxu0
      %v1749 = vpop.f32.mrb[0].mxu0
      %1750 = vdwg.mxu0
      %1752 = vrot.lane.b32.xlu0 %v1623, 96
      %v1753 = vpop.permute.xlu0 %1752
      %v1755 = vsel %vm464, %v1623, 0
      %v1758 = vsel %vm464, %v1753, 0
      %1760 = vmatprep.subr.bf16.mxu0 0
      %1761 = vmatpush1.bf16.xpose.msra.mxu0 %v1758
      %1762 = vmatprep.subr.bf16.mxu0 0
      %1763 = vmatpush1.bf16.xpose.msra.mxu0 0
      %1764 = vmatprep.subr.bf16.mxu0 0
      %1765 = vmatpush1.bf16.xpose.msra.mxu0 0
      %1766 = vmatprep.subr.bf16.mxu0 0
      %1767 = vmatpush1.bf16.xpose.msra.mxu0 0
      %1768 = vmatprep.subr.bf16.mxu0 0
      %1769 = vmatpush1.bf16.xpose.msra.mxu0 0
      %1770 = vmatprep.subr.bf16.mxu0 0
      %1771 = vmatpush1.bf16.xpose.msra.mxu0 0
      %1772 = vmatprep.subr.bf16.mxu0 0
      %1773 = vmatpush1.bf16.xpose.msra.mxu0 0
      %1774 = vmatprep.subr.bf16.mxu0 0
      %1775 = vmatpush1.bf16.xpose.msra.mxu0 0
      %1776 = vmatprep.subr.bf16.mxu0 0
      %1777 = vmatpush1.bf16.xpose.msra.mxu0 0
      %1778 = vmatprep.subr.bf16.mxu0 0
      %1779 = vmatpush1.bf16.xpose.msra.mxu0 0
      %1780 = vmatprep.subr.bf16.mxu0 0
      %1781 = vmatpush1.bf16.xpose.msra.mxu0 0
      %1782 = vmatprep.subr.bf16.mxu0 0
      %1783 = vmatpush1.bf16.xpose.msra.mxu0 0
      %1784 = vmatprep.subr.bf16.mxu0 0
      %1785 = vmatpush1.bf16.xpose.msra.mxu0 0
      %1786 = vmatprep.subr.bf16.mxu0 0
      %1787 = vmatpush1.bf16.xpose.msra.mxu0 0
      %1788 = vmatprep.subr.bf16.mxu0 0
      %1789 = vmatpush1.bf16.xpose.msra.mxu0 0
      %1790 = vmatprep.subr.bf16.mxu0 0
      %1791 = vmatpush1.bf16.xpose.msra.mxu0 0
      %1792 = vmatprep.mubr.bf16.mxu0 0
      %1793 = vmatmul.mubr.bf16.gmra.mrb[0].mxu0 %v1755
      %v1794 = vpop.f32.mrb[0].mxu0
      %v1795 = vadd.f32 0.0, %v1794
      %v1796 = vpop.f32.mrb[0].mxu0
      %v1797 = vpop.f32.mrb[0].mxu0
      %v1798 = vpop.f32.mrb[0].mxu0
      %1799 = vdwg.mxu0
      %1801 = vrot.lane.b32.xlu0 %v1624, 96
      %v1802 = vpop.permute.xlu0 %1801
      %v1804 = vsel %vm464, %v1624, 0
      %v1807 = vsel %vm464, %v1802, 0
      %1809 = vmatprep.subr.bf16.mxu0 0
      %1810 = vmatpush1.bf16.xpose.msra.mxu0 %v1807
      %1811 = vmatprep.subr.bf16.mxu0 0
      %1812 = vmatpush1.bf16.xpose.msra.mxu0 0
      %1813 = vmatprep.subr.bf16.mxu0 0
      %1814 = vmatpush1.bf16.xpose.msra.mxu0 0
      %1815 = vmatprep.subr.bf16.mxu0 0
      %1816 = vmatpush1.bf16.xpose.msra.mxu0 0
      %1817 = vmatprep.subr.bf16.mxu0 0
      %1818 = vmatpush1.bf16.xpose.msra.mxu0 0
      %1819 = vmatprep.subr.bf16.mxu0 0
      %1820 = vmatpush1.bf16.xpose.msra.mxu0 0
      %1821 = vmatprep.subr.bf16.mxu0 0
      %1822 = vmatpush1.bf16.xpose.msra.mxu0 0
      %1823 = vmatprep.subr.bf16.mxu0 0
      %1824 = vmatpush1.bf16.xpose.msra.mxu0 0
      %1825 = vmatprep.subr.bf16.mxu0 0
      %1826 = vmatpush1.bf16.xpose.msra.mxu0 0
      %1827 = vmatprep.subr.bf16.mxu0 0
      %1828 = vmatpush1.bf16.xpose.msra.mxu0 0
      %1829 = vmatprep.subr.bf16.mxu0 0
      %1830 = vmatpush1.bf16.xpose.msra.mxu0 0
      %1831 = vmatprep.subr.bf16.mxu0 0
      %1832 = vmatpush1.bf16.xpose.msra.mxu0 0
      %1833 = vmatprep.subr.bf16.mxu0 0
      %1834 = vmatpush1.bf16.xpose.msra.mxu0 0
      %1835 = vmatprep.subr.bf16.mxu0 0
      %1836 = vmatpush1.bf16.xpose.msra.mxu0 0
      %1837 = vmatprep.subr.bf16.mxu0 0
      %1838 = vmatpush1.bf16.xpose.msra.mxu0 0
      %1839 = vmatprep.subr.bf16.mxu0 0
      %1840 = vmatpush1.bf16.xpose.msra.mxu0 0
      %1841 = vmatprep.mubr.bf16.mxu0 0
      %1842 = vmatmul.mubr.bf16.gmra.mrb[0].mxu0 %v1804
      %v1843 = vpop.f32.mrb[0].mxu0
      %v1844 = vadd.f32 0.0, %v1843
      %v1845 = vpop.f32.mrb[0].mxu0
      %v1846 = vpop.f32.mrb[0].mxu0
      %v1847 = vpop.f32.mrb[0].mxu0
      %1848 = vdwg.mxu0
      %1850 = vrot.lane.b32.xlu0 %v1625, 96
      %v1851 = vpop.permute.xlu0 %1850
      %v1853 = vsel %vm464, %v1625, 0
      %v1856 = vsel %vm464, %v1851, 0
      %1858 = vmatprep.subr.bf16.mxu0 0
      %1859 = vmatpush1.bf16.xpose.msra.mxu0 %v1856
      %1860 = vmatprep.subr.bf16.mxu0 0
      %1861 = vmatpush1.bf16.xpose.msra.mxu0 0
      %1862 = vmatprep.subr.bf16.mxu0 0
      %1863 = vmatpush1.bf16.xpose.msra.mxu0 0
      %1864 = vmatprep.subr.bf16.mxu0 0
      %1865 = vmatpush1.bf16.xpose.msra.mxu0 0
      %1866 = vmatprep.subr.bf16.mxu0 0
      %1867 = vmatpush1.bf16.xpose.msra.mxu0 0
      %1868 = vmatprep.subr.bf16.mxu0 0
      %1869 = vmatpush1.bf16.xpose.msra.mxu0 0
      %1870 = vmatprep.subr.bf16.mxu0 0
      %1871 = vmatpush1.bf16.xpose.msra.mxu0 0
      %1872 = vmatprep.subr.bf16.mxu0 0
      %1873 = vmatpush1.bf16.xpose.msra.mxu0 0
      %1874 = vmatprep.subr.bf16.mxu0 0
      %1875 = vmatpush1.bf16.xpose.msra.mxu0 0
      %1876 = vmatprep.subr.bf16.mxu0 0
      %1877 = vmatpush1.bf16.xpose.msra.mxu0 0
      %1878 = vmatprep.subr.bf16.mxu0 0
      %1879 = vmatpush1.bf16.xpose.msra.mxu0 0
      %1880 = vmatprep.subr.bf16.mxu0 0
      %1881 = vmatpush1.bf16.xpose.msra.mxu0 0
      %1882 = vmatprep.subr.bf16.mxu0 0
      %1883 = vmatpush1.bf16.xpose.msra.mxu0 0
      %1884 = vmatprep.subr.bf16.mxu0 0
      %1885 = vmatpush1.bf16.xpose.msra.mxu0 0
      %1886 = vmatprep.subr.bf16.mxu0 0
      %1887 = vmatpush1.bf16.xpose.msra.mxu0 0
      %1888 = vmatprep.subr.bf16.mxu0 0
      %1889 = vmatpush1.bf16.xpose.msra.mxu0 0
      %1890 = vmatprep.mubr.bf16.mxu0 0
      %1891 = vmatmul.mubr.bf16.gmra.mrb[0].mxu0 %v1853
      %v1892 = vpop.f32.mrb[0].mxu0
      %v1893 = vadd.f32 0.0, %v1892
      %v1894 = vpop.f32.mrb[0].mxu0
      %v1895 = vpop.f32.mrb[0].mxu0
      %v1896 = vpop.f32.mrb[0].mxu0
      %1897 = vdwg.mxu0
      %1899 = vrot.lane.b32.xlu0 %v1626, 96
      %v1900 = vpop.permute.xlu0 %1899
      %v1902 = vsel %vm464, %v1626, 0
      %v1905 = vsel %vm464, %v1900, 0
      %1907 = vmatprep.subr.bf16.mxu0 0
      %1908 = vmatpush1.bf16.xpose.msra.mxu0 %v1905
      %1909 = vmatprep.subr.bf16.mxu0 0
      %1910 = vmatpush1.bf16.xpose.msra.mxu0 0
      %1911 = vmatprep.subr.bf16.mxu0 0
      %1912 = vmatpush1.bf16.xpose.msra.mxu0 0
      %1913 = vmatprep.subr.bf16.mxu0 0
      %1914 = vmatpush1.bf16.xpose.msra.mxu0 0
      %1915 = vmatprep.subr.bf16.mxu0 0
      %1916 = vmatpush1.bf16.xpose.msra.mxu0 0
      %1917 = vmatprep.subr.bf16.mxu0 0
      %1918 = vmatpush1.bf16.xpose.msra.mxu0 0
      %1919 = vmatprep.subr.bf16.mxu0 0
      %1920 = vmatpush1.bf16.xpose.msra.mxu0 0
      %1921 = vmatprep.subr.bf16.mxu0 0
      %1922 = vmatpush1.bf16.xpose.msra.mxu0 0
      %1923 = vmatprep.subr.bf16.mxu0 0
      %1924 = vmatpush1.bf16.xpose.msra.mxu0 0
      %1925 = vmatprep.subr.bf16.mxu0 0
      %1926 = vmatpush1.bf16.xpose.msra.mxu0 0
      %1927 = vmatprep.subr.bf16.mxu0 0
      %1928 = vmatpush1.bf16.xpose.msra.mxu0 0
      %1929 = vmatprep.subr.bf16.mxu0 0
      %1930 = vmatpush1.bf16.xpose.msra.mxu0 0
      %1931 = vmatprep.subr.bf16.mxu0 0
      %1932 = vmatpush1.bf16.xpose.msra.mxu0 0
      %1933 = vmatprep.subr.bf16.mxu0 0
      %1934 = vmatpush1.bf16.xpose.msra.mxu0 0
      %1935 = vmatprep.subr.bf16.mxu0 0
      %1936 = vmatpush1.bf16.xpose.msra.mxu0 0
      %1937 = vmatprep.subr.bf16.mxu0 0
      %1938 = vmatpush1.bf16.xpose.msra.mxu0 0
      %1939 = vmatprep.mubr.bf16.mxu0 0
      %1940 = vmatmul.mubr.bf16.gmra.mrb[0].mxu0 %v1902
      %v1941 = vpop.f32.mrb[0].mxu0
      %v1942 = vadd.f32 0.0, %v1941
      %v1943 = vpop.f32.mrb[0].mxu0
      %v1944 = vpop.f32.mrb[0].mxu0
      %v1945 = vpop.f32.mrb[0].mxu0
      %1946 = vdwg.mxu0
      %1948 = vrot.lane.b32.xlu0 %v1627, 96
      %v1949 = vpop.permute.xlu0 %1948
      %v1951 = vsel %vm464, %v1627, 0
      %v1954 = vsel %vm464, %v1949, 0
      %1956 = vmatprep.subr.bf16.mxu0 0
      %1957 = vmatpush1.bf16.xpose.msra.mxu0 %v1954
      %1958 = vmatprep.subr.bf16.mxu0 0
      %1959 = vmatpush1.bf16.xpose.msra.mxu0 0
      %1960 = vmatprep.subr.bf16.mxu0 0
      %1961 = vmatpush1.bf16.xpose.msra.mxu0 0
      %1962 = vmatprep.subr.bf16.mxu0 0
      %1963 = vmatpush1.bf16.xpose.msra.mxu0 0
      %1964 = vmatprep.subr.bf16.mxu0 0
      %1965 = vmatpush1.bf16.xpose.msra.mxu0 0
      %1966 = vmatprep.subr.bf16.mxu0 0
      %1967 = vmatpush1.bf16.xpose.msra.mxu0 0
      %1968 = vmatprep.subr.bf16.mxu0 0
      %1969 = vmatpush1.bf16.xpose.msra.mxu0 0
      %1970 = vmatprep.subr.bf16.mxu0 0
      %1971 = vmatpush1.bf16.xpose.msra.mxu0 0
      %1972 = vmatprep.subr.bf16.mxu0 0
      %1973 = vmatpush1.bf16.xpose.msra.mxu0 0
      %1974 = vmatprep.subr.bf16.mxu0 0
      %1975 = vmatpush1.bf16.xpose.msra.mxu0 0
      %1976 = vmatprep.subr.bf16.mxu0 0
      %1977 = vmatpush1.bf16.xpose.msra.mxu0 0
      %1978 = vmatprep.subr.bf16.mxu0 0
      %1979 = vmatpush1.bf16.xpose.msra.mxu0 0
      %1980 = vmatprep.subr.bf16.mxu0 0
      %1981 = vmatpush1.bf16.xpose.msra.mxu0 0
      %1982 = vmatprep.subr.bf16.mxu0 0
      %1983 = vmatpush1.bf16.xpose.msra.mxu0 0
      %1984 = vmatprep.subr.bf16.mxu0 0
      %1985 = vmatpush1.bf16.xpose.msra.mxu0 0
      %1986 = vmatprep.subr.bf16.mxu0 0
      %1987 = vmatpush1.bf16.xpose.msra.mxu0 0
      %1988 = vmatprep.mubr.bf16.mxu0 0
      %1989 = vmatmul.mubr.bf16.gmra.mrb[0].mxu0 %v1951
      %v1990 = vpop.f32.mrb[0].mxu0
      %v1991 = vadd.f32 0.0, %v1990
      %v1992 = vpop.f32.mrb[0].mxu0
      %v1993 = vpop.f32.mrb[0].mxu0
      %v1994 = vpop.f32.mrb[0].mxu0
      %1995 = vdwg.mxu0
      %1997 = vrot.lane.b32.xlu0 %v1628, 96
      %v1998 = vpop.permute.xlu0 %1997
      %v2000 = vsel %vm464, %v1628, 0
      %v2003 = vsel %vm464, %v1998, 0
      %2005 = vmatprep.subr.bf16.mxu0 0
      %2006 = vmatpush1.bf16.xpose.msra.mxu0 %v2003
      %2007 = vmatprep.subr.bf16.mxu0 0
      %2008 = vmatpush1.bf16.xpose.msra.mxu0 0
      %2009 = vmatprep.subr.bf16.mxu0 0
      %2010 = vmatpush1.bf16.xpose.msra.mxu0 0
      %2011 = vmatprep.subr.bf16.mxu0 0
      %2012 = vmatpush1.bf16.xpose.msra.mxu0 0
      %2013 = vmatprep.subr.bf16.mxu0 0
      %2014 = vmatpush1.bf16.xpose.msra.mxu0 0
      %2015 = vmatprep.subr.bf16.mxu0 0
      %2016 = vmatpush1.bf16.xpose.msra.mxu0 0
      %2017 = vmatprep.subr.bf16.mxu0 0
      %2018 = vmatpush1.bf16.xpose.msra.mxu0 0
      %2019 = vmatprep.subr.bf16.mxu0 0
      %2020 = vmatpush1.bf16.xpose.msra.mxu0 0
      %2021 = vmatprep.subr.bf16.mxu0 0
      %2022 = vmatpush1.bf16.xpose.msra.mxu0 0
      %2023 = vmatprep.subr.bf16.mxu0 0
      %2024 = vmatpush1.bf16.xpose.msra.mxu0 0
      %2025 = vmatprep.subr.bf16.mxu0 0
      %2026 = vmatpush1.bf16.xpose.msra.mxu0 0
      %2027 = vmatprep.subr.bf16.mxu0 0
      %2028 = vmatpush1.bf16.xpose.msra.mxu0 0
      %2029 = vmatprep.subr.bf16.mxu0 0
      %2030 = vmatpush1.bf16.xpose.msra.mxu0 0
      %2031 = vmatprep.subr.bf16.mxu0 0
      %2032 = vmatpush1.bf16.xpose.msra.mxu0 0
      %2033 = vmatprep.subr.bf16.mxu0 0
      %2034 = vmatpush1.bf16.xpose.msra.mxu0 0
      %2035 = vmatprep.subr.bf16.mxu0 0
      %2036 = vmatpush1.bf16.xpose.msra.mxu0 0
      %2037 = vmatprep.mubr.bf16.mxu0 0
      %2038 = vmatmul.mubr.bf16.gmra.mrb[0].mxu0 %v2000
      %v2039 = vpop.f32.mrb[0].mxu0
      %v2040 = vadd.f32 0.0, %v2039
      %v2041 = vpop.f32.mrb[0].mxu0
      %v2042 = vpop.f32.mrb[0].mxu0
      %v2043 = vpop.f32.mrb[0].mxu0
      %2044 = vdwg.mxu0
      %2046 = vrot.lane.b32.xlu0 %v1629, 96
      %v2047 = vpop.permute.xlu0 %2046
      %v2049 = vsel %vm464, %v1629, 0
      %v2052 = vsel %vm464, %v2047, 0
      %2054 = vmatprep.subr.bf16.mxu0 0
      %2055 = vmatpush1.bf16.xpose.msra.mxu0 %v2052
      %2056 = vmatprep.subr.bf16.mxu0 0
      %2057 = vmatpush1.bf16.xpose.msra.mxu0 0
      %2058 = vmatprep.subr.bf16.mxu0 0
      %2059 = vmatpush1.bf16.xpose.msra.mxu0 0
      %2060 = vmatprep.subr.bf16.mxu0 0
      %2061 = vmatpush1.bf16.xpose.msra.mxu0 0
      %2062 = vmatprep.subr.bf16.mxu0 0
      %2063 = vmatpush1.bf16.xpose.msra.mxu0 0
      %2064 = vmatprep.subr.bf16.mxu0 0
      %2065 = vmatpush1.bf16.xpose.msra.mxu0 0
      %2066 = vmatprep.subr.bf16.mxu0 0
      %2067 = vmatpush1.bf16.xpose.msra.mxu0 0
      %2068 = vmatprep.subr.bf16.mxu0 0
      %2069 = vmatpush1.bf16.xpose.msra.mxu0 0
      %2070 = vmatprep.subr.bf16.mxu0 0
      %2071 = vmatpush1.bf16.xpose.msra.mxu0 0
      %2072 = vmatprep.subr.bf16.mxu0 0
      %2073 = vmatpush1.bf16.xpose.msra.mxu0 0
      %2074 = vmatprep.subr.bf16.mxu0 0
      %2075 = vmatpush1.bf16.xpose.msra.mxu0 0
      %2076 = vmatprep.subr.bf16.mxu0 0
      %2077 = vmatpush1.bf16.xpose.msra.mxu0 0
      %2078 = vmatprep.subr.bf16.mxu0 0
      %2079 = vmatpush1.bf16.xpose.msra.mxu0 0
      %2080 = vmatprep.subr.bf16.mxu0 0
      %2081 = vmatpush1.bf16.xpose.msra.mxu0 0
      %2082 = vmatprep.subr.bf16.mxu0 0
      %2083 = vmatpush1.bf16.xpose.msra.mxu0 0
      %2084 = vmatprep.subr.bf16.mxu0 0
      %2085 = vmatpush1.bf16.xpose.msra.mxu0 0
      %2086 = vmatprep.mubr.bf16.mxu0 0
      %2087 = vmatmul.mubr.bf16.gmra.mrb[0].mxu0 %v2049
      %v2088 = vpop.f32.mrb[0].mxu0
      %v2089 = vadd.f32 0.0, %v2088
      %v2090 = vpop.f32.mrb[0].mxu0
      %v2091 = vpop.f32.mrb[0].mxu0
      %v2092 = vpop.f32.mrb[0].mxu0
      %2093 = vdwg.mxu0
      %2095 = vrot.lane.b32.xlu0 %v1630, 96
      %v2096 = vpop.permute.xlu0 %2095
      %v2098 = vsel %vm464, %v1630, 0
      %v2101 = vsel %vm464, %v2096, 0
      %2103 = vmatprep.subr.bf16.mxu0 0
      %2104 = vmatpush1.bf16.xpose.msra.mxu0 %v2101
      %2105 = vmatprep.subr.bf16.mxu0 0
      %2106 = vmatpush1.bf16.xpose.msra.mxu0 0
      %2107 = vmatprep.subr.bf16.mxu0 0
      %2108 = vmatpush1.bf16.xpose.msra.mxu0 0
      %2109 = vmatprep.subr.bf16.mxu0 0
      %2110 = vmatpush1.bf16.xpose.msra.mxu0 0
      %2111 = vmatprep.subr.bf16.mxu0 0
      %2112 = vmatpush1.bf16.xpose.msra.mxu0 0
      %2113 = vmatprep.subr.bf16.mxu0 0
      %2114 = vmatpush1.bf16.xpose.msra.mxu0 0
      %2115 = vmatprep.subr.bf16.mxu0 0
      %2116 = vmatpush1.bf16.xpose.msra.mxu0 0
      %2117 = vmatprep.subr.bf16.mxu0 0
      %2118 = vmatpush1.bf16.xpose.msra.mxu0 0
      %2119 = vmatprep.subr.bf16.mxu0 0
      %2120 = vmatpush1.bf16.xpose.msra.mxu0 0
      %2121 = vmatprep.subr.bf16.mxu0 0
      %2122 = vmatpush1.bf16.xpose.msra.mxu0 0
      %2123 = vmatprep.subr.bf16.mxu0 0
      %2124 = vmatpush1.bf16.xpose.msra.mxu0 0
      %2125 = vmatprep.subr.bf16.mxu0 0
      %2126 = vmatpush1.bf16.xpose.msra.mxu0 0
      %2127 = vmatprep.subr.bf16.mxu0 0
      %2128 = vmatpush1.bf16.xpose.msra.mxu0 0
      %2129 = vmatprep.subr.bf16.mxu0 0
      %2130 = vmatpush1.bf16.xpose.msra.mxu0 0
      %2131 = vmatprep.subr.bf16.mxu0 0
      %2132 = vmatpush1.bf16.xpose.msra.mxu0 0
      %2133 = vmatprep.subr.bf16.mxu0 0
      %2134 = vmatpush1.bf16.xpose.msra.mxu0 0
      %2135 = vmatprep.mubr.bf16.mxu0 0
      %2136 = vmatmul.mubr.bf16.gmra.mrb[0].mxu0 %v2098
      %v2137 = vpop.f32.mrb[0].mxu0
      %v2138 = vadd.f32 0.0, %v2137
      %v2139 = vpop.f32.mrb[0].mxu0
      %v2140 = vpop.f32.mrb[0].mxu0
      %v2141 = vpop.f32.mrb[0].mxu0
      %2142 = vdwg.mxu0
      %2144 = vrot.lane.b32.xlu0 %v1631, 96
      %v2145 = vpop.permute.xlu0 %2144
      %v2147 = vsel %vm464, %v1631, 0
      %v2150 = vsel %vm464, %v2145, 0
      %2152 = vmatprep.subr.bf16.mxu0 0
      %2153 = vmatpush1.bf16.xpose.msra.mxu0 %v2150
      %2154 = vmatprep.subr.bf16.mxu0 0
      %2155 = vmatpush1.bf16.xpose.msra.mxu0 0
      %2156 = vmatprep.subr.bf16.mxu0 0
      %2157 = vmatpush1.bf16.xpose.msra.mxu0 0
      %2158 = vmatprep.subr.bf16.mxu0 0
      %2159 = vmatpush1.bf16.xpose.msra.mxu0 0
      %2160 = vmatprep.subr.bf16.mxu0 0
      %2161 = vmatpush1.bf16.xpose.msra.mxu0 0
      %2162 = vmatprep.subr.bf16.mxu0 0
      %2163 = vmatpush1.bf16.xpose.msra.mxu0 0
      %2164 = vmatprep.subr.bf16.mxu0 0
      %2165 = vmatpush1.bf16.xpose.msra.mxu0 0
      %2166 = vmatprep.subr.bf16.mxu0 0
      %2167 = vmatpush1.bf16.xpose.msra.mxu0 0
      %2168 = vmatprep.subr.bf16.mxu0 0
      %2169 = vmatpush1.bf16.xpose.msra.mxu0 0
      %2170 = vmatprep.subr.bf16.mxu0 0
      %2171 = vmatpush1.bf16.xpose.msra.mxu0 0
      %2172 = vmatprep.subr.bf16.mxu0 0
      %2173 = vmatpush1.bf16.xpose.msra.mxu0 0
      %2174 = vmatprep.subr.bf16.mxu0 0
      %2175 = vmatpush1.bf16.xpose.msra.mxu0 0
      %2176 = vmatprep.subr.bf16.mxu0 0
      %2177 = vmatpush1.bf16.xpose.msra.mxu0 0
      %2178 = vmatprep.subr.bf16.mxu0 0
      %2179 = vmatpush1.bf16.xpose.msra.mxu0 0
      %2180 = vmatprep.subr.bf16.mxu0 0
      %2181 = vmatpush1.bf16.xpose.msra.mxu0 0
      %2182 = vmatprep.subr.bf16.mxu0 0
      %2183 = vmatpush1.bf16.xpose.msra.mxu0 0
      %2184 = vmatprep.mubr.bf16.mxu0 0
      %2185 = vmatmul.mubr.bf16.gmra.mrb[0].mxu0 %v2147
      %v2186 = vpop.f32.mrb[0].mxu0
      %v2187 = vadd.f32 0.0, %v2186
      %v2188 = vpop.f32.mrb[0].mxu0
      %v2189 = vpop.f32.mrb[0].mxu0
      %v2190 = vpop.f32.mrb[0].mxu0
      %2191 = vdwg.mxu0
      %2193 = vrot.lane.b32.xlu0 %v1632, 96
      %v2194 = vpop.permute.xlu0 %2193
      %v2196 = vsel %vm464, %v1632, 0
      %v2199 = vsel %vm464, %v2194, 0
      %2201 = vmatprep.subr.bf16.mxu0 0
      %2202 = vmatpush1.bf16.xpose.msra.mxu0 %v2199
      %2203 = vmatprep.subr.bf16.mxu0 0
      %2204 = vmatpush1.bf16.xpose.msra.mxu0 0
      %2205 = vmatprep.subr.bf16.mxu0 0
      %2206 = vmatpush1.bf16.xpose.msra.mxu0 0
      %2207 = vmatprep.subr.bf16.mxu0 0
      %2208 = vmatpush1.bf16.xpose.msra.mxu0 0
      %2209 = vmatprep.subr.bf16.mxu0 0
      %2210 = vmatpush1.bf16.xpose.msra.mxu0 0
      %2211 = vmatprep.subr.bf16.mxu0 0
      %2212 = vmatpush1.bf16.xpose.msra.mxu0 0
      %2213 = vmatprep.subr.bf16.mxu0 0
      %2214 = vmatpush1.bf16.xpose.msra.mxu0 0
      %2215 = vmatprep.subr.bf16.mxu0 0
      %2216 = vmatpush1.bf16.xpose.msra.mxu0 0
      %2217 = vmatprep.subr.bf16.mxu0 0
      %2218 = vmatpush1.bf16.xpose.msra.mxu0 0
      %2219 = vmatprep.subr.bf16.mxu0 0
      %2220 = vmatpush1.bf16.xpose.msra.mxu0 0
      %2221 = vmatprep.subr.bf16.mxu0 0
      %2222 = vmatpush1.bf16.xpose.msra.mxu0 0
      %2223 = vmatprep.subr.bf16.mxu0 0
      %2224 = vmatpush1.bf16.xpose.msra.mxu0 0
      %2225 = vmatprep.subr.bf16.mxu0 0
      %2226 = vmatpush1.bf16.xpose.msra.mxu0 0
      %2227 = vmatprep.subr.bf16.mxu0 0
      %2228 = vmatpush1.bf16.xpose.msra.mxu0 0
      %2229 = vmatprep.subr.bf16.mxu0 0
      %2230 = vmatpush1.bf16.xpose.msra.mxu0 0
      %2231 = vmatprep.subr.bf16.mxu0 0
      %2232 = vmatpush1.bf16.xpose.msra.mxu0 0
      %2233 = vmatprep.mubr.bf16.mxu0 0
      %2234 = vmatmul.mubr.bf16.gmra.mrb[0].mxu0 %v2196
      %v2235 = vpop.f32.mrb[0].mxu0
      %v2236 = vadd.f32 0.0, %v2235
      %v2237 = vpop.f32.mrb[0].mxu0
      %v2238 = vpop.f32.mrb[0].mxu0
      %v2239 = vpop.f32.mrb[0].mxu0
      %2240 = vdwg.mxu0
      %2242 = vrot.lane.b32.xlu0 %v1633, 96
      %v2243 = vpop.permute.xlu0 %2242
      %v2245 = vsel %vm464, %v1633, 0
      %v2248 = vsel %vm464, %v2243, 0
      %2250 = vmatprep.subr.bf16.mxu0 0
      %2251 = vmatpush1.bf16.xpose.msra.mxu0 %v2248
      %2252 = vmatprep.subr.bf16.mxu0 0
      %2253 = vmatpush1.bf16.xpose.msra.mxu0 0
      %2254 = vmatprep.subr.bf16.mxu0 0
      %2255 = vmatpush1.bf16.xpose.msra.mxu0 0
      %2256 = vmatprep.subr.bf16.mxu0 0
      %2257 = vmatpush1.bf16.xpose.msra.mxu0 0
      %2258 = vmatprep.subr.bf16.mxu0 0
      %2259 = vmatpush1.bf16.xpose.msra.mxu0 0
      %2260 = vmatprep.subr.bf16.mxu0 0
      %2261 = vmatpush1.bf16.xpose.msra.mxu0 0
      %2262 = vmatprep.subr.bf16.mxu0 0
      %2263 = vmatpush1.bf16.xpose.msra.mxu0 0
      %2264 = vmatprep.subr.bf16.mxu0 0
      %2265 = vmatpush1.bf16.xpose.msra.mxu0 0
      %2266 = vmatprep.subr.bf16.mxu0 0
      %2267 = vmatpush1.bf16.xpose.msra.mxu0 0
      %2268 = vmatprep.subr.bf16.mxu0 0
      %2269 = vmatpush1.bf16.xpose.msra.mxu0 0
      %2270 = vmatprep.subr.bf16.mxu0 0
      %2271 = vmatpush1.bf16.xpose.msra.mxu0 0
      %2272 = vmatprep.subr.bf16.mxu0 0
      %2273 = vmatpush1.bf16.xpose.msra.mxu0 0
      %2274 = vmatprep.subr.bf16.mxu0 0
      %2275 = vmatpush1.bf16.xpose.msra.mxu0 0
      %2276 = vmatprep.subr.bf16.mxu0 0
      %2277 = vmatpush1.bf16.xpose.msra.mxu0 0
      %2278 = vmatprep.subr.bf16.mxu0 0
      %2279 = vmatpush1.bf16.xpose.msra.mxu0 0
      %2280 = vmatprep.subr.bf16.mxu0 0
      %2281 = vmatpush1.bf16.xpose.msra.mxu0 0
      %2282 = vmatprep.mubr.bf16.mxu0 0
      %2283 = vmatmul.mubr.bf16.gmra.mrb[0].mxu0 %v2245
      %v2284 = vpop.f32.mrb[0].mxu0
      %v2285 = vadd.f32 0.0, %v2284
      %v2286 = vpop.f32.mrb[0].mxu0
      %v2287 = vpop.f32.mrb[0].mxu0
      %v2288 = vpop.f32.mrb[0].mxu0
      %2289 = vdwg.mxu0
      %2291 = vrot.lane.b32.xlu0 %v1634, 96
      %v2292 = vpop.permute.xlu0 %2291
      %v2294 = vsel %vm464, %v1634, 0
      %v2297 = vsel %vm464, %v2292, 0
      %2299 = vmatprep.subr.bf16.mxu0 0
      %2300 = vmatpush1.bf16.xpose.msra.mxu0 %v2297
      %2301 = vmatprep.subr.bf16.mxu0 0
      %2302 = vmatpush1.bf16.xpose.msra.mxu0 0
      %2303 = vmatprep.subr.bf16.mxu0 0
      %2304 = vmatpush1.bf16.xpose.msra.mxu0 0
      %2305 = vmatprep.subr.bf16.mxu0 0
      %2306 = vmatpush1.bf16.xpose.msra.mxu0 0
      %2307 = vmatprep.subr.bf16.mxu0 0
      %2308 = vmatpush1.bf16.xpose.msra.mxu0 0
      %2309 = vmatprep.subr.bf16.mxu0 0
      %2310 = vmatpush1.bf16.xpose.msra.mxu0 0
      %2311 = vmatprep.subr.bf16.mxu0 0
      %2312 = vmatpush1.bf16.xpose.msra.mxu0 0
      %2313 = vmatprep.subr.bf16.mxu0 0
      %2314 = vmatpush1.bf16.xpose.msra.mxu0 0
      %2315 = vmatprep.subr.bf16.mxu0 0
      %2316 = vmatpush1.bf16.xpose.msra.mxu0 0
      %2317 = vmatprep.subr.bf16.mxu0 0
      %2318 = vmatpush1.bf16.xpose.msra.mxu0 0
      %2319 = vmatprep.subr.bf16.mxu0 0
      %2320 = vmatpush1.bf16.xpose.msra.mxu0 0
      %2321 = vmatprep.subr.bf16.mxu0 0
      %2322 = vmatpush1.bf16.xpose.msra.mxu0 0
      %2323 = vmatprep.subr.bf16.mxu0 0
      %2324 = vmatpush1.bf16.xpose.msra.mxu0 0
      %2325 = vmatprep.subr.bf16.mxu0 0
      %2326 = vmatpush1.bf16.xpose.msra.mxu0 0
      %2327 = vmatprep.subr.bf16.mxu0 0
      %2328 = vmatpush1.bf16.xpose.msra.mxu0 0
      %2329 = vmatprep.subr.bf16.mxu0 0
      %2330 = vmatpush1.bf16.xpose.msra.mxu0 0
      %2331 = vmatprep.mubr.bf16.mxu0 0
      %2332 = vmatmul.mubr.bf16.gmra.mrb[0].mxu0 %v2294
      %v2333 = vpop.f32.mrb[0].mxu0
      %v2334 = vadd.f32 0.0, %v2333
      %v2335 = vpop.f32.mrb[0].mxu0
      %v2336 = vpop.f32.mrb[0].mxu0
      %v2337 = vpop.f32.mrb[0].mxu0
      %2338 = vdwg.mxu0
      %2340 = vrot.lane.b32.xlu0 %v1635, 96
      %v2341 = vpop.permute.xlu0 %2340
      %v2343 = vsel %vm464, %v1635, 0
      %v2346 = vsel %vm464, %v2341, 0
      %2348 = vmatprep.subr.bf16.mxu0 0
      %2349 = vmatpush1.bf16.xpose.msra.mxu0 %v2346
      %2350 = vmatprep.subr.bf16.mxu0 0
      %2351 = vmatpush1.bf16.xpose.msra.mxu0 0
      %2352 = vmatprep.subr.bf16.mxu0 0
      %2353 = vmatpush1.bf16.xpose.msra.mxu0 0
      %2354 = vmatprep.subr.bf16.mxu0 0
      %2355 = vmatpush1.bf16.xpose.msra.mxu0 0
      %2356 = vmatprep.subr.bf16.mxu0 0
      %2357 = vmatpush1.bf16.xpose.msra.mxu0 0
      %2358 = vmatprep.subr.bf16.mxu0 0
      %2359 = vmatpush1.bf16.xpose.msra.mxu0 0
      %2360 = vmatprep.subr.bf16.mxu0 0
      %2361 = vmatpush1.bf16.xpose.msra.mxu0 0
      %2362 = vmatprep.subr.bf16.mxu0 0
      %2363 = vmatpush1.bf16.xpose.msra.mxu0 0
      %2364 = vmatprep.subr.bf16.mxu0 0
      %2365 = vmatpush1.bf16.xpose.msra.mxu0 0
      %2366 = vmatprep.subr.bf16.mxu0 0
      %2367 = vmatpush1.bf16.xpose.msra.mxu0 0
      %2368 = vmatprep.subr.bf16.mxu0 0
      %2369 = vmatpush1.bf16.xpose.msra.mxu0 0
      %2370 = vmatprep.subr.bf16.mxu0 0
      %2371 = vmatpush1.bf16.xpose.msra.mxu0 0
      %2372 = vmatprep.subr.bf16.mxu0 0
      %2373 = vmatpush1.bf16.xpose.msra.mxu0 0
      %2374 = vmatprep.subr.bf16.mxu0 0
      %2375 = vmatpush1.bf16.xpose.msra.mxu0 0
      %2376 = vmatprep.subr.bf16.mxu0 0
      %2377 = vmatpush1.bf16.xpose.msra.mxu0 0
      %2378 = vmatprep.subr.bf16.mxu0 0
      %2379 = vmatpush1.bf16.xpose.msra.mxu0 0
      %2380 = vmatprep.mubr.bf16.mxu0 0
      %2381 = vmatmul.mubr.bf16.gmra.mrb[0].mxu0 %v2343
      %v2382 = vpop.f32.mrb[0].mxu0
      %v2383 = vadd.f32 0.0, %v2382
      %v2384 = vpop.f32.mrb[0].mxu0
      %v2385 = vpop.f32.mrb[0].mxu0
      %v2386 = vpop.f32.mrb[0].mxu0
      %2387 = vdwg.mxu0
      %2389 = vrot.lane.b32.xlu0 %v1636, 96
      %v2390 = vpop.permute.xlu0 %2389
      %v2392 = vsel %vm464, %v1636, 0
      %v2395 = vsel %vm464, %v2390, 0
      %2397 = vmatprep.subr.bf16.mxu0 0
      %2398 = vmatpush1.bf16.xpose.msra.mxu0 %v2395
      %2399 = vmatprep.subr.bf16.mxu0 0
      %2400 = vmatpush1.bf16.xpose.msra.mxu0 0
      %2401 = vmatprep.subr.bf16.mxu0 0
      %2402 = vmatpush1.bf16.xpose.msra.mxu0 0
      %2403 = vmatprep.subr.bf16.mxu0 0
      %2404 = vmatpush1.bf16.xpose.msra.mxu0 0
      %2405 = vmatprep.subr.bf16.mxu0 0
      %2406 = vmatpush1.bf16.xpose.msra.mxu0 0
      %2407 = vmatprep.subr.bf16.mxu0 0
      %2408 = vmatpush1.bf16.xpose.msra.mxu0 0
      %2409 = vmatprep.subr.bf16.mxu0 0
      %2410 = vmatpush1.bf16.xpose.msra.mxu0 0
      %2411 = vmatprep.subr.bf16.mxu0 0
      %2412 = vmatpush1.bf16.xpose.msra.mxu0 0
      %2413 = vmatprep.subr.bf16.mxu0 0
      %2414 = vmatpush1.bf16.xpose.msra.mxu0 0
      %2415 = vmatprep.subr.bf16.mxu0 0
      %2416 = vmatpush1.bf16.xpose.msra.mxu0 0
      %2417 = vmatprep.subr.bf16.mxu0 0
      %2418 = vmatpush1.bf16.xpose.msra.mxu0 0
      %2419 = vmatprep.subr.bf16.mxu0 0
      %2420 = vmatpush1.bf16.xpose.msra.mxu0 0
      %2421 = vmatprep.subr.bf16.mxu0 0
      %2422 = vmatpush1.bf16.xpose.msra.mxu0 0
      %2423 = vmatprep.subr.bf16.mxu0 0
      %2424 = vmatpush1.bf16.xpose.msra.mxu0 0
      %2425 = vmatprep.subr.bf16.mxu0 0
      %2426 = vmatpush1.bf16.xpose.msra.mxu0 0
      %2427 = vmatprep.subr.bf16.mxu0 0
      %2428 = vmatpush1.bf16.xpose.msra.mxu0 0
      %2429 = vmatprep.mubr.bf16.mxu0 0
      %2430 = vmatmul.mubr.bf16.gmra.mrb[0].mxu0 %v2392
      %v2431 = vpop.f32.mrb[0].mxu0
      %v2432 = vadd.f32 0.0, %v2431
      %v2433 = vpop.f32.mrb[0].mxu0
      %v2434 = vpop.f32.mrb[0].mxu0
      %v2435 = vpop.f32.mrb[0].mxu0
      %2436 = vdwg.mxu0
      %2438 = vrot.lane.b32.xlu0 %v1637, 96
      %v2439 = vpop.permute.xlu0 %2438
      %v2441 = vsel %vm464, %v1637, 0
      %v2444 = vsel %vm464, %v2439, 0
      %2446 = vmatprep.subr.bf16.mxu0 0
      %2447 = vmatpush1.bf16.xpose.msra.mxu0 %v2444
      %2448 = vmatprep.subr.bf16.mxu0 0
      %2449 = vmatpush1.bf16.xpose.msra.mxu0 0
      %2450 = vmatprep.subr.bf16.mxu0 0
      %2451 = vmatpush1.bf16.xpose.msra.mxu0 0
      %2452 = vmatprep.subr.bf16.mxu0 0
      %2453 = vmatpush1.bf16.xpose.msra.mxu0 0
      %2454 = vmatprep.subr.bf16.mxu0 0
      %2455 = vmatpush1.bf16.xpose.msra.mxu0 0
      %2456 = vmatprep.subr.bf16.mxu0 0
      %2457 = vmatpush1.bf16.xpose.msra.mxu0 0
      %2458 = vmatprep.subr.bf16.mxu0 0
      %2459 = vmatpush1.bf16.xpose.msra.mxu0 0
      %2460 = vmatprep.subr.bf16.mxu0 0
      %2461 = vmatpush1.bf16.xpose.msra.mxu0 0
      %2462 = vmatprep.subr.bf16.mxu0 0
      %2463 = vmatpush1.bf16.xpose.msra.mxu0 0
      %2464 = vmatprep.subr.bf16.mxu0 0
      %2465 = vmatpush1.bf16.xpose.msra.mxu0 0
      %2466 = vmatprep.subr.bf16.mxu0 0
      %2467 = vmatpush1.bf16.xpose.msra.mxu0 0
      %2468 = vmatprep.subr.bf16.mxu0 0
      %2469 = vmatpush1.bf16.xpose.msra.mxu0 0
      %2470 = vmatprep.subr.bf16.mxu0 0
      %2471 = vmatpush1.bf16.xpose.msra.mxu0 0
      %2472 = vmatprep.subr.bf16.mxu0 0
      %2473 = vmatpush1.bf16.xpose.msra.mxu0 0
      %2474 = vmatprep.subr.bf16.mxu0 0
      %2475 = vmatpush1.bf16.xpose.msra.mxu0 0
      %2476 = vmatprep.subr.bf16.mxu0 0
      %2477 = vmatpush1.bf16.xpose.msra.mxu0 0
      %2478 = vmatprep.mubr.bf16.mxu0 0
      %2479 = vmatmul.mubr.bf16.gmra.mrb[0].mxu0 %v2441
      %v2480 = vpop.f32.mrb[0].mxu0
      %v2481 = vadd.f32 0.0, %v2480
      %v2482 = vpop.f32.mrb[0].mxu0
      %v2483 = vpop.f32.mrb[0].mxu0
      %v2484 = vpop.f32.mrb[0].mxu0
      %2485 = vdwg.mxu0
      %2487 = vrot.lane.b32.xlu0 %v1638, 96
      %v2488 = vpop.permute.xlu0 %2487
      %v2490 = vsel %vm464, %v1638, 0
      %v2493 = vsel %vm464, %v2488, 0
      %2495 = vmatprep.subr.bf16.mxu0 0
      %2496 = vmatpush1.bf16.xpose.msra.mxu0 %v2493
      %2497 = vmatprep.subr.bf16.mxu0 0
      %2498 = vmatpush1.bf16.xpose.msra.mxu0 0
      %2499 = vmatprep.subr.bf16.mxu0 0
      %2500 = vmatpush1.bf16.xpose.msra.mxu0 0
      %2501 = vmatprep.subr.bf16.mxu0 0
      %2502 = vmatpush1.bf16.xpose.msra.mxu0 0
      %2503 = vmatprep.subr.bf16.mxu0 0
      %2504 = vmatpush1.bf16.xpose.msra.mxu0 0
      %2505 = vmatprep.subr.bf16.mxu0 0
      %2506 = vmatpush1.bf16.xpose.msra.mxu0 0
      %2507 = vmatprep.subr.bf16.mxu0 0
      %2508 = vmatpush1.bf16.xpose.msra.mxu0 0
      %2509 = vmatprep.subr.bf16.mxu0 0
      %2510 = vmatpush1.bf16.xpose.msra.mxu0 0
      %2511 = vmatprep.subr.bf16.mxu0 0
      %2512 = vmatpush1.bf16.xpose.msra.mxu0 0
      %2513 = vmatprep.subr.bf16.mxu0 0
      %2514 = vmatpush1.bf16.xpose.msra.mxu0 0
      %2515 = vmatprep.subr.bf16.mxu0 0
      %2516 = vmatpush1.bf16.xpose.msra.mxu0 0
      %2517 = vmatprep.subr.bf16.mxu0 0
      %2518 = vmatpush1.bf16.xpose.msra.mxu0 0
      %2519 = vmatprep.subr.bf16.mxu0 0
      %2520 = vmatpush1.bf16.xpose.msra.mxu0 0
      %2521 = vmatprep.subr.bf16.mxu0 0
      %2522 = vmatpush1.bf16.xpose.msra.mxu0 0
      %2523 = vmatprep.subr.bf16.mxu0 0
      %2524 = vmatpush1.bf16.xpose.msra.mxu0 0
      %2525 = vmatprep.subr.bf16.mxu0 0
      %2526 = vmatpush1.bf16.xpose.msra.mxu0 0
      %2527 = vmatprep.mubr.bf16.mxu0 0
      %2528 = vmatmul.mubr.bf16.gmra.mrb[0].mxu0 %v2490
      %v2529 = vpop.f32.mrb[0].mxu0
      %v2530 = vadd.f32 0.0, %v2529
      %v2531 = vpop.f32.mrb[0].mxu0
      %v2532 = vpop.f32.mrb[0].mxu0
      %v2533 = vpop.f32.mrb[0].mxu0
      %2534 = vdwg.mxu0
      %2536 = vrot.lane.b32.xlu0 %v1639, 96
      %v2537 = vpop.permute.xlu0 %2536
      %v2539 = vsel %vm464, %v1639, 0
      %v2542 = vsel %vm464, %v2537, 0
      %2544 = vmatprep.subr.bf16.mxu0 0
      %2545 = vmatpush1.bf16.xpose.msra.mxu0 %v2542
      %2546 = vmatprep.subr.bf16.mxu0 0
      %2547 = vmatpush1.bf16.xpose.msra.mxu0 0
      %2548 = vmatprep.subr.bf16.mxu0 0
      %2549 = vmatpush1.bf16.xpose.msra.mxu0 0
      %2550 = vmatprep.subr.bf16.mxu0 0
      %2551 = vmatpush1.bf16.xpose.msra.mxu0 0
      %2552 = vmatprep.subr.bf16.mxu0 0
      %2553 = vmatpush1.bf16.xpose.msra.mxu0 0
      %2554 = vmatprep.subr.bf16.mxu0 0
      %2555 = vmatpush1.bf16.xpose.msra.mxu0 0
      %2556 = vmatprep.subr.bf16.mxu0 0
      %2557 = vmatpush1.bf16.xpose.msra.mxu0 0
      %2558 = vmatprep.subr.bf16.mxu0 0
      %2559 = vmatpush1.bf16.xpose.msra.mxu0 0
      %2560 = vmatprep.subr.bf16.mxu0 0
      %2561 = vmatpush1.bf16.xpose.msra.mxu0 0
      %2562 = vmatprep.subr.bf16.mxu0 0
      %2563 = vmatpush1.bf16.xpose.msra.mxu0 0
      %2564 = vmatprep.subr.bf16.mxu0 0
      %2565 = vmatpush1.bf16.xpose.msra.mxu0 0
      %2566 = vmatprep.subr.bf16.mxu0 0
      %2567 = vmatpush1.bf16.xpose.msra.mxu0 0
      %2568 = vmatprep.subr.bf16.mxu0 0
      %2569 = vmatpush1.bf16.xpose.msra.mxu0 0
      %2570 = vmatprep.subr.bf16.mxu0 0
      %2571 = vmatpush1.bf16.xpose.msra.mxu0 0
      %2572 = vmatprep.subr.bf16.mxu0 0
      %2573 = vmatpush1.bf16.xpose.msra.mxu0 0
      %2574 = vmatprep.subr.bf16.mxu0 0
      %2575 = vmatpush1.bf16.xpose.msra.mxu0 0
      %2576 = vmatprep.mubr.bf16.mxu0 0
      %2577 = vmatmul.mubr.bf16.gmra.mrb[0].mxu0 %v2539
      %v2578 = vpop.f32.mrb[0].mxu0
      %v2579 = vadd.f32 0.0, %v2578
      %v2580 = vpop.f32.mrb[0].mxu0
      %v2581 = vpop.f32.mrb[0].mxu0
      %v2582 = vpop.f32.mrb[0].mxu0
      %2583 = vdwg.mxu0
      %2585 = vrot.lane.b32.xlu0 %v1640, 96
      %v2586 = vpop.permute.xlu0 %2585
      %v2588 = vsel %vm464, %v1640, 0
      %v2591 = vsel %vm464, %v2586, 0
      %2593 = vmatprep.subr.bf16.mxu0 0
      %2594 = vmatpush1.bf16.xpose.msra.mxu0 %v2591
      %2595 = vmatprep.subr.bf16.mxu0 0
      %2596 = vmatpush1.bf16.xpose.msra.mxu0 0
      %2597 = vmatprep.subr.bf16.mxu0 0
      %2598 = vmatpush1.bf16.xpose.msra.mxu0 0
      %2599 = vmatprep.subr.bf16.mxu0 0
      %2600 = vmatpush1.bf16.xpose.msra.mxu0 0
      %2601 = vmatprep.subr.bf16.mxu0 0
      %2602 = vmatpush1.bf16.xpose.msra.mxu0 0
      %2603 = vmatprep.subr.bf16.mxu0 0
      %2604 = vmatpush1.bf16.xpose.msra.mxu0 0
      %2605 = vmatprep.subr.bf16.mxu0 0
      %2606 = vmatpush1.bf16.xpose.msra.mxu0 0
      %2607 = vmatprep.subr.bf16.mxu0 0
      %2608 = vmatpush1.bf16.xpose.msra.mxu0 0
      %2609 = vmatprep.subr.bf16.mxu0 0
      %2610 = vmatpush1.bf16.xpose.msra.mxu0 0
      %2611 = vmatprep.subr.bf16.mxu0 0
      %2612 = vmatpush1.bf16.xpose.msra.mxu0 0
      %2613 = vmatprep.subr.bf16.mxu0 0
      %2614 = vmatpush1.bf16.xpose.msra.mxu0 0
      %2615 = vmatprep.subr.bf16.mxu0 0
      %2616 = vmatpush1.bf16.xpose.msra.mxu0 0
      %2617 = vmatprep.subr.bf16.mxu0 0
      %2618 = vmatpush1.bf16.xpose.msra.mxu0 0
      %2619 = vmatprep.subr.bf16.mxu0 0
      %2620 = vmatpush1.bf16.xpose.msra.mxu0 0
      %2621 = vmatprep.subr.bf16.mxu0 0
      %2622 = vmatpush1.bf16.xpose.msra.mxu0 0
      %2623 = vmatprep.subr.bf16.mxu0 0
      %2624 = vmatpush1.bf16.xpose.msra.mxu0 0
      %2625 = vmatprep.mubr.bf16.mxu0 0
      %2626 = vmatmul.mubr.bf16.gmra.mrb[0].mxu0 %v2588
      %v2627 = vpop.f32.mrb[0].mxu0
      %v2628 = vadd.f32 0.0, %v2627
      %v2629 = vpop.f32.mrb[0].mxu0
      %v2630 = vpop.f32.mrb[0].mxu0
      %v2631 = vpop.f32.mrb[0].mxu0
      %2632 = vdwg.mxu0
      %2634 = vrot.lane.b32.xlu0 %v1641, 96
      %v2635 = vpop.permute.xlu0 %2634
      %v2637 = vsel %vm464, %v1641, 0
      %v2640 = vsel %vm464, %v2635, 0
      %2642 = vmatprep.subr.bf16.mxu0 0
      %2643 = vmatpush1.bf16.xpose.msra.mxu0 %v2640
      %2644 = vmatprep.subr.bf16.mxu0 0
      %2645 = vmatpush1.bf16.xpose.msra.mxu0 0
      %2646 = vmatprep.subr.bf16.mxu0 0
      %2647 = vmatpush1.bf16.xpose.msra.mxu0 0
      %2648 = vmatprep.subr.bf16.mxu0 0
      %2649 = vmatpush1.bf16.xpose.msra.mxu0 0
      %2650 = vmatprep.subr.bf16.mxu0 0
      %2651 = vmatpush1.bf16.xpose.msra.mxu0 0
      %2652 = vmatprep.subr.bf16.mxu0 0
      %2653 = vmatpush1.bf16.xpose.msra.mxu0 0
      %2654 = vmatprep.subr.bf16.mxu0 0
      %2655 = vmatpush1.bf16.xpose.msra.mxu0 0
      %2656 = vmatprep.subr.bf16.mxu0 0
      %2657 = vmatpush1.bf16.xpose.msra.mxu0 0
      %2658 = vmatprep.subr.bf16.mxu0 0
      %2659 = vmatpush1.bf16.xpose.msra.mxu0 0
      %2660 = vmatprep.subr.bf16.mxu0 0
      %2661 = vmatpush1.bf16.xpose.msra.mxu0 0
      %2662 = vmatprep.subr.bf16.mxu0 0
      %2663 = vmatpush1.bf16.xpose.msra.mxu0 0
      %2664 = vmatprep.subr.bf16.mxu0 0
      %2665 = vmatpush1.bf16.xpose.msra.mxu0 0
      %2666 = vmatprep.subr.bf16.mxu0 0
      %2667 = vmatpush1.bf16.xpose.msra.mxu0 0
      %2668 = vmatprep.subr.bf16.mxu0 0
      %2669 = vmatpush1.bf16.xpose.msra.mxu0 0
      %2670 = vmatprep.subr.bf16.mxu0 0
      %2671 = vmatpush1.bf16.xpose.msra.mxu0 0
      %2672 = vmatprep.subr.bf16.mxu0 0
      %2673 = vmatpush1.bf16.xpose.msra.mxu0 0
      %2674 = vmatprep.mubr.bf16.mxu0 0
      %2675 = vmatmul.mubr.bf16.gmra.mrb[0].mxu0 %v2637
      %v2676 = vpop.f32.mrb[0].mxu0
      %v2677 = vadd.f32 0.0, %v2676
      %v2678 = vpop.f32.mrb[0].mxu0
      %v2679 = vpop.f32.mrb[0].mxu0
      %v2680 = vpop.f32.mrb[0].mxu0
      %2681 = vdwg.mxu0
      %2683 = vrot.lane.b32.xlu0 %v1642, 96
      %v2684 = vpop.permute.xlu0 %2683
      %v2686 = vsel %vm464, %v1642, 0
      %v2689 = vsel %vm464, %v2684, 0
      %2691 = vmatprep.subr.bf16.mxu0 0
      %2692 = vmatpush1.bf16.xpose.msra.mxu0 %v2689
      %2693 = vmatprep.subr.bf16.mxu0 0
      %2694 = vmatpush1.bf16.xpose.msra.mxu0 0
      %2695 = vmatprep.subr.bf16.mxu0 0
      %2696 = vmatpush1.bf16.xpose.msra.mxu0 0
      %2697 = vmatprep.subr.bf16.mxu0 0
      %2698 = vmatpush1.bf16.xpose.msra.mxu0 0
      %2699 = vmatprep.subr.bf16.mxu0 0
      %2700 = vmatpush1.bf16.xpose.msra.mxu0 0
      %2701 = vmatprep.subr.bf16.mxu0 0
      %2702 = vmatpush1.bf16.xpose.msra.mxu0 0
      %2703 = vmatprep.subr.bf16.mxu0 0
      %2704 = vmatpush1.bf16.xpose.msra.mxu0 0
      %2705 = vmatprep.subr.bf16.mxu0 0
      %2706 = vmatpush1.bf16.xpose.msra.mxu0 0
      %2707 = vmatprep.subr.bf16.mxu0 0
      %2708 = vmatpush1.bf16.xpose.msra.mxu0 0
      %2709 = vmatprep.subr.bf16.mxu0 0
      %2710 = vmatpush1.bf16.xpose.msra.mxu0 0
      %2711 = vmatprep.subr.bf16.mxu0 0
      %2712 = vmatpush1.bf16.xpose.msra.mxu0 0
      %2713 = vmatprep.subr.bf16.mxu0 0
      %2714 = vmatpush1.bf16.xpose.msra.mxu0 0
      %2715 = vmatprep.subr.bf16.mxu0 0
      %2716 = vmatpush1.bf16.xpose.msra.mxu0 0
      %2717 = vmatprep.subr.bf16.mxu0 0
      %2718 = vmatpush1.bf16.xpose.msra.mxu0 0
      %2719 = vmatprep.subr.bf16.mxu0 0
      %2720 = vmatpush1.bf16.xpose.msra.mxu0 0
      %2721 = vmatprep.subr.bf16.mxu0 0
      %2722 = vmatpush1.bf16.xpose.msra.mxu0 0
      %2723 = vmatprep.mubr.bf16.mxu0 0
      %2724 = vmatmul.mubr.bf16.gmra.mrb[0].mxu0 %v2686
      %v2725 = vpop.f32.mrb[0].mxu0
      %v2726 = vadd.f32 0.0, %v2725
      %v2727 = vpop.f32.mrb[0].mxu0
      %v2728 = vpop.f32.mrb[0].mxu0
      %v2729 = vpop.f32.mrb[0].mxu0
      %2730 = vdwg.mxu0
      %2732 = vrot.lane.b32.xlu0 %v1643, 96
      %v2733 = vpop.permute.xlu0 %2732
      %v2735 = vsel %vm464, %v1643, 0
      %v2738 = vsel %vm464, %v2733, 0
      %2740 = vmatprep.subr.bf16.mxu0 0
      %2741 = vmatpush1.bf16.xpose.msra.mxu0 %v2738
      %2742 = vmatprep.subr.bf16.mxu0 0
      %2743 = vmatpush1.bf16.xpose.msra.mxu0 0
      %2744 = vmatprep.subr.bf16.mxu0 0
      %2745 = vmatpush1.bf16.xpose.msra.mxu0 0
      %2746 = vmatprep.subr.bf16.mxu0 0
      %2747 = vmatpush1.bf16.xpose.msra.mxu0 0
      %2748 = vmatprep.subr.bf16.mxu0 0
      %2749 = vmatpush1.bf16.xpose.msra.mxu0 0
      %2750 = vmatprep.subr.bf16.mxu0 0
      %2751 = vmatpush1.bf16.xpose.msra.mxu0 0
      %2752 = vmatprep.subr.bf16.mxu0 0
      %2753 = vmatpush1.bf16.xpose.msra.mxu0 0
      %2754 = vmatprep.subr.bf16.mxu0 0
      %2755 = vmatpush1.bf16.xpose.msra.mxu0 0
      %2756 = vmatprep.subr.bf16.mxu0 0
      %2757 = vmatpush1.bf16.xpose.msra.mxu0 0
      %2758 = vmatprep.subr.bf16.mxu0 0
      %2759 = vmatpush1.bf16.xpose.msra.mxu0 0
      %2760 = vmatprep.subr.bf16.mxu0 0
      %2761 = vmatpush1.bf16.xpose.msra.mxu0 0
      %2762 = vmatprep.subr.bf16.mxu0 0
      %2763 = vmatpush1.bf16.xpose.msra.mxu0 0
      %2764 = vmatprep.subr.bf16.mxu0 0
      %2765 = vmatpush1.bf16.xpose.msra.mxu0 0
      %2766 = vmatprep.subr.bf16.mxu0 0
      %2767 = vmatpush1.bf16.xpose.msra.mxu0 0
      %2768 = vmatprep.subr.bf16.mxu0 0
      %2769 = vmatpush1.bf16.xpose.msra.mxu0 0
      %2770 = vmatprep.subr.bf16.mxu0 0
      %2771 = vmatpush1.bf16.xpose.msra.mxu0 0
      %2772 = vmatprep.mubr.bf16.mxu0 0
      %2773 = vmatmul.mubr.bf16.gmra.mrb[0].mxu0 %v2735
      %v2774 = vpop.f32.mrb[0].mxu0
      %v2775 = vadd.f32 0.0, %v2774
      %v2776 = vpop.f32.mrb[0].mxu0
      %v2777 = vpop.f32.mrb[0].mxu0
      %v2778 = vpop.f32.mrb[0].mxu0
      %2779 = vdwg.mxu0
      %2781 = vrot.lane.b32.xlu0 %v1644, 96
      %v2782 = vpop.permute.xlu0 %2781
      %v2784 = vsel %vm464, %v1644, 0
      %v2787 = vsel %vm464, %v2782, 0
      %2789 = vmatprep.subr.bf16.mxu0 0
      %2790 = vmatpush1.bf16.xpose.msra.mxu0 %v2787
      %2791 = vmatprep.subr.bf16.mxu0 0
      %2792 = vmatpush1.bf16.xpose.msra.mxu0 0
      %2793 = vmatprep.subr.bf16.mxu0 0
      %2794 = vmatpush1.bf16.xpose.msra.mxu0 0
      %2795 = vmatprep.subr.bf16.mxu0 0
      %2796 = vmatpush1.bf16.xpose.msra.mxu0 0
      %2797 = vmatprep.subr.bf16.mxu0 0
      %2798 = vmatpush1.bf16.xpose.msra.mxu0 0
      %2799 = vmatprep.subr.bf16.mxu0 0
      %2800 = vmatpush1.bf16.xpose.msra.mxu0 0
      %2801 = vmatprep.subr.bf16.mxu0 0
      %2802 = vmatpush1.bf16.xpose.msra.mxu0 0
      %2803 = vmatprep.subr.bf16.mxu0 0
      %2804 = vmatpush1.bf16.xpose.msra.mxu0 0
      %2805 = vmatprep.subr.bf16.mxu0 0
      %2806 = vmatpush1.bf16.xpose.msra.mxu0 0
      %2807 = vmatprep.subr.bf16.mxu0 0
      %2808 = vmatpush1.bf16.xpose.msra.mxu0 0
      %2809 = vmatprep.subr.bf16.mxu0 0
      %2810 = vmatpush1.bf16.xpose.msra.mxu0 0
      %2811 = vmatprep.subr.bf16.mxu0 0
      %2812 = vmatpush1.bf16.xpose.msra.mxu0 0
      %2813 = vmatprep.subr.bf16.mxu0 0
      %2814 = vmatpush1.bf16.xpose.msra.mxu0 0
      %2815 = vmatprep.subr.bf16.mxu0 0
      %2816 = vmatpush1.bf16.xpose.msra.mxu0 0
      %2817 = vmatprep.subr.bf16.mxu0 0
      %2818 = vmatpush1.bf16.xpose.msra.mxu0 0
      %2819 = vmatprep.subr.bf16.mxu0 0
      %2820 = vmatpush1.bf16.xpose.msra.mxu0 0
      %2821 = vmatprep.mubr.bf16.mxu0 0
      %2822 = vmatmul.mubr.bf16.gmra.mrb[0].mxu0 %v2784
      %v2823 = vpop.f32.mrb[0].mxu0
      %v2824 = vadd.f32 0.0, %v2823
      %v2825 = vpop.f32.mrb[0].mxu0
      %v2826 = vpop.f32.mrb[0].mxu0
      %v2827 = vpop.f32.mrb[0].mxu0
      %2828 = vdwg.mxu0
      %2830 = vrot.lane.b32.xlu0 %v1645, 96
      %v2831 = vpop.permute.xlu0 %2830
      %v2833 = vsel %vm464, %v1645, 0
      %v2836 = vsel %vm464, %v2831, 0
      %2838 = vmatprep.subr.bf16.mxu0 0
      %2839 = vmatpush1.bf16.xpose.msra.mxu0 %v2836
      %2840 = vmatprep.subr.bf16.mxu0 0
      %2841 = vmatpush1.bf16.xpose.msra.mxu0 0
      %2842 = vmatprep.subr.bf16.mxu0 0
      %2843 = vmatpush1.bf16.xpose.msra.mxu0 0
      %2844 = vmatprep.subr.bf16.mxu0 0
      %2845 = vmatpush1.bf16.xpose.msra.mxu0 0
      %2846 = vmatprep.subr.bf16.mxu0 0
      %2847 = vmatpush1.bf16.xpose.msra.mxu0 0
      %2848 = vmatprep.subr.bf16.mxu0 0
      %2849 = vmatpush1.bf16.xpose.msra.mxu0 0
      %2850 = vmatprep.subr.bf16.mxu0 0
      %2851 = vmatpush1.bf16.xpose.msra.mxu0 0
      %2852 = vmatprep.subr.bf16.mxu0 0
      %2853 = vmatpush1.bf16.xpose.msra.mxu0 0
      %2854 = vmatprep.subr.bf16.mxu0 0
      %2855 = vmatpush1.bf16.xpose.msra.mxu0 0
      %2856 = vmatprep.subr.bf16.mxu0 0
      %2857 = vmatpush1.bf16.xpose.msra.mxu0 0
      %2858 = vmatprep.subr.bf16.mxu0 0
      %2859 = vmatpush1.bf16.xpose.msra.mxu0 0
      %2860 = vmatprep.subr.bf16.mxu0 0
      %2861 = vmatpush1.bf16.xpose.msra.mxu0 0
      %2862 = vmatprep.subr.bf16.mxu0 0
      %2863 = vmatpush1.bf16.xpose.msra.mxu0 0
      %2864 = vmatprep.subr.bf16.mxu0 0
      %2865 = vmatpush1.bf16.xpose.msra.mxu0 0
      %2866 = vmatprep.subr.bf16.mxu0 0
      %2867 = vmatpush1.bf16.xpose.msra.mxu0 0
      %2868 = vmatprep.subr.bf16.mxu0 0
      %2869 = vmatpush1.bf16.xpose.msra.mxu0 0
      %2870 = vmatprep.mubr.bf16.mxu0 0
      %2871 = vmatmul.mubr.bf16.gmra.mrb[0].mxu0 %v2833
      %v2872 = vpop.f32.mrb[0].mxu0
      %v2873 = vadd.f32 0.0, %v2872
      %v2874 = vpop.f32.mrb[0].mxu0
      %v2875 = vpop.f32.mrb[0].mxu0
      %v2876 = vpop.f32.mrb[0].mxu0
      %2877 = vdwg.mxu0
      %2879 = vrot.lane.b32.xlu0 %v1646, 96
      %v2880 = vpop.permute.xlu0 %2879
      %v2882 = vsel %vm464, %v1646, 0
      %v2885 = vsel %vm464, %v2880, 0
      %2887 = vmatprep.subr.bf16.mxu0 0
      %2888 = vmatpush1.bf16.xpose.msra.mxu0 %v2885
      %2889 = vmatprep.subr.bf16.mxu0 0
      %2890 = vmatpush1.bf16.xpose.msra.mxu0 0
      %2891 = vmatprep.subr.bf16.mxu0 0
      %2892 = vmatpush1.bf16.xpose.msra.mxu0 0
      %2893 = vmatprep.subr.bf16.mxu0 0
      %2894 = vmatpush1.bf16.xpose.msra.mxu0 0
      %2895 = vmatprep.subr.bf16.mxu0 0
      %2896 = vmatpush1.bf16.xpose.msra.mxu0 0
      %2897 = vmatprep.subr.bf16.mxu0 0
      %2898 = vmatpush1.bf16.xpose.msra.mxu0 0
      %2899 = vmatprep.subr.bf16.mxu0 0
      %2900 = vmatpush1.bf16.xpose.msra.mxu0 0
      %2901 = vmatprep.subr.bf16.mxu0 0
      %2902 = vmatpush1.bf16.xpose.msra.mxu0 0
      %2903 = vmatprep.subr.bf16.mxu0 0
      %2904 = vmatpush1.bf16.xpose.msra.mxu0 0
      %2905 = vmatprep.subr.bf16.mxu0 0
      %2906 = vmatpush1.bf16.xpose.msra.mxu0 0
      %2907 = vmatprep.subr.bf16.mxu0 0
      %2908 = vmatpush1.bf16.xpose.msra.mxu0 0
      %2909 = vmatprep.subr.bf16.mxu0 0
      %2910 = vmatpush1.bf16.xpose.msra.mxu0 0
      %2911 = vmatprep.subr.bf16.mxu0 0
      %2912 = vmatpush1.bf16.xpose.msra.mxu0 0
      %2913 = vmatprep.subr.bf16.mxu0 0
      %2914 = vmatpush1.bf16.xpose.msra.mxu0 0
      %2915 = vmatprep.subr.bf16.mxu0 0
      %2916 = vmatpush1.bf16.xpose.msra.mxu0 0
      %2917 = vmatprep.subr.bf16.mxu0 0
      %2918 = vmatpush1.bf16.xpose.msra.mxu0 0
      %2919 = vmatprep.mubr.bf16.mxu0 0
      %2920 = vmatmul.mubr.bf16.gmra.mrb[0].mxu0 %v2882
      %v2921 = vpop.f32.mrb[0].mxu0
      %v2922 = vadd.f32 0.0, %v2921
      %v2923 = vpop.f32.mrb[0].mxu0
      %v2924 = vpop.f32.mrb[0].mxu0
      %v2925 = vpop.f32.mrb[0].mxu0
      %2926 = vdwg.mxu0
      %2928 = vrot.lane.b32.xlu0 %v1647, 96
      %v2929 = vpop.permute.xlu0 %2928
      %v2931 = vsel %vm464, %v1647, 0
      %v2934 = vsel %vm464, %v2929, 0
      %2936 = vmatprep.subr.bf16.mxu0 0
      %2937 = vmatpush1.bf16.xpose.msra.mxu0 %v2934
      %2938 = vmatprep.subr.bf16.mxu0 0
      %2939 = vmatpush1.bf16.xpose.msra.mxu0 0
      %2940 = vmatprep.subr.bf16.mxu0 0
      %2941 = vmatpush1.bf16.xpose.msra.mxu0 0
      %2942 = vmatprep.subr.bf16.mxu0 0
      %2943 = vmatpush1.bf16.xpose.msra.mxu0 0
      %2944 = vmatprep.subr.bf16.mxu0 0
      %2945 = vmatpush1.bf16.xpose.msra.mxu0 0
      %2946 = vmatprep.subr.bf16.mxu0 0
      %2947 = vmatpush1.bf16.xpose.msra.mxu0 0
      %2948 = vmatprep.subr.bf16.mxu0 0
      %2949 = vmatpush1.bf16.xpose.msra.mxu0 0
      %2950 = vmatprep.subr.bf16.mxu0 0
      %2951 = vmatpush1.bf16.xpose.msra.mxu0 0
      %2952 = vmatprep.subr.bf16.mxu0 0
      %2953 = vmatpush1.bf16.xpose.msra.mxu0 0
      %2954 = vmatprep.subr.bf16.mxu0 0
      %2955 = vmatpush1.bf16.xpose.msra.mxu0 0
      %2956 = vmatprep.subr.bf16.mxu0 0
      %2957 = vmatpush1.bf16.xpose.msra.mxu0 0
      %2958 = vmatprep.subr.bf16.mxu0 0
      %2959 = vmatpush1.bf16.xpose.msra.mxu0 0
      %2960 = vmatprep.subr.bf16.mxu0 0
      %2961 = vmatpush1.bf16.xpose.msra.mxu0 0
      %2962 = vmatprep.subr.bf16.mxu0 0
      %2963 = vmatpush1.bf16.xpose.msra.mxu0 0
      %2964 = vmatprep.subr.bf16.mxu0 0
      %2965 = vmatpush1.bf16.xpose.msra.mxu0 0
      %2966 = vmatprep.subr.bf16.mxu0 0
      %2967 = vmatpush1.bf16.xpose.msra.mxu0 0
      %2968 = vmatprep.mubr.bf16.mxu0 0
      %2969 = vmatmul.mubr.bf16.gmra.mrb[0].mxu0 %v2931
      %v2970 = vpop.f32.mrb[0].mxu0
      %v2971 = vadd.f32 0.0, %v2970
      %v2972 = vpop.f32.mrb[0].mxu0
      %v2973 = vpop.f32.mrb[0].mxu0
      %v2974 = vpop.f32.mrb[0].mxu0
      %2975 = vdwg.mxu0
      %2977 = vrot.lane.b32.xlu0 %v1648, 96
      %v2978 = vpop.permute.xlu0 %2977
      %v2980 = vsel %vm464, %v1648, 0
      %v2983 = vsel %vm464, %v2978, 0
      %2985 = vmatprep.subr.bf16.mxu0 0
      %2986 = vmatpush1.bf16.xpose.msra.mxu0 %v2983
      %2987 = vmatprep.subr.bf16.mxu0 0
      %2988 = vmatpush1.bf16.xpose.msra.mxu0 0
      %2989 = vmatprep.subr.bf16.mxu0 0
      %2990 = vmatpush1.bf16.xpose.msra.mxu0 0
      %2991 = vmatprep.subr.bf16.mxu0 0
      %2992 = vmatpush1.bf16.xpose.msra.mxu0 0
      %2993 = vmatprep.subr.bf16.mxu0 0
      %2994 = vmatpush1.bf16.xpose.msra.mxu0 0
      %2995 = vmatprep.subr.bf16.mxu0 0
      %2996 = vmatpush1.bf16.xpose.msra.mxu0 0
      %2997 = vmatprep.subr.bf16.mxu0 0
      %2998 = vmatpush1.bf16.xpose.msra.mxu0 0
      %2999 = vmatprep.subr.bf16.mxu0 0
      %3000 = vmatpush1.bf16.xpose.msra.mxu0 0
      %3001 = vmatprep.subr.bf16.mxu0 0
      %3002 = vmatpush1.bf16.xpose.msra.mxu0 0
      %3003 = vmatprep.subr.bf16.mxu0 0
      %3004 = vmatpush1.bf16.xpose.msra.mxu0 0
      %3005 = vmatprep.subr.bf16.mxu0 0
      %3006 = vmatpush1.bf16.xpose.msra.mxu0 0
      %3007 = vmatprep.subr.bf16.mxu0 0
      %3008 = vmatpush1.bf16.xpose.msra.mxu0 0
      %3009 = vmatprep.subr.bf16.mxu0 0
      %3010 = vmatpush1.bf16.xpose.msra.mxu0 0
      %3011 = vmatprep.subr.bf16.mxu0 0
      %3012 = vmatpush1.bf16.xpose.msra.mxu0 0
      %3013 = vmatprep.subr.bf16.mxu0 0
      %3014 = vmatpush1.bf16.xpose.msra.mxu0 0
      %3015 = vmatprep.subr.bf16.mxu0 0
      %3016 = vmatpush1.bf16.xpose.msra.mxu0 0
      %3017 = vmatprep.mubr.bf16.mxu0 0
      %3018 = vmatmul.mubr.bf16.gmra.mrb[0].mxu0 %v2980
      %v3019 = vpop.f32.mrb[0].mxu0
      %v3020 = vadd.f32 0.0, %v3019
      %v3021 = vpop.f32.mrb[0].mxu0
      %v3022 = vpop.f32.mrb[0].mxu0
      %v3023 = vpop.f32.mrb[0].mxu0
      %3024 = vdwg.mxu0
      %3026 = vrot.lane.b32.xlu0 %v1649, 96
      %v3027 = vpop.permute.xlu0 %3026
      %v3029 = vsel %vm464, %v1649, 0
      %v3032 = vsel %vm464, %v3027, 0
      %3034 = vmatprep.subr.bf16.mxu0 0
      %3035 = vmatpush1.bf16.xpose.msra.mxu0 %v3032
      %3036 = vmatprep.subr.bf16.mxu0 0
      %3037 = vmatpush1.bf16.xpose.msra.mxu0 0
      %3038 = vmatprep.subr.bf16.mxu0 0
      %3039 = vmatpush1.bf16.xpose.msra.mxu0 0
      %3040 = vmatprep.subr.bf16.mxu0 0
      %3041 = vmatpush1.bf16.xpose.msra.mxu0 0
      %3042 = vmatprep.subr.bf16.mxu0 0
      %3043 = vmatpush1.bf16.xpose.msra.mxu0 0
      %3044 = vmatprep.subr.bf16.mxu0 0
      %3045 = vmatpush1.bf16.xpose.msra.mxu0 0
      %3046 = vmatprep.subr.bf16.mxu0 0
      %3047 = vmatpush1.bf16.xpose.msra.mxu0 0
      %3048 = vmatprep.subr.bf16.mxu0 0
      %3049 = vmatpush1.bf16.xpose.msra.mxu0 0
      %3050 = vmatprep.subr.bf16.mxu0 0
      %3051 = vmatpush1.bf16.xpose.msra.mxu0 0
      %3052 = vmatprep.subr.bf16.mxu0 0
      %3053 = vmatpush1.bf16.xpose.msra.mxu0 0
      %3054 = vmatprep.subr.bf16.mxu0 0
      %3055 = vmatpush1.bf16.xpose.msra.mxu0 0
      %3056 = vmatprep.subr.bf16.mxu0 0
      %3057 = vmatpush1.bf16.xpose.msra.mxu0 0
      %3058 = vmatprep.subr.bf16.mxu0 0
      %3059 = vmatpush1.bf16.xpose.msra.mxu0 0
      %3060 = vmatprep.subr.bf16.mxu0 0
      %3061 = vmatpush1.bf16.xpose.msra.mxu0 0
      %3062 = vmatprep.subr.bf16.mxu0 0
      %3063 = vmatpush1.bf16.xpose.msra.mxu0 0
      %3064 = vmatprep.subr.bf16.mxu0 0
      %3065 = vmatpush1.bf16.xpose.msra.mxu0 0
      %3066 = vmatprep.mubr.bf16.mxu0 0
      %3067 = vmatmul.mubr.bf16.gmra.mrb[0].mxu0 %v3029
      %v3068 = vpop.f32.mrb[0].mxu0
      %v3069 = vadd.f32 0.0, %v3068
      %v3070 = vpop.f32.mrb[0].mxu0
      %v3071 = vpop.f32.mrb[0].mxu0
      %v3072 = vpop.f32.mrb[0].mxu0
      %3073 = vdwg.mxu0
      %3075 = vrot.lane.b32.xlu0 %v1650, 96
      %v3076 = vpop.permute.xlu0 %3075
      %v3078 = vsel %vm464, %v1650, 0
      %v3081 = vsel %vm464, %v3076, 0
      %3083 = vmatprep.subr.bf16.mxu0 0
      %3084 = vmatpush1.bf16.xpose.msra.mxu0 %v3081
      %3085 = vmatprep.subr.bf16.mxu0 0
      %3086 = vmatpush1.bf16.xpose.msra.mxu0 0
      %3087 = vmatprep.subr.bf16.mxu0 0
      %3088 = vmatpush1.bf16.xpose.msra.mxu0 0
      %3089 = vmatprep.subr.bf16.mxu0 0
      %3090 = vmatpush1.bf16.xpose.msra.mxu0 0
      %3091 = vmatprep.subr.bf16.mxu0 0
      %3092 = vmatpush1.bf16.xpose.msra.mxu0 0
      %3093 = vmatprep.subr.bf16.mxu0 0
      %3094 = vmatpush1.bf16.xpose.msra.mxu0 0
      %3095 = vmatprep.subr.bf16.mxu0 0
      %3096 = vmatpush1.bf16.xpose.msra.mxu0 0
      %3097 = vmatprep.subr.bf16.mxu0 0
      %3098 = vmatpush1.bf16.xpose.msra.mxu0 0
      %3099 = vmatprep.subr.bf16.mxu0 0
      %3100 = vmatpush1.bf16.xpose.msra.mxu0 0
      %3101 = vmatprep.subr.bf16.mxu0 0
      %3102 = vmatpush1.bf16.xpose.msra.mxu0 0
      %3103 = vmatprep.subr.bf16.mxu0 0
      %3104 = vmatpush1.bf16.xpose.msra.mxu0 0
      %3105 = vmatprep.subr.bf16.mxu0 0
      %3106 = vmatpush1.bf16.xpose.msra.mxu0 0
      %3107 = vmatprep.subr.bf16.mxu0 0
      %3108 = vmatpush1.bf16.xpose.msra.mxu0 0
      %3109 = vmatprep.subr.bf16.mxu0 0
      %3110 = vmatpush1.bf16.xpose.msra.mxu0 0
      %3111 = vmatprep.subr.bf16.mxu0 0
      %3112 = vmatpush1.bf16.xpose.msra.mxu0 0
      %3113 = vmatprep.subr.bf16.mxu0 0
      %3114 = vmatpush1.bf16.xpose.msra.mxu0 0
      %3115 = vmatprep.mubr.bf16.mxu0 0
      %3116 = vmatmul.mubr.bf16.gmra.mrb[0].mxu0 %v3078
      %v3117 = vpop.f32.mrb[0].mxu0
      %v3118 = vadd.f32 0.0, %v3117
      %v3119 = vpop.f32.mrb[0].mxu0
      %v3120 = vpop.f32.mrb[0].mxu0
      %v3121 = vpop.f32.mrb[0].mxu0
      %3122 = vdwg.mxu0
      %3124 = vrot.lane.b32.xlu0 %v1651, 96
      %v3125 = vpop.permute.xlu0 %3124
      %v3127 = vsel %vm464, %v1651, 0
      %v3130 = vsel %vm464, %v3125, 0
      %3132 = vmatprep.subr.bf16.mxu0 0
      %3133 = vmatpush1.bf16.xpose.msra.mxu0 %v3130
      %3134 = vmatprep.subr.bf16.mxu0 0
      %3135 = vmatpush1.bf16.xpose.msra.mxu0 0
      %3136 = vmatprep.subr.bf16.mxu0 0
      %3137 = vmatpush1.bf16.xpose.msra.mxu0 0
      %3138 = vmatprep.subr.bf16.mxu0 0
      %3139 = vmatpush1.bf16.xpose.msra.mxu0 0
      %3140 = vmatprep.subr.bf16.mxu0 0
      %3141 = vmatpush1.bf16.xpose.msra.mxu0 0
      %3142 = vmatprep.subr.bf16.mxu0 0
      %3143 = vmatpush1.bf16.xpose.msra.mxu0 0
      %3144 = vmatprep.subr.bf16.mxu0 0
      %3145 = vmatpush1.bf16.xpose.msra.mxu0 0
      %3146 = vmatprep.subr.bf16.mxu0 0
      %3147 = vmatpush1.bf16.xpose.msra.mxu0 0
      %3148 = vmatprep.subr.bf16.mxu0 0
      %3149 = vmatpush1.bf16.xpose.msra.mxu0 0
      %3150 = vmatprep.subr.bf16.mxu0 0
      %3151 = vmatpush1.bf16.xpose.msra.mxu0 0
      %3152 = vmatprep.subr.bf16.mxu0 0
      %3153 = vmatpush1.bf16.xpose.msra.mxu0 0
      %3154 = vmatprep.subr.bf16.mxu0 0
      %3155 = vmatpush1.bf16.xpose.msra.mxu0 0
      %3156 = vmatprep.subr.bf16.mxu0 0
      %3157 = vmatpush1.bf16.xpose.msra.mxu0 0
      %3158 = vmatprep.subr.bf16.mxu0 0
      %3159 = vmatpush1.bf16.xpose.msra.mxu0 0
      %3160 = vmatprep.subr.bf16.mxu0 0
      %3161 = vmatpush1.bf16.xpose.msra.mxu0 0
      %3162 = vmatprep.subr.bf16.mxu0 0
      %3163 = vmatpush1.bf16.xpose.msra.mxu0 0
      %3164 = vmatprep.mubr.bf16.mxu0 0
      %3165 = vmatmul.mubr.bf16.gmra.mrb[0].mxu0 %v3127
      %v3166 = vpop.f32.mrb[0].mxu0
      %v3167 = vadd.f32 0.0, %v3166
      %v3168 = vpop.f32.mrb[0].mxu0
      %v3169 = vpop.f32.mrb[0].mxu0
      %v3170 = vpop.f32.mrb[0].mxu0
      %3171 = vdwg.mxu0
      %3173 = vrot.lane.b32.xlu0 %v1652, 96
      %v3174 = vpop.permute.xlu0 %3173
      %v3176 = vsel %vm464, %v1652, 0
      %v3179 = vsel %vm464, %v3174, 0
      %3181 = vmatprep.subr.bf16.mxu0 0
      %3182 = vmatpush1.bf16.xpose.msra.mxu0 %v3179
      %3183 = vmatprep.subr.bf16.mxu0 0
      %3184 = vmatpush1.bf16.xpose.msra.mxu0 0
      %3185 = vmatprep.subr.bf16.mxu0 0
      %3186 = vmatpush1.bf16.xpose.msra.mxu0 0
      %3187 = vmatprep.subr.bf16.mxu0 0
      %3188 = vmatpush1.bf16.xpose.msra.mxu0 0
      %3189 = vmatprep.subr.bf16.mxu0 0
      %3190 = vmatpush1.bf16.xpose.msra.mxu0 0
      %3191 = vmatprep.subr.bf16.mxu0 0
      %3192 = vmatpush1.bf16.xpose.msra.mxu0 0
      %3193 = vmatprep.subr.bf16.mxu0 0
      %3194 = vmatpush1.bf16.xpose.msra.mxu0 0
      %3195 = vmatprep.subr.bf16.mxu0 0
      %3196 = vmatpush1.bf16.xpose.msra.mxu0 0
      %3197 = vmatprep.subr.bf16.mxu0 0
      %3198 = vmatpush1.bf16.xpose.msra.mxu0 0
      %3199 = vmatprep.subr.bf16.mxu0 0
      %3200 = vmatpush1.bf16.xpose.msra.mxu0 0
      %3201 = vmatprep.subr.bf16.mxu0 0
      %3202 = vmatpush1.bf16.xpose.msra.mxu0 0
      %3203 = vmatprep.subr.bf16.mxu0 0
      %3204 = vmatpush1.bf16.xpose.msra.mxu0 0
      %3205 = vmatprep.subr.bf16.mxu0 0
      %3206 = vmatpush1.bf16.xpose.msra.mxu0 0
      %3207 = vmatprep.subr.bf16.mxu0 0
      %3208 = vmatpush1.bf16.xpose.msra.mxu0 0
      %3209 = vmatprep.subr.bf16.mxu0 0
      %3210 = vmatpush1.bf16.xpose.msra.mxu0 0
      %3211 = vmatprep.subr.bf16.mxu0 0
      %3212 = vmatpush1.bf16.xpose.msra.mxu0 0
      %3213 = vmatprep.mubr.bf16.mxu0 0
      %3214 = vmatmul.mubr.bf16.gmra.mrb[0].mxu0 %v3176
      %v3215 = vpop.f32.mrb[0].mxu0
      %v3216 = vadd.f32 0.0, %v3215
      %v3217 = vpop.f32.mrb[0].mxu0
      %v3218 = vpop.f32.mrb[0].mxu0
      %v3219 = vpop.f32.mrb[0].mxu0
      %3220 = vdwg.mxu0
      %v3221 = vmul.f32 %v1697, 0.17677669
      %v3222 = vmul.f32 %v1746, 0.17677669
      %v3223 = vmul.f32 %v1795, 0.17677669
      %v3224 = vmul.f32 %v1844, 0.17677669
      %v3225 = vmul.f32 %v1893, 0.17677669
      %v3226 = vmul.f32 %v1942, 0.17677669
      %v3227 = vmul.f32 %v1991, 0.17677669
      %v3228 = vmul.f32 %v2040, 0.17677669
      %v3229 = vmul.f32 %v2089, 0.17677669
      %v3230 = vmul.f32 %v2138, 0.17677669
      %v3231 = vmul.f32 %v2187, 0.17677669
      %v3232 = vmul.f32 %v2236, 0.17677669
      %v3233 = vmul.f32 %v2285, 0.17677669
      %v3234 = vmul.f32 %v2334, 0.17677669
      %v3235 = vmul.f32 %v2383, 0.17677669
      %v3236 = vmul.f32 %v2432, 0.17677669
      %v3237 = vmul.f32 %v2481, 0.17677669
      %v3238 = vmul.f32 %v2530, 0.17677669
      %v3239 = vmul.f32 %v2579, 0.17677669
      %v3240 = vmul.f32 %v2628, 0.17677669
      %v3241 = vmul.f32 %v2677, 0.17677669
      %v3242 = vmul.f32 %v2726, 0.17677669
      %v3243 = vmul.f32 %v2775, 0.17677669
      %v3244 = vmul.f32 %v2824, 0.17677669
      %v3245 = vmul.f32 %v2873, 0.17677669
      %v3246 = vmul.f32 %v2922, 0.17677669
      %v3247 = vmul.f32 %v2971, 0.17677669
      %v3248 = vmul.f32 %v3020, 0.17677669
      %v3249 = vmul.f32 %v3069, 0.17677669
      %v3250 = vmul.f32 %v3118, 0.17677669
      %v3251 = vmul.f32 %v3167, 0.17677669
      %v3252 = vmul.f32 %v3216, 0.17677669
      %3253 = vmatprep.subr.bf16.mxu0 0
      %3254 = vmatpush1.bf16.xpose.msra.mxu0 %v1657
      %3255 = vmatprep.subr.bf16.mxu0 0
      %3256 = vmatpush1.bf16.xpose.msra.mxu0 0
      %3257 = vmatprep.subr.bf16.mxu0 0
      %3258 = vmatpush1.bf16.xpose.msra.mxu0 0
      %3259 = vmatprep.subr.bf16.mxu0 0
      %3260 = vmatpush1.bf16.xpose.msra.mxu0 0
      %3261 = vmatprep.subr.bf16.mxu0 0
      %3262 = vmatpush1.bf16.xpose.msra.mxu0 0
      %3263 = vmatprep.subr.bf16.mxu0 0
      %3264 = vmatpush1.bf16.xpose.msra.mxu0 0
      %3265 = vmatprep.subr.bf16.mxu0 0
      %3266 = vmatpush1.bf16.xpose.msra.mxu0 0
      %3267 = vmatprep.subr.bf16.mxu0 0
      %3268 = vmatpush1.bf16.xpose.msra.mxu0 0
      %3269 = vmatprep.subr.bf16.mxu0 0
      %3270 = vmatpush1.bf16.xpose.msra.mxu0 0
      %3271 = vmatprep.subr.bf16.mxu0 0
      %3272 = vmatpush1.bf16.xpose.msra.mxu0 0
      %3273 = vmatprep.subr.bf16.mxu0 0
      %3274 = vmatpush1.bf16.xpose.msra.mxu0 0
      %3275 = vmatprep.subr.bf16.mxu0 0
      %3276 = vmatpush1.bf16.xpose.msra.mxu0 0
      %3277 = vmatprep.subr.bf16.mxu0 0
      %3278 = vmatpush1.bf16.xpose.msra.mxu0 0
      %3279 = vmatprep.subr.bf16.mxu0 0
      %3280 = vmatpush1.bf16.xpose.msra.mxu0 0
      %3281 = vmatprep.subr.bf16.mxu0 0
      %3282 = vmatpush1.bf16.xpose.msra.mxu0 0
      %3283 = vmatprep.subr.bf16.mxu0 0
      %3284 = vmatpush1.bf16.xpose.msra.mxu0 0
      %3285 = vmatprep.mubr.bf16.mxu0 0
      %3286 = vmatmul.mubr.bf16.gmra.mrb[0].mxu0 %v1660
      %v3287 = vpop.f32.mrb[0].mxu0
      %v3288 = vadd.f32 0.0, %v3287
      %v3289 = vpop.f32.mrb[0].mxu0
      %v3290 = vpop.f32.mrb[0].mxu0
      %v3291 = vpop.f32.mrb[0].mxu0
      %3292 = vdwg.mxu0
      %3293 = vmatprep.subr.bf16.mxu0 0
      %3294 = vmatpush1.bf16.xpose.msra.mxu0 %v1706
      %3295 = vmatprep.subr.bf16.mxu0 0
      %3296 = vmatpush1.bf16.xpose.msra.mxu0 0
      %3297 = vmatprep.subr.bf16.mxu0 0
      %3298 = vmatpush1.bf16.xpose.msra.mxu0 0
      %3299 = vmatprep.subr.bf16.mxu0 0
      %3300 = vmatpush1.bf16.xpose.msra.mxu0 0
      %3301 = vmatprep.subr.bf16.mxu0 0
      %3302 = vmatpush1.bf16.xpose.msra.mxu0 0
      %3303 = vmatprep.subr.bf16.mxu0 0
      %3304 = vmatpush1.bf16.xpose.msra.mxu0 0
      %3305 = vmatprep.subr.bf16.mxu0 0
      %3306 = vmatpush1.bf16.xpose.msra.mxu0 0
      %3307 = vmatprep.subr.bf16.mxu0 0
      %3308 = vmatpush1.bf16.xpose.msra.mxu0 0
      %3309 = vmatprep.subr.bf16.mxu0 0
      %3310 = vmatpush1.bf16.xpose.msra.mxu0 0
      %3311 = vmatprep.subr.bf16.mxu0 0
      %3312 = vmatpush1.bf16.xpose.msra.mxu0 0
      %3313 = vmatprep.subr.bf16.mxu0 0
      %3314 = vmatpush1.bf16.xpose.msra.mxu0 0
      %3315 = vmatprep.subr.bf16.mxu0 0
      %3316 = vmatpush1.bf16.xpose.msra.mxu0 0
      %3317 = vmatprep.subr.bf16.mxu0 0
      %3318 = vmatpush1.bf16.xpose.msra.mxu0 0
      %3319 = vmatprep.subr.bf16.mxu0 0
      %3320 = vmatpush1.bf16.xpose.msra.mxu0 0
      %3321 = vmatprep.subr.bf16.mxu0 0
      %3322 = vmatpush1.bf16.xpose.msra.mxu0 0
      %3323 = vmatprep.subr.bf16.mxu0 0
      %3324 = vmatpush1.bf16.xpose.msra.mxu0 0
      %3325 = vmatprep.mubr.bf16.mxu0 0
      %3326 = vmatmul.mubr.bf16.gmra.mrb[0].mxu0 %v1709
      %v3327 = vpop.f32.mrb[0].mxu0
      %v3328 = vadd.f32 0.0, %v3327
      %v3329 = vpop.f32.mrb[0].mxu0
      %v3330 = vpop.f32.mrb[0].mxu0
      %v3331 = vpop.f32.mrb[0].mxu0
      %3332 = vdwg.mxu0
      %3333 = vmatprep.subr.bf16.mxu0 0
      %3334 = vmatpush1.bf16.xpose.msra.mxu0 %v1755
      %3335 = vmatprep.subr.bf16.mxu0 0
      %3336 = vmatpush1.bf16.xpose.msra.mxu0 0
      %3337 = vmatprep.subr.bf16.mxu0 0
      %3338 = vmatpush1.bf16.xpose.msra.mxu0 0
      %3339 = vmatprep.subr.bf16.mxu0 0
      %3340 = vmatpush1.bf16.xpose.msra.mxu0 0
      %3341 = vmatprep.subr.bf16.mxu0 0
      %3342 = vmatpush1.bf16.xpose.msra.mxu0 0
      %3343 = vmatprep.subr.bf16.mxu0 0
      %3344 = vmatpush1.bf16.xpose.msra.mxu0 0
      %3345 = vmatprep.subr.bf16.mxu0 0
      %3346 = vmatpush1.bf16.xpose.msra.mxu0 0
      %3347 = vmatprep.subr.bf16.mxu0 0
      %3348 = vmatpush1.bf16.xpose.msra.mxu0 0
      %3349 = vmatprep.subr.bf16.mxu0 0
      %3350 = vmatpush1.bf16.xpose.msra.mxu0 0
      %3351 = vmatprep.subr.bf16.mxu0 0
      %3352 = vmatpush1.bf16.xpose.msra.mxu0 0
      %3353 = vmatprep.subr.bf16.mxu0 0
      %3354 = vmatpush1.bf16.xpose.msra.mxu0 0
      %3355 = vmatprep.subr.bf16.mxu0 0
      %3356 = vmatpush1.bf16.xpose.msra.mxu0 0
      %3357 = vmatprep.subr.bf16.mxu0 0
      %3358 = vmatpush1.bf16.xpose.msra.mxu0 0
      %3359 = vmatprep.subr.bf16.mxu0 0
      %3360 = vmatpush1.bf16.xpose.msra.mxu0 0
      %3361 = vmatprep.subr.bf16.mxu0 0
      %3362 = vmatpush1.bf16.xpose.msra.mxu0 0
      %3363 = vmatprep.subr.bf16.mxu0 0
      %3364 = vmatpush1.bf16.xpose.msra.mxu0 0
      %3365 = vmatprep.mubr.bf16.mxu0 0
      %3366 = vmatmul.mubr.bf16.gmra.mrb[0].mxu0 %v1758
      %v3367 = vpop.f32.mrb[0].mxu0
      %v3368 = vadd.f32 0.0, %v3367
      %v3369 = vpop.f32.mrb[0].mxu0
      %v3370 = vpop.f32.mrb[0].mxu0
      %v3371 = vpop.f32.mrb[0].mxu0
      %3372 = vdwg.mxu0
      %3373 = vmatprep.subr.bf16.mxu0 0
      %3374 = vmatpush1.bf16.xpose.msra.mxu0 %v1804
      %3375 = vmatprep.subr.bf16.mxu0 0
      %3376 = vmatpush1.bf16.xpose.msra.mxu0 0
      %3377 = vmatprep.subr.bf16.mxu0 0
      %3378 = vmatpush1.bf16.xpose.msra.mxu0 0
      %3379 = vmatprep.subr.bf16.mxu0 0
      %3380 = vmatpush1.bf16.xpose.msra.mxu0 0
      %3381 = vmatprep.subr.bf16.mxu0 0
      %3382 = vmatpush1.bf16.xpose.msra.mxu0 0
      %3383 = vmatprep.subr.bf16.mxu0 0
      %3384 = vmatpush1.bf16.xpose.msra.mxu0 0
      %3385 = vmatprep.subr.bf16.mxu0 0
      %3386 = vmatpush1.bf16.xpose.msra.mxu0 0
      %3387 = vmatprep.subr.bf16.mxu0 0
      %3388 = vmatpush1.bf16.xpose.msra.mxu0 0
      %3389 = vmatprep.subr.bf16.mxu0 0
      %3390 = vmatpush1.bf16.xpose.msra.mxu0 0
      %3391 = vmatprep.subr.bf16.mxu0 0
      %3392 = vmatpush1.bf16.xpose.msra.mxu0 0
      %3393 = vmatprep.subr.bf16.mxu0 0
      %3394 = vmatpush1.bf16.xpose.msra.mxu0 0
      %3395 = vmatprep.subr.bf16.mxu0 0
      %3396 = vmatpush1.bf16.xpose.msra.mxu0 0
      %3397 = vmatprep.subr.bf16.mxu0 0
      %3398 = vmatpush1.bf16.xpose.msra.mxu0 0
      %3399 = vmatprep.subr.bf16.mxu0 0
      %3400 = vmatpush1.bf16.xpose.msra.mxu0 0
      %3401 = vmatprep.subr.bf16.mxu0 0
      %3402 = vmatpush1.bf16.xpose.msra.mxu0 0
      %3403 = vmatprep.subr.bf16.mxu0 0
      %3404 = vmatpush1.bf16.xpose.msra.mxu0 0
      %3405 = vmatprep.mubr.bf16.mxu0 0
      %3406 = vmatmul.mubr.bf16.gmra.mrb[0].mxu0 %v1807
      %v3407 = vpop.f32.mrb[0].mxu0
      %v3408 = vadd.f32 0.0, %v3407
      %v3409 = vpop.f32.mrb[0].mxu0
      %v3410 = vpop.f32.mrb[0].mxu0
      %v3411 = vpop.f32.mrb[0].mxu0
      %3412 = vdwg.mxu0
      %3413 = vmatprep.subr.bf16.mxu0 0
      %3414 = vmatpush1.bf16.xpose.msra.mxu0 %v1853
      %3415 = vmatprep.subr.bf16.mxu0 0
      %3416 = vmatpush1.bf16.xpose.msra.mxu0 0
      %3417 = vmatprep.subr.bf16.mxu0 0
      %3418 = vmatpush1.bf16.xpose.msra.mxu0 0
      %3419 = vmatprep.subr.bf16.mxu0 0
      %3420 = vmatpush1.bf16.xpose.msra.mxu0 0
      %3421 = vmatprep.subr.bf16.mxu0 0
      %3422 = vmatpush1.bf16.xpose.msra.mxu0 0
      %3423 = vmatprep.subr.bf16.mxu0 0
      %3424 = vmatpush1.bf16.xpose.msra.mxu0 0
      %3425 = vmatprep.subr.bf16.mxu0 0
      %3426 = vmatpush1.bf16.xpose.msra.mxu0 0
      %3427 = vmatprep.subr.bf16.mxu0 0
      %3428 = vmatpush1.bf16.xpose.msra.mxu0 0
      %3429 = vmatprep.subr.bf16.mxu0 0
      %3430 = vmatpush1.bf16.xpose.msra.mxu0 0
      %3431 = vmatprep.subr.bf16.mxu0 0
      %3432 = vmatpush1.bf16.xpose.msra.mxu0 0
      %3433 = vmatprep.subr.bf16.mxu0 0
      %3434 = vmatpush1.bf16.xpose.msra.mxu0 0
      %3435 = vmatprep.subr.bf16.mxu0 0
      %3436 = vmatpush1.bf16.xpose.msra.mxu0 0
      %3437 = vmatprep.subr.bf16.mxu0 0
      %3438 = vmatpush1.bf16.xpose.msra.mxu0 0
      %3439 = vmatprep.subr.bf16.mxu0 0
      %3440 = vmatpush1.bf16.xpose.msra.mxu0 0
      %3441 = vmatprep.subr.bf16.mxu0 0
      %3442 = vmatpush1.bf16.xpose.msra.mxu0 0
      %3443 = vmatprep.subr.bf16.mxu0 0
      %3444 = vmatpush1.bf16.xpose.msra.mxu0 0
      %3445 = vmatprep.mubr.bf16.mxu0 0
      %3446 = vmatmul.mubr.bf16.gmra.mrb[0].mxu0 %v1856
      %v3447 = vpop.f32.mrb[0].mxu0
      %v3448 = vadd.f32 0.0, %v3447
      %v3449 = vpop.f32.mrb[0].mxu0
      %v3450 = vpop.f32.mrb[0].mxu0
      %v3451 = vpop.f32.mrb[0].mxu0
      %3452 = vdwg.mxu0
      %3453 = vmatprep.subr.bf16.mxu0 0
      %3454 = vmatpush1.bf16.xpose.msra.mxu0 %v1902
      %3455 = vmatprep.subr.bf16.mxu0 0
      %3456 = vmatpush1.bf16.xpose.msra.mxu0 0
      %3457 = vmatprep.subr.bf16.mxu0 0
      %3458 = vmatpush1.bf16.xpose.msra.mxu0 0
      %3459 = vmatprep.subr.bf16.mxu0 0
      %3460 = vmatpush1.bf16.xpose.msra.mxu0 0
      %3461 = vmatprep.subr.bf16.mxu0 0
      %3462 = vmatpush1.bf16.xpose.msra.mxu0 0
      %3463 = vmatprep.subr.bf16.mxu0 0
      %3464 = vmatpush1.bf16.xpose.msra.mxu0 0
      %3465 = vmatprep.subr.bf16.mxu0 0
      %3466 = vmatpush1.bf16.xpose.msra.mxu0 0
      %3467 = vmatprep.subr.bf16.mxu0 0
      %3468 = vmatpush1.bf16.xpose.msra.mxu0 0
      %3469 = vmatprep.subr.bf16.mxu0 0
      %3470 = vmatpush1.bf16.xpose.msra.mxu0 0
      %3471 = vmatprep.subr.bf16.mxu0 0
      %3472 = vmatpush1.bf16.xpose.msra.mxu0 0
      %3473 = vmatprep.subr.bf16.mxu0 0
      %3474 = vmatpush1.bf16.xpose.msra.mxu0 0
      %3475 = vmatprep.subr.bf16.mxu0 0
      %3476 = vmatpush1.bf16.xpose.msra.mxu0 0
      %3477 = vmatprep.subr.bf16.mxu0 0
      %3478 = vmatpush1.bf16.xpose.msra.mxu0 0
      %3479 = vmatprep.subr.bf16.mxu0 0
      %3480 = vmatpush1.bf16.xpose.msra.mxu0 0
      %3481 = vmatprep.subr.bf16.mxu0 0
      %3482 = vmatpush1.bf16.xpose.msra.mxu0 0
      %3483 = vmatprep.subr.bf16.mxu0 0
      %3484 = vmatpush1.bf16.xpose.msra.mxu0 0
      %3485 = vmatprep.mubr.bf16.mxu0 0
      %3486 = vmatmul.mubr.bf16.gmra.mrb[0].mxu0 %v1905
      %v3487 = vpop.f32.mrb[0].mxu0
      %v3488 = vadd.f32 0.0, %v3487
      %v3489 = vpop.f32.mrb[0].mxu0
      %v3490 = vpop.f32.mrb[0].mxu0
      %v3491 = vpop.f32.mrb[0].mxu0
      %3492 = vdwg.mxu0
      %3493 = vmatprep.subr.bf16.mxu0 0
      %3494 = vmatpush1.bf16.xpose.msra.mxu0 %v1951
      %3495 = vmatprep.subr.bf16.mxu0 0
      %3496 = vmatpush1.bf16.xpose.msra.mxu0 0
      %3497 = vmatprep.subr.bf16.mxu0 0
      %3498 = vmatpush1.bf16.xpose.msra.mxu0 0
      %3499 = vmatprep.subr.bf16.mxu0 0
      %3500 = vmatpush1.bf16.xpose.msra.mxu0 0
      %3501 = vmatprep.subr.bf16.mxu0 0
      %3502 = vmatpush1.bf16.xpose.msra.mxu0 0
      %3503 = vmatprep.subr.bf16.mxu0 0
      %3504 = vmatpush1.bf16.xpose.msra.mxu0 0
      %3505 = vmatprep.subr.bf16.mxu0 0
      %3506 = vmatpush1.bf16.xpose.msra.mxu0 0
      %3507 = vmatprep.subr.bf16.mxu0 0
      %3508 = vmatpush1.bf16.xpose.msra.mxu0 0
      %3509 = vmatprep.subr.bf16.mxu0 0
      %3510 = vmatpush1.bf16.xpose.msra.mxu0 0
      %3511 = vmatprep.subr.bf16.mxu0 0
      %3512 = vmatpush1.bf16.xpose.msra.mxu0 0
      %3513 = vmatprep.subr.bf16.mxu0 0
      %3514 = vmatpush1.bf16.xpose.msra.mxu0 0
      %3515 = vmatprep.subr.bf16.mxu0 0
      %3516 = vmatpush1.bf16.xpose.msra.mxu0 0
      %3517 = vmatprep.subr.bf16.mxu0 0
      %3518 = vmatpush1.bf16.xpose.msra.mxu0 0
      %3519 = vmatprep.subr.bf16.mxu0 0
      %3520 = vmatpush1.bf16.xpose.msra.mxu0 0
      %3521 = vmatprep.subr.bf16.mxu0 0
      %3522 = vmatpush1.bf16.xpose.msra.mxu0 0
      %3523 = vmatprep.subr.bf16.mxu0 0
      %3524 = vmatpush1.bf16.xpose.msra.mxu0 0
      %3525 = vmatprep.mubr.bf16.mxu0 0
      %3526 = vmatmul.mubr.bf16.gmra.mrb[0].mxu0 %v1954
      %v3527 = vpop.f32.mrb[0].mxu0
      %v3528 = vadd.f32 0.0, %v3527
      %v3529 = vpop.f32.mrb[0].mxu0
      %v3530 = vpop.f32.mrb[0].mxu0
      %v3531 = vpop.f32.mrb[0].mxu0
      %3532 = vdwg.mxu0
      %3533 = vmatprep.subr.bf16.mxu0 0
      %3534 = vmatpush1.bf16.xpose.msra.mxu0 %v2000
      %3535 = vmatprep.subr.bf16.mxu0 0
      %3536 = vmatpush1.bf16.xpose.msra.mxu0 0
      %3537 = vmatprep.subr.bf16.mxu0 0
      %3538 = vmatpush1.bf16.xpose.msra.mxu0 0
      %3539 = vmatprep.subr.bf16.mxu0 0
      %3540 = vmatpush1.bf16.xpose.msra.mxu0 0
      %3541 = vmatprep.subr.bf16.mxu0 0
      %3542 = vmatpush1.bf16.xpose.msra.mxu0 0
      %3543 = vmatprep.subr.bf16.mxu0 0
      %3544 = vmatpush1.bf16.xpose.msra.mxu0 0
      %3545 = vmatprep.subr.bf16.mxu0 0
      %3546 = vmatpush1.bf16.xpose.msra.mxu0 0
      %3547 = vmatprep.subr.bf16.mxu0 0
      %3548 = vmatpush1.bf16.xpose.msra.mxu0 0
      %3549 = vmatprep.subr.bf16.mxu0 0
      %3550 = vmatpush1.bf16.xpose.msra.mxu0 0
      %3551 = vmatprep.subr.bf16.mxu0 0
      %3552 = vmatpush1.bf16.xpose.msra.mxu0 0
      %3553 = vmatprep.subr.bf16.mxu0 0
      %3554 = vmatpush1.bf16.xpose.msra.mxu0 0
      %3555 = vmatprep.subr.bf16.mxu0 0
      %3556 = vmatpush1.bf16.xpose.msra.mxu0 0
      %3557 = vmatprep.subr.bf16.mxu0 0
      %3558 = vmatpush1.bf16.xpose.msra.mxu0 0
      %3559 = vmatprep.subr.bf16.mxu0 0
      %3560 = vmatpush1.bf16.xpose.msra.mxu0 0
      %3561 = vmatprep.subr.bf16.mxu0 0
      %3562 = vmatpush1.bf16.xpose.msra.mxu0 0
      %3563 = vmatprep.subr.bf16.mxu0 0
      %3564 = vmatpush1.bf16.xpose.msra.mxu0 0
      %3565 = vmatprep.mubr.bf16.mxu0 0
      %3566 = vmatmul.mubr.bf16.gmra.mrb[0].mxu0 %v2003
      %v3567 = vpop.f32.mrb[0].mxu0
      %v3568 = vadd.f32 0.0, %v3567
      %v3569 = vpop.f32.mrb[0].mxu0
      %v3570 = vpop.f32.mrb[0].mxu0
      %v3571 = vpop.f32.mrb[0].mxu0
      %3572 = vdwg.mxu0
      %3573 = vmatprep.subr.bf16.mxu0 0
      %3574 = vmatpush1.bf16.xpose.msra.mxu0 %v2049
      %3575 = vmatprep.subr.bf16.mxu0 0
      %3576 = vmatpush1.bf16.xpose.msra.mxu0 0
      %3577 = vmatprep.subr.bf16.mxu0 0
      %3578 = vmatpush1.bf16.xpose.msra.mxu0 0
      %3579 = vmatprep.subr.bf16.mxu0 0
      %3580 = vmatpush1.bf16.xpose.msra.mxu0 0
      %3581 = vmatprep.subr.bf16.mxu0 0
      %3582 = vmatpush1.bf16.xpose.msra.mxu0 0
      %3583 = vmatprep.subr.bf16.mxu0 0
      %3584 = vmatpush1.bf16.xpose.msra.mxu0 0
      %3585 = vmatprep.subr.bf16.mxu0 0
      %3586 = vmatpush1.bf16.xpose.msra.mxu0 0
      %3587 = vmatprep.subr.bf16.mxu0 0
      %3588 = vmatpush1.bf16.xpose.msra.mxu0 0
      %3589 = vmatprep.subr.bf16.mxu0 0
      %3590 = vmatpush1.bf16.xpose.msra.mxu0 0
      %3591 = vmatprep.subr.bf16.mxu0 0
      %3592 = vmatpush1.bf16.xpose.msra.mxu0 0
      %3593 = vmatprep.subr.bf16.mxu0 0
      %3594 = vmatpush1.bf16.xpose.msra.mxu0 0
      %3595 = vmatprep.subr.bf16.mxu0 0
      %3596 = vmatpush1.bf16.xpose.msra.mxu0 0
      %3597 = vmatprep.subr.bf16.mxu0 0
      %3598 = vmatpush1.bf16.xpose.msra.mxu0 0
      %3599 = vmatprep.subr.bf16.mxu0 0
      %3600 = vmatpush1.bf16.xpose.msra.mxu0 0
      %3601 = vmatprep.subr.bf16.mxu0 0
      %3602 = vmatpush1.bf16.xpose.msra.mxu0 0
      %3603 = vmatprep.subr.bf16.mxu0 0
      %3604 = vmatpush1.bf16.xpose.msra.mxu0 0
      %3605 = vmatprep.mubr.bf16.mxu0 0
      %3606 = vmatmul.mubr.bf16.gmra.mrb[0].mxu0 %v2052
      %v3607 = vpop.f32.mrb[0].mxu0
      %v3608 = vadd.f32 0.0, %v3607
      %v3609 = vpop.f32.mrb[0].mxu0
      %v3610 = vpop.f32.mrb[0].mxu0
      %v3611 = vpop.f32.mrb[0].mxu0
      %3612 = vdwg.mxu0
      %3613 = vmatprep.subr.bf16.mxu0 0
      %3614 = vmatpush1.bf16.xpose.msra.mxu0 %v2098
      %3615 = vmatprep.subr.bf16.mxu0 0
      %3616 = vmatpush1.bf16.xpose.msra.mxu0 0
      %3617 = vmatprep.subr.bf16.mxu0 0
      %3618 = vmatpush1.bf16.xpose.msra.mxu0 0
      %3619 = vmatprep.subr.bf16.mxu0 0
      %3620 = vmatpush1.bf16.xpose.msra.mxu0 0
      %3621 = vmatprep.subr.bf16.mxu0 0
      %3622 = vmatpush1.bf16.xpose.msra.mxu0 0
      %3623 = vmatprep.subr.bf16.mxu0 0
      %3624 = vmatpush1.bf16.xpose.msra.mxu0 0
      %3625 = vmatprep.subr.bf16.mxu0 0
      %3626 = vmatpush1.bf16.xpose.msra.mxu0 0
      %3627 = vmatprep.subr.bf16.mxu0 0
      %3628 = vmatpush1.bf16.xpose.msra.mxu0 0
      %3629 = vmatprep.subr.bf16.mxu0 0
      %3630 = vmatpush1.bf16.xpose.msra.mxu0 0
      %3631 = vmatprep.subr.bf16.mxu0 0
      %3632 = vmatpush1.bf16.xpose.msra.mxu0 0
      %3633 = vmatprep.subr.bf16.mxu0 0
      %3634 = vmatpush1.bf16.xpose.msra.mxu0 0
      %3635 = vmatprep.subr.bf16.mxu0 0
      %3636 = vmatpush1.bf16.xpose.msra.mxu0 0
      %3637 = vmatprep.subr.bf16.mxu0 0
      %3638 = vmatpush1.bf16.xpose.msra.mxu0 0
      %3639 = vmatprep.subr.bf16.mxu0 0
      %3640 = vmatpush1.bf16.xpose.msra.mxu0 0
      %3641 = vmatprep.subr.bf16.mxu0 0
      %3642 = vmatpush1.bf16.xpose.msra.mxu0 0
      %3643 = vmatprep.subr.bf16.mxu0 0
      %3644 = vmatpush1.bf16.xpose.msra.mxu0 0
      %3645 = vmatprep.mubr.bf16.mxu0 0
      %3646 = vmatmul.mubr.bf16.gmra.mrb[0].mxu0 %v2101
      %v3647 = vpop.f32.mrb[0].mxu0
      %v3648 = vadd.f32 0.0, %v3647
      %v3649 = vpop.f32.mrb[0].mxu0
      %v3650 = vpop.f32.mrb[0].mxu0
      %v3651 = vpop.f32.mrb[0].mxu0
      %3652 = vdwg.mxu0
      %3653 = vmatprep.subr.bf16.mxu0 0
      %3654 = vmatpush1.bf16.xpose.msra.mxu0 %v2147
      %3655 = vmatprep.subr.bf16.mxu0 0
      %3656 = vmatpush1.bf16.xpose.msra.mxu0 0
      %3657 = vmatprep.subr.bf16.mxu0 0
      %3658 = vmatpush1.bf16.xpose.msra.mxu0 0
      %3659 = vmatprep.subr.bf16.mxu0 0
      %3660 = vmatpush1.bf16.xpose.msra.mxu0 0
      %3661 = vmatprep.subr.bf16.mxu0 0
      %3662 = vmatpush1.bf16.xpose.msra.mxu0 0
      %3663 = vmatprep.subr.bf16.mxu0 0
      %3664 = vmatpush1.bf16.xpose.msra.mxu0 0
      %3665 = vmatprep.subr.bf16.mxu0 0
      %3666 = vmatpush1.bf16.xpose.msra.mxu0 0
      %3667 = vmatprep.subr.bf16.mxu0 0
      %3668 = vmatpush1.bf16.xpose.msra.mxu0 0
      %3669 = vmatprep.subr.bf16.mxu0 0
      %3670 = vmatpush1.bf16.xpose.msra.mxu0 0
      %3671 = vmatprep.subr.bf16.mxu0 0
      %3672 = vmatpush1.bf16.xpose.msra.mxu0 0
      %3673 = vmatprep.subr.bf16.mxu0 0
      %3674 = vmatpush1.bf16.xpose.msra.mxu0 0
      %3675 = vmatprep.subr.bf16.mxu0 0
      %3676 = vmatpush1.bf16.xpose.msra.mxu0 0
      %3677 = vmatprep.subr.bf16.mxu0 0
      %3678 = vmatpush1.bf16.xpose.msra.mxu0 0
      %3679 = vmatprep.subr.bf16.mxu0 0
      %3680 = vmatpush1.bf16.xpose.msra.mxu0 0
      %3681 = vmatprep.subr.bf16.mxu0 0
      %3682 = vmatpush1.bf16.xpose.msra.mxu0 0
      %3683 = vmatprep.subr.bf16.mxu0 0
      %3684 = vmatpush1.bf16.xpose.msra.mxu0 0
      %3685 = vmatprep.mubr.bf16.mxu0 0
      %3686 = vmatmul.mubr.bf16.gmra.mrb[0].mxu0 %v2150
      %v3687 = vpop.f32.mrb[0].mxu0
      %v3688 = vadd.f32 0.0, %v3687
      %v3689 = vpop.f32.mrb[0].mxu0
      %v3690 = vpop.f32.mrb[0].mxu0
      %v3691 = vpop.f32.mrb[0].mxu0
      %3692 = vdwg.mxu0
      %3693 = vmatprep.subr.bf16.mxu0 0
      %3694 = vmatpush1.bf16.xpose.msra.mxu0 %v2196
      %3695 = vmatprep.subr.bf16.mxu0 0
      %3696 = vmatpush1.bf16.xpose.msra.mxu0 0
      %3697 = vmatprep.subr.bf16.mxu0 0
      %3698 = vmatpush1.bf16.xpose.msra.mxu0 0
      %3699 = vmatprep.subr.bf16.mxu0 0
      %3700 = vmatpush1.bf16.xpose.msra.mxu0 0
      %3701 = vmatprep.subr.bf16.mxu0 0
      %3702 = vmatpush1.bf16.xpose.msra.mxu0 0
      %3703 = vmatprep.subr.bf16.mxu0 0
      %3704 = vmatpush1.bf16.xpose.msra.mxu0 0
      %3705 = vmatprep.subr.bf16.mxu0 0
      %3706 = vmatpush1.bf16.xpose.msra.mxu0 0
      %3707 = vmatprep.subr.bf16.mxu0 0
      %3708 = vmatpush1.bf16.xpose.msra.mxu0 0
      %3709 = vmatprep.subr.bf16.mxu0 0
      %3710 = vmatpush1.bf16.xpose.msra.mxu0 0
      %3711 = vmatprep.subr.bf16.mxu0 0
      %3712 = vmatpush1.bf16.xpose.msra.mxu0 0
      %3713 = vmatprep.subr.bf16.mxu0 0
      %3714 = vmatpush1.bf16.xpose.msra.mxu0 0
      %3715 = vmatprep.subr.bf16.mxu0 0
      %3716 = vmatpush1.bf16.xpose.msra.mxu0 0
      %3717 = vmatprep.subr.bf16.mxu0 0
      %3718 = vmatpush1.bf16.xpose.msra.mxu0 0
      %3719 = vmatprep.subr.bf16.mxu0 0
      %3720 = vmatpush1.bf16.xpose.msra.mxu0 0
      %3721 = vmatprep.subr.bf16.mxu0 0
      %3722 = vmatpush1.bf16.xpose.msra.mxu0 0
      %3723 = vmatprep.subr.bf16.mxu0 0
      %3724 = vmatpush1.bf16.xpose.msra.mxu0 0
      %3725 = vmatprep.mubr.bf16.mxu0 0
      %3726 = vmatmul.mubr.bf16.gmra.mrb[0].mxu0 %v2199
      %v3727 = vpop.f32.mrb[0].mxu0
      %v3728 = vadd.f32 0.0, %v3727
      %v3729 = vpop.f32.mrb[0].mxu0
      %v3730 = vpop.f32.mrb[0].mxu0
      %v3731 = vpop.f32.mrb[0].mxu0
      %3732 = vdwg.mxu0
      %3733 = vmatprep.subr.bf16.mxu0 0
      %3734 = vmatpush1.bf16.xpose.msra.mxu0 %v2245
      %3735 = vmatprep.subr.bf16.mxu0 0
      %3736 = vmatpush1.bf16.xpose.msra.mxu0 0
      %3737 = vmatprep.subr.bf16.mxu0 0
      %3738 = vmatpush1.bf16.xpose.msra.mxu0 0
      %3739 = vmatprep.subr.bf16.mxu0 0
      %3740 = vmatpush1.bf16.xpose.msra.mxu0 0
      %3741 = vmatprep.subr.bf16.mxu0 0
      %3742 = vmatpush1.bf16.xpose.msra.mxu0 0
      %3743 = vmatprep.subr.bf16.mxu0 0
      %3744 = vmatpush1.bf16.xpose.msra.mxu0 0
      %3745 = vmatprep.subr.bf16.mxu0 0
      %3746 = vmatpush1.bf16.xpose.msra.mxu0 0
      %3747 = vmatprep.subr.bf16.mxu0 0
      %3748 = vmatpush1.bf16.xpose.msra.mxu0 0
      %3749 = vmatprep.subr.bf16.mxu0 0
      %3750 = vmatpush1.bf16.xpose.msra.mxu0 0
      %3751 = vmatprep.subr.bf16.mxu0 0
      %3752 = vmatpush1.bf16.xpose.msra.mxu0 0
      %3753 = vmatprep.subr.bf16.mxu0 0
      %3754 = vmatpush1.bf16.xpose.msra.mxu0 0
      %3755 = vmatprep.subr.bf16.mxu0 0
      %3756 = vmatpush1.bf16.xpose.msra.mxu0 0
      %3757 = vmatprep.subr.bf16.mxu0 0
      %3758 = vmatpush1.bf16.xpose.msra.mxu0 0
      %3759 = vmatprep.subr.bf16.mxu0 0
      %3760 = vmatpush1.bf16.xpose.msra.mxu0 0
      %3761 = vmatprep.subr.bf16.mxu0 0
      %3762 = vmatpush1.bf16.xpose.msra.mxu0 0
      %3763 = vmatprep.subr.bf16.mxu0 0
      %3764 = vmatpush1.bf16.xpose.msra.mxu0 0
      %3765 = vmatprep.mubr.bf16.mxu0 0
      %3766 = vmatmul.mubr.bf16.gmra.mrb[0].mxu0 %v2248
      %v3767 = vpop.f32.mrb[0].mxu0
      %v3768 = vadd.f32 0.0, %v3767
      %v3769 = vpop.f32.mrb[0].mxu0
      %v3770 = vpop.f32.mrb[0].mxu0
      %v3771 = vpop.f32.mrb[0].mxu0
      %3772 = vdwg.mxu0
      %3773 = vmatprep.subr.bf16.mxu0 0
      %3774 = vmatpush1.bf16.xpose.msra.mxu0 %v2294
      %3775 = vmatprep.subr.bf16.mxu0 0
      %3776 = vmatpush1.bf16.xpose.msra.mxu0 0
      %3777 = vmatprep.subr.bf16.mxu0 0
      %3778 = vmatpush1.bf16.xpose.msra.mxu0 0
      %3779 = vmatprep.subr.bf16.mxu0 0
      %3780 = vmatpush1.bf16.xpose.msra.mxu0 0
      %3781 = vmatprep.subr.bf16.mxu0 0
      %3782 = vmatpush1.bf16.xpose.msra.mxu0 0
      %3783 = vmatprep.subr.bf16.mxu0 0
      %3784 = vmatpush1.bf16.xpose.msra.mxu0 0
      %3785 = vmatprep.subr.bf16.mxu0 0
      %3786 = vmatpush1.bf16.xpose.msra.mxu0 0
      %3787 = vmatprep.subr.bf16.mxu0 0
      %3788 = vmatpush1.bf16.xpose.msra.mxu0 0
      %3789 = vmatprep.subr.bf16.mxu0 0
      %3790 = vmatpush1.bf16.xpose.msra.mxu0 0
      %3791 = vmatprep.subr.bf16.mxu0 0
      %3792 = vmatpush1.bf16.xpose.msra.mxu0 0
      %3793 = vmatprep.subr.bf16.mxu0 0
      %3794 = vmatpush1.bf16.xpose.msra.mxu0 0
      %3795 = vmatprep.subr.bf16.mxu0 0
      %3796 = vmatpush1.bf16.xpose.msra.mxu0 0
      %3797 = vmatprep.subr.bf16.mxu0 0
      %3798 = vmatpush1.bf16.xpose.msra.mxu0 0
      %3799 = vmatprep.subr.bf16.mxu0 0
      %3800 = vmatpush1.bf16.xpose.msra.mxu0 0
      %3801 = vmatprep.subr.bf16.mxu0 0
      %3802 = vmatpush1.bf16.xpose.msra.mxu0 0
      %3803 = vmatprep.subr.bf16.mxu0 0
      %3804 = vmatpush1.bf16.xpose.msra.mxu0 0
      %3805 = vmatprep.mubr.bf16.mxu0 0
      %3806 = vmatmul.mubr.bf16.gmra.mrb[0].mxu0 %v2297
      %v3807 = vpop.f32.mrb[0].mxu0
      %v3808 = vadd.f32 0.0, %v3807
      %v3809 = vpop.f32.mrb[0].mxu0
      %v3810 = vpop.f32.mrb[0].mxu0
      %v3811 = vpop.f32.mrb[0].mxu0
      %3812 = vdwg.mxu0
      %3813 = vmatprep.subr.bf16.mxu0 0
      %3814 = vmatpush1.bf16.xpose.msra.mxu0 %v2343
      %3815 = vmatprep.subr.bf16.mxu0 0
      %3816 = vmatpush1.bf16.xpose.msra.mxu0 0
      %3817 = vmatprep.subr.bf16.mxu0 0
      %3818 = vmatpush1.bf16.xpose.msra.mxu0 0
      %3819 = vmatprep.subr.bf16.mxu0 0
      %3820 = vmatpush1.bf16.xpose.msra.mxu0 0
      %3821 = vmatprep.subr.bf16.mxu0 0
      %3822 = vmatpush1.bf16.xpose.msra.mxu0 0
      %3823 = vmatprep.subr.bf16.mxu0 0
      %3824 = vmatpush1.bf16.xpose.msra.mxu0 0
      %3825 = vmatprep.subr.bf16.mxu0 0
      %3826 = vmatpush1.bf16.xpose.msra.mxu0 0
      %3827 = vmatprep.subr.bf16.mxu0 0
      %3828 = vmatpush1.bf16.xpose.msra.mxu0 0
      %3829 = vmatprep.subr.bf16.mxu0 0
      %3830 = vmatpush1.bf16.xpose.msra.mxu0 0
      %3831 = vmatprep.subr.bf16.mxu0 0
      %3832 = vmatpush1.bf16.xpose.msra.mxu0 0
      %3833 = vmatprep.subr.bf16.mxu0 0
      %3834 = vmatpush1.bf16.xpose.msra.mxu0 0
      %3835 = vmatprep.subr.bf16.mxu0 0
      %3836 = vmatpush1.bf16.xpose.msra.mxu0 0
      %3837 = vmatprep.subr.bf16.mxu0 0
      %3838 = vmatpush1.bf16.xpose.msra.mxu0 0
      %3839 = vmatprep.subr.bf16.mxu0 0
      %3840 = vmatpush1.bf16.xpose.msra.mxu0 0
      %3841 = vmatprep.subr.bf16.mxu0 0
      %3842 = vmatpush1.bf16.xpose.msra.mxu0 0
      %3843 = vmatprep.subr.bf16.mxu0 0
      %3844 = vmatpush1.bf16.xpose.msra.mxu0 0
      %3845 = vmatprep.mubr.bf16.mxu0 0
      %3846 = vmatmul.mubr.bf16.gmra.mrb[0].mxu0 %v2346
      %v3847 = vpop.f32.mrb[0].mxu0
      %v3848 = vadd.f32 0.0, %v3847
      %v3849 = vpop.f32.mrb[0].mxu0
      %v3850 = vpop.f32.mrb[0].mxu0
      %v3851 = vpop.f32.mrb[0].mxu0
      %3852 = vdwg.mxu0
      %3853 = vmatprep.subr.bf16.mxu0 0
      %3854 = vmatpush1.bf16.xpose.msra.mxu0 %v2392
      %3855 = vmatprep.subr.bf16.mxu0 0
      %3856 = vmatpush1.bf16.xpose.msra.mxu0 0
      %3857 = vmatprep.subr.bf16.mxu0 0
      %3858 = vmatpush1.bf16.xpose.msra.mxu0 0
      %3859 = vmatprep.subr.bf16.mxu0 0
      %3860 = vmatpush1.bf16.xpose.msra.mxu0 0
      %3861 = vmatprep.subr.bf16.mxu0 0
      %3862 = vmatpush1.bf16.xpose.msra.mxu0 0
      %3863 = vmatprep.subr.bf16.mxu0 0
      %3864 = vmatpush1.bf16.xpose.msra.mxu0 0
      %3865 = vmatprep.subr.bf16.mxu0 0
      %3866 = vmatpush1.bf16.xpose.msra.mxu0 0
      %3867 = vmatprep.subr.bf16.mxu0 0
      %3868 = vmatpush1.bf16.xpose.msra.mxu0 0
      %3869 = vmatprep.subr.bf16.mxu0 0
      %3870 = vmatpush1.bf16.xpose.msra.mxu0 0
      %3871 = vmatprep.subr.bf16.mxu0 0
      %3872 = vmatpush1.bf16.xpose.msra.mxu0 0
      %3873 = vmatprep.subr.bf16.mxu0 0
      %3874 = vmatpush1.bf16.xpose.msra.mxu0 0
      %3875 = vmatprep.subr.bf16.mxu0 0
      %3876 = vmatpush1.bf16.xpose.msra.mxu0 0
      %3877 = vmatprep.subr.bf16.mxu0 0
      %3878 = vmatpush1.bf16.xpose.msra.mxu0 0
      %3879 = vmatprep.subr.bf16.mxu0 0
      %3880 = vmatpush1.bf16.xpose.msra.mxu0 0
      %3881 = vmatprep.subr.bf16.mxu0 0
      %3882 = vmatpush1.bf16.xpose.msra.mxu0 0
      %3883 = vmatprep.subr.bf16.mxu0 0
      %3884 = vmatpush1.bf16.xpose.msra.mxu0 0
      %3885 = vmatprep.mubr.bf16.mxu0 0
      %3886 = vmatmul.mubr.bf16.gmra.mrb[0].mxu0 %v2395
      %v3887 = vpop.f32.mrb[0].mxu0
      %v3888 = vadd.f32 0.0, %v3887
      %v3889 = vpop.f32.mrb[0].mxu0
      %v3890 = vpop.f32.mrb[0].mxu0
      %v3891 = vpop.f32.mrb[0].mxu0
      %3892 = vdwg.mxu0
      %3893 = vmatprep.subr.bf16.mxu0 0
      %3894 = vmatpush1.bf16.xpose.msra.mxu0 %v2441
      %3895 = vmatprep.subr.bf16.mxu0 0
      %3896 = vmatpush1.bf16.xpose.msra.mxu0 0
      %3897 = vmatprep.subr.bf16.mxu0 0
      %3898 = vmatpush1.bf16.xpose.msra.mxu0 0
      %3899 = vmatprep.subr.bf16.mxu0 0
      %3900 = vmatpush1.bf16.xpose.msra.mxu0 0
      %3901 = vmatprep.subr.bf16.mxu0 0
      %3902 = vmatpush1.bf16.xpose.msra.mxu0 0
      %3903 = vmatprep.subr.bf16.mxu0 0
      %3904 = vmatpush1.bf16.xpose.msra.mxu0 0
      %3905 = vmatprep.subr.bf16.mxu0 0
      %3906 = vmatpush1.bf16.xpose.msra.mxu0 0
      %3907 = vmatprep.subr.bf16.mxu0 0
      %3908 = vmatpush1.bf16.xpose.msra.mxu0 0
      %3909 = vmatprep.subr.bf16.mxu0 0
      %3910 = vmatpush1.bf16.xpose.msra.mxu0 0
      %3911 = vmatprep.subr.bf16.mxu0 0
      %3912 = vmatpush1.bf16.xpose.msra.mxu0 0
      %3913 = vmatprep.subr.bf16.mxu0 0
      %3914 = vmatpush1.bf16.xpose.msra.mxu0 0
      %3915 = vmatprep.subr.bf16.mxu0 0
      %3916 = vmatpush1.bf16.xpose.msra.mxu0 0
      %3917 = vmatprep.subr.bf16.mxu0 0
      %3918 = vmatpush1.bf16.xpose.msra.mxu0 0
      %3919 = vmatprep.subr.bf16.mxu0 0
      %3920 = vmatpush1.bf16.xpose.msra.mxu0 0
      %3921 = vmatprep.subr.bf16.mxu0 0
      %3922 = vmatpush1.bf16.xpose.msra.mxu0 0
      %3923 = vmatprep.subr.bf16.mxu0 0
      %3924 = vmatpush1.bf16.xpose.msra.mxu0 0
      %3925 = vmatprep.mubr.bf16.mxu0 0
      %3926 = vmatmul.mubr.bf16.gmra.mrb[0].mxu0 %v2444
      %v3927 = vpop.f32.mrb[0].mxu0
      %v3928 = vadd.f32 0.0, %v3927
      %v3929 = vpop.f32.mrb[0].mxu0
      %v3930 = vpop.f32.mrb[0].mxu0
      %v3931 = vpop.f32.mrb[0].mxu0
      %3932 = vdwg.mxu0
      %3933 = vmatprep.subr.bf16.mxu0 0
      %3934 = vmatpush1.bf16.xpose.msra.mxu0 %v2490
      %3935 = vmatprep.subr.bf16.mxu0 0
      %3936 = vmatpush1.bf16.xpose.msra.mxu0 0
      %3937 = vmatprep.subr.bf16.mxu0 0
      %3938 = vmatpush1.bf16.xpose.msra.mxu0 0
      %3939 = vmatprep.subr.bf16.mxu0 0
      %3940 = vmatpush1.bf16.xpose.msra.mxu0 0
      %3941 = vmatprep.subr.bf16.mxu0 0
      %3942 = vmatpush1.bf16.xpose.msra.mxu0 0
      %3943 = vmatprep.subr.bf16.mxu0 0
      %3944 = vmatpush1.bf16.xpose.msra.mxu0 0
      %3945 = vmatprep.subr.bf16.mxu0 0
      %3946 = vmatpush1.bf16.xpose.msra.mxu0 0
      %3947 = vmatprep.subr.bf16.mxu0 0
      %3948 = vmatpush1.bf16.xpose.msra.mxu0 0
      %3949 = vmatprep.subr.bf16.mxu0 0
      %3950 = vmatpush1.bf16.xpose.msra.mxu0 0
      %3951 = vmatprep.subr.bf16.mxu0 0
      %3952 = vmatpush1.bf16.xpose.msra.mxu0 0
      %3953 = vmatprep.subr.bf16.mxu0 0
      %3954 = vmatpush1.bf16.xpose.msra.mxu0 0
      %3955 = vmatprep.subr.bf16.mxu0 0
      %3956 = vmatpush1.bf16.xpose.msra.mxu0 0
      %3957 = vmatprep.subr.bf16.mxu0 0
      %3958 = vmatpush1.bf16.xpose.msra.mxu0 0
      %3959 = vmatprep.subr.bf16.mxu0 0
      %3960 = vmatpush1.bf16.xpose.msra.mxu0 0
      %3961 = vmatprep.subr.bf16.mxu0 0
      %3962 = vmatpush1.bf16.xpose.msra.mxu0 0
      %3963 = vmatprep.subr.bf16.mxu0 0
      %3964 = vmatpush1.bf16.xpose.msra.mxu0 0
      %3965 = vmatprep.mubr.bf16.mxu0 0
      %3966 = vmatmul.mubr.bf16.gmra.mrb[0].mxu0 %v2493
      %v3967 = vpop.f32.mrb[0].mxu0
      %v3968 = vadd.f32 0.0, %v3967
      %v3969 = vpop.f32.mrb[0].mxu0
      %v3970 = vpop.f32.mrb[0].mxu0
      %v3971 = vpop.f32.mrb[0].mxu0
      %3972 = vdwg.mxu0
      %3973 = vmatprep.subr.bf16.mxu0 0
      %3974 = vmatpush1.bf16.xpose.msra.mxu0 %v2539
      %3975 = vmatprep.subr.bf16.mxu0 0
      %3976 = vmatpush1.bf16.xpose.msra.mxu0 0
      %3977 = vmatprep.subr.bf16.mxu0 0
      %3978 = vmatpush1.bf16.xpose.msra.mxu0 0
      %3979 = vmatprep.subr.bf16.mxu0 0
      %3980 = vmatpush1.bf16.xpose.msra.mxu0 0
      %3981 = vmatprep.subr.bf16.mxu0 0
      %3982 = vmatpush1.bf16.xpose.msra.mxu0 0
      %3983 = vmatprep.subr.bf16.mxu0 0
      %3984 = vmatpush1.bf16.xpose.msra.mxu0 0
      %3985 = vmatprep.subr.bf16.mxu0 0
      %3986 = vmatpush1.bf16.xpose.msra.mxu0 0
      %3987 = vmatprep.subr.bf16.mxu0 0
      %3988 = vmatpush1.bf16.xpose.msra.mxu0 0
      %3989 = vmatprep.subr.bf16.mxu0 0
      %3990 = vmatpush1.bf16.xpose.msra.mxu0 0
      %3991 = vmatprep.subr.bf16.mxu0 0
      %3992 = vmatpush1.bf16.xpose.msra.mxu0 0
      %3993 = vmatprep.subr.bf16.mxu0 0
      %3994 = vmatpush1.bf16.xpose.msra.mxu0 0
      %3995 = vmatprep.subr.bf16.mxu0 0
      %3996 = vmatpush1.bf16.xpose.msra.mxu0 0
      %3997 = vmatprep.subr.bf16.mxu0 0
      %3998 = vmatpush1.bf16.xpose.msra.mxu0 0
      %3999 = vmatprep.subr.bf16.mxu0 0
      %4000 = vmatpush1.bf16.xpose.msra.mxu0 0
      %4001 = vmatprep.subr.bf16.mxu0 0
      %4002 = vmatpush1.bf16.xpose.msra.mxu0 0
      %4003 = vmatprep.subr.bf16.mxu0 0
      %4004 = vmatpush1.bf16.xpose.msra.mxu0 0
      %4005 = vmatprep.mubr.bf16.mxu0 0
      %4006 = vmatmul.mubr.bf16.gmra.mrb[0].mxu0 %v2542
      %v4007 = vpop.f32.mrb[0].mxu0
      %v4008 = vadd.f32 0.0, %v4007
      %v4009 = vpop.f32.mrb[0].mxu0
      %v4010 = vpop.f32.mrb[0].mxu0
      %v4011 = vpop.f32.mrb[0].mxu0
      %4012 = vdwg.mxu0
      %4013 = vmatprep.subr.bf16.mxu0 0
      %4014 = vmatpush1.bf16.xpose.msra.mxu0 %v2588
      %4015 = vmatprep.subr.bf16.mxu0 0
      %4016 = vmatpush1.bf16.xpose.msra.mxu0 0
      %4017 = vmatprep.subr.bf16.mxu0 0
      %4018 = vmatpush1.bf16.xpose.msra.mxu0 0
      %4019 = vmatprep.subr.bf16.mxu0 0
      %4020 = vmatpush1.bf16.xpose.msra.mxu0 0
      %4021 = vmatprep.subr.bf16.mxu0 0
      %4022 = vmatpush1.bf16.xpose.msra.mxu0 0
      %4023 = vmatprep.subr.bf16.mxu0 0
      %4024 = vmatpush1.bf16.xpose.msra.mxu0 0
      %4025 = vmatprep.subr.bf16.mxu0 0
      %4026 = vmatpush1.bf16.xpose.msra.mxu0 0
      %4027 = vmatprep.subr.bf16.mxu0 0
      %4028 = vmatpush1.bf16.xpose.msra.mxu0 0
      %4029 = vmatprep.subr.bf16.mxu0 0
      %4030 = vmatpush1.bf16.xpose.msra.mxu0 0
      %4031 = vmatprep.subr.bf16.mxu0 0
      %4032 = vmatpush1.bf16.xpose.msra.mxu0 0
      %4033 = vmatprep.subr.bf16.mxu0 0
      %4034 = vmatpush1.bf16.xpose.msra.mxu0 0
      %4035 = vmatprep.subr.bf16.mxu0 0
      %4036 = vmatpush1.bf16.xpose.msra.mxu0 0
      %4037 = vmatprep.subr.bf16.mxu0 0
      %4038 = vmatpush1.bf16.xpose.msra.mxu0 0
      %4039 = vmatprep.subr.bf16.mxu0 0
      %4040 = vmatpush1.bf16.xpose.msra.mxu0 0
      %4041 = vmatprep.subr.bf16.mxu0 0
      %4042 = vmatpush1.bf16.xpose.msra.mxu0 0
      %4043 = vmatprep.subr.bf16.mxu0 0
      %4044 = vmatpush1.bf16.xpose.msra.mxu0 0
      %4045 = vmatprep.mubr.bf16.mxu0 0
      %4046 = vmatmul.mubr.bf16.gmra.mrb[0].mxu0 %v2591
      %v4047 = vpop.f32.mrb[0].mxu0
      %v4048 = vadd.f32 0.0, %v4047
      %v4049 = vpop.f32.mrb[0].mxu0
      %v4050 = vpop.f32.mrb[0].mxu0
      %v4051 = vpop.f32.mrb[0].mxu0
      %4052 = vdwg.mxu0
      %4053 = vmatprep.subr.bf16.mxu0 0
      %4054 = vmatpush1.bf16.xpose.msra.mxu0 %v2637
      %4055 = vmatprep.subr.bf16.mxu0 0
      %4056 = vmatpush1.bf16.xpose.msra.mxu0 0
      %4057 = vmatprep.subr.bf16.mxu0 0
      %4058 = vmatpush1.bf16.xpose.msra.mxu0 0
      %4059 = vmatprep.subr.bf16.mxu0 0
      %4060 = vmatpush1.bf16.xpose.msra.mxu0 0
      %4061 = vmatprep.subr.bf16.mxu0 0
      %4062 = vmatpush1.bf16.xpose.msra.mxu0 0
      %4063 = vmatprep.subr.bf16.mxu0 0
      %4064 = vmatpush1.bf16.xpose.msra.mxu0 0
      %4065 = vmatprep.subr.bf16.mxu0 0
      %4066 = vmatpush1.bf16.xpose.msra.mxu0 0
      %4067 = vmatprep.subr.bf16.mxu0 0
      %4068 = vmatpush1.bf16.xpose.msra.mxu0 0
      %4069 = vmatprep.subr.bf16.mxu0 0
      %4070 = vmatpush1.bf16.xpose.msra.mxu0 0
      %4071 = vmatprep.subr.bf16.mxu0 0
      %4072 = vmatpush1.bf16.xpose.msra.mxu0 0
      %4073 = vmatprep.subr.bf16.mxu0 0
      %4074 = vmatpush1.bf16.xpose.msra.mxu0 0
      %4075 = vmatprep.subr.bf16.mxu0 0
      %4076 = vmatpush1.bf16.xpose.msra.mxu0 0
      %4077 = vmatprep.subr.bf16.mxu0 0
      %4078 = vmatpush1.bf16.xpose.msra.mxu0 0
      %4079 = vmatprep.subr.bf16.mxu0 0
      %4080 = vmatpush1.bf16.xpose.msra.mxu0 0
      %4081 = vmatprep.subr.bf16.mxu0 0
      %4082 = vmatpush1.bf16.xpose.msra.mxu0 0
      %4083 = vmatprep.subr.bf16.mxu0 0
      %4084 = vmatpush1.bf16.xpose.msra.mxu0 0
      %4085 = vmatprep.mubr.bf16.mxu0 0
      %4086 = vmatmul.mubr.bf16.gmra.mrb[0].mxu0 %v2640
      %v4087 = vpop.f32.mrb[0].mxu0
      %v4088 = vadd.f32 0.0, %v4087
      %v4089 = vpop.f32.mrb[0].mxu0
      %v4090 = vpop.f32.mrb[0].mxu0
      %v4091 = vpop.f32.mrb[0].mxu0
      %4092 = vdwg.mxu0
      %4093 = vmatprep.subr.bf16.mxu0 0
      %4094 = vmatpush1.bf16.xpose.msra.mxu0 %v2686
      %4095 = vmatprep.subr.bf16.mxu0 0
      %4096 = vmatpush1.bf16.xpose.msra.mxu0 0
      %4097 = vmatprep.subr.bf16.mxu0 0
      %4098 = vmatpush1.bf16.xpose.msra.mxu0 0
      %4099 = vmatprep.subr.bf16.mxu0 0
      %4100 = vmatpush1.bf16.xpose.msra.mxu0 0
      %4101 = vmatprep.subr.bf16.mxu0 0
      %4102 = vmatpush1.bf16.xpose.msra.mxu0 0
      %4103 = vmatprep.subr.bf16.mxu0 0
      %4104 = vmatpush1.bf16.xpose.msra.mxu0 0
      %4105 = vmatprep.subr.bf16.mxu0 0
      %4106 = vmatpush1.bf16.xpose.msra.mxu0 0
      %4107 = vmatprep.subr.bf16.mxu0 0
      %4108 = vmatpush1.bf16.xpose.msra.mxu0 0
      %4109 = vmatprep.subr.bf16.mxu0 0
      %4110 = vmatpush1.bf16.xpose.msra.mxu0 0
      %4111 = vmatprep.subr.bf16.mxu0 0
      %4112 = vmatpush1.bf16.xpose.msra.mxu0 0
      %4113 = vmatprep.subr.bf16.mxu0 0
      %4114 = vmatpush1.bf16.xpose.msra.mxu0 0
      %4115 = vmatprep.subr.bf16.mxu0 0
      %4116 = vmatpush1.bf16.xpose.msra.mxu0 0
      %4117 = vmatprep.subr.bf16.mxu0 0
      %4118 = vmatpush1.bf16.xpose.msra.mxu0 0
      %4119 = vmatprep.subr.bf16.mxu0 0
      %4120 = vmatpush1.bf16.xpose.msra.mxu0 0
      %4121 = vmatprep.subr.bf16.mxu0 0
      %4122 = vmatpush1.bf16.xpose.msra.mxu0 0
      %4123 = vmatprep.subr.bf16.mxu0 0
      %4124 = vmatpush1.bf16.xpose.msra.mxu0 0
      %4125 = vmatprep.mubr.bf16.mxu0 0
      %4126 = vmatmul.mubr.bf16.gmra.mrb[0].mxu0 %v2689
      %v4127 = vpop.f32.mrb[0].mxu0
      %v4128 = vadd.f32 0.0, %v4127
      %v4129 = vpop.f32.mrb[0].mxu0
      %v4130 = vpop.f32.mrb[0].mxu0
      %v4131 = vpop.f32.mrb[0].mxu0
      %4132 = vdwg.mxu0
      %4133 = vmatprep.subr.bf16.mxu0 0
      %4134 = vmatpush1.bf16.xpose.msra.mxu0 %v2735
      %4135 = vmatprep.subr.bf16.mxu0 0
      %4136 = vmatpush1.bf16.xpose.msra.mxu0 0
      %4137 = vmatprep.subr.bf16.mxu0 0
      %4138 = vmatpush1.bf16.xpose.msra.mxu0 0
      %4139 = vmatprep.subr.bf16.mxu0 0
      %4140 = vmatpush1.bf16.xpose.msra.mxu0 0
      %4141 = vmatprep.subr.bf16.mxu0 0
      %4142 = vmatpush1.bf16.xpose.msra.mxu0 0
      %4143 = vmatprep.subr.bf16.mxu0 0
      %4144 = vmatpush1.bf16.xpose.msra.mxu0 0
      %4145 = vmatprep.subr.bf16.mxu0 0
      %4146 = vmatpush1.bf16.xpose.msra.mxu0 0
      %4147 = vmatprep.subr.bf16.mxu0 0
      %4148 = vmatpush1.bf16.xpose.msra.mxu0 0
      %4149 = vmatprep.subr.bf16.mxu0 0
      %4150 = vmatpush1.bf16.xpose.msra.mxu0 0
      %4151 = vmatprep.subr.bf16.mxu0 0
      %4152 = vmatpush1.bf16.xpose.msra.mxu0 0
      %4153 = vmatprep.subr.bf16.mxu0 0
      %4154 = vmatpush1.bf16.xpose.msra.mxu0 0
      %4155 = vmatprep.subr.bf16.mxu0 0
      %4156 = vmatpush1.bf16.xpose.msra.mxu0 0
      %4157 = vmatprep.subr.bf16.mxu0 0
      %4158 = vmatpush1.bf16.xpose.msra.mxu0 0
      %4159 = vmatprep.subr.bf16.mxu0 0
      %4160 = vmatpush1.bf16.xpose.msra.mxu0 0
      %4161 = vmatprep.subr.bf16.mxu0 0
      %4162 = vmatpush1.bf16.xpose.msra.mxu0 0
      %4163 = vmatprep.subr.bf16.mxu0 0
      %4164 = vmatpush1.bf16.xpose.msra.mxu0 0
      %4165 = vmatprep.mubr.bf16.mxu0 0
      %4166 = vmatmul.mubr.bf16.gmra.mrb[0].mxu0 %v2738
      %v4167 = vpop.f32.mrb[0].mxu0
      %v4168 = vadd.f32 0.0, %v4167
      %v4169 = vpop.f32.mrb[0].mxu0
      %v4170 = vpop.f32.mrb[0].mxu0
      %v4171 = vpop.f32.mrb[0].mxu0
      %4172 = vdwg.mxu0
      %4173 = vmatprep.subr.bf16.mxu0 0
      %4174 = vmatpush1.bf16.xpose.msra.mxu0 %v2784
      %4175 = vmatprep.subr.bf16.mxu0 0
      %4176 = vmatpush1.bf16.xpose.msra.mxu0 0
      %4177 = vmatprep.subr.bf16.mxu0 0
      %4178 = vmatpush1.bf16.xpose.msra.mxu0 0
      %4179 = vmatprep.subr.bf16.mxu0 0
      %4180 = vmatpush1.bf16.xpose.msra.mxu0 0
      %4181 = vmatprep.subr.bf16.mxu0 0
      %4182 = vmatpush1.bf16.xpose.msra.mxu0 0
      %4183 = vmatprep.subr.bf16.mxu0 0
      %4184 = vmatpush1.bf16.xpose.msra.mxu0 0
      %4185 = vmatprep.subr.bf16.mxu0 0
      %4186 = vmatpush1.bf16.xpose.msra.mxu0 0
      %4187 = vmatprep.subr.bf16.mxu0 0
      %4188 = vmatpush1.bf16.xpose.msra.mxu0 0
      %4189 = vmatprep.subr.bf16.mxu0 0
      %4190 = vmatpush1.bf16.xpose.msra.mxu0 0
      %4191 = vmatprep.subr.bf16.mxu0 0
      %4192 = vmatpush1.bf16.xpose.msra.mxu0 0
      %4193 = vmatprep.subr.bf16.mxu0 0
      %4194 = vmatpush1.bf16.xpose.msra.mxu0 0
      %4195 = vmatprep.subr.bf16.mxu0 0
      %4196 = vmatpush1.bf16.xpose.msra.mxu0 0
      %4197 = vmatprep.subr.bf16.mxu0 0
      %4198 = vmatpush1.bf16.xpose.msra.mxu0 0
      %4199 = vmatprep.subr.bf16.mxu0 0
      %4200 = vmatpush1.bf16.xpose.msra.mxu0 0
      %4201 = vmatprep.subr.bf16.mxu0 0
      %4202 = vmatpush1.bf16.xpose.msra.mxu0 0
      %4203 = vmatprep.subr.bf16.mxu0 0
      %4204 = vmatpush1.bf16.xpose.msra.mxu0 0
      %4205 = vmatprep.mubr.bf16.mxu0 0
      %4206 = vmatmul.mubr.bf16.gmra.mrb[0].mxu0 %v2787
      %v4207 = vpop.f32.mrb[0].mxu0
      %v4208 = vadd.f32 0.0, %v4207
      %v4209 = vpop.f32.mrb[0].mxu0
      %v4210 = vpop.f32.mrb[0].mxu0
      %v4211 = vpop.f32.mrb[0].mxu0
      %4212 = vdwg.mxu0
      %4213 = vmatprep.subr.bf16.mxu0 0
      %4214 = vmatpush1.bf16.xpose.msra.mxu0 %v2833
      %4215 = vmatprep.subr.bf16.mxu0 0
      %4216 = vmatpush1.bf16.xpose.msra.mxu0 0
      %4217 = vmatprep.subr.bf16.mxu0 0
      %4218 = vmatpush1.bf16.xpose.msra.mxu0 0
      %4219 = vmatprep.subr.bf16.mxu0 0
      %4220 = vmatpush1.bf16.xpose.msra.mxu0 0
      %4221 = vmatprep.subr.bf16.mxu0 0
      %4222 = vmatpush1.bf16.xpose.msra.mxu0 0
      %4223 = vmatprep.subr.bf16.mxu0 0
      %4224 = vmatpush1.bf16.xpose.msra.mxu0 0
      %4225 = vmatprep.subr.bf16.mxu0 0
      %4226 = vmatpush1.bf16.xpose.msra.mxu0 0
      %4227 = vmatprep.subr.bf16.mxu0 0
      %4228 = vmatpush1.bf16.xpose.msra.mxu0 0
      %4229 = vmatprep.subr.bf16.mxu0 0
      %4230 = vmatpush1.bf16.xpose.msra.mxu0 0
      %4231 = vmatprep.subr.bf16.mxu0 0
      %4232 = vmatpush1.bf16.xpose.msra.mxu0 0
      %4233 = vmatprep.subr.bf16.mxu0 0
      %4234 = vmatpush1.bf16.xpose.msra.mxu0 0
      %4235 = vmatprep.subr.bf16.mxu0 0
      %4236 = vmatpush1.bf16.xpose.msra.mxu0 0
      %4237 = vmatprep.subr.bf16.mxu0 0
      %4238 = vmatpush1.bf16.xpose.msra.mxu0 0
      %4239 = vmatprep.subr.bf16.mxu0 0
      %4240 = vmatpush1.bf16.xpose.msra.mxu0 0
      %4241 = vmatprep.subr.bf16.mxu0 0
      %4242 = vmatpush1.bf16.xpose.msra.mxu0 0
      %4243 = vmatprep.subr.bf16.mxu0 0
      %4244 = vmatpush1.bf16.xpose.msra.mxu0 0
      %4245 = vmatprep.mubr.bf16.mxu0 0
      %4246 = vmatmul.mubr.bf16.gmra.mrb[0].mxu0 %v2836
      %v4247 = vpop.f32.mrb[0].mxu0
      %v4248 = vadd.f32 0.0, %v4247
      %v4249 = vpop.f32.mrb[0].mxu0
      %v4250 = vpop.f32.mrb[0].mxu0
      %v4251 = vpop.f32.mrb[0].mxu0
      %4252 = vdwg.mxu0
      %4253 = vmatprep.subr.bf16.mxu0 0
      %4254 = vmatpush1.bf16.xpose.msra.mxu0 %v2882
      %4255 = vmatprep.subr.bf16.mxu0 0
      %4256 = vmatpush1.bf16.xpose.msra.mxu0 0
      %4257 = vmatprep.subr.bf16.mxu0 0
      %4258 = vmatpush1.bf16.xpose.msra.mxu0 0
      %4259 = vmatprep.subr.bf16.mxu0 0
      %4260 = vmatpush1.bf16.xpose.msra.mxu0 0
      %4261 = vmatprep.subr.bf16.mxu0 0
      %4262 = vmatpush1.bf16.xpose.msra.mxu0 0
      %4263 = vmatprep.subr.bf16.mxu0 0
      %4264 = vmatpush1.bf16.xpose.msra.mxu0 0
      %4265 = vmatprep.subr.bf16.mxu0 0
      %4266 = vmatpush1.bf16.xpose.msra.mxu0 0
      %4267 = vmatprep.subr.bf16.mxu0 0
      %4268 = vmatpush1.bf16.xpose.msra.mxu0 0
      %4269 = vmatprep.subr.bf16.mxu0 0
      %4270 = vmatpush1.bf16.xpose.msra.mxu0 0
      %4271 = vmatprep.subr.bf16.mxu0 0
      %4272 = vmatpush1.bf16.xpose.msra.mxu0 0
      %4273 = vmatprep.subr.bf16.mxu0 0
      %4274 = vmatpush1.bf16.xpose.msra.mxu0 0
      %4275 = vmatprep.subr.bf16.mxu0 0
      %4276 = vmatpush1.bf16.xpose.msra.mxu0 0
      %4277 = vmatprep.subr.bf16.mxu0 0
      %4278 = vmatpush1.bf16.xpose.msra.mxu0 0
      %4279 = vmatprep.subr.bf16.mxu0 0
      %4280 = vmatpush1.bf16.xpose.msra.mxu0 0
      %4281 = vmatprep.subr.bf16.mxu0 0
      %4282 = vmatpush1.bf16.xpose.msra.mxu0 0
      %4283 = vmatprep.subr.bf16.mxu0 0
      %4284 = vmatpush1.bf16.xpose.msra.mxu0 0
      %4285 = vmatprep.mubr.bf16.mxu0 0
      %4286 = vmatmul.mubr.bf16.gmra.mrb[0].mxu0 %v2885
      %v4287 = vpop.f32.mrb[0].mxu0
      %v4288 = vadd.f32 0.0, %v4287
      %v4289 = vpop.f32.mrb[0].mxu0
      %v4290 = vpop.f32.mrb[0].mxu0
      %v4291 = vpop.f32.mrb[0].mxu0
      %4292 = vdwg.mxu0
      %4293 = vmatprep.subr.bf16.mxu0 0
      %4294 = vmatpush1.bf16.xpose.msra.mxu0 %v2931
      %4295 = vmatprep.subr.bf16.mxu0 0
      %4296 = vmatpush1.bf16.xpose.msra.mxu0 0
      %4297 = vmatprep.subr.bf16.mxu0 0
      %4298 = vmatpush1.bf16.xpose.msra.mxu0 0
      %4299 = vmatprep.subr.bf16.mxu0 0
      %4300 = vmatpush1.bf16.xpose.msra.mxu0 0
      %4301 = vmatprep.subr.bf16.mxu0 0
      %4302 = vmatpush1.bf16.xpose.msra.mxu0 0
      %4303 = vmatprep.subr.bf16.mxu0 0
      %4304 = vmatpush1.bf16.xpose.msra.mxu0 0
      %4305 = vmatprep.subr.bf16.mxu0 0
      %4306 = vmatpush1.bf16.xpose.msra.mxu0 0
      %4307 = vmatprep.subr.bf16.mxu0 0
      %4308 = vmatpush1.bf16.xpose.msra.mxu0 0
      %4309 = vmatprep.subr.bf16.mxu0 0
      %4310 = vmatpush1.bf16.xpose.msra.mxu0 0
      %4311 = vmatprep.subr.bf16.mxu0 0
      %4312 = vmatpush1.bf16.xpose.msra.mxu0 0
      %4313 = vmatprep.subr.bf16.mxu0 0
      %4314 = vmatpush1.bf16.xpose.msra.mxu0 0
      %4315 = vmatprep.subr.bf16.mxu0 0
      %4316 = vmatpush1.bf16.xpose.msra.mxu0 0
      %4317 = vmatprep.subr.bf16.mxu0 0
      %4318 = vmatpush1.bf16.xpose.msra.mxu0 0
      %4319 = vmatprep.subr.bf16.mxu0 0
      %4320 = vmatpush1.bf16.xpose.msra.mxu0 0
      %4321 = vmatprep.subr.bf16.mxu0 0
      %4322 = vmatpush1.bf16.xpose.msra.mxu0 0
      %4323 = vmatprep.subr.bf16.mxu0 0
      %4324 = vmatpush1.bf16.xpose.msra.mxu0 0
      %4325 = vmatprep.mubr.bf16.mxu0 0
      %4326 = vmatmul.mubr.bf16.gmra.mrb[0].mxu0 %v2934
      %v4327 = vpop.f32.mrb[0].mxu0
      %v4328 = vadd.f32 0.0, %v4327
      %v4329 = vpop.f32.mrb[0].mxu0
      %v4330 = vpop.f32.mrb[0].mxu0
      %v4331 = vpop.f32.mrb[0].mxu0
      %4332 = vdwg.mxu0
      %4333 = vmatprep.subr.bf16.mxu0 0
      %4334 = vmatpush1.bf16.xpose.msra.mxu0 %v2980
      %4335 = vmatprep.subr.bf16.mxu0 0
      %4336 = vmatpush1.bf16.xpose.msra.mxu0 0
      %4337 = vmatprep.subr.bf16.mxu0 0
      %4338 = vmatpush1.bf16.xpose.msra.mxu0 0
      %4339 = vmatprep.subr.bf16.mxu0 0
      %4340 = vmatpush1.bf16.xpose.msra.mxu0 0
      %4341 = vmatprep.subr.bf16.mxu0 0
      %4342 = vmatpush1.bf16.xpose.msra.mxu0 0
      %4343 = vmatprep.subr.bf16.mxu0 0
      %4344 = vmatpush1.bf16.xpose.msra.mxu0 0
      %4345 = vmatprep.subr.bf16.mxu0 0
      %4346 = vmatpush1.bf16.xpose.msra.mxu0 0
      %4347 = vmatprep.subr.bf16.mxu0 0
      %4348 = vmatpush1.bf16.xpose.msra.mxu0 0
      %4349 = vmatprep.subr.bf16.mxu0 0
      %4350 = vmatpush1.bf16.xpose.msra.mxu0 0
      %4351 = vmatprep.subr.bf16.mxu0 0
      %4352 = vmatpush1.bf16.xpose.msra.mxu0 0
      %4353 = vmatprep.subr.bf16.mxu0 0
      %4354 = vmatpush1.bf16.xpose.msra.mxu0 0
      %4355 = vmatprep.subr.bf16.mxu0 0
      %4356 = vmatpush1.bf16.xpose.msra.mxu0 0
      %4357 = vmatprep.subr.bf16.mxu0 0
      %4358 = vmatpush1.bf16.xpose.msra.mxu0 0
      %4359 = vmatprep.subr.bf16.mxu0 0
      %4360 = vmatpush1.bf16.xpose.msra.mxu0 0
      %4361 = vmatprep.subr.bf16.mxu0 0
      %4362 = vmatpush1.bf16.xpose.msra.mxu0 0
      %4363 = vmatprep.subr.bf16.mxu0 0
      %4364 = vmatpush1.bf16.xpose.msra.mxu0 0
      %4365 = vmatprep.mubr.bf16.mxu0 0
      %4366 = vmatmul.mubr.bf16.gmra.mrb[0].mxu0 %v2983
      %v4367 = vpop.f32.mrb[0].mxu0
      %v4368 = vadd.f32 0.0, %v4367
      %v4369 = vpop.f32.mrb[0].mxu0
      %v4370 = vpop.f32.mrb[0].mxu0
      %v4371 = vpop.f32.mrb[0].mxu0
      %4372 = vdwg.mxu0
      %4373 = vmatprep.subr.bf16.mxu0 0
      %4374 = vmatpush1.bf16.xpose.msra.mxu0 %v3029
      %4375 = vmatprep.subr.bf16.mxu0 0
      %4376 = vmatpush1.bf16.xpose.msra.mxu0 0
      %4377 = vmatprep.subr.bf16.mxu0 0
      %4378 = vmatpush1.bf16.xpose.msra.mxu0 0
      %4379 = vmatprep.subr.bf16.mxu0 0
      %4380 = vmatpush1.bf16.xpose.msra.mxu0 0
      %4381 = vmatprep.subr.bf16.mxu0 0
      %4382 = vmatpush1.bf16.xpose.msra.mxu0 0
      %4383 = vmatprep.subr.bf16.mxu0 0
      %4384 = vmatpush1.bf16.xpose.msra.mxu0 0
      %4385 = vmatprep.subr.bf16.mxu0 0
      %4386 = vmatpush1.bf16.xpose.msra.mxu0 0
      %4387 = vmatprep.subr.bf16.mxu0 0
      %4388 = vmatpush1.bf16.xpose.msra.mxu0 0
      %4389 = vmatprep.subr.bf16.mxu0 0
      %4390 = vmatpush1.bf16.xpose.msra.mxu0 0
      %4391 = vmatprep.subr.bf16.mxu0 0
      %4392 = vmatpush1.bf16.xpose.msra.mxu0 0
      %4393 = vmatprep.subr.bf16.mxu0 0
      %4394 = vmatpush1.bf16.xpose.msra.mxu0 0
      %4395 = vmatprep.subr.bf16.mxu0 0
      %4396 = vmatpush1.bf16.xpose.msra.mxu0 0
      %4397 = vmatprep.subr.bf16.mxu0 0
      %4398 = vmatpush1.bf16.xpose.msra.mxu0 0
      %4399 = vmatprep.subr.bf16.mxu0 0
      %4400 = vmatpush1.bf16.xpose.msra.mxu0 0
      %4401 = vmatprep.subr.bf16.mxu0 0
      %4402 = vmatpush1.bf16.xpose.msra.mxu0 0
      %4403 = vmatprep.subr.bf16.mxu0 0
      %4404 = vmatpush1.bf16.xpose.msra.mxu0 0
      %4405 = vmatprep.mubr.bf16.mxu0 0
      %4406 = vmatmul.mubr.bf16.gmra.mrb[0].mxu0 %v3032
      %v4407 = vpop.f32.mrb[0].mxu0
      %v4408 = vadd.f32 0.0, %v4407
      %v4409 = vpop.f32.mrb[0].mxu0
      %v4410 = vpop.f32.mrb[0].mxu0
      %v4411 = vpop.f32.mrb[0].mxu0
      %4412 = vdwg.mxu0
      %4413 = vmatprep.subr.bf16.mxu0 0
      %4414 = vmatpush1.bf16.xpose.msra.mxu0 %v3078
      %4415 = vmatprep.subr.bf16.mxu0 0
      %4416 = vmatpush1.bf16.xpose.msra.mxu0 0
      %4417 = vmatprep.subr.bf16.mxu0 0
      %4418 = vmatpush1.bf16.xpose.msra.mxu0 0
      %4419 = vmatprep.subr.bf16.mxu0 0
      %4420 = vmatpush1.bf16.xpose.msra.mxu0 0
      %4421 = vmatprep.subr.bf16.mxu0 0
      %4422 = vmatpush1.bf16.xpose.msra.mxu0 0
      %4423 = vmatprep.subr.bf16.mxu0 0
      %4424 = vmatpush1.bf16.xpose.msra.mxu0 0
      %4425 = vmatprep.subr.bf16.mxu0 0
      %4426 = vmatpush1.bf16.xpose.msra.mxu0 0
      %4427 = vmatprep.subr.bf16.mxu0 0
      %4428 = vmatpush1.bf16.xpose.msra.mxu0 0
      %4429 = vmatprep.subr.bf16.mxu0 0
      %4430 = vmatpush1.bf16.xpose.msra.mxu0 0
      %4431 = vmatprep.subr.bf16.mxu0 0
      %4432 = vmatpush1.bf16.xpose.msra.mxu0 0
      %4433 = vmatprep.subr.bf16.mxu0 0
      %4434 = vmatpush1.bf16.xpose.msra.mxu0 0
      %4435 = vmatprep.subr.bf16.mxu0 0
      %4436 = vmatpush1.bf16.xpose.msra.mxu0 0
      %4437 = vmatprep.subr.bf16.mxu0 0
      %4438 = vmatpush1.bf16.xpose.msra.mxu0 0
      %4439 = vmatprep.subr.bf16.mxu0 0
      %4440 = vmatpush1.bf16.xpose.msra.mxu0 0
      %4441 = vmatprep.subr.bf16.mxu0 0
      %4442 = vmatpush1.bf16.xpose.msra.mxu0 0
      %4443 = vmatprep.subr.bf16.mxu0 0
      %4444 = vmatpush1.bf16.xpose.msra.mxu0 0
      %4445 = vmatprep.mubr.bf16.mxu0 0
      %4446 = vmatmul.mubr.bf16.gmra.mrb[0].mxu0 %v3081
      %v4447 = vpop.f32.mrb[0].mxu0
      %v4448 = vadd.f32 0.0, %v4447
      %v4449 = vpop.f32.mrb[0].mxu0
      %v4450 = vpop.f32.mrb[0].mxu0
      %v4451 = vpop.f32.mrb[0].mxu0
      %4452 = vdwg.mxu0
      %4453 = vmatprep.subr.bf16.mxu0 0
      %4454 = vmatpush1.bf16.xpose.msra.mxu0 %v3127
      %4455 = vmatprep.subr.bf16.mxu0 0
      %4456 = vmatpush1.bf16.xpose.msra.mxu0 0
      %4457 = vmatprep.subr.bf16.mxu0 0
      %4458 = vmatpush1.bf16.xpose.msra.mxu0 0
      %4459 = vmatprep.subr.bf16.mxu0 0
      %4460 = vmatpush1.bf16.xpose.msra.mxu0 0
      %4461 = vmatprep.subr.bf16.mxu0 0
      %4462 = vmatpush1.bf16.xpose.msra.mxu0 0
      %4463 = vmatprep.subr.bf16.mxu0 0
      %4464 = vmatpush1.bf16.xpose.msra.mxu0 0
      %4465 = vmatprep.subr.bf16.mxu0 0
      %4466 = vmatpush1.bf16.xpose.msra.mxu0 0
      %4467 = vmatprep.subr.bf16.mxu0 0
      %4468 = vmatpush1.bf16.xpose.msra.mxu0 0
      %4469 = vmatprep.subr.bf16.mxu0 0
      %4470 = vmatpush1.bf16.xpose.msra.mxu0 0
      %4471 = vmatprep.subr.bf16.mxu0 0
      %4472 = vmatpush1.bf16.xpose.msra.mxu0 0
      %4473 = vmatprep.subr.bf16.mxu0 0
      %4474 = vmatpush1.bf16.xpose.msra.mxu0 0
      %4475 = vmatprep.subr.bf16.mxu0 0
      %4476 = vmatpush1.bf16.xpose.msra.mxu0 0
      %4477 = vmatprep.subr.bf16.mxu0 0
      %4478 = vmatpush1.bf16.xpose.msra.mxu0 0
      %4479 = vmatprep.subr.bf16.mxu0 0
      %4480 = vmatpush1.bf16.xpose.msra.mxu0 0
      %4481 = vmatprep.subr.bf16.mxu0 0
      %4482 = vmatpush1.bf16.xpose.msra.mxu0 0
      %4483 = vmatprep.subr.bf16.mxu0 0
      %4484 = vmatpush1.bf16.xpose.msra.mxu0 0
      %4485 = vmatprep.mubr.bf16.mxu0 0
      %4486 = vmatmul.mubr.bf16.gmra.mrb[0].mxu0 %v3130
      %v4487 = vpop.f32.mrb[0].mxu0
      %v4488 = vadd.f32 0.0, %v4487
      %v4489 = vpop.f32.mrb[0].mxu0
      %v4490 = vpop.f32.mrb[0].mxu0
      %v4491 = vpop.f32.mrb[0].mxu0
      %4492 = vdwg.mxu0
      %4493 = vmatprep.subr.bf16.mxu0 0
      %4494 = vmatpush1.bf16.xpose.msra.mxu0 %v3176
      %4495 = vmatprep.subr.bf16.mxu0 0
      %4496 = vmatpush1.bf16.xpose.msra.mxu0 0
      %4497 = vmatprep.subr.bf16.mxu0 0
      %4498 = vmatpush1.bf16.xpose.msra.mxu0 0
      %4499 = vmatprep.subr.bf16.mxu0 0
      %4500 = vmatpush1.bf16.xpose.msra.mxu0 0
      %4501 = vmatprep.subr.bf16.mxu0 0
      %4502 = vmatpush1.bf16.xpose.msra.mxu0 0
      %4503 = vmatprep.subr.bf16.mxu0 0
      %4504 = vmatpush1.bf16.xpose.msra.mxu0 0
      %4505 = vmatprep.subr.bf16.mxu0 0
      %4506 = vmatpush1.bf16.xpose.msra.mxu0 0
      %4507 = vmatprep.subr.bf16.mxu0 0
      %4508 = vmatpush1.bf16.xpose.msra.mxu0 0
      %4509 = vmatprep.subr.bf16.mxu0 0
      %4510 = vmatpush1.bf16.xpose.msra.mxu0 0
      %4511 = vmatprep.subr.bf16.mxu0 0
      %4512 = vmatpush1.bf16.xpose.msra.mxu0 0
      %4513 = vmatprep.subr.bf16.mxu0 0
      %4514 = vmatpush1.bf16.xpose.msra.mxu0 0
      %4515 = vmatprep.subr.bf16.mxu0 0
      %4516 = vmatpush1.bf16.xpose.msra.mxu0 0
      %4517 = vmatprep.subr.bf16.mxu0 0
      %4518 = vmatpush1.bf16.xpose.msra.mxu0 0
      %4519 = vmatprep.subr.bf16.mxu0 0
      %4520 = vmatpush1.bf16.xpose.msra.mxu0 0
      %4521 = vmatprep.subr.bf16.mxu0 0
      %4522 = vmatpush1.bf16.xpose.msra.mxu0 0
      %4523 = vmatprep.subr.bf16.mxu0 0
      %4524 = vmatpush1.bf16.xpose.msra.mxu0 0
      %4525 = vmatprep.mubr.bf16.mxu0 0
      %4526 = vmatmul.mubr.bf16.gmra.mrb[0].mxu0 %v3179
      %v4527 = vpop.f32.mrb[0].mxu0
      %v4528 = vadd.f32 0.0, %v4527
      %v4529 = vpop.f32.mrb[0].mxu0
      %v4530 = vpop.f32.mrb[0].mxu0
      %v4531 = vpop.f32.mrb[0].mxu0
      %4532 = vdwg.mxu0
      %v4533 = vmul.f32 %v3288, 0.17677669
      %v4534 = vmul.f32 %v3328, 0.17677669
      %v4535 = vmul.f32 %v3368, 0.17677669
      %v4536 = vmul.f32 %v3408, 0.17677669
      %v4537 = vmul.f32 %v3448, 0.17677669
      %v4538 = vmul.f32 %v3488, 0.17677669
      %v4539 = vmul.f32 %v3528, 0.17677669
      %v4540 = vmul.f32 %v3568, 0.17677669
      %v4541 = vmul.f32 %v3608, 0.17677669
      %v4542 = vmul.f32 %v3648, 0.17677669
      %v4543 = vmul.f32 %v3688, 0.17677669
      %v4544 = vmul.f32 %v3728, 0.17677669
      %v4545 = vmul.f32 %v3768, 0.17677669
      %v4546 = vmul.f32 %v3808, 0.17677669
      %v4547 = vmul.f32 %v3848, 0.17677669
      %v4548 = vmul.f32 %v3888, 0.17677669
      %v4549 = vmul.f32 %v3928, 0.17677669
      %v4550 = vmul.f32 %v3968, 0.17677669
      %v4551 = vmul.f32 %v4008, 0.17677669
      %v4552 = vmul.f32 %v4048, 0.17677669
      %v4553 = vmul.f32 %v4088, 0.17677669
      %v4554 = vmul.f32 %v4128, 0.17677669
      %v4555 = vmul.f32 %v4168, 0.17677669
      %v4556 = vmul.f32 %v4208, 0.17677669
      %v4557 = vmul.f32 %v4248, 0.17677669
      %v4558 = vmul.f32 %v4288, 0.17677669
      %v4559 = vmul.f32 %v4328, 0.17677669
      %v4560 = vmul.f32 %v4368, 0.17677669
      %v4561 = vmul.f32 %v4408, 0.17677669
      %v4562 = vmul.f32 %v4448, 0.17677669
      %v4563 = vmul.f32 %v4488, 0.17677669
      %v4564 = vmul.f32 %v4528, 0.17677669
      %vm4565 = vcmask 64512
      %v4566 = vsel %vm4565, %v3221, -inf
      %4567 = vmax.xlane.f32.xlu0 %v4566
      %v4568 = vpop.xlane.xlu0 %4567
      %v4569 = vsel %vm4565, %v3222, -inf
      %4570 = vmax.xlane.f32.xlu0 %v4569
      %v4571 = vpop.xlane.xlu0 %4570
      %v4572 = vsel %vm4565, %v3223, -inf
      %4573 = vmax.xlane.f32.xlu0 %v4572
      %v4574 = vpop.xlane.xlu0 %4573
      %v4575 = vsel %vm4565, %v3224, -inf
      %4576 = vmax.xlane.f32.xlu0 %v4575
      %v4577 = vpop.xlane.xlu0 %4576
      %v4578 = vsel %vm4565, %v3225, -inf
      %4579 = vmax.xlane.f32.xlu0 %v4578
      %v4580 = vpop.xlane.xlu0 %4579
      %v4581 = vsel %vm4565, %v3226, -inf
      %4582 = vmax.xlane.f32.xlu0 %v4581
      %v4583 = vpop.xlane.xlu0 %4582
      %v4584 = vsel %vm4565, %v3227, -inf
      %4585 = vmax.xlane.f32.xlu0 %v4584
      %v4586 = vpop.xlane.xlu0 %4585
      %v4587 = vsel %vm4565, %v3228, -inf
      %4588 = vmax.xlane.f32.xlu0 %v4587
      %v4589 = vpop.xlane.xlu0 %4588
      %v4590 = vsel %vm4565, %v3229, -inf
      %4591 = vmax.xlane.f32.xlu0 %v4590
      %v4592 = vpop.xlane.xlu0 %4591
      %v4593 = vsel %vm4565, %v3230, -inf
      %4594 = vmax.xlane.f32.xlu0 %v4593
      %v4595 = vpop.xlane.xlu0 %4594
      %v4596 = vsel %vm4565, %v3231, -inf
      %4597 = vmax.xlane.f32.xlu0 %v4596
      %v4598 = vpop.xlane.xlu0 %4597
      %v4599 = vsel %vm4565, %v3232, -inf
      %4600 = vmax.xlane.f32.xlu0 %v4599
      %v4601 = vpop.xlane.xlu0 %4600
      %v4602 = vsel %vm4565, %v3233, -inf
      %4603 = vmax.xlane.f32.xlu0 %v4602
      %v4604 = vpop.xlane.xlu0 %4603
      %v4605 = vsel %vm4565, %v3234, -inf
      %4606 = vmax.xlane.f32.xlu0 %v4605
      %v4607 = vpop.xlane.xlu0 %4606
      %v4608 = vsel %vm4565, %v3235, -inf
      %4609 = vmax.xlane.f32.xlu0 %v4608
      %v4610 = vpop.xlane.xlu0 %4609
      %v4611 = vsel %vm4565, %v3236, -inf
      %4612 = vmax.xlane.f32.xlu0 %v4611
      %v4613 = vpop.xlane.xlu0 %4612
      %v4614 = vsel %vm4565, %v3237, -inf
      %4615 = vmax.xlane.f32.xlu0 %v4614
      %v4616 = vpop.xlane.xlu0 %4615
      %v4617 = vsel %vm4565, %v3238, -inf
      %4618 = vmax.xlane.f32.xlu0 %v4617
      %v4619 = vpop.xlane.xlu0 %4618
      %v4620 = vsel %vm4565, %v3239, -inf
      %4621 = vmax.xlane.f32.xlu0 %v4620
      %v4622 = vpop.xlane.xlu0 %4621
      %v4623 = vsel %vm4565, %v3240, -inf
      %4624 = vmax.xlane.f32.xlu0 %v4623
      %v4625 = vpop.xlane.xlu0 %4624
      %v4626 = vsel %vm4565, %v3241, -inf
      %4627 = vmax.xlane.f32.xlu0 %v4626
      %v4628 = vpop.xlane.xlu0 %4627
      %v4629 = vsel %vm4565, %v3242, -inf
      %4630 = vmax.xlane.f32.xlu0 %v4629
      %v4631 = vpop.xlane.xlu0 %4630
      %v4632 = vsel %vm4565, %v3243, -inf
      %4633 = vmax.xlane.f32.xlu0 %v4632
      %v4634 = vpop.xlane.xlu0 %4633
      %v4635 = vsel %vm4565, %v3244, -inf
      %4636 = vmax.xlane.f32.xlu0 %v4635
      %v4637 = vpop.xlane.xlu0 %4636
      %v4638 = vsel %vm4565, %v3245, -inf
      %4639 = vmax.xlane.f32.xlu0 %v4638
      %v4640 = vpop.xlane.xlu0 %4639
      %v4641 = vsel %vm4565, %v3246, -inf
      %4642 = vmax.xlane.f32.xlu0 %v4641
      %v4643 = vpop.xlane.xlu0 %4642
      %v4644 = vsel %vm4565, %v3247, -inf
      %4645 = vmax.xlane.f32.xlu0 %v4644
      %v4646 = vpop.xlane.xlu0 %4645
      %v4647 = vsel %vm4565, %v3248, -inf
      %4648 = vmax.xlane.f32.xlu0 %v4647
      %v4649 = vpop.xlane.xlu0 %4648
      %v4650 = vsel %vm4565, %v3249, -inf
      %4651 = vmax.xlane.f32.xlu0 %v4650
      %v4652 = vpop.xlane.xlu0 %4651
      %v4653 = vsel %vm4565, %v3250, -inf
      %4654 = vmax.xlane.f32.xlu0 %v4653
      %v4655 = vpop.xlane.xlu0 %4654
      %v4656 = vsel %vm4565, %v3251, -inf
      %4657 = vmax.xlane.f32.xlu0 %v4656
      %v4658 = vpop.xlane.xlu0 %4657
      %v4659 = vsel %vm4565, %v3252, -inf
      %4660 = vmax.xlane.f32.xlu0 %v4659
      %v4661 = vpop.xlane.xlu0 %4660
      %v4662 = vsub.f32 %v3221, %v4568
      %v4663 = vsub.f32 %v3222, %v4571
      %v4664 = vsub.f32 %v3223, %v4574
      %v4665 = vsub.f32 %v3224, %v4577
      %v4666 = vsub.f32 %v3225, %v4580
      %v4667 = vsub.f32 %v3226, %v4583
      %v4668 = vsub.f32 %v3227, %v4586
      %v4669 = vsub.f32 %v3228, %v4589
      %v4670 = vsub.f32 %v3229, %v4592
      %v4671 = vsub.f32 %v3230, %v4595
      %v4672 = vsub.f32 %v3231, %v4598
      %v4673 = vsub.f32 %v3232, %v4601
      %v4674 = vsub.f32 %v3233, %v4604
      %v4675 = vsub.f32 %v3234, %v4607
      %v4676 = vsub.f32 %v3235, %v4610
      %v4677 = vsub.f32 %v3236, %v4613
      %v4678 = vsub.f32 %v3237, %v4616
      %v4679 = vsub.f32 %v3238, %v4619
      %v4680 = vsub.f32 %v3239, %v4622
      %v4681 = vsub.f32 %v3240, %v4625
      %v4682 = vsub.f32 %v3241, %v4628
      %v4683 = vsub.f32 %v3242, %v4631
      %v4684 = vsub.f32 %v3243, %v4634
      %v4685 = vsub.f32 %v3244, %v4637
      %v4686 = vsub.f32 %v3245, %v4640
      %v4687 = vsub.f32 %v3246, %v4643
      %v4688 = vsub.f32 %v3247, %v4646
      %v4689 = vsub.f32 %v3248, %v4649
      %v4690 = vsub.f32 %v3249, %v4652
      %v4691 = vsub.f32 %v3250, %v4655
      %v4692 = vsub.f32 %v3251, %v4658
      %v4693 = vsub.f32 %v3252, %v4661
      %v4694 = vmul.f32 %v4662, 1.442695
      %v4695 = vpow.pop %v4694
      %v4696 = vmul.f32 %v4663, 1.442695
      %v4697 = vpow.pop %v4696
      %v4698 = vmul.f32 %v4664, 1.442695
      %v4699 = vpow.pop %v4698
      %v4700 = vmul.f32 %v4665, 1.442695
      %v4701 = vpow.pop %v4700
      %v4702 = vmul.f32 %v4666, 1.442695
      %v4703 = vpow.pop %v4702
      %v4704 = vmul.f32 %v4667, 1.442695
      %v4705 = vpow.pop %v4704
      %v4706 = vmul.f32 %v4668, 1.442695
      %v4707 = vpow.pop %v4706
      %v4708 = vmul.f32 %v4669, 1.442695
      %v4709 = vpow.pop %v4708
      %v4710 = vmul.f32 %v4670, 1.442695
      %v4711 = vpow.pop %v4710
      %v4712 = vmul.f32 %v4671, 1.442695
      %v4713 = vpow.pop %v4712
      %v4714 = vmul.f32 %v4672, 1.442695
      %v4715 = vpow.pop %v4714
      %v4716 = vmul.f32 %v4673, 1.442695
      %v4717 = vpow.pop %v4716
      %v4718 = vmul.f32 %v4674, 1.442695
      %v4719 = vpow.pop %v4718
      %v4720 = vmul.f32 %v4675, 1.442695
      %v4721 = vpow.pop %v4720
      %v4722 = vmul.f32 %v4676, 1.442695
      %v4723 = vpow.pop %v4722
      %v4724 = vmul.f32 %v4677, 1.442695
      %v4725 = vpow.pop %v4724
      %v4726 = vmul.f32 %v4678, 1.442695
      %v4727 = vpow.pop %v4726
      %v4728 = vmul.f32 %v4679, 1.442695
      %v4729 = vpow.pop %v4728
      %v4730 = vmul.f32 %v4680, 1.442695
      %v4731 = vpow.pop %v4730
      %v4732 = vmul.f32 %v4681, 1.442695
      %v4733 = vpow.pop %v4732
      %v4734 = vmul.f32 %v4682, 1.442695
      %v4735 = vpow.pop %v4734
      %v4736 = vmul.f32 %v4683, 1.442695
      %v4737 = vpow.pop %v4736
      %v4738 = vmul.f32 %v4684, 1.442695
      %v4739 = vpow.pop %v4738
      %v4740 = vmul.f32 %v4685, 1.442695
      %v4741 = vpow.pop %v4740
      %v4742 = vmul.f32 %v4686, 1.442695
      %v4743 = vpow.pop %v4742
      %v4744 = vmul.f32 %v4687, 1.442695
      %v4745 = vpow.pop %v4744
      %v4746 = vmul.f32 %v4688, 1.442695
      %v4747 = vpow.pop %v4746
      %v4748 = vmul.f32 %v4689, 1.442695
      %v4749 = vpow.pop %v4748
      %v4750 = vmul.f32 %v4690, 1.442695
      %v4751 = vpow.pop %v4750
      %v4752 = vmul.f32 %v4691, 1.442695
      %v4753 = vpow.pop %v4752
      %v4754 = vmul.f32 %v4692, 1.442695
      %v4755 = vpow.pop %v4754
      %v4756 = vmul.f32 %v4693, 1.442695
      %v4757 = vpow.pop %v4756
      %v4758 = vsel %vm4565, %v4695, 0.0
      %4759 = vadd.xlane.f32.xlu0 %v4758
      %v4760 = vpop.xlane.xlu0 %4759
      %v4761 = vsel %vm4565, %v4697, 0.0
      %4762 = vadd.xlane.f32.xlu0 %v4761
      %v4763 = vpop.xlane.xlu0 %4762
      %v4764 = vsel %vm4565, %v4699, 0.0
      %4765 = vadd.xlane.f32.xlu0 %v4764
      %v4766 = vpop.xlane.xlu0 %4765
      %v4767 = vsel %vm4565, %v4701, 0.0
      %4768 = vadd.xlane.f32.xlu0 %v4767
      %v4769 = vpop.xlane.xlu0 %4768
      %v4770 = vsel %vm4565, %v4703, 0.0
      %4771 = vadd.xlane.f32.xlu0 %v4770
      %v4772 = vpop.xlane.xlu0 %4771
      %v4773 = vsel %vm4565, %v4705, 0.0
      %4774 = vadd.xlane.f32.xlu0 %v4773
      %v4775 = vpop.xlane.xlu0 %4774
      %v4776 = vsel %vm4565, %v4707, 0.0
      %4777 = vadd.xlane.f32.xlu0 %v4776
      %v4778 = vpop.xlane.xlu0 %4777
      %v4779 = vsel %vm4565, %v4709, 0.0
      %4780 = vadd.xlane.f32.xlu0 %v4779
      %v4781 = vpop.xlane.xlu0 %4780
      %v4782 = vsel %vm4565, %v4711, 0.0
      %4783 = vadd.xlane.f32.xlu0 %v4782
      %v4784 = vpop.xlane.xlu0 %4783
      %v4785 = vsel %vm4565, %v4713, 0.0
      %4786 = vadd.xlane.f32.xlu0 %v4785
      %v4787 = vpop.xlane.xlu0 %4786
      %v4788 = vsel %vm4565, %v4715, 0.0
      %4789 = vadd.xlane.f32.xlu0 %v4788
      %v4790 = vpop.xlane.xlu0 %4789
      %v4791 = vsel %vm4565, %v4717, 0.0
      %4792 = vadd.xlane.f32.xlu0 %v4791
      %v4793 = vpop.xlane.xlu0 %4792
      %v4794 = vsel %vm4565, %v4719, 0.0
      %4795 = vadd.xlane.f32.xlu0 %v4794
      %v4796 = vpop.xlane.xlu0 %4795
      %v4797 = vsel %vm4565, %v4721, 0.0
      %4798 = vadd.xlane.f32.xlu0 %v4797
      %v4799 = vpop.xlane.xlu0 %4798
      %v4800 = vsel %vm4565, %v4723, 0.0
      %4801 = vadd.xlane.f32.xlu0 %v4800
      %v4802 = vpop.xlane.xlu0 %4801
      %v4803 = vsel %vm4565, %v4725, 0.0
      %4804 = vadd.xlane.f32.xlu0 %v4803
      %v4805 = vpop.xlane.xlu0 %4804
      %v4806 = vsel %vm4565, %v4727, 0.0
      %4807 = vadd.xlane.f32.xlu0 %v4806
      %v4808 = vpop.xlane.xlu0 %4807
      %v4809 = vsel %vm4565, %v4729, 0.0
      %4810 = vadd.xlane.f32.xlu0 %v4809
      %v4811 = vpop.xlane.xlu0 %4810
      %v4812 = vsel %vm4565, %v4731, 0.0
      %4813 = vadd.xlane.f32.xlu0 %v4812
      %v4814 = vpop.xlane.xlu0 %4813
      %v4815 = vsel %vm4565, %v4733, 0.0
      %4816 = vadd.xlane.f32.xlu0 %v4815
      %v4817 = vpop.xlane.xlu0 %4816
      %v4818 = vsel %vm4565, %v4735, 0.0
      %4819 = vadd.xlane.f32.xlu0 %v4818
      %v4820 = vpop.xlane.xlu0 %4819
      %v4821 = vsel %vm4565, %v4737, 0.0
      %4822 = vadd.xlane.f32.xlu0 %v4821
      %v4823 = vpop.xlane.xlu0 %4822
      %v4824 = vsel %vm4565, %v4739, 0.0
      %4825 = vadd.xlane.f32.xlu0 %v4824
      %v4826 = vpop.xlane.xlu0 %4825
      %v4827 = vsel %vm4565, %v4741, 0.0
      %4828 = vadd.xlane.f32.xlu0 %v4827
      %v4829 = vpop.xlane.xlu0 %4828
      %v4830 = vsel %vm4565, %v4743, 0.0
      %4831 = vadd.xlane.f32.xlu0 %v4830
      %v4832 = vpop.xlane.xlu0 %4831
      %v4833 = vsel %vm4565, %v4745, 0.0
      %4834 = vadd.xlane.f32.xlu0 %v4833
      %v4835 = vpop.xlane.xlu0 %4834
      %v4836 = vsel %vm4565, %v4747, 0.0
      %4837 = vadd.xlane.f32.xlu0 %v4836
      %v4838 = vpop.xlane.xlu0 %4837
      %v4839 = vsel %vm4565, %v4749, 0.0
      %4840 = vadd.xlane.f32.xlu0 %v4839
      %v4841 = vpop.xlane.xlu0 %4840
      %v4842 = vsel %vm4565, %v4751, 0.0
      %4843 = vadd.xlane.f32.xlu0 %v4842
      %v4844 = vpop.xlane.xlu0 %4843
      %v4845 = vsel %vm4565, %v4753, 0.0
      %4846 = vadd.xlane.f32.xlu0 %v4845
      %v4847 = vpop.xlane.xlu0 %4846
      %v4848 = vsel %vm4565, %v4755, 0.0
      %4849 = vadd.xlane.f32.xlu0 %v4848
      %v4850 = vpop.xlane.xlu0 %4849
      %v4851 = vsel %vm4565, %v4757, 0.0
      %4852 = vadd.xlane.f32.xlu0 %v4851
      %v4853 = vpop.xlane.xlu0 %4852
      %v4854 = vrcp.pop %v4760
      %v4855 = vmul.f32 %v4695, %v4854
      %v4856 = vrcp.pop %v4763
      %v4857 = vmul.f32 %v4697, %v4856
      %v4858 = vrcp.pop %v4766
      %v4859 = vmul.f32 %v4699, %v4858
      %v4860 = vrcp.pop %v4769
      %v4861 = vmul.f32 %v4701, %v4860
      %v4862 = vrcp.pop %v4772
      %v4863 = vmul.f32 %v4703, %v4862
      %v4864 = vrcp.pop %v4775
      %v4865 = vmul.f32 %v4705, %v4864
      %v4866 = vrcp.pop %v4778
      %v4867 = vmul.f32 %v4707, %v4866
      %v4868 = vrcp.pop %v4781
      %v4869 = vmul.f32 %v4709, %v4868
      %v4870 = vrcp.pop %v4784
      %v4871 = vmul.f32 %v4711, %v4870
      %v4872 = vrcp.pop %v4787
      %v4873 = vmul.f32 %v4713, %v4872
      %v4874 = vrcp.pop %v4790
      %v4875 = vmul.f32 %v4715, %v4874
      %v4876 = vrcp.pop %v4793
      %v4877 = vmul.f32 %v4717, %v4876
      %v4878 = vrcp.pop %v4796
      %v4879 = vmul.f32 %v4719, %v4878
      %v4880 = vrcp.pop %v4799
      %v4881 = vmul.f32 %v4721, %v4880
      %v4882 = vrcp.pop %v4802
      %v4883 = vmul.f32 %v4723, %v4882
      %v4884 = vrcp.pop %v4805
      %v4885 = vmul.f32 %v4725, %v4884
      %v4886 = vrcp.pop %v4808
      %v4887 = vmul.f32 %v4727, %v4886
      %v4888 = vrcp.pop %v4811
      %v4889 = vmul.f32 %v4729, %v4888
      %v4890 = vrcp.pop %v4814
      %v4891 = vmul.f32 %v4731, %v4890
      %v4892 = vrcp.pop %v4817
      %v4893 = vmul.f32 %v4733, %v4892
      %v4894 = vrcp.pop %v4820
      %v4895 = vmul.f32 %v4735, %v4894
      %v4896 = vrcp.pop %v4823
      %v4897 = vmul.f32 %v4737, %v4896
      %v4898 = vrcp.pop %v4826
      %v4899 = vmul.f32 %v4739, %v4898
      %v4900 = vrcp.pop %v4829
      %v4901 = vmul.f32 %v4741, %v4900
      %v4902 = vrcp.pop %v4832
      %v4903 = vmul.f32 %v4743, %v4902
      %v4904 = vrcp.pop %v4835
      %v4905 = vmul.f32 %v4745, %v4904
      %v4906 = vrcp.pop %v4838
      %v4907 = vmul.f32 %v4747, %v4906
      %v4908 = vrcp.pop %v4841
      %v4909 = vmul.f32 %v4749, %v4908
      %v4910 = vrcp.pop %v4844
      %v4911 = vmul.f32 %v4751, %v4910
      %v4912 = vrcp.pop %v4847
      %v4913 = vmul.f32 %v4753, %v4912
      %v4914 = vrcp.pop %v4850
      %v4915 = vmul.f32 %v4755, %v4914
      %v4916 = vrcp.pop %v4853
      %v4917 = vmul.f32 %v4757, %v4916
      %v4918 = vsel %vm4565, %v4533, -inf
      %4919 = vmax.xlane.f32.xlu0 %v4918
      %v4920 = vpop.xlane.xlu0 %4919
      %v4921 = vsel %vm4565, %v4534, -inf
      %4922 = vmax.xlane.f32.xlu0 %v4921
      %v4923 = vpop.xlane.xlu0 %4922
      %v4924 = vsel %vm4565, %v4535, -inf
      %4925 = vmax.xlane.f32.xlu0 %v4924
      %v4926 = vpop.xlane.xlu0 %4925
      %v4927 = vsel %vm4565, %v4536, -inf
      %4928 = vmax.xlane.f32.xlu0 %v4927
      %v4929 = vpop.xlane.xlu0 %4928
      %v4930 = vsel %vm4565, %v4537, -inf
      %4931 = vmax.xlane.f32.xlu0 %v4930
      %v4932 = vpop.xlane.xlu0 %4931
      %v4933 = vsel %vm4565, %v4538, -inf
      %4934 = vmax.xlane.f32.xlu0 %v4933
      %v4935 = vpop.xlane.xlu0 %4934
      %v4936 = vsel %vm4565, %v4539, -inf
      %4937 = vmax.xlane.f32.xlu0 %v4936
      %v4938 = vpop.xlane.xlu0 %4937
      %v4939 = vsel %vm4565, %v4540, -inf
      %4940 = vmax.xlane.f32.xlu0 %v4939
      %v4941 = vpop.xlane.xlu0 %4940
      %v4942 = vsel %vm4565, %v4541, -inf
      %4943 = vmax.xlane.f32.xlu0 %v4942
      %v4944 = vpop.xlane.xlu0 %4943
      %v4945 = vsel %vm4565, %v4542, -inf
      %4946 = vmax.xlane.f32.xlu0 %v4945
      %v4947 = vpop.xlane.xlu0 %4946
      %v4948 = vsel %vm4565, %v4543, -inf
      %4949 = vmax.xlane.f32.xlu0 %v4948
      %v4950 = vpop.xlane.xlu0 %4949
      %v4951 = vsel %vm4565, %v4544, -inf
      %4952 = vmax.xlane.f32.xlu0 %v4951
      %v4953 = vpop.xlane.xlu0 %4952
      %v4954 = vsel %vm4565, %v4545, -inf
      %4955 = vmax.xlane.f32.xlu0 %v4954
      %v4956 = vpop.xlane.xlu0 %4955
      %v4957 = vsel %vm4565, %v4546, -inf
      %4958 = vmax.xlane.f32.xlu0 %v4957
      %v4959 = vpop.xlane.xlu0 %4958
      %v4960 = vsel %vm4565, %v4547, -inf
      %4961 = vmax.xlane.f32.xlu0 %v4960
      %v4962 = vpop.xlane.xlu0 %4961
      %v4963 = vsel %vm4565, %v4548, -inf
      %4964 = vmax.xlane.f32.xlu0 %v4963
      %v4965 = vpop.xlane.xlu0 %4964
      %v4966 = vsel %vm4565, %v4549, -inf
      %4967 = vmax.xlane.f32.xlu0 %v4966
      %v4968 = vpop.xlane.xlu0 %4967
      %v4969 = vsel %vm4565, %v4550, -inf
      %4970 = vmax.xlane.f32.xlu0 %v4969
      %v4971 = vpop.xlane.xlu0 %4970
      %v4972 = vsel %vm4565, %v4551, -inf
      %4973 = vmax.xlane.f32.xlu0 %v4972
      %v4974 = vpop.xlane.xlu0 %4973
      %v4975 = vsel %vm4565, %v4552, -inf
      %4976 = vmax.xlane.f32.xlu0 %v4975
      %v4977 = vpop.xlane.xlu0 %4976
      %v4978 = vsel %vm4565, %v4553, -inf
      %4979 = vmax.xlane.f32.xlu0 %v4978
      %v4980 = vpop.xlane.xlu0 %4979
      %v4981 = vsel %vm4565, %v4554, -inf
      %4982 = vmax.xlane.f32.xlu0 %v4981
      %v4983 = vpop.xlane.xlu0 %4982
      %v4984 = vsel %vm4565, %v4555, -inf
      %4985 = vmax.xlane.f32.xlu0 %v4984
      %v4986 = vpop.xlane.xlu0 %4985
      %v4987 = vsel %vm4565, %v4556, -inf
      %4988 = vmax.xlane.f32.xlu0 %v4987
      %v4989 = vpop.xlane.xlu0 %4988
      %v4990 = vsel %vm4565, %v4557, -inf
      %4991 = vmax.xlane.f32.xlu0 %v4990
      %v4992 = vpop.xlane.xlu0 %4991
      %v4993 = vsel %vm4565, %v4558, -inf
      %4994 = vmax.xlane.f32.xlu0 %v4993
      %v4995 = vpop.xlane.xlu0 %4994
      %v4996 = vsel %vm4565, %v4559, -inf
      %4997 = vmax.xlane.f32.xlu0 %v4996
      %v4998 = vpop.xlane.xlu0 %4997
      %v4999 = vsel %vm4565, %v4560, -inf
      %5000 = vmax.xlane.f32.xlu0 %v4999
      %v5001 = vpop.xlane.xlu0 %5000
      %v5002 = vsel %vm4565, %v4561, -inf
      %5003 = vmax.xlane.f32.xlu0 %v5002
      %v5004 = vpop.xlane.xlu0 %5003
      %v5005 = vsel %vm4565, %v4562, -inf
      %5006 = vmax.xlane.f32.xlu0 %v5005
      %v5007 = vpop.xlane.xlu0 %5006
      %v5008 = vsel %vm4565, %v4563, -inf
      %5009 = vmax.xlane.f32.xlu0 %v5008
      %v5010 = vpop.xlane.xlu0 %5009
      %v5011 = vsel %vm4565, %v4564, -inf
      %5012 = vmax.xlane.f32.xlu0 %v5011
      %v5013 = vpop.xlane.xlu0 %5012
      %v5014 = vsub.f32 %v4533, %v4920
      %v5015 = vsub.f32 %v4534, %v4923
      %v5016 = vsub.f32 %v4535, %v4926
      %v5017 = vsub.f32 %v4536, %v4929
      %v5018 = vsub.f32 %v4537, %v4932
      %v5019 = vsub.f32 %v4538, %v4935
      %v5020 = vsub.f32 %v4539, %v4938
      %v5021 = vsub.f32 %v4540, %v4941
      %v5022 = vsub.f32 %v4541, %v4944
      %v5023 = vsub.f32 %v4542, %v4947
      %v5024 = vsub.f32 %v4543, %v4950
      %v5025 = vsub.f32 %v4544, %v4953
      %v5026 = vsub.f32 %v4545, %v4956
      %v5027 = vsub.f32 %v4546, %v4959
      %v5028 = vsub.f32 %v4547, %v4962
      %v5029 = vsub.f32 %v4548, %v4965
      %v5030 = vsub.f32 %v4549, %v4968
      %v5031 = vsub.f32 %v4550, %v4971
      %v5032 = vsub.f32 %v4551, %v4974
      %v5033 = vsub.f32 %v4552, %v4977
      %v5034 = vsub.f32 %v4553, %v4980
      %v5035 = vsub.f32 %v4554, %v4983
      %v5036 = vsub.f32 %v4555, %v4986
      %v5037 = vsub.f32 %v4556, %v4989
      %v5038 = vsub.f32 %v4557, %v4992
      %v5039 = vsub.f32 %v4558, %v4995
      %v5040 = vsub.f32 %v4559, %v4998
      %v5041 = vsub.f32 %v4560, %v5001
      %v5042 = vsub.f32 %v4561, %v5004
      %v5043 = vsub.f32 %v4562, %v5007
      %v5044 = vsub.f32 %v4563, %v5010
      %v5045 = vsub.f32 %v4564, %v5013
      %v5046 = vmul.f32 %v5014, 1.442695
      %v5047 = vpow.pop %v5046
      %v5048 = vmul.f32 %v5015, 1.442695
      %v5049 = vpow.pop %v5048
      %v5050 = vmul.f32 %v5016, 1.442695
      %v5051 = vpow.pop %v5050
      %v5052 = vmul.f32 %v5017, 1.442695
      %v5053 = vpow.pop %v5052
      %v5054 = vmul.f32 %v5018, 1.442695
      %v5055 = vpow.pop %v5054
      %v5056 = vmul.f32 %v5019, 1.442695
      %v5057 = vpow.pop %v5056
      %v5058 = vmul.f32 %v5020, 1.442695
      %v5059 = vpow.pop %v5058
      %v5060 = vmul.f32 %v5021, 1.442695
      %v5061 = vpow.pop %v5060
      %v5062 = vmul.f32 %v5022, 1.442695
      %v5063 = vpow.pop %v5062
      %v5064 = vmul.f32 %v5023, 1.442695
      %v5065 = vpow.pop %v5064
      %v5066 = vmul.f32 %v5024, 1.442695
      %v5067 = vpow.pop %v5066
      %v5068 = vmul.f32 %v5025, 1.442695
      %v5069 = vpow.pop %v5068
      %v5070 = vmul.f32 %v5026, 1.442695
      %v5071 = vpow.pop %v5070
      %v5072 = vmul.f32 %v5027, 1.442695
      %v5073 = vpow.pop %v5072
      %v5074 = vmul.f32 %v5028, 1.442695
      %v5075 = vpow.pop %v5074
      %v5076 = vmul.f32 %v5029, 1.442695
      %v5077 = vpow.pop %v5076
      %v5078 = vmul.f32 %v5030, 1.442695
      %v5079 = vpow.pop %v5078
      %v5080 = vmul.f32 %v5031, 1.442695
      %v5081 = vpow.pop %v5080
      %v5082 = vmul.f32 %v5032, 1.442695
      %v5083 = vpow.pop %v5082
      %v5084 = vmul.f32 %v5033, 1.442695
      %v5085 = vpow.pop %v5084
      %v5086 = vmul.f32 %v5034, 1.442695
      %v5087 = vpow.pop %v5086
      %v5088 = vmul.f32 %v5035, 1.442695
      %v5089 = vpow.pop %v5088
      %v5090 = vmul.f32 %v5036, 1.442695
      %v5091 = vpow.pop %v5090
      %v5092 = vmul.f32 %v5037, 1.442695
      %v5093 = vpow.pop %v5092
      %v5094 = vmul.f32 %v5038, 1.442695
      %v5095 = vpow.pop %v5094
      %v5096 = vmul.f32 %v5039, 1.442695
      %v5097 = vpow.pop %v5096
      %v5098 = vmul.f32 %v5040, 1.442695
      %v5099 = vpow.pop %v5098
      %v5100 = vmul.f32 %v5041, 1.442695
      %v5101 = vpow.pop %v5100
      %v5102 = vmul.f32 %v5042, 1.442695
      %v5103 = vpow.pop %v5102
      %v5104 = vmul.f32 %v5043, 1.442695
      %v5105 = vpow.pop %v5104
      %v5106 = vmul.f32 %v5044, 1.442695
      %v5107 = vpow.pop %v5106
      %v5108 = vmul.f32 %v5045, 1.442695
      %v5109 = vpow.pop %v5108
      %v5110 = vsel %vm4565, %v5047, 0.0
      %5111 = vadd.xlane.f32.xlu0 %v5110
      %v5112 = vpop.xlane.xlu0 %5111
      %v5113 = vsel %vm4565, %v5049, 0.0
      %5114 = vadd.xlane.f32.xlu0 %v5113
      %v5115 = vpop.xlane.xlu0 %5114
      %v5116 = vsel %vm4565, %v5051, 0.0
      %5117 = vadd.xlane.f32.xlu0 %v5116
      %v5118 = vpop.xlane.xlu0 %5117
      %v5119 = vsel %vm4565, %v5053, 0.0
      %5120 = vadd.xlane.f32.xlu0 %v5119
      %v5121 = vpop.xlane.xlu0 %5120
      %v5122 = vsel %vm4565, %v5055, 0.0
      %5123 = vadd.xlane.f32.xlu0 %v5122
      %v5124 = vpop.xlane.xlu0 %5123
      %v5125 = vsel %vm4565, %v5057, 0.0
      %5126 = vadd.xlane.f32.xlu0 %v5125
      %v5127 = vpop.xlane.xlu0 %5126
      %v5128 = vsel %vm4565, %v5059, 0.0
      %5129 = vadd.xlane.f32.xlu0 %v5128
      %v5130 = vpop.xlane.xlu0 %5129
      %v5131 = vsel %vm4565, %v5061, 0.0
      %5132 = vadd.xlane.f32.xlu0 %v5131
      %v5133 = vpop.xlane.xlu0 %5132
      %v5134 = vsel %vm4565, %v5063, 0.0
      %5135 = vadd.xlane.f32.xlu0 %v5134
      %v5136 = vpop.xlane.xlu0 %5135
      %v5137 = vsel %vm4565, %v5065, 0.0
      %5138 = vadd.xlane.f32.xlu0 %v5137
      %v5139 = vpop.xlane.xlu0 %5138
      %v5140 = vsel %vm4565, %v5067, 0.0
      %5141 = vadd.xlane.f32.xlu0 %v5140
      %v5142 = vpop.xlane.xlu0 %5141
      %v5143 = vsel %vm4565, %v5069, 0.0
      %5144 = vadd.xlane.f32.xlu0 %v5143
      %v5145 = vpop.xlane.xlu0 %5144
      %v5146 = vsel %vm4565, %v5071, 0.0
      %5147 = vadd.xlane.f32.xlu0 %v5146
      %v5148 = vpop.xlane.xlu0 %5147
      %v5149 = vsel %vm4565, %v5073, 0.0
      %5150 = vadd.xlane.f32.xlu0 %v5149
      %v5151 = vpop.xlane.xlu0 %5150
      %v5152 = vsel %vm4565, %v5075, 0.0
      %5153 = vadd.xlane.f32.xlu0 %v5152
      %v5154 = vpop.xlane.xlu0 %5153
      %v5155 = vsel %vm4565, %v5077, 0.0
      %5156 = vadd.xlane.f32.xlu0 %v5155
      %v5157 = vpop.xlane.xlu0 %5156
      %v5158 = vsel %vm4565, %v5079, 0.0
      %5159 = vadd.xlane.f32.xlu0 %v5158
      %v5160 = vpop.xlane.xlu0 %5159
      %v5161 = vsel %vm4565, %v5081, 0.0
      %5162 = vadd.xlane.f32.xlu0 %v5161
      %v5163 = vpop.xlane.xlu0 %5162
      %v5164 = vsel %vm4565, %v5083, 0.0
      %5165 = vadd.xlane.f32.xlu0 %v5164
      %v5166 = vpop.xlane.xlu0 %5165
      %v5167 = vsel %vm4565, %v5085, 0.0
      %5168 = vadd.xlane.f32.xlu0 %v5167
      %v5169 = vpop.xlane.xlu0 %5168
      %v5170 = vsel %vm4565, %v5087, 0.0
      %5171 = vadd.xlane.f32.xlu0 %v5170
      %v5172 = vpop.xlane.xlu0 %5171
      %v5173 = vsel %vm4565, %v5089, 0.0
      %5174 = vadd.xlane.f32.xlu0 %v5173
      %v5175 = vpop.xlane.xlu0 %5174
      %v5176 = vsel %vm4565, %v5091, 0.0
      %5177 = vadd.xlane.f32.xlu0 %v5176
      %v5178 = vpop.xlane.xlu0 %5177
      %v5179 = vsel %vm4565, %v5093, 0.0
      %5180 = vadd.xlane.f32.xlu0 %v5179
      %v5181 = vpop.xlane.xlu0 %5180
      %v5182 = vsel %vm4565, %v5095, 0.0
      %5183 = vadd.xlane.f32.xlu0 %v5182
      %v5184 = vpop.xlane.xlu0 %5183
      %v5185 = vsel %vm4565, %v5097, 0.0
      %5186 = vadd.xlane.f32.xlu0 %v5185
      %v5187 = vpop.xlane.xlu0 %5186
      %v5188 = vsel %vm4565, %v5099, 0.0
      %5189 = vadd.xlane.f32.xlu0 %v5188
      %v5190 = vpop.xlane.xlu0 %5189
      %v5191 = vsel %vm4565, %v5101, 0.0
      %5192 = vadd.xlane.f32.xlu0 %v5191
      %v5193 = vpop.xlane.xlu0 %5192
      %v5194 = vsel %vm4565, %v5103, 0.0
      %5195 = vadd.xlane.f32.xlu0 %v5194
      %v5196 = vpop.xlane.xlu0 %5195
      %v5197 = vsel %vm4565, %v5105, 0.0
      %5198 = vadd.xlane.f32.xlu0 %v5197
      %v5199 = vpop.xlane.xlu0 %5198
      %v5200 = vsel %vm4565, %v5107, 0.0
      %5201 = vadd.xlane.f32.xlu0 %v5200
      %v5202 = vpop.xlane.xlu0 %5201
      %v5203 = vsel %vm4565, %v5109, 0.0
      %5204 = vadd.xlane.f32.xlu0 %v5203
      %v5205 = vpop.xlane.xlu0 %5204
      %v5206 = vrcp.pop %v5112
      %v5207 = vmul.f32 %v5047, %v5206
      %v5208 = vrcp.pop %v5115
      %v5209 = vmul.f32 %v5049, %v5208
      %v5210 = vrcp.pop %v5118
      %v5211 = vmul.f32 %v5051, %v5210
      %v5212 = vrcp.pop %v5121
      %v5213 = vmul.f32 %v5053, %v5212
      %v5214 = vrcp.pop %v5124
      %v5215 = vmul.f32 %v5055, %v5214
      %v5216 = vrcp.pop %v5127
      %v5217 = vmul.f32 %v5057, %v5216
      %v5218 = vrcp.pop %v5130
      %v5219 = vmul.f32 %v5059, %v5218
      %v5220 = vrcp.pop %v5133
      %v5221 = vmul.f32 %v5061, %v5220
      %v5222 = vrcp.pop %v5136
      %v5223 = vmul.f32 %v5063, %v5222
      %v5224 = vrcp.pop %v5139
      %v5225 = vmul.f32 %v5065, %v5224
      %v5226 = vrcp.pop %v5142
      %v5227 = vmul.f32 %v5067, %v5226
      %v5228 = vrcp.pop %v5145
      %v5229 = vmul.f32 %v5069, %v5228
      %v5230 = vrcp.pop %v5148
      %v5231 = vmul.f32 %v5071, %v5230
      %v5232 = vrcp.pop %v5151
      %v5233 = vmul.f32 %v5073, %v5232
      %v5234 = vrcp.pop %v5154
      %v5235 = vmul.f32 %v5075, %v5234
      %v5236 = vrcp.pop %v5157
      %v5237 = vmul.f32 %v5077, %v5236
      %v5238 = vrcp.pop %v5160
      %v5239 = vmul.f32 %v5079, %v5238
      %v5240 = vrcp.pop %v5163
      %v5241 = vmul.f32 %v5081, %v5240
      %v5242 = vrcp.pop %v5166
      %v5243 = vmul.f32 %v5083, %v5242
      %v5244 = vrcp.pop %v5169
      %v5245 = vmul.f32 %v5085, %v5244
      %v5246 = vrcp.pop %v5172
      %v5247 = vmul.f32 %v5087, %v5246
      %v5248 = vrcp.pop %v5175
      %v5249 = vmul.f32 %v5089, %v5248
      %v5250 = vrcp.pop %v5178
      %v5251 = vmul.f32 %v5091, %v5250
      %v5252 = vrcp.pop %v5181
      %v5253 = vmul.f32 %v5093, %v5252
      %v5254 = vrcp.pop %v5184
      %v5255 = vmul.f32 %v5095, %v5254
      %v5256 = vrcp.pop %v5187
      %v5257 = vmul.f32 %v5097, %v5256
      %v5258 = vrcp.pop %v5190
      %v5259 = vmul.f32 %v5099, %v5258
      %v5260 = vrcp.pop %v5193
      %v5261 = vmul.f32 %v5101, %v5260
      %v5262 = vrcp.pop %v5196
      %v5263 = vmul.f32 %v5103, %v5262
      %v5264 = vrcp.pop %v5199
      %v5265 = vmul.f32 %v5105, %v5264
      %v5266 = vrcp.pop %v5202
      %v5267 = vmul.f32 %v5107, %v5266
      %v5268 = vrcp.pop %v5205
      %v5269 = vmul.f32 %v5109, %v5268
      %v5270 = vpack.c.bf16 %v5207, %v5207
      %v5271 = vpack.c.bf16 %v5209, %v5209
      %v5272 = vpack.c.bf16 %v5211, %v5211
      %v5273 = vpack.c.bf16 %v5213, %v5213
      %v5274 = vpack.c.bf16 %v5215, %v5215
      %v5275 = vpack.c.bf16 %v5217, %v5217
      %v5276 = vpack.c.bf16 %v5219, %v5219
      %v5277 = vpack.c.bf16 %v5221, %v5221
      %v5278 = vpack.c.bf16 %v5223, %v5223
      %v5279 = vpack.c.bf16 %v5225, %v5225
      %v5280 = vpack.c.bf16 %v5227, %v5227
      %v5281 = vpack.c.bf16 %v5229, %v5229
      %v5282 = vpack.c.bf16 %v5231, %v5231
      %v5283 = vpack.c.bf16 %v5233, %v5233
      %v5284 = vpack.c.bf16 %v5235, %v5235
      %v5285 = vpack.c.bf16 %v5237, %v5237
      %v5286 = vpack.c.bf16 %v5239, %v5239
      %v5287 = vpack.c.bf16 %v5241, %v5241
      %v5288 = vpack.c.bf16 %v5243, %v5243
      %v5289 = vpack.c.bf16 %v5245, %v5245
      %v5290 = vpack.c.bf16 %v5247, %v5247
      %v5291 = vpack.c.bf16 %v5249, %v5249
      %v5292 = vpack.c.bf16 %v5251, %v5251
      %v5293 = vpack.c.bf16 %v5253, %v5253
      %v5294 = vpack.c.bf16 %v5255, %v5255
      %v5295 = vpack.c.bf16 %v5257, %v5257
      %v5296 = vpack.c.bf16 %v5259, %v5259
      %v5297 = vpack.c.bf16 %v5261, %v5261
      %v5298 = vpack.c.bf16 %v5263, %v5263
      %v5299 = vpack.c.bf16 %v5265, %v5265
      %v5300 = vpack.c.bf16 %v5267, %v5267
      %v5301 = vpack.c.bf16 %v5269, %v5269
      %v5303 = vsel %vm4565, %v5270, 0
      %vm5305 = vcmask 1043456
      %v5306 = vsel %vm5305, %v1655, 0
      %5308 = vmatprep.subr.bf16.mxu0 0
      %5309 = vmatpush1.bf16.msra.mxu0 %v5306
      %5310 = vmatprep.subr.bf16.mxu0 0
      %5311 = vmatpush1.bf16.msra.mxu0 0
      %5312 = vmatprep.subr.bf16.mxu0 0
      %5313 = vmatpush1.bf16.msra.mxu0 0
      %5314 = vmatprep.subr.bf16.mxu0 0
      %5315 = vmatpush1.bf16.msra.mxu0 0
      %5316 = vmatprep.subr.bf16.mxu0 0
      %5317 = vmatpush1.bf16.msra.mxu0 0
      %5318 = vmatprep.subr.bf16.mxu0 0
      %5319 = vmatpush1.bf16.msra.mxu0 0
      %5320 = vmatprep.subr.bf16.mxu0 0
      %5321 = vmatpush1.bf16.msra.mxu0 0
      %5322 = vmatprep.subr.bf16.mxu0 0
      %5323 = vmatpush1.bf16.msra.mxu0 0
      %5324 = vmatprep.subr.bf16.mxu0 0
      %5325 = vmatpush1.bf16.msra.mxu0 0
      %5326 = vmatprep.subr.bf16.mxu0 0
      %5327 = vmatpush1.bf16.msra.mxu0 0
      %5328 = vmatprep.subr.bf16.mxu0 0
      %5329 = vmatpush1.bf16.msra.mxu0 0
      %5330 = vmatprep.subr.bf16.mxu0 0
      %5331 = vmatpush1.bf16.msra.mxu0 0
      %5332 = vmatprep.subr.bf16.mxu0 0
      %5333 = vmatpush1.bf16.msra.mxu0 0
      %5334 = vmatprep.subr.bf16.mxu0 0
      %5335 = vmatpush1.bf16.msra.mxu0 0
      %5336 = vmatprep.subr.bf16.mxu0 0
      %5337 = vmatpush1.bf16.msra.mxu0 0
      %5338 = vmatprep.subr.bf16.mxu0 0
      %5339 = vmatpush1.bf16.msra.mxu0 0
      %5340 = vmatprep.mubr.bf16.mxu0 0
      %5341 = vmatmul.mubr.bf16.gmra.mrb[0].mxu0 %v5303
      %v5342 = vpop.f32.mrb[0].mxu0
      %v5343 = vadd.f32 0.0, %v5342
      %v5344 = vpop.f32.mrb[0].mxu0
      %v5345 = vpop.f32.mrb[0].mxu0
      %v5346 = vpop.f32.mrb[0].mxu0
      %5347 = vdwg.mxu0
      %v5349 = vsel %vm4565, %v5271, 0
      %v5351 = vsel %vm5305, %v1704, 0
      %5353 = vmatprep.subr.bf16.mxu0 0
      %5354 = vmatpush1.bf16.msra.mxu0 %v5351
      %5355 = vmatprep.subr.bf16.mxu0 0
      %5356 = vmatpush1.bf16.msra.mxu0 0
      %5357 = vmatprep.subr.bf16.mxu0 0
      %5358 = vmatpush1.bf16.msra.mxu0 0
      %5359 = vmatprep.subr.bf16.mxu0 0
      %5360 = vmatpush1.bf16.msra.mxu0 0
      %5361 = vmatprep.subr.bf16.mxu0 0
      %5362 = vmatpush1.bf16.msra.mxu0 0
      %5363 = vmatprep.subr.bf16.mxu0 0
      %5364 = vmatpush1.bf16.msra.mxu0 0
      %5365 = vmatprep.subr.bf16.mxu0 0
      %5366 = vmatpush1.bf16.msra.mxu0 0
      %5367 = vmatprep.subr.bf16.mxu0 0
      %5368 = vmatpush1.bf16.msra.mxu0 0
      %5369 = vmatprep.subr.bf16.mxu0 0
      %5370 = vmatpush1.bf16.msra.mxu0 0
      %5371 = vmatprep.subr.bf16.mxu0 0
      %5372 = vmatpush1.bf16.msra.mxu0 0
      %5373 = vmatprep.subr.bf16.mxu0 0
      %5374 = vmatpush1.bf16.msra.mxu0 0
      %5375 = vmatprep.subr.bf16.mxu0 0
      %5376 = vmatpush1.bf16.msra.mxu0 0
      %5377 = vmatprep.subr.bf16.mxu0 0
      %5378 = vmatpush1.bf16.msra.mxu0 0
      %5379 = vmatprep.subr.bf16.mxu0 0
      %5380 = vmatpush1.bf16.msra.mxu0 0
      %5381 = vmatprep.subr.bf16.mxu0 0
      %5382 = vmatpush1.bf16.msra.mxu0 0
      %5383 = vmatprep.subr.bf16.mxu0 0
      %5384 = vmatpush1.bf16.msra.mxu0 0
      %5385 = vmatprep.mubr.bf16.mxu0 0
      %5386 = vmatmul.mubr.bf16.gmra.mrb[0].mxu0 %v5349
      %v5387 = vpop.f32.mrb[0].mxu0
      %v5388 = vadd.f32 0.0, %v5387
      %v5389 = vpop.f32.mrb[0].mxu0
      %v5390 = vpop.f32.mrb[0].mxu0
      %v5391 = vpop.f32.mrb[0].mxu0
      %5392 = vdwg.mxu0
      %v5394 = vsel %vm4565, %v5272, 0
      %v5396 = vsel %vm5305, %v1753, 0
      %5398 = vmatprep.subr.bf16.mxu0 0
      %5399 = vmatpush1.bf16.msra.mxu0 %v5396
      %5400 = vmatprep.subr.bf16.mxu0 0
      %5401 = vmatpush1.bf16.msra.mxu0 0
      %5402 = vmatprep.subr.bf16.mxu0 0
      %5403 = vmatpush1.bf16.msra.mxu0 0
      %5404 = vmatprep.subr.bf16.mxu0 0
      %5405 = vmatpush1.bf16.msra.mxu0 0
      %5406 = vmatprep.subr.bf16.mxu0 0
      %5407 = vmatpush1.bf16.msra.mxu0 0
      %5408 = vmatprep.subr.bf16.mxu0 0
      %5409 = vmatpush1.bf16.msra.mxu0 0
      %5410 = vmatprep.subr.bf16.mxu0 0
      %5411 = vmatpush1.bf16.msra.mxu0 0
      %5412 = vmatprep.subr.bf16.mxu0 0
      %5413 = vmatpush1.bf16.msra.mxu0 0
      %5414 = vmatprep.subr.bf16.mxu0 0
      %5415 = vmatpush1.bf16.msra.mxu0 0
      %5416 = vmatprep.subr.bf16.mxu0 0
      %5417 = vmatpush1.bf16.msra.mxu0 0
      %5418 = vmatprep.subr.bf16.mxu0 0
      %5419 = vmatpush1.bf16.msra.mxu0 0
      %5420 = vmatprep.subr.bf16.mxu0 0
      %5421 = vmatpush1.bf16.msra.mxu0 0
      %5422 = vmatprep.subr.bf16.mxu0 0
      %5423 = vmatpush1.bf16.msra.mxu0 0
      %5424 = vmatprep.subr.bf16.mxu0 0
      %5425 = vmatpush1.bf16.msra.mxu0 0
      %5426 = vmatprep.subr.bf16.mxu0 0
      %5427 = vmatpush1.bf16.msra.mxu0 0
      %5428 = vmatprep.subr.bf16.mxu0 0
      %5429 = vmatpush1.bf16.msra.mxu0 0
      %5430 = vmatprep.mubr.bf16.mxu0 0
      %5431 = vmatmul.mubr.bf16.gmra.mrb[0].mxu0 %v5394
      %v5432 = vpop.f32.mrb[0].mxu0
      %v5433 = vadd.f32 0.0, %v5432
      %v5434 = vpop.f32.mrb[0].mxu0
      %v5435 = vpop.f32.mrb[0].mxu0
      %v5436 = vpop.f32.mrb[0].mxu0
      %5437 = vdwg.mxu0
      %v5439 = vsel %vm4565, %v5273, 0
      %v5441 = vsel %vm5305, %v1802, 0
      %5443 = vmatprep.subr.bf16.mxu0 0
      %5444 = vmatpush1.bf16.msra.mxu0 %v5441
      %5445 = vmatprep.subr.bf16.mxu0 0
      %5446 = vmatpush1.bf16.msra.mxu0 0
      %5447 = vmatprep.subr.bf16.mxu0 0
      %5448 = vmatpush1.bf16.msra.mxu0 0
      %5449 = vmatprep.subr.bf16.mxu0 0
      %5450 = vmatpush1.bf16.msra.mxu0 0
      %5451 = vmatprep.subr.bf16.mxu0 0
      %5452 = vmatpush1.bf16.msra.mxu0 0
      %5453 = vmatprep.subr.bf16.mxu0 0
      %5454 = vmatpush1.bf16.msra.mxu0 0
      %5455 = vmatprep.subr.bf16.mxu0 0
      %5456 = vmatpush1.bf16.msra.mxu0 0
      %5457 = vmatprep.subr.bf16.mxu0 0
      %5458 = vmatpush1.bf16.msra.mxu0 0
      %5459 = vmatprep.subr.bf16.mxu0 0
      %5460 = vmatpush1.bf16.msra.mxu0 0
      %5461 = vmatprep.subr.bf16.mxu0 0
      %5462 = vmatpush1.bf16.msra.mxu0 0
      %5463 = vmatprep.subr.bf16.mxu0 0
      %5464 = vmatpush1.bf16.msra.mxu0 0
      %5465 = vmatprep.subr.bf16.mxu0 0
      %5466 = vmatpush1.bf16.msra.mxu0 0
      %5467 = vmatprep.subr.bf16.mxu0 0
      %5468 = vmatpush1.bf16.msra.mxu0 0
      %5469 = vmatprep.subr.bf16.mxu0 0
      %5470 = vmatpush1.bf16.msra.mxu0 0
      %5471 = vmatprep.subr.bf16.mxu0 0
      %5472 = vmatpush1.bf16.msra.mxu0 0
      %5473 = vmatprep.subr.bf16.mxu0 0
      %5474 = vmatpush1.bf16.msra.mxu0 0
      %5475 = vmatprep.mubr.bf16.mxu0 0
      %5476 = vmatmul.mubr.bf16.gmra.mrb[0].mxu0 %v5439
      %v5477 = vpop.f32.mrb[0].mxu0
      %v5478 = vadd.f32 0.0, %v5477
      %v5479 = vpop.f32.mrb[0].mxu0
      %v5480 = vpop.f32.mrb[0].mxu0
      %v5481 = vpop.f32.mrb[0].mxu0
      %5482 = vdwg.mxu0
      %v5484 = vsel %vm4565, %v5274, 0
      %v5486 = vsel %vm5305, %v1851, 0
      %5488 = vmatprep.subr.bf16.mxu0 0
      %5489 = vmatpush1.bf16.msra.mxu0 %v5486
      %5490 = vmatprep.subr.bf16.mxu0 0
      %5491 = vmatpush1.bf16.msra.mxu0 0
      %5492 = vmatprep.subr.bf16.mxu0 0
      %5493 = vmatpush1.bf16.msra.mxu0 0
      %5494 = vmatprep.subr.bf16.mxu0 0
      %5495 = vmatpush1.bf16.msra.mxu0 0
      %5496 = vmatprep.subr.bf16.mxu0 0
      %5497 = vmatpush1.bf16.msra.mxu0 0
      %5498 = vmatprep.subr.bf16.mxu0 0
      %5499 = vmatpush1.bf16.msra.mxu0 0
      %5500 = vmatprep.subr.bf16.mxu0 0
      %5501 = vmatpush1.bf16.msra.mxu0 0
      %5502 = vmatprep.subr.bf16.mxu0 0
      %5503 = vmatpush1.bf16.msra.mxu0 0
      %5504 = vmatprep.subr.bf16.mxu0 0
      %5505 = vmatpush1.bf16.msra.mxu0 0
      %5506 = vmatprep.subr.bf16.mxu0 0
      %5507 = vmatpush1.bf16.msra.mxu0 0
      %5508 = vmatprep.subr.bf16.mxu0 0
      %5509 = vmatpush1.bf16.msra.mxu0 0
      %5510 = vmatprep.subr.bf16.mxu0 0
      %5511 = vmatpush1.bf16.msra.mxu0 0
      %5512 = vmatprep.subr.bf16.mxu0 0
      %5513 = vmatpush1.bf16.msra.mxu0 0
      %5514 = vmatprep.subr.bf16.mxu0 0
      %5515 = vmatpush1.bf16.msra.mxu0 0
      %5516 = vmatprep.subr.bf16.mxu0 0
      %5517 = vmatpush1.bf16.msra.mxu0 0
      %5518 = vmatprep.subr.bf16.mxu0 0
      %5519 = vmatpush1.bf16.msra.mxu0 0
      %5520 = vmatprep.mubr.bf16.mxu0 0
      %5521 = vmatmul.mubr.bf16.gmra.mrb[0].mxu0 %v5484
      %v5522 = vpop.f32.mrb[0].mxu0
      %v5523 = vadd.f32 0.0, %v5522
      %v5524 = vpop.f32.mrb[0].mxu0
      %v5525 = vpop.f32.mrb[0].mxu0
      %v5526 = vpop.f32.mrb[0].mxu0
      %5527 = vdwg.mxu0
      %v5529 = vsel %vm4565, %v5275, 0
      %v5531 = vsel %vm5305, %v1900, 0
      %5533 = vmatprep.subr.bf16.mxu0 0
      %5534 = vmatpush1.bf16.msra.mxu0 %v5531
      %5535 = vmatprep.subr.bf16.mxu0 0
      %5536 = vmatpush1.bf16.msra.mxu0 0
      %5537 = vmatprep.subr.bf16.mxu0 0
      %5538 = vmatpush1.bf16.msra.mxu0 0
      %5539 = vmatprep.subr.bf16.mxu0 0
      %5540 = vmatpush1.bf16.msra.mxu0 0
      %5541 = vmatprep.subr.bf16.mxu0 0
      %5542 = vmatpush1.bf16.msra.mxu0 0
      %5543 = vmatprep.subr.bf16.mxu0 0
      %5544 = vmatpush1.bf16.msra.mxu0 0
      %5545 = vmatprep.subr.bf16.mxu0 0
      %5546 = vmatpush1.bf16.msra.mxu0 0
      %5547 = vmatprep.subr.bf16.mxu0 0
      %5548 = vmatpush1.bf16.msra.mxu0 0
      %5549 = vmatprep.subr.bf16.mxu0 0
      %5550 = vmatpush1.bf16.msra.mxu0 0
      %5551 = vmatprep.subr.bf16.mxu0 0
      %5552 = vmatpush1.bf16.msra.mxu0 0
      %5553 = vmatprep.subr.bf16.mxu0 0
      %5554 = vmatpush1.bf16.msra.mxu0 0
      %5555 = vmatprep.subr.bf16.mxu0 0
      %5556 = vmatpush1.bf16.msra.mxu0 0
      %5557 = vmatprep.subr.bf16.mxu0 0
      %5558 = vmatpush1.bf16.msra.mxu0 0
      %5559 = vmatprep.subr.bf16.mxu0 0
      %5560 = vmatpush1.bf16.msra.mxu0 0
      %5561 = vmatprep.subr.bf16.mxu0 0
      %5562 = vmatpush1.bf16.msra.mxu0 0
      %5563 = vmatprep.subr.bf16.mxu0 0
      %5564 = vmatpush1.bf16.msra.mxu0 0
      %5565 = vmatprep.mubr.bf16.mxu0 0
      %5566 = vmatmul.mubr.bf16.gmra.mrb[0].mxu0 %v5529
      %v5567 = vpop.f32.mrb[0].mxu0
      %v5568 = vadd.f32 0.0, %v5567
      %v5569 = vpop.f32.mrb[0].mxu0
      %v5570 = vpop.f32.mrb[0].mxu0
      %v5571 = vpop.f32.mrb[0].mxu0
      %5572 = vdwg.mxu0
      %v5574 = vsel %vm4565, %v5276, 0
      %v5576 = vsel %vm5305, %v1949, 0
      %5578 = vmatprep.subr.bf16.mxu0 0
      %5579 = vmatpush1.bf16.msra.mxu0 %v5576
      %5580 = vmatprep.subr.bf16.mxu0 0
      %5581 = vmatpush1.bf16.msra.mxu0 0
      %5582 = vmatprep.subr.bf16.mxu0 0
      %5583 = vmatpush1.bf16.msra.mxu0 0
      %5584 = vmatprep.subr.bf16.mxu0 0
      %5585 = vmatpush1.bf16.msra.mxu0 0
      %5586 = vmatprep.subr.bf16.mxu0 0
      %5587 = vmatpush1.bf16.msra.mxu0 0
      %5588 = vmatprep.subr.bf16.mxu0 0
      %5589 = vmatpush1.bf16.msra.mxu0 0
      %5590 = vmatprep.subr.bf16.mxu0 0
      %5591 = vmatpush1.bf16.msra.mxu0 0
      %5592 = vmatprep.subr.bf16.mxu0 0
      %5593 = vmatpush1.bf16.msra.mxu0 0
      %5594 = vmatprep.subr.bf16.mxu0 0
      %5595 = vmatpush1.bf16.msra.mxu0 0
      %5596 = vmatprep.subr.bf16.mxu0 0
      %5597 = vmatpush1.bf16.msra.mxu0 0
      %5598 = vmatprep.subr.bf16.mxu0 0
      %5599 = vmatpush1.bf16.msra.mxu0 0
      %5600 = vmatprep.subr.bf16.mxu0 0
      %5601 = vmatpush1.bf16.msra.mxu0 0
      %5602 = vmatprep.subr.bf16.mxu0 0
      %5603 = vmatpush1.bf16.msra.mxu0 0
      %5604 = vmatprep.subr.bf16.mxu0 0
      %5605 = vmatpush1.bf16.msra.mxu0 0
      %5606 = vmatprep.subr.bf16.mxu0 0
      %5607 = vmatpush1.bf16.msra.mxu0 0
      %5608 = vmatprep.subr.bf16.mxu0 0
      %5609 = vmatpush1.bf16.msra.mxu0 0
      %5610 = vmatprep.mubr.bf16.mxu0 0
      %5611 = vmatmul.mubr.bf16.gmra.mrb[0].mxu0 %v5574
      %v5612 = vpop.f32.mrb[0].mxu0
      %v5613 = vadd.f32 0.0, %v5612
      %v5614 = vpop.f32.mrb[0].mxu0
      %v5615 = vpop.f32.mrb[0].mxu0
      %v5616 = vpop.f32.mrb[0].mxu0
      %5617 = vdwg.mxu0
      %v5619 = vsel %vm4565, %v5277, 0
      %v5621 = vsel %vm5305, %v1998, 0
      %5623 = vmatprep.subr.bf16.mxu0 0
      %5624 = vmatpush1.bf16.msra.mxu0 %v5621
      %5625 = vmatprep.subr.bf16.mxu0 0
      %5626 = vmatpush1.bf16.msra.mxu0 0
      %5627 = vmatprep.subr.bf16.mxu0 0
      %5628 = vmatpush1.bf16.msra.mxu0 0
      %5629 = vmatprep.subr.bf16.mxu0 0
      %5630 = vmatpush1.bf16.msra.mxu0 0
      %5631 = vmatprep.subr.bf16.mxu0 0
      %5632 = vmatpush1.bf16.msra.mxu0 0
      %5633 = vmatprep.subr.bf16.mxu0 0
      %5634 = vmatpush1.bf16.msra.mxu0 0
      %5635 = vmatprep.subr.bf16.mxu0 0
      %5636 = vmatpush1.bf16.msra.mxu0 0
      %5637 = vmatprep.subr.bf16.mxu0 0
      %5638 = vmatpush1.bf16.msra.mxu0 0
      %5639 = vmatprep.subr.bf16.mxu0 0
      %5640 = vmatpush1.bf16.msra.mxu0 0
      %5641 = vmatprep.subr.bf16.mxu0 0
      %5642 = vmatpush1.bf16.msra.mxu0 0
      %5643 = vmatprep.subr.bf16.mxu0 0
      %5644 = vmatpush1.bf16.msra.mxu0 0
      %5645 = vmatprep.subr.bf16.mxu0 0
      %5646 = vmatpush1.bf16.msra.mxu0 0
      %5647 = vmatprep.subr.bf16.mxu0 0
      %5648 = vmatpush1.bf16.msra.mxu0 0
      %5649 = vmatprep.subr.bf16.mxu0 0
      %5650 = vmatpush1.bf16.msra.mxu0 0
      %5651 = vmatprep.subr.bf16.mxu0 0
      %5652 = vmatpush1.bf16.msra.mxu0 0
      %5653 = vmatprep.subr.bf16.mxu0 0
      %5654 = vmatpush1.bf16.msra.mxu0 0
      %5655 = vmatprep.mubr.bf16.mxu0 0
      %5656 = vmatmul.mubr.bf16.gmra.mrb[0].mxu0 %v5619
      %v5657 = vpop.f32.mrb[0].mxu0
      %v5658 = vadd.f32 0.0, %v5657
      %v5659 = vpop.f32.mrb[0].mxu0
      %v5660 = vpop.f32.mrb[0].mxu0
      %v5661 = vpop.f32.mrb[0].mxu0
      %5662 = vdwg.mxu0
      %v5664 = vsel %vm4565, %v5278, 0
      %v5666 = vsel %vm5305, %v2047, 0
      %5668 = vmatprep.subr.bf16.mxu0 0
      %5669 = vmatpush1.bf16.msra.mxu0 %v5666
      %5670 = vmatprep.subr.bf16.mxu0 0
      %5671 = vmatpush1.bf16.msra.mxu0 0
      %5672 = vmatprep.subr.bf16.mxu0 0
      %5673 = vmatpush1.bf16.msra.mxu0 0
      %5674 = vmatprep.subr.bf16.mxu0 0
      %5675 = vmatpush1.bf16.msra.mxu0 0
      %5676 = vmatprep.subr.bf16.mxu0 0
      %5677 = vmatpush1.bf16.msra.mxu0 0
      %5678 = vmatprep.subr.bf16.mxu0 0
      %5679 = vmatpush1.bf16.msra.mxu0 0
      %5680 = vmatprep.subr.bf16.mxu0 0
      %5681 = vmatpush1.bf16.msra.mxu0 0
      %5682 = vmatprep.subr.bf16.mxu0 0
      %5683 = vmatpush1.bf16.msra.mxu0 0
      %5684 = vmatprep.subr.bf16.mxu0 0
      %5685 = vmatpush1.bf16.msra.mxu0 0
      %5686 = vmatprep.subr.bf16.mxu0 0
      %5687 = vmatpush1.bf16.msra.mxu0 0
      %5688 = vmatprep.subr.bf16.mxu0 0
      %5689 = vmatpush1.bf16.msra.mxu0 0
      %5690 = vmatprep.subr.bf16.mxu0 0
      %5691 = vmatpush1.bf16.msra.mxu0 0
      %5692 = vmatprep.subr.bf16.mxu0 0
      %5693 = vmatpush1.bf16.msra.mxu0 0
      %5694 = vmatprep.subr.bf16.mxu0 0
      %5695 = vmatpush1.bf16.msra.mxu0 0
      %5696 = vmatprep.subr.bf16.mxu0 0
      %5697 = vmatpush1.bf16.msra.mxu0 0
      %5698 = vmatprep.subr.bf16.mxu0 0
      %5699 = vmatpush1.bf16.msra.mxu0 0
      %5700 = vmatprep.mubr.bf16.mxu0 0
      %5701 = vmatmul.mubr.bf16.gmra.mrb[0].mxu0 %v5664
      %v5702 = vpop.f32.mrb[0].mxu0
      %v5703 = vadd.f32 0.0, %v5702
      %v5704 = vpop.f32.mrb[0].mxu0
      %v5705 = vpop.f32.mrb[0].mxu0
      %v5706 = vpop.f32.mrb[0].mxu0
      %5707 = vdwg.mxu0
      %v5709 = vsel %vm4565, %v5279, 0
      %v5711 = vsel %vm5305, %v2096, 0
      %5713 = vmatprep.subr.bf16.mxu0 0
      %5714 = vmatpush1.bf16.msra.mxu0 %v5711
      %5715 = vmatprep.subr.bf16.mxu0 0
      %5716 = vmatpush1.bf16.msra.mxu0 0
      %5717 = vmatprep.subr.bf16.mxu0 0
      %5718 = vmatpush1.bf16.msra.mxu0 0
      %5719 = vmatprep.subr.bf16.mxu0 0
      %5720 = vmatpush1.bf16.msra.mxu0 0
      %5721 = vmatprep.subr.bf16.mxu0 0
      %5722 = vmatpush1.bf16.msra.mxu0 0
      %5723 = vmatprep.subr.bf16.mxu0 0
      %5724 = vmatpush1.bf16.msra.mxu0 0
      %5725 = vmatprep.subr.bf16.mxu0 0
      %5726 = vmatpush1.bf16.msra.mxu0 0
      %5727 = vmatprep.subr.bf16.mxu0 0
      %5728 = vmatpush1.bf16.msra.mxu0 0
      %5729 = vmatprep.subr.bf16.mxu0 0
      %5730 = vmatpush1.bf16.msra.mxu0 0
      %5731 = vmatprep.subr.bf16.mxu0 0
      %5732 = vmatpush1.bf16.msra.mxu0 0
      %5733 = vmatprep.subr.bf16.mxu0 0
      %5734 = vmatpush1.bf16.msra.mxu0 0
      %5735 = vmatprep.subr.bf16.mxu0 0
      %5736 = vmatpush1.bf16.msra.mxu0 0
      %5737 = vmatprep.subr.bf16.mxu0 0
      %5738 = vmatpush1.bf16.msra.mxu0 0
      %5739 = vmatprep.subr.bf16.mxu0 0
      %5740 = vmatpush1.bf16.msra.mxu0 0
      %5741 = vmatprep.subr.bf16.mxu0 0
      %5742 = vmatpush1.bf16.msra.mxu0 0
      %5743 = vmatprep.subr.bf16.mxu0 0
      %5744 = vmatpush1.bf16.msra.mxu0 0
      %5745 = vmatprep.mubr.bf16.mxu0 0
      %5746 = vmatmul.mubr.bf16.gmra.mrb[0].mxu0 %v5709
      %v5747 = vpop.f32.mrb[0].mxu0
      %v5748 = vadd.f32 0.0, %v5747
      %v5749 = vpop.f32.mrb[0].mxu0
      %v5750 = vpop.f32.mrb[0].mxu0
      %v5751 = vpop.f32.mrb[0].mxu0
      %5752 = vdwg.mxu0
      %v5754 = vsel %vm4565, %v5280, 0
      %v5756 = vsel %vm5305, %v2145, 0
      %5758 = vmatprep.subr.bf16.mxu0 0
      %5759 = vmatpush1.bf16.msra.mxu0 %v5756
      %5760 = vmatprep.subr.bf16.mxu0 0
      %5761 = vmatpush1.bf16.msra.mxu0 0
      %5762 = vmatprep.subr.bf16.mxu0 0
      %5763 = vmatpush1.bf16.msra.mxu0 0
      %5764 = vmatprep.subr.bf16.mxu0 0
      %5765 = vmatpush1.bf16.msra.mxu0 0
      %5766 = vmatprep.subr.bf16.mxu0 0
      %5767 = vmatpush1.bf16.msra.mxu0 0
      %5768 = vmatprep.subr.bf16.mxu0 0
      %5769 = vmatpush1.bf16.msra.mxu0 0
      %5770 = vmatprep.subr.bf16.mxu0 0
      %5771 = vmatpush1.bf16.msra.mxu0 0
      %5772 = vmatprep.subr.bf16.mxu0 0
      %5773 = vmatpush1.bf16.msra.mxu0 0
      %5774 = vmatprep.subr.bf16.mxu0 0
      %5775 = vmatpush1.bf16.msra.mxu0 0
      %5776 = vmatprep.subr.bf16.mxu0 0
      %5777 = vmatpush1.bf16.msra.mxu0 0
      %5778 = vmatprep.subr.bf16.mxu0 0
      %5779 = vmatpush1.bf16.msra.mxu0 0
      %5780 = vmatprep.subr.bf16.mxu0 0
      %5781 = vmatpush1.bf16.msra.mxu0 0
      %5782 = vmatprep.subr.bf16.mxu0 0
      %5783 = vmatpush1.bf16.msra.mxu0 0
      %5784 = vmatprep.subr.bf16.mxu0 0
      %5785 = vmatpush1.bf16.msra.mxu0 0
      %5786 = vmatprep.subr.bf16.mxu0 0
      %5787 = vmatpush1.bf16.msra.mxu0 0
      %5788 = vmatprep.subr.bf16.mxu0 0
      %5789 = vmatpush1.bf16.msra.mxu0 0
      %5790 = vmatprep.mubr.bf16.mxu0 0
      %5791 = vmatmul.mubr.bf16.gmra.mrb[0].mxu0 %v5754
      %v5792 = vpop.f32.mrb[0].mxu0
      %v5793 = vadd.f32 0.0, %v5792
      %v5794 = vpop.f32.mrb[0].mxu0
      %v5795 = vpop.f32.mrb[0].mxu0
      %v5796 = vpop.f32.mrb[0].mxu0
      %5797 = vdwg.mxu0
      %v5799 = vsel %vm4565, %v5281, 0
      %v5801 = vsel %vm5305, %v2194, 0
      %5803 = vmatprep.subr.bf16.mxu0 0
      %5804 = vmatpush1.bf16.msra.mxu0 %v5801
      %5805 = vmatprep.subr.bf16.mxu0 0
      %5806 = vmatpush1.bf16.msra.mxu0 0
      %5807 = vmatprep.subr.bf16.mxu0 0
      %5808 = vmatpush1.bf16.msra.mxu0 0
      %5809 = vmatprep.subr.bf16.mxu0 0
      %5810 = vmatpush1.bf16.msra.mxu0 0
      %5811 = vmatprep.subr.bf16.mxu0 0
      %5812 = vmatpush1.bf16.msra.mxu0 0
      %5813 = vmatprep.subr.bf16.mxu0 0
      %5814 = vmatpush1.bf16.msra.mxu0 0
      %5815 = vmatprep.subr.bf16.mxu0 0
      %5816 = vmatpush1.bf16.msra.mxu0 0
      %5817 = vmatprep.subr.bf16.mxu0 0
      %5818 = vmatpush1.bf16.msra.mxu0 0
      %5819 = vmatprep.subr.bf16.mxu0 0
      %5820 = vmatpush1.bf16.msra.mxu0 0
      %5821 = vmatprep.subr.bf16.mxu0 0
      %5822 = vmatpush1.bf16.msra.mxu0 0
      %5823 = vmatprep.subr.bf16.mxu0 0
      %5824 = vmatpush1.bf16.msra.mxu0 0
      %5825 = vmatprep.subr.bf16.mxu0 0
      %5826 = vmatpush1.bf16.msra.mxu0 0
      %5827 = vmatprep.subr.bf16.mxu0 0
      %5828 = vmatpush1.bf16.msra.mxu0 0
      %5829 = vmatprep.subr.bf16.mxu0 0
      %5830 = vmatpush1.bf16.msra.mxu0 0
      %5831 = vmatprep.subr.bf16.mxu0 0
      %5832 = vmatpush1.bf16.msra.mxu0 0
      %5833 = vmatprep.subr.bf16.mxu0 0
      %5834 = vmatpush1.bf16.msra.mxu0 0
      %5835 = vmatprep.mubr.bf16.mxu0 0
      %5836 = vmatmul.mubr.bf16.gmra.mrb[0].mxu0 %v5799
      %v5837 = vpop.f32.mrb[0].mxu0
      %v5838 = vadd.f32 0.0, %v5837
      %v5839 = vpop.f32.mrb[0].mxu0
      %v5840 = vpop.f32.mrb[0].mxu0
      %v5841 = vpop.f32.mrb[0].mxu0
      %5842 = vdwg.mxu0
      %v5844 = vsel %vm4565, %v5282, 0
      %v5846 = vsel %vm5305, %v2243, 0
      %5848 = vmatprep.subr.bf16.mxu0 0
      %5849 = vmatpush1.bf16.msra.mxu0 %v5846
      %5850 = vmatprep.subr.bf16.mxu0 0
      %5851 = vmatpush1.bf16.msra.mxu0 0
      %5852 = vmatprep.subr.bf16.mxu0 0
      %5853 = vmatpush1.bf16.msra.mxu0 0
      %5854 = vmatprep.subr.bf16.mxu0 0
      %5855 = vmatpush1.bf16.msra.mxu0 0
      %5856 = vmatprep.subr.bf16.mxu0 0
      %5857 = vmatpush1.bf16.msra.mxu0 0
      %5858 = vmatprep.subr.bf16.mxu0 0
      %5859 = vmatpush1.bf16.msra.mxu0 0
      %5860 = vmatprep.subr.bf16.mxu0 0
      %5861 = vmatpush1.bf16.msra.mxu0 0
      %5862 = vmatprep.subr.bf16.mxu0 0
      %5863 = vmatpush1.bf16.msra.mxu0 0
      %5864 = vmatprep.subr.bf16.mxu0 0
      %5865 = vmatpush1.bf16.msra.mxu0 0
      %5866 = vmatprep.subr.bf16.mxu0 0
      %5867 = vmatpush1.bf16.msra.mxu0 0
      %5868 = vmatprep.subr.bf16.mxu0 0
      %5869 = vmatpush1.bf16.msra.mxu0 0
      %5870 = vmatprep.subr.bf16.mxu0 0
      %5871 = vmatpush1.bf16.msra.mxu0 0
      %5872 = vmatprep.subr.bf16.mxu0 0
      %5873 = vmatpush1.bf16.msra.mxu0 0
      %5874 = vmatprep.subr.bf16.mxu0 0
      %5875 = vmatpush1.bf16.msra.mxu0 0
      %5876 = vmatprep.subr.bf16.mxu0 0
      %5877 = vmatpush1.bf16.msra.mxu0 0
      %5878 = vmatprep.subr.bf16.mxu0 0
      %5879 = vmatpush1.bf16.msra.mxu0 0
      %5880 = vmatprep.mubr.bf16.mxu0 0
      %5881 = vmatmul.mubr.bf16.gmra.mrb[0].mxu0 %v5844
      %v5882 = vpop.f32.mrb[0].mxu0
      %v5883 = vadd.f32 0.0, %v5882
      %v5884 = vpop.f32.mrb[0].mxu0
      %v5885 = vpop.f32.mrb[0].mxu0
      %v5886 = vpop.f32.mrb[0].mxu0
      %5887 = vdwg.mxu0
      %v5889 = vsel %vm4565, %v5283, 0
      %v5891 = vsel %vm5305, %v2292, 0
      %5893 = vmatprep.subr.bf16.mxu0 0
      %5894 = vmatpush1.bf16.msra.mxu0 %v5891
      %5895 = vmatprep.subr.bf16.mxu0 0
      %5896 = vmatpush1.bf16.msra.mxu0 0
      %5897 = vmatprep.subr.bf16.mxu0 0
      %5898 = vmatpush1.bf16.msra.mxu0 0
      %5899 = vmatprep.subr.bf16.mxu0 0
      %5900 = vmatpush1.bf16.msra.mxu0 0
      %5901 = vmatprep.subr.bf16.mxu0 0
      %5902 = vmatpush1.bf16.msra.mxu0 0
      %5903 = vmatprep.subr.bf16.mxu0 0
      %5904 = vmatpush1.bf16.msra.mxu0 0
      %5905 = vmatprep.subr.bf16.mxu0 0
      %5906 = vmatpush1.bf16.msra.mxu0 0
      %5907 = vmatprep.subr.bf16.mxu0 0
      %5908 = vmatpush1.bf16.msra.mxu0 0
      %5909 = vmatprep.subr.bf16.mxu0 0
      %5910 = vmatpush1.bf16.msra.mxu0 0
      %5911 = vmatprep.subr.bf16.mxu0 0
      %5912 = vmatpush1.bf16.msra.mxu0 0
      %5913 = vmatprep.subr.bf16.mxu0 0
      %5914 = vmatpush1.bf16.msra.mxu0 0
      %5915 = vmatprep.subr.bf16.mxu0 0
      %5916 = vmatpush1.bf16.msra.mxu0 0
      %5917 = vmatprep.subr.bf16.mxu0 0
      %5918 = vmatpush1.bf16.msra.mxu0 0
      %5919 = vmatprep.subr.bf16.mxu0 0
      %5920 = vmatpush1.bf16.msra.mxu0 0
      %5921 = vmatprep.subr.bf16.mxu0 0
      %5922 = vmatpush1.bf16.msra.mxu0 0
      %5923 = vmatprep.subr.bf16.mxu0 0
      %5924 = vmatpush1.bf16.msra.mxu0 0
      %5925 = vmatprep.mubr.bf16.mxu0 0
      %5926 = vmatmul.mubr.bf16.gmra.mrb[0].mxu0 %v5889
      %v5927 = vpop.f32.mrb[0].mxu0
      %v5928 = vadd.f32 0.0, %v5927
      %v5929 = vpop.f32.mrb[0].mxu0
      %v5930 = vpop.f32.mrb[0].mxu0
      %v5931 = vpop.f32.mrb[0].mxu0
      %5932 = vdwg.mxu0
      %v5934 = vsel %vm4565, %v5284, 0
      %v5936 = vsel %vm5305, %v2341, 0
      %5938 = vmatprep.subr.bf16.mxu0 0
      %5939 = vmatpush1.bf16.msra.mxu0 %v5936
      %5940 = vmatprep.subr.bf16.mxu0 0
      %5941 = vmatpush1.bf16.msra.mxu0 0
      %5942 = vmatprep.subr.bf16.mxu0 0
      %5943 = vmatpush1.bf16.msra.mxu0 0
      %5944 = vmatprep.subr.bf16.mxu0 0
      %5945 = vmatpush1.bf16.msra.mxu0 0
      %5946 = vmatprep.subr.bf16.mxu0 0
      %5947 = vmatpush1.bf16.msra.mxu0 0
      %5948 = vmatprep.subr.bf16.mxu0 0
      %5949 = vmatpush1.bf16.msra.mxu0 0
      %5950 = vmatprep.subr.bf16.mxu0 0
      %5951 = vmatpush1.bf16.msra.mxu0 0
      %5952 = vmatprep.subr.bf16.mxu0 0
      %5953 = vmatpush1.bf16.msra.mxu0 0
      %5954 = vmatprep.subr.bf16.mxu0 0
      %5955 = vmatpush1.bf16.msra.mxu0 0
      %5956 = vmatprep.subr.bf16.mxu0 0
      %5957 = vmatpush1.bf16.msra.mxu0 0
      %5958 = vmatprep.subr.bf16.mxu0 0
      %5959 = vmatpush1.bf16.msra.mxu0 0
      %5960 = vmatprep.subr.bf16.mxu0 0
      %5961 = vmatpush1.bf16.msra.mxu0 0
      %5962 = vmatprep.subr.bf16.mxu0 0
      %5963 = vmatpush1.bf16.msra.mxu0 0
      %5964 = vmatprep.subr.bf16.mxu0 0
      %5965 = vmatpush1.bf16.msra.mxu0 0
      %5966 = vmatprep.subr.bf16.mxu0 0
      %5967 = vmatpush1.bf16.msra.mxu0 0
      %5968 = vmatprep.subr.bf16.mxu0 0
      %5969 = vmatpush1.bf16.msra.mxu0 0
      %5970 = vmatprep.mubr.bf16.mxu0 0
      %5971 = vmatmul.mubr.bf16.gmra.mrb[0].mxu0 %v5934
      %v5972 = vpop.f32.mrb[0].mxu0
      %v5973 = vadd.f32 0.0, %v5972
      %v5974 = vpop.f32.mrb[0].mxu0
      %v5975 = vpop.f32.mrb[0].mxu0
      %v5976 = vpop.f32.mrb[0].mxu0
      %5977 = vdwg.mxu0
      %v5979 = vsel %vm4565, %v5285, 0
      %v5981 = vsel %vm5305, %v2390, 0
      %5983 = vmatprep.subr.bf16.mxu0 0
      %5984 = vmatpush1.bf16.msra.mxu0 %v5981
      %5985 = vmatprep.subr.bf16.mxu0 0
      %5986 = vmatpush1.bf16.msra.mxu0 0
      %5987 = vmatprep.subr.bf16.mxu0 0
      %5988 = vmatpush1.bf16.msra.mxu0 0
      %5989 = vmatprep.subr.bf16.mxu0 0
      %5990 = vmatpush1.bf16.msra.mxu0 0
      %5991 = vmatprep.subr.bf16.mxu0 0
      %5992 = vmatpush1.bf16.msra.mxu0 0
      %5993 = vmatprep.subr.bf16.mxu0 0
      %5994 = vmatpush1.bf16.msra.mxu0 0
      %5995 = vmatprep.subr.bf16.mxu0 0
      %5996 = vmatpush1.bf16.msra.mxu0 0
      %5997 = vmatprep.subr.bf16.mxu0 0
      %5998 = vmatpush1.bf16.msra.mxu0 0
      %5999 = vmatprep.subr.bf16.mxu0 0
      %6000 = vmatpush1.bf16.msra.mxu0 0
      %6001 = vmatprep.subr.bf16.mxu0 0
      %6002 = vmatpush1.bf16.msra.mxu0 0
      %6003 = vmatprep.subr.bf16.mxu0 0
      %6004 = vmatpush1.bf16.msra.mxu0 0
      %6005 = vmatprep.subr.bf16.mxu0 0
      %6006 = vmatpush1.bf16.msra.mxu0 0
      %6007 = vmatprep.subr.bf16.mxu0 0
      %6008 = vmatpush1.bf16.msra.mxu0 0
      %6009 = vmatprep.subr.bf16.mxu0 0
      %6010 = vmatpush1.bf16.msra.mxu0 0
      %6011 = vmatprep.subr.bf16.mxu0 0
      %6012 = vmatpush1.bf16.msra.mxu0 0
      %6013 = vmatprep.subr.bf16.mxu0 0
      %6014 = vmatpush1.bf16.msra.mxu0 0
      %6015 = vmatprep.mubr.bf16.mxu0 0
      %6016 = vmatmul.mubr.bf16.gmra.mrb[0].mxu0 %v5979
      %v6017 = vpop.f32.mrb[0].mxu0
      %v6018 = vadd.f32 0.0, %v6017
      %v6019 = vpop.f32.mrb[0].mxu0
      %v6020 = vpop.f32.mrb[0].mxu0
      %v6021 = vpop.f32.mrb[0].mxu0
      %6022 = vdwg.mxu0
      %v6024 = vsel %vm4565, %v5286, 0
      %v6026 = vsel %vm5305, %v2439, 0
      %6028 = vmatprep.subr.bf16.mxu0 0
      %6029 = vmatpush1.bf16.msra.mxu0 %v6026
      %6030 = vmatprep.subr.bf16.mxu0 0
      %6031 = vmatpush1.bf16.msra.mxu0 0
      %6032 = vmatprep.subr.bf16.mxu0 0
      %6033 = vmatpush1.bf16.msra.mxu0 0
      %6034 = vmatprep.subr.bf16.mxu0 0
      %6035 = vmatpush1.bf16.msra.mxu0 0
      %6036 = vmatprep.subr.bf16.mxu0 0
      %6037 = vmatpush1.bf16.msra.mxu0 0
      %6038 = vmatprep.subr.bf16.mxu0 0
      %6039 = vmatpush1.bf16.msra.mxu0 0
      %6040 = vmatprep.subr.bf16.mxu0 0
      %6041 = vmatpush1.bf16.msra.mxu0 0
      %6042 = vmatprep.subr.bf16.mxu0 0
      %6043 = vmatpush1.bf16.msra.mxu0 0
      %6044 = vmatprep.subr.bf16.mxu0 0
      %6045 = vmatpush1.bf16.msra.mxu0 0
      %6046 = vmatprep.subr.bf16.mxu0 0
      %6047 = vmatpush1.bf16.msra.mxu0 0
      %6048 = vmatprep.subr.bf16.mxu0 0
      %6049 = vmatpush1.bf16.msra.mxu0 0
      %6050 = vmatprep.subr.bf16.mxu0 0
      %6051 = vmatpush1.bf16.msra.mxu0 0
      %6052 = vmatprep.subr.bf16.mxu0 0
      %6053 = vmatpush1.bf16.msra.mxu0 0
      %6054 = vmatprep.subr.bf16.mxu0 0
      %6055 = vmatpush1.bf16.msra.mxu0 0
      %6056 = vmatprep.subr.bf16.mxu0 0
      %6057 = vmatpush1.bf16.msra.mxu0 0
      %6058 = vmatprep.subr.bf16.mxu0 0
      %6059 = vmatpush1.bf16.msra.mxu0 0
      %6060 = vmatprep.mubr.bf16.mxu0 0
      %6061 = vmatmul.mubr.bf16.gmra.mrb[0].mxu0 %v6024
      %v6062 = vpop.f32.mrb[0].mxu0
      %v6063 = vadd.f32 0.0, %v6062
      %v6064 = vpop.f32.mrb[0].mxu0
      %v6065 = vpop.f32.mrb[0].mxu0
      %v6066 = vpop.f32.mrb[0].mxu0
      %6067 = vdwg.mxu0
      %v6069 = vsel %vm4565, %v5287, 0
      %v6071 = vsel %vm5305, %v2488, 0
      %6073 = vmatprep.subr.bf16.mxu0 0
      %6074 = vmatpush1.bf16.msra.mxu0 %v6071
      %6075 = vmatprep.subr.bf16.mxu0 0
      %6076 = vmatpush1.bf16.msra.mxu0 0
      %6077 = vmatprep.subr.bf16.mxu0 0
      %6078 = vmatpush1.bf16.msra.mxu0 0
      %6079 = vmatprep.subr.bf16.mxu0 0
      %6080 = vmatpush1.bf16.msra.mxu0 0
      %6081 = vmatprep.subr.bf16.mxu0 0
      %6082 = vmatpush1.bf16.msra.mxu0 0
      %6083 = vmatprep.subr.bf16.mxu0 0
      %6084 = vmatpush1.bf16.msra.mxu0 0
      %6085 = vmatprep.subr.bf16.mxu0 0
      %6086 = vmatpush1.bf16.msra.mxu0 0
      %6087 = vmatprep.subr.bf16.mxu0 0
      %6088 = vmatpush1.bf16.msra.mxu0 0
      %6089 = vmatprep.subr.bf16.mxu0 0
      %6090 = vmatpush1.bf16.msra.mxu0 0
      %6091 = vmatprep.subr.bf16.mxu0 0
      %6092 = vmatpush1.bf16.msra.mxu0 0
      %6093 = vmatprep.subr.bf16.mxu0 0
      %6094 = vmatpush1.bf16.msra.mxu0 0
      %6095 = vmatprep.subr.bf16.mxu0 0
      %6096 = vmatpush1.bf16.msra.mxu0 0
      %6097 = vmatprep.subr.bf16.mxu0 0
      %6098 = vmatpush1.bf16.msra.mxu0 0
      %6099 = vmatprep.subr.bf16.mxu0 0
      %6100 = vmatpush1.bf16.msra.mxu0 0
      %6101 = vmatprep.subr.bf16.mxu0 0
      %6102 = vmatpush1.bf16.msra.mxu0 0
      %6103 = vmatprep.subr.bf16.mxu0 0
      %6104 = vmatpush1.bf16.msra.mxu0 0
      %6105 = vmatprep.mubr.bf16.mxu0 0
      %6106 = vmatmul.mubr.bf16.gmra.mrb[0].mxu0 %v6069
      %v6107 = vpop.f32.mrb[0].mxu0
      %v6108 = vadd.f32 0.0, %v6107
      %v6109 = vpop.f32.mrb[0].mxu0
      %v6110 = vpop.f32.mrb[0].mxu0
      %v6111 = vpop.f32.mrb[0].mxu0
      %6112 = vdwg.mxu0
      %v6114 = vsel %vm4565, %v5288, 0
      %v6116 = vsel %vm5305, %v2537, 0
      %6118 = vmatprep.subr.bf16.mxu0 0
      %6119 = vmatpush1.bf16.msra.mxu0 %v6116
      %6120 = vmatprep.subr.bf16.mxu0 0
      %6121 = vmatpush1.bf16.msra.mxu0 0
      %6122 = vmatprep.subr.bf16.mxu0 0
      %6123 = vmatpush1.bf16.msra.mxu0 0
      %6124 = vmatprep.subr.bf16.mxu0 0
      %6125 = vmatpush1.bf16.msra.mxu0 0
      %6126 = vmatprep.subr.bf16.mxu0 0
      %6127 = vmatpush1.bf16.msra.mxu0 0
      %6128 = vmatprep.subr.bf16.mxu0 0
      %6129 = vmatpush1.bf16.msra.mxu0 0
      %6130 = vmatprep.subr.bf16.mxu0 0
      %6131 = vmatpush1.bf16.msra.mxu0 0
      %6132 = vmatprep.subr.bf16.mxu0 0
      %6133 = vmatpush1.bf16.msra.mxu0 0
      %6134 = vmatprep.subr.bf16.mxu0 0
      %6135 = vmatpush1.bf16.msra.mxu0 0
      %6136 = vmatprep.subr.bf16.mxu0 0
      %6137 = vmatpush1.bf16.msra.mxu0 0
      %6138 = vmatprep.subr.bf16.mxu0 0
      %6139 = vmatpush1.bf16.msra.mxu0 0
      %6140 = vmatprep.subr.bf16.mxu0 0
      %6141 = vmatpush1.bf16.msra.mxu0 0
      %6142 = vmatprep.subr.bf16.mxu0 0
      %6143 = vmatpush1.bf16.msra.mxu0 0
      %6144 = vmatprep.subr.bf16.mxu0 0
      %6145 = vmatpush1.bf16.msra.mxu0 0
      %6146 = vmatprep.subr.bf16.mxu0 0
      %6147 = vmatpush1.bf16.msra.mxu0 0
      %6148 = vmatprep.subr.bf16.mxu0 0
      %6149 = vmatpush1.bf16.msra.mxu0 0
      %6150 = vmatprep.mubr.bf16.mxu0 0
      %6151 = vmatmul.mubr.bf16.gmra.mrb[0].mxu0 %v6114
      %v6152 = vpop.f32.mrb[0].mxu0
      %v6153 = vadd.f32 0.0, %v6152
      %v6154 = vpop.f32.mrb[0].mxu0
      %v6155 = vpop.f32.mrb[0].mxu0
      %v6156 = vpop.f32.mrb[0].mxu0
      %6157 = vdwg.mxu0
      %v6159 = vsel %vm4565, %v5289, 0
      %v6161 = vsel %vm5305, %v2586, 0
      %6163 = vmatprep.subr.bf16.mxu0 0
      %6164 = vmatpush1.bf16.msra.mxu0 %v6161
      %6165 = vmatprep.subr.bf16.mxu0 0
      %6166 = vmatpush1.bf16.msra.mxu0 0
      %6167 = vmatprep.subr.bf16.mxu0 0
      %6168 = vmatpush1.bf16.msra.mxu0 0
      %6169 = vmatprep.subr.bf16.mxu0 0
      %6170 = vmatpush1.bf16.msra.mxu0 0
      %6171 = vmatprep.subr.bf16.mxu0 0
      %6172 = vmatpush1.bf16.msra.mxu0 0
      %6173 = vmatprep.subr.bf16.mxu0 0
      %6174 = vmatpush1.bf16.msra.mxu0 0
      %6175 = vmatprep.subr.bf16.mxu0 0
      %6176 = vmatpush1.bf16.msra.mxu0 0
      %6177 = vmatprep.subr.bf16.mxu0 0
      %6178 = vmatpush1.bf16.msra.mxu0 0
      %6179 = vmatprep.subr.bf16.mxu0 0
      %6180 = vmatpush1.bf16.msra.mxu0 0
      %6181 = vmatprep.subr.bf16.mxu0 0
      %6182 = vmatpush1.bf16.msra.mxu0 0
      %6183 = vmatprep.subr.bf16.mxu0 0
      %6184 = vmatpush1.bf16.msra.mxu0 0
      %6185 = vmatprep.subr.bf16.mxu0 0
      %6186 = vmatpush1.bf16.msra.mxu0 0
      %6187 = vmatprep.subr.bf16.mxu0 0
      %6188 = vmatpush1.bf16.msra.mxu0 0
      %6189 = vmatprep.subr.bf16.mxu0 0
      %6190 = vmatpush1.bf16.msra.mxu0 0
      %6191 = vmatprep.subr.bf16.mxu0 0
      %6192 = vmatpush1.bf16.msra.mxu0 0
      %6193 = vmatprep.subr.bf16.mxu0 0
      %6194 = vmatpush1.bf16.msra.mxu0 0
      %6195 = vmatprep.mubr.bf16.mxu0 0
      %6196 = vmatmul.mubr.bf16.gmra.mrb[0].mxu0 %v6159
      %v6197 = vpop.f32.mrb[0].mxu0
      %v6198 = vadd.f32 0.0, %v6197
      %v6199 = vpop.f32.mrb[0].mxu0
      %v6200 = vpop.f32.mrb[0].mxu0
      %v6201 = vpop.f32.mrb[0].mxu0
      %6202 = vdwg.mxu0
      %v6204 = vsel %vm4565, %v5290, 0
      %v6206 = vsel %vm5305, %v2635, 0
      %6208 = vmatprep.subr.bf16.mxu0 0
      %6209 = vmatpush1.bf16.msra.mxu0 %v6206
      %6210 = vmatprep.subr.bf16.mxu0 0
      %6211 = vmatpush1.bf16.msra.mxu0 0
      %6212 = vmatprep.subr.bf16.mxu0 0
      %6213 = vmatpush1.bf16.msra.mxu0 0
      %6214 = vmatprep.subr.bf16.mxu0 0
      %6215 = vmatpush1.bf16.msra.mxu0 0
      %6216 = vmatprep.subr.bf16.mxu0 0
      %6217 = vmatpush1.bf16.msra.mxu0 0
      %6218 = vmatprep.subr.bf16.mxu0 0
      %6219 = vmatpush1.bf16.msra.mxu0 0
      %6220 = vmatprep.subr.bf16.mxu0 0
      %6221 = vmatpush1.bf16.msra.mxu0 0
      %6222 = vmatprep.subr.bf16.mxu0 0
      %6223 = vmatpush1.bf16.msra.mxu0 0
      %6224 = vmatprep.subr.bf16.mxu0 0
      %6225 = vmatpush1.bf16.msra.mxu0 0
      %6226 = vmatprep.subr.bf16.mxu0 0
      %6227 = vmatpush1.bf16.msra.mxu0 0
      %6228 = vmatprep.subr.bf16.mxu0 0
      %6229 = vmatpush1.bf16.msra.mxu0 0
      %6230 = vmatprep.subr.bf16.mxu0 0
      %6231 = vmatpush1.bf16.msra.mxu0 0
      %6232 = vmatprep.subr.bf16.mxu0 0
      %6233 = vmatpush1.bf16.msra.mxu0 0
      %6234 = vmatprep.subr.bf16.mxu0 0
      %6235 = vmatpush1.bf16.msra.mxu0 0
      %6236 = vmatprep.subr.bf16.mxu0 0
      %6237 = vmatpush1.bf16.msra.mxu0 0
      %6238 = vmatprep.subr.bf16.mxu0 0
      %6239 = vmatpush1.bf16.msra.mxu0 0
      %6240 = vmatprep.mubr.bf16.mxu0 0
      %6241 = vmatmul.mubr.bf16.gmra.mrb[0].mxu0 %v6204
      %v6242 = vpop.f32.mrb[0].mxu0
      %v6243 = vadd.f32 0.0, %v6242
      %v6244 = vpop.f32.mrb[0].mxu0
      %v6245 = vpop.f32.mrb[0].mxu0
      %v6246 = vpop.f32.mrb[0].mxu0
      %6247 = vdwg.mxu0
      %v6249 = vsel %vm4565, %v5291, 0
      %v6251 = vsel %vm5305, %v2684, 0
      %6253 = vmatprep.subr.bf16.mxu0 0
      %6254 = vmatpush1.bf16.msra.mxu0 %v6251
      %6255 = vmatprep.subr.bf16.mxu0 0
      %6256 = vmatpush1.bf16.msra.mxu0 0
      %6257 = vmatprep.subr.bf16.mxu0 0
      %6258 = vmatpush1.bf16.msra.mxu0 0
      %6259 = vmatprep.subr.bf16.mxu0 0
      %6260 = vmatpush1.bf16.msra.mxu0 0
      %6261 = vmatprep.subr.bf16.mxu0 0
      %6262 = vmatpush1.bf16.msra.mxu0 0
      %6263 = vmatprep.subr.bf16.mxu0 0
      %6264 = vmatpush1.bf16.msra.mxu0 0
      %6265 = vmatprep.subr.bf16.mxu0 0
      %6266 = vmatpush1.bf16.msra.mxu0 0
      %6267 = vmatprep.subr.bf16.mxu0 0
      %6268 = vmatpush1.bf16.msra.mxu0 0
      %6269 = vmatprep.subr.bf16.mxu0 0
      %6270 = vmatpush1.bf16.msra.mxu0 0
      %6271 = vmatprep.subr.bf16.mxu0 0
      %6272 = vmatpush1.bf16.msra.mxu0 0
      %6273 = vmatprep.subr.bf16.mxu0 0
      %6274 = vmatpush1.bf16.msra.mxu0 0
      %6275 = vmatprep.subr.bf16.mxu0 0
      %6276 = vmatpush1.bf16.msra.mxu0 0
      %6277 = vmatprep.subr.bf16.mxu0 0
      %6278 = vmatpush1.bf16.msra.mxu0 0
      %6279 = vmatprep.subr.bf16.mxu0 0
      %6280 = vmatpush1.bf16.msra.mxu0 0
      %6281 = vmatprep.subr.bf16.mxu0 0
      %6282 = vmatpush1.bf16.msra.mxu0 0
      %6283 = vmatprep.subr.bf16.mxu0 0
      %6284 = vmatpush1.bf16.msra.mxu0 0
      %6285 = vmatprep.mubr.bf16.mxu0 0
      %6286 = vmatmul.mubr.bf16.gmra.mrb[0].mxu0 %v6249
      %v6287 = vpop.f32.mrb[0].mxu0
      %v6288 = vadd.f32 0.0, %v6287
      %v6289 = vpop.f32.mrb[0].mxu0
      %v6290 = vpop.f32.mrb[0].mxu0
      %v6291 = vpop.f32.mrb[0].mxu0
      %6292 = vdwg.mxu0
      %v6294 = vsel %vm4565, %v5292, 0
      %v6296 = vsel %vm5305, %v2733, 0
      %6298 = vmatprep.subr.bf16.mxu0 0
      %6299 = vmatpush1.bf16.msra.mxu0 %v6296
      %6300 = vmatprep.subr.bf16.mxu0 0
      %6301 = vmatpush1.bf16.msra.mxu0 0
      %6302 = vmatprep.subr.bf16.mxu0 0
      %6303 = vmatpush1.bf16.msra.mxu0 0
      %6304 = vmatprep.subr.bf16.mxu0 0
      %6305 = vmatpush1.bf16.msra.mxu0 0
      %6306 = vmatprep.subr.bf16.mxu0 0
      %6307 = vmatpush1.bf16.msra.mxu0 0
      %6308 = vmatprep.subr.bf16.mxu0 0
      %6309 = vmatpush1.bf16.msra.mxu0 0
      %6310 = vmatprep.subr.bf16.mxu0 0
      %6311 = vmatpush1.bf16.msra.mxu0 0
      %6312 = vmatprep.subr.bf16.mxu0 0
      %6313 = vmatpush1.bf16.msra.mxu0 0
      %6314 = vmatprep.subr.bf16.mxu0 0
      %6315 = vmatpush1.bf16.msra.mxu0 0
      %6316 = vmatprep.subr.bf16.mxu0 0
      %6317 = vmatpush1.bf16.msra.mxu0 0
      %6318 = vmatprep.subr.bf16.mxu0 0
      %6319 = vmatpush1.bf16.msra.mxu0 0
      %6320 = vmatprep.subr.bf16.mxu0 0
      %6321 = vmatpush1.bf16.msra.mxu0 0
      %6322 = vmatprep.subr.bf16.mxu0 0
      %6323 = vmatpush1.bf16.msra.mxu0 0
      %6324 = vmatprep.subr.bf16.mxu0 0
      %6325 = vmatpush1.bf16.msra.mxu0 0
      %6326 = vmatprep.subr.bf16.mxu0 0
      %6327 = vmatpush1.bf16.msra.mxu0 0
      %6328 = vmatprep.subr.bf16.mxu0 0
      %6329 = vmatpush1.bf16.msra.mxu0 0
      %6330 = vmatprep.mubr.bf16.mxu0 0
      %6331 = vmatmul.mubr.bf16.gmra.mrb[0].mxu0 %v6294
      %v6332 = vpop.f32.mrb[0].mxu0
      %v6333 = vadd.f32 0.0, %v6332
      %v6334 = vpop.f32.mrb[0].mxu0
      %v6335 = vpop.f32.mrb[0].mxu0
      %v6336 = vpop.f32.mrb[0].mxu0
      %6337 = vdwg.mxu0
      %v6339 = vsel %vm4565, %v5293, 0
      %v6341 = vsel %vm5305, %v2782, 0
      %6343 = vmatprep.subr.bf16.mxu0 0
      %6344 = vmatpush1.bf16.msra.mxu0 %v6341
      %6345 = vmatprep.subr.bf16.mxu0 0
      %6346 = vmatpush1.bf16.msra.mxu0 0
      %6347 = vmatprep.subr.bf16.mxu0 0
      %6348 = vmatpush1.bf16.msra.mxu0 0
      %6349 = vmatprep.subr.bf16.mxu0 0
      %6350 = vmatpush1.bf16.msra.mxu0 0
      %6351 = vmatprep.subr.bf16.mxu0 0
      %6352 = vmatpush1.bf16.msra.mxu0 0
      %6353 = vmatprep.subr.bf16.mxu0 0
      %6354 = vmatpush1.bf16.msra.mxu0 0
      %6355 = vmatprep.subr.bf16.mxu0 0
      %6356 = vmatpush1.bf16.msra.mxu0 0
      %6357 = vmatprep.subr.bf16.mxu0 0
      %6358 = vmatpush1.bf16.msra.mxu0 0
      %6359 = vmatprep.subr.bf16.mxu0 0
      %6360 = vmatpush1.bf16.msra.mxu0 0
      %6361 = vmatprep.subr.bf16.mxu0 0
      %6362 = vmatpush1.bf16.msra.mxu0 0
      %6363 = vmatprep.subr.bf16.mxu0 0
      %6364 = vmatpush1.bf16.msra.mxu0 0
      %6365 = vmatprep.subr.bf16.mxu0 0
      %6366 = vmatpush1.bf16.msra.mxu0 0
      %6367 = vmatprep.subr.bf16.mxu0 0
      %6368 = vmatpush1.bf16.msra.mxu0 0
      %6369 = vmatprep.subr.bf16.mxu0 0
      %6370 = vmatpush1.bf16.msra.mxu0 0
      %6371 = vmatprep.subr.bf16.mxu0 0
      %6372 = vmatpush1.bf16.msra.mxu0 0
      %6373 = vmatprep.subr.bf16.mxu0 0
      %6374 = vmatpush1.bf16.msra.mxu0 0
      %6375 = vmatprep.mubr.bf16.mxu0 0
      %6376 = vmatmul.mubr.bf16.gmra.mrb[0].mxu0 %v6339
      %v6377 = vpop.f32.mrb[0].mxu0
      %v6378 = vadd.f32 0.0, %v6377
      %v6379 = vpop.f32.mrb[0].mxu0
      %v6380 = vpop.f32.mrb[0].mxu0
      %v6381 = vpop.f32.mrb[0].mxu0
      %6382 = vdwg.mxu0
      %v6384 = vsel %vm4565, %v5294, 0
      %v6386 = vsel %vm5305, %v2831, 0
      %6388 = vmatprep.subr.bf16.mxu0 0
      %6389 = vmatpush1.bf16.msra.mxu0 %v6386
      %6390 = vmatprep.subr.bf16.mxu0 0
      %6391 = vmatpush1.bf16.msra.mxu0 0
      %6392 = vmatprep.subr.bf16.mxu0 0
      %6393 = vmatpush1.bf16.msra.mxu0 0
      %6394 = vmatprep.subr.bf16.mxu0 0
      %6395 = vmatpush1.bf16.msra.mxu0 0
      %6396 = vmatprep.subr.bf16.mxu0 0
      %6397 = vmatpush1.bf16.msra.mxu0 0
      %6398 = vmatprep.subr.bf16.mxu0 0
      %6399 = vmatpush1.bf16.msra.mxu0 0
      %6400 = vmatprep.subr.bf16.mxu0 0
      %6401 = vmatpush1.bf16.msra.mxu0 0
      %6402 = vmatprep.subr.bf16.mxu0 0
      %6403 = vmatpush1.bf16.msra.mxu0 0
      %6404 = vmatprep.subr.bf16.mxu0 0
      %6405 = vmatpush1.bf16.msra.mxu0 0
      %6406 = vmatprep.subr.bf16.mxu0 0
      %6407 = vmatpush1.bf16.msra.mxu0 0
      %6408 = vmatprep.subr.bf16.mxu0 0
      %6409 = vmatpush1.bf16.msra.mxu0 0
      %6410 = vmatprep.subr.bf16.mxu0 0
      %6411 = vmatpush1.bf16.msra.mxu0 0
      %6412 = vmatprep.subr.bf16.mxu0 0
      %6413 = vmatpush1.bf16.msra.mxu0 0
      %6414 = vmatprep.subr.bf16.mxu0 0
      %6415 = vmatpush1.bf16.msra.mxu0 0
      %6416 = vmatprep.subr.bf16.mxu0 0
      %6417 = vmatpush1.bf16.msra.mxu0 0
      %6418 = vmatprep.subr.bf16.mxu0 0
      %6419 = vmatpush1.bf16.msra.mxu0 0
      %6420 = vmatprep.mubr.bf16.mxu0 0
      %6421 = vmatmul.mubr.bf16.gmra.mrb[0].mxu0 %v6384
      %v6422 = vpop.f32.mrb[0].mxu0
      %v6423 = vadd.f32 0.0, %v6422
      %v6424 = vpop.f32.mrb[0].mxu0
      %v6425 = vpop.f32.mrb[0].mxu0
      %v6426 = vpop.f32.mrb[0].mxu0
      %6427 = vdwg.mxu0
      %v6429 = vsel %vm4565, %v5295, 0
      %v6431 = vsel %vm5305, %v2880, 0
      %6433 = vmatprep.subr.bf16.mxu0 0
      %6434 = vmatpush1.bf16.msra.mxu0 %v6431
      %6435 = vmatprep.subr.bf16.mxu0 0
      %6436 = vmatpush1.bf16.msra.mxu0 0
      %6437 = vmatprep.subr.bf16.mxu0 0
      %6438 = vmatpush1.bf16.msra.mxu0 0
      %6439 = vmatprep.subr.bf16.mxu0 0
      %6440 = vmatpush1.bf16.msra.mxu0 0
      %6441 = vmatprep.subr.bf16.mxu0 0
      %6442 = vmatpush1.bf16.msra.mxu0 0
      %6443 = vmatprep.subr.bf16.mxu0 0
      %6444 = vmatpush1.bf16.msra.mxu0 0
      %6445 = vmatprep.subr.bf16.mxu0 0
      %6446 = vmatpush1.bf16.msra.mxu0 0
      %6447 = vmatprep.subr.bf16.mxu0 0
      %6448 = vmatpush1.bf16.msra.mxu0 0
      %6449 = vmatprep.subr.bf16.mxu0 0
      %6450 = vmatpush1.bf16.msra.mxu0 0
      %6451 = vmatprep.subr.bf16.mxu0 0
      %6452 = vmatpush1.bf16.msra.mxu0 0
      %6453 = vmatprep.subr.bf16.mxu0 0
      %6454 = vmatpush1.bf16.msra.mxu0 0
      %6455 = vmatprep.subr.bf16.mxu0 0
      %6456 = vmatpush1.bf16.msra.mxu0 0
      %6457 = vmatprep.subr.bf16.mxu0 0
      %6458 = vmatpush1.bf16.msra.mxu0 0
      %6459 = vmatprep.subr.bf16.mxu0 0
      %6460 = vmatpush1.bf16.msra.mxu0 0
      %6461 = vmatprep.subr.bf16.mxu0 0
      %6462 = vmatpush1.bf16.msra.mxu0 0
      %6463 = vmatprep.subr.bf16.mxu0 0
      %6464 = vmatpush1.bf16.msra.mxu0 0
      %6465 = vmatprep.mubr.bf16.mxu0 0
      %6466 = vmatmul.mubr.bf16.gmra.mrb[0].mxu0 %v6429
      %v6467 = vpop.f32.mrb[0].mxu0
      %v6468 = vadd.f32 0.0, %v6467
      %v6469 = vpop.f32.mrb[0].mxu0
      %v6470 = vpop.f32.mrb[0].mxu0
      %v6471 = vpop.f32.mrb[0].mxu0
      %6472 = vdwg.mxu0
      %v6474 = vsel %vm4565, %v5296, 0
      %v6476 = vsel %vm5305, %v2929, 0
      %6478 = vmatprep.subr.bf16.mxu0 0
      %6479 = vmatpush1.bf16.msra.mxu0 %v6476
      %6480 = vmatprep.subr.bf16.mxu0 0
      %6481 = vmatpush1.bf16.msra.mxu0 0
      %6482 = vmatprep.subr.bf16.mxu0 0
      %6483 = vmatpush1.bf16.msra.mxu0 0
      %6484 = vmatprep.subr.bf16.mxu0 0
      %6485 = vmatpush1.bf16.msra.mxu0 0
      %6486 = vmatprep.subr.bf16.mxu0 0
      %6487 = vmatpush1.bf16.msra.mxu0 0
      %6488 = vmatprep.subr.bf16.mxu0 0
      %6489 = vmatpush1.bf16.msra.mxu0 0
      %6490 = vmatprep.subr.bf16.mxu0 0
      %6491 = vmatpush1.bf16.msra.mxu0 0
      %6492 = vmatprep.subr.bf16.mxu0 0
      %6493 = vmatpush1.bf16.msra.mxu0 0
      %6494 = vmatprep.subr.bf16.mxu0 0
      %6495 = vmatpush1.bf16.msra.mxu0 0
      %6496 = vmatprep.subr.bf16.mxu0 0
      %6497 = vmatpush1.bf16.msra.mxu0 0
      %6498 = vmatprep.subr.bf16.mxu0 0
      %6499 = vmatpush1.bf16.msra.mxu0 0
      %6500 = vmatprep.subr.bf16.mxu0 0
      %6501 = vmatpush1.bf16.msra.mxu0 0
      %6502 = vmatprep.subr.bf16.mxu0 0
      %6503 = vmatpush1.bf16.msra.mxu0 0
      %6504 = vmatprep.subr.bf16.mxu0 0
      %6505 = vmatpush1.bf16.msra.mxu0 0
      %6506 = vmatprep.subr.bf16.mxu0 0
      %6507 = vmatpush1.bf16.msra.mxu0 0
      %6508 = vmatprep.subr.bf16.mxu0 0
      %6509 = vmatpush1.bf16.msra.mxu0 0
      %6510 = vmatprep.mubr.bf16.mxu0 0
      %6511 = vmatmul.mubr.bf16.gmra.mrb[0].mxu0 %v6474
      %v6512 = vpop.f32.mrb[0].mxu0
      %v6513 = vadd.f32 0.0, %v6512
      %v6514 = vpop.f32.mrb[0].mxu0
      %v6515 = vpop.f32.mrb[0].mxu0
      %v6516 = vpop.f32.mrb[0].mxu0
      %6517 = vdwg.mxu0
      %v6519 = vsel %vm4565, %v5297, 0
      %v6521 = vsel %vm5305, %v2978, 0
      %6523 = vmatprep.subr.bf16.mxu0 0
      %6524 = vmatpush1.bf16.msra.mxu0 %v6521
      %6525 = vmatprep.subr.bf16.mxu0 0
      %6526 = vmatpush1.bf16.msra.mxu0 0
      %6527 = vmatprep.subr.bf16.mxu0 0
      %6528 = vmatpush1.bf16.msra.mxu0 0
      %6529 = vmatprep.subr.bf16.mxu0 0
      %6530 = vmatpush1.bf16.msra.mxu0 0
      %6531 = vmatprep.subr.bf16.mxu0 0
      %6532 = vmatpush1.bf16.msra.mxu0 0
      %6533 = vmatprep.subr.bf16.mxu0 0
      %6534 = vmatpush1.bf16.msra.mxu0 0
      %6535 = vmatprep.subr.bf16.mxu0 0
      %6536 = vmatpush1.bf16.msra.mxu0 0
      %6537 = vmatprep.subr.bf16.mxu0 0
      %6538 = vmatpush1.bf16.msra.mxu0 0
      %6539 = vmatprep.subr.bf16.mxu0 0
      %6540 = vmatpush1.bf16.msra.mxu0 0
      %6541 = vmatprep.subr.bf16.mxu0 0
      %6542 = vmatpush1.bf16.msra.mxu0 0
      %6543 = vmatprep.subr.bf16.mxu0 0
      %6544 = vmatpush1.bf16.msra.mxu0 0
      %6545 = vmatprep.subr.bf16.mxu0 0
      %6546 = vmatpush1.bf16.msra.mxu0 0
      %6547 = vmatprep.subr.bf16.mxu0 0
      %6548 = vmatpush1.bf16.msra.mxu0 0
      %6549 = vmatprep.subr.bf16.mxu0 0
      %6550 = vmatpush1.bf16.msra.mxu0 0
      %6551 = vmatprep.subr.bf16.mxu0 0
      %6552 = vmatpush1.bf16.msra.mxu0 0
      %6553 = vmatprep.subr.bf16.mxu0 0
      %6554 = vmatpush1.bf16.msra.mxu0 0
      %6555 = vmatprep.mubr.bf16.mxu0 0
      %6556 = vmatmul.mubr.bf16.gmra.mrb[0].mxu0 %v6519
      %v6557 = vpop.f32.mrb[0].mxu0
      %v6558 = vadd.f32 0.0, %v6557
      %v6559 = vpop.f32.mrb[0].mxu0
      %v6560 = vpop.f32.mrb[0].mxu0
      %v6561 = vpop.f32.mrb[0].mxu0
      %6562 = vdwg.mxu0
      %v6564 = vsel %vm4565, %v5298, 0
      %v6566 = vsel %vm5305, %v3027, 0
      %6568 = vmatprep.subr.bf16.mxu0 0
      %6569 = vmatpush1.bf16.msra.mxu0 %v6566
      %6570 = vmatprep.subr.bf16.mxu0 0
      %6571 = vmatpush1.bf16.msra.mxu0 0
      %6572 = vmatprep.subr.bf16.mxu0 0
      %6573 = vmatpush1.bf16.msra.mxu0 0
      %6574 = vmatprep.subr.bf16.mxu0 0
      %6575 = vmatpush1.bf16.msra.mxu0 0
      %6576 = vmatprep.subr.bf16.mxu0 0
      %6577 = vmatpush1.bf16.msra.mxu0 0
      %6578 = vmatprep.subr.bf16.mxu0 0
      %6579 = vmatpush1.bf16.msra.mxu0 0
      %6580 = vmatprep.subr.bf16.mxu0 0
      %6581 = vmatpush1.bf16.msra.mxu0 0
      %6582 = vmatprep.subr.bf16.mxu0 0
      %6583 = vmatpush1.bf16.msra.mxu0 0
      %6584 = vmatprep.subr.bf16.mxu0 0
      %6585 = vmatpush1.bf16.msra.mxu0 0
      %6586 = vmatprep.subr.bf16.mxu0 0
      %6587 = vmatpush1.bf16.msra.mxu0 0
      %6588 = vmatprep.subr.bf16.mxu0 0
      %6589 = vmatpush1.bf16.msra.mxu0 0
      %6590 = vmatprep.subr.bf16.mxu0 0
      %6591 = vmatpush1.bf16.msra.mxu0 0
      %6592 = vmatprep.subr.bf16.mxu0 0
      %6593 = vmatpush1.bf16.msra.mxu0 0
      %6594 = vmatprep.subr.bf16.mxu0 0
      %6595 = vmatpush1.bf16.msra.mxu0 0
      %6596 = vmatprep.subr.bf16.mxu0 0
      %6597 = vmatpush1.bf16.msra.mxu0 0
      %6598 = vmatprep.subr.bf16.mxu0 0
      %6599 = vmatpush1.bf16.msra.mxu0 0
      %6600 = vmatprep.mubr.bf16.mxu0 0
      %6601 = vmatmul.mubr.bf16.gmra.mrb[0].mxu0 %v6564
      %v6602 = vpop.f32.mrb[0].mxu0
      %v6603 = vadd.f32 0.0, %v6602
      %v6604 = vpop.f32.mrb[0].mxu0
      %v6605 = vpop.f32.mrb[0].mxu0
      %v6606 = vpop.f32.mrb[0].mxu0
      %6607 = vdwg.mxu0
      %v6609 = vsel %vm4565, %v5299, 0
      %v6611 = vsel %vm5305, %v3076, 0
      %6613 = vmatprep.subr.bf16.mxu0 0
      %6614 = vmatpush1.bf16.msra.mxu0 %v6611
      %6615 = vmatprep.subr.bf16.mxu0 0
      %6616 = vmatpush1.bf16.msra.mxu0 0
      %6617 = vmatprep.subr.bf16.mxu0 0
      %6618 = vmatpush1.bf16.msra.mxu0 0
      %6619 = vmatprep.subr.bf16.mxu0 0
      %6620 = vmatpush1.bf16.msra.mxu0 0
      %6621 = vmatprep.subr.bf16.mxu0 0
      %6622 = vmatpush1.bf16.msra.mxu0 0
      %6623 = vmatprep.subr.bf16.mxu0 0
      %6624 = vmatpush1.bf16.msra.mxu0 0
      %6625 = vmatprep.subr.bf16.mxu0 0
      %6626 = vmatpush1.bf16.msra.mxu0 0
      %6627 = vmatprep.subr.bf16.mxu0 0
      %6628 = vmatpush1.bf16.msra.mxu0 0
      %6629 = vmatprep.subr.bf16.mxu0 0
      %6630 = vmatpush1.bf16.msra.mxu0 0
      %6631 = vmatprep.subr.bf16.mxu0 0
      %6632 = vmatpush1.bf16.msra.mxu0 0
      %6633 = vmatprep.subr.bf16.mxu0 0
      %6634 = vmatpush1.bf16.msra.mxu0 0
      %6635 = vmatprep.subr.bf16.mxu0 0
      %6636 = vmatpush1.bf16.msra.mxu0 0
      %6637 = vmatprep.subr.bf16.mxu0 0
      %6638 = vmatpush1.bf16.msra.mxu0 0
      %6639 = vmatprep.subr.bf16.mxu0 0
      %6640 = vmatpush1.bf16.msra.mxu0 0
      %6641 = vmatprep.subr.bf16.mxu0 0
      %6642 = vmatpush1.bf16.msra.mxu0 0
      %6643 = vmatprep.subr.bf16.mxu0 0
      %6644 = vmatpush1.bf16.msra.mxu0 0
      %6645 = vmatprep.mubr.bf16.mxu0 0
      %6646 = vmatmul.mubr.bf16.gmra.mrb[0].mxu0 %v6609
      %v6647 = vpop.f32.mrb[0].mxu0
      %v6648 = vadd.f32 0.0, %v6647
      %v6649 = vpop.f32.mrb[0].mxu0
      %v6650 = vpop.f32.mrb[0].mxu0
      %v6651 = vpop.f32.mrb[0].mxu0
      %6652 = vdwg.mxu0
      %v6654 = vsel %vm4565, %v5300, 0
      %v6656 = vsel %vm5305, %v3125, 0
      %6658 = vmatprep.subr.bf16.mxu0 0
      %6659 = vmatpush1.bf16.msra.mxu0 %v6656
      %6660 = vmatprep.subr.bf16.mxu0 0
      %6661 = vmatpush1.bf16.msra.mxu0 0
      %6662 = vmatprep.subr.bf16.mxu0 0
      %6663 = vmatpush1.bf16.msra.mxu0 0
      %6664 = vmatprep.subr.bf16.mxu0 0
      %6665 = vmatpush1.bf16.msra.mxu0 0
      %6666 = vmatprep.subr.bf16.mxu0 0
      %6667 = vmatpush1.bf16.msra.mxu0 0
      %6668 = vmatprep.subr.bf16.mxu0 0
      %6669 = vmatpush1.bf16.msra.mxu0 0
      %6670 = vmatprep.subr.bf16.mxu0 0
      %6671 = vmatpush1.bf16.msra.mxu0 0
      %6672 = vmatprep.subr.bf16.mxu0 0
      %6673 = vmatpush1.bf16.msra.mxu0 0
      %6674 = vmatprep.subr.bf16.mxu0 0
      %6675 = vmatpush1.bf16.msra.mxu0 0
      %6676 = vmatprep.subr.bf16.mxu0 0
      %6677 = vmatpush1.bf16.msra.mxu0 0
      %6678 = vmatprep.subr.bf16.mxu0 0
      %6679 = vmatpush1.bf16.msra.mxu0 0
      %6680 = vmatprep.subr.bf16.mxu0 0
      %6681 = vmatpush1.bf16.msra.mxu0 0
      %6682 = vmatprep.subr.bf16.mxu0 0
      %6683 = vmatpush1.bf16.msra.mxu0 0
      %6684 = vmatprep.subr.bf16.mxu0 0
      %6685 = vmatpush1.bf16.msra.mxu0 0
      %6686 = vmatprep.subr.bf16.mxu0 0
      %6687 = vmatpush1.bf16.msra.mxu0 0
      %6688 = vmatprep.subr.bf16.mxu0 0
      %6689 = vmatpush1.bf16.msra.mxu0 0
      %6690 = vmatprep.mubr.bf16.mxu0 0
      %6691 = vmatmul.mubr.bf16.gmra.mrb[0].mxu0 %v6654
      %v6692 = vpop.f32.mrb[0].mxu0
      %v6693 = vadd.f32 0.0, %v6692
      %v6694 = vpop.f32.mrb[0].mxu0
      %v6695 = vpop.f32.mrb[0].mxu0
      %v6696 = vpop.f32.mrb[0].mxu0
      %6697 = vdwg.mxu0
      %v6699 = vsel %vm4565, %v5301, 0
      %v6701 = vsel %vm5305, %v3174, 0
      %6703 = vmatprep.subr.bf16.mxu0 0
      %6704 = vmatpush1.bf16.msra.mxu0 %v6701
      %6705 = vmatprep.subr.bf16.mxu0 0
      %6706 = vmatpush1.bf16.msra.mxu0 0
      %6707 = vmatprep.subr.bf16.mxu0 0
      %6708 = vmatpush1.bf16.msra.mxu0 0
      %6709 = vmatprep.subr.bf16.mxu0 0
      %6710 = vmatpush1.bf16.msra.mxu0 0
      %6711 = vmatprep.subr.bf16.mxu0 0
      %6712 = vmatpush1.bf16.msra.mxu0 0
      %6713 = vmatprep.subr.bf16.mxu0 0
      %6714 = vmatpush1.bf16.msra.mxu0 0
      %6715 = vmatprep.subr.bf16.mxu0 0
      %6716 = vmatpush1.bf16.msra.mxu0 0
      %6717 = vmatprep.subr.bf16.mxu0 0
      %6718 = vmatpush1.bf16.msra.mxu0 0
      %6719 = vmatprep.subr.bf16.mxu0 0
      %6720 = vmatpush1.bf16.msra.mxu0 0
      %6721 = vmatprep.subr.bf16.mxu0 0
      %6722 = vmatpush1.bf16.msra.mxu0 0
      %6723 = vmatprep.subr.bf16.mxu0 0
      %6724 = vmatpush1.bf16.msra.mxu0 0
      %6725 = vmatprep.subr.bf16.mxu0 0
      %6726 = vmatpush1.bf16.msra.mxu0 0
      %6727 = vmatprep.subr.bf16.mxu0 0
      %6728 = vmatpush1.bf16.msra.mxu0 0
      %6729 = vmatprep.subr.bf16.mxu0 0
      %6730 = vmatpush1.bf16.msra.mxu0 0
      %6731 = vmatprep.subr.bf16.mxu0 0
      %6732 = vmatpush1.bf16.msra.mxu0 0
      %6733 = vmatprep.subr.bf16.mxu0 0
      %6734 = vmatpush1.bf16.msra.mxu0 0
      %6735 = vmatprep.mubr.bf16.mxu0 0
      %6736 = vmatmul.mubr.bf16.gmra.mrb[0].mxu0 %v6699
      %v6737 = vpop.f32.mrb[0].mxu0
      %v6738 = vadd.f32 0.0, %v6737
      %v6739 = vpop.f32.mrb[0].mxu0
      %v6740 = vpop.f32.mrb[0].mxu0
      %v6741 = vpop.f32.mrb[0].mxu0
      %6742 = vdwg.mxu0
      %v6743 = vpack.c.bf16 %v4855, %v4855
      %v6744 = vpack.c.bf16 %v4857, %v4857
      %v6745 = vpack.c.bf16 %v4859, %v4859
      %v6746 = vpack.c.bf16 %v4861, %v4861
      %v6747 = vpack.c.bf16 %v4863, %v4863
      %v6748 = vpack.c.bf16 %v4865, %v4865
      %v6749 = vpack.c.bf16 %v4867, %v4867
      %v6750 = vpack.c.bf16 %v4869, %v4869
      %v6751 = vpack.c.bf16 %v4871, %v4871
      %v6752 = vpack.c.bf16 %v4873, %v4873
      %v6753 = vpack.c.bf16 %v4875, %v4875
      %v6754 = vpack.c.bf16 %v4877, %v4877
      %v6755 = vpack.c.bf16 %v4879, %v4879
      %v6756 = vpack.c.bf16 %v4881, %v4881
      %v6757 = vpack.c.bf16 %v4883, %v4883
      %v6758 = vpack.c.bf16 %v4885, %v4885
      %v6759 = vpack.c.bf16 %v4887, %v4887
      %v6760 = vpack.c.bf16 %v4889, %v4889
      %v6761 = vpack.c.bf16 %v4891, %v4891
      %v6762 = vpack.c.bf16 %v4893, %v4893
      %v6763 = vpack.c.bf16 %v4895, %v4895
      %v6764 = vpack.c.bf16 %v4897, %v4897
      %v6765 = vpack.c.bf16 %v4899, %v4899
      %v6766 = vpack.c.bf16 %v4901, %v4901
      %v6767 = vpack.c.bf16 %v4903, %v4903
      %v6768 = vpack.c.bf16 %v4905, %v4905
      %v6769 = vpack.c.bf16 %v4907, %v4907
      %v6770 = vpack.c.bf16 %v4909, %v4909
      %v6771 = vpack.c.bf16 %v4911, %v4911
      %v6772 = vpack.c.bf16 %v4913, %v4913
      %v6773 = vpack.c.bf16 %v4915, %v4915
      %v6774 = vpack.c.bf16 %v4917, %v4917
      %v6776 = vsel %vm4565, %v6743, 0
      %v6778 = vsel %vm5305, %v1621, 0
      %6780 = vmatprep.subr.bf16.mxu0 0
      %6781 = vmatpush1.bf16.msra.mxu0 %v6778
      %6782 = vmatprep.subr.bf16.mxu0 0
      %6783 = vmatpush1.bf16.msra.mxu0 0
      %6784 = vmatprep.subr.bf16.mxu0 0
      %6785 = vmatpush1.bf16.msra.mxu0 0
      %6786 = vmatprep.subr.bf16.mxu0 0
      %6787 = vmatpush1.bf16.msra.mxu0 0
      %6788 = vmatprep.subr.bf16.mxu0 0
      %6789 = vmatpush1.bf16.msra.mxu0 0
      %6790 = vmatprep.subr.bf16.mxu0 0
      %6791 = vmatpush1.bf16.msra.mxu0 0
      %6792 = vmatprep.subr.bf16.mxu0 0
      %6793 = vmatpush1.bf16.msra.mxu0 0
      %6794 = vmatprep.subr.bf16.mxu0 0
      %6795 = vmatpush1.bf16.msra.mxu0 0
      %6796 = vmatprep.subr.bf16.mxu0 0
      %6797 = vmatpush1.bf16.msra.mxu0 0
      %6798 = vmatprep.subr.bf16.mxu0 0
      %6799 = vmatpush1.bf16.msra.mxu0 0
      %6800 = vmatprep.subr.bf16.mxu0 0
      %6801 = vmatpush1.bf16.msra.mxu0 0
      %6802 = vmatprep.subr.bf16.mxu0 0
      %6803 = vmatpush1.bf16.msra.mxu0 0
      %6804 = vmatprep.subr.bf16.mxu0 0
      %6805 = vmatpush1.bf16.msra.mxu0 0
      %6806 = vmatprep.subr.bf16.mxu0 0
      %6807 = vmatpush1.bf16.msra.mxu0 0
      %6808 = vmatprep.subr.bf16.mxu0 0
      %6809 = vmatpush1.bf16.msra.mxu0 0
      %6810 = vmatprep.subr.bf16.mxu0 0
      %6811 = vmatpush1.bf16.msra.mxu0 0
      %6812 = vmatprep.mubr.bf16.mxu0 0
      %6813 = vmatmul.mubr.bf16.gmra.mrb[0].mxu0 %v6776
      %v6814 = vpop.f32.mrb[0].mxu0
      %v6815 = vadd.f32 0.0, %v6814
      %v6816 = vpop.f32.mrb[0].mxu0
      %v6817 = vpop.f32.mrb[0].mxu0
      %v6818 = vpop.f32.mrb[0].mxu0
      %6819 = vdwg.mxu0
      %v6821 = vsel %vm4565, %v6744, 0
      %v6823 = vsel %vm5305, %v1622, 0
      %6825 = vmatprep.subr.bf16.mxu0 0
      %6826 = vmatpush1.bf16.msra.mxu0 %v6823
      %6827 = vmatprep.subr.bf16.mxu0 0
      %6828 = vmatpush1.bf16.msra.mxu0 0
      %6829 = vmatprep.subr.bf16.mxu0 0
      %6830 = vmatpush1.bf16.msra.mxu0 0
      %6831 = vmatprep.subr.bf16.mxu0 0
      %6832 = vmatpush1.bf16.msra.mxu0 0
      %6833 = vmatprep.subr.bf16.mxu0 0
      %6834 = vmatpush1.bf16.msra.mxu0 0
      %6835 = vmatprep.subr.bf16.mxu0 0
      %6836 = vmatpush1.bf16.msra.mxu0 0
      %6837 = vmatprep.subr.bf16.mxu0 0
      %6838 = vmatpush1.bf16.msra.mxu0 0
      %6839 = vmatprep.subr.bf16.mxu0 0
      %6840 = vmatpush1.bf16.msra.mxu0 0
      %6841 = vmatprep.subr.bf16.mxu0 0
      %6842 = vmatpush1.bf16.msra.mxu0 0
      %6843 = vmatprep.subr.bf16.mxu0 0
      %6844 = vmatpush1.bf16.msra.mxu0 0
      %6845 = vmatprep.subr.bf16.mxu0 0
      %6846 = vmatpush1.bf16.msra.mxu0 0
      %6847 = vmatprep.subr.bf16.mxu0 0
      %6848 = vmatpush1.bf16.msra.mxu0 0
      %6849 = vmatprep.subr.bf16.mxu0 0
      %6850 = vmatpush1.bf16.msra.mxu0 0
      %6851 = vmatprep.subr.bf16.mxu0 0
      %6852 = vmatpush1.bf16.msra.mxu0 0
      %6853 = vmatprep.subr.bf16.mxu0 0
      %6854 = vmatpush1.bf16.msra.mxu0 0
      %6855 = vmatprep.subr.bf16.mxu0 0
      %6856 = vmatpush1.bf16.msra.mxu0 0
      %6857 = vmatprep.mubr.bf16.mxu0 0
      %6858 = vmatmul.mubr.bf16.gmra.mrb[0].mxu0 %v6821
      %v6859 = vpop.f32.mrb[0].mxu0
      %v6860 = vadd.f32 0.0, %v6859
      %v6861 = vpop.f32.mrb[0].mxu0
      %v6862 = vpop.f32.mrb[0].mxu0
      %v6863 = vpop.f32.mrb[0].mxu0
      %6864 = vdwg.mxu0
      %v6866 = vsel %vm4565, %v6745, 0
      %v6868 = vsel %vm5305, %v1623, 0
      %6870 = vmatprep.subr.bf16.mxu0 0
      %6871 = vmatpush1.bf16.msra.mxu0 %v6868
      %6872 = vmatprep.subr.bf16.mxu0 0
      %6873 = vmatpush1.bf16.msra.mxu0 0
      %6874 = vmatprep.subr.bf16.mxu0 0
      %6875 = vmatpush1.bf16.msra.mxu0 0
      %6876 = vmatprep.subr.bf16.mxu0 0
      %6877 = vmatpush1.bf16.msra.mxu0 0
      %6878 = vmatprep.subr.bf16.mxu0 0
      %6879 = vmatpush1.bf16.msra.mxu0 0
      %6880 = vmatprep.subr.bf16.mxu0 0
      %6881 = vmatpush1.bf16.msra.mxu0 0
      %6882 = vmatprep.subr.bf16.mxu0 0
      %6883 = vmatpush1.bf16.msra.mxu0 0
      %6884 = vmatprep.subr.bf16.mxu0 0
      %6885 = vmatpush1.bf16.msra.mxu0 0
      %6886 = vmatprep.subr.bf16.mxu0 0
      %6887 = vmatpush1.bf16.msra.mxu0 0
      %6888 = vmatprep.subr.bf16.mxu0 0
      %6889 = vmatpush1.bf16.msra.mxu0 0
      %6890 = vmatprep.subr.bf16.mxu0 0
      %6891 = vmatpush1.bf16.msra.mxu0 0
      %6892 = vmatprep.subr.bf16.mxu0 0
      %6893 = vmatpush1.bf16.msra.mxu0 0
      %6894 = vmatprep.subr.bf16.mxu0 0
      %6895 = vmatpush1.bf16.msra.mxu0 0
      %6896 = vmatprep.subr.bf16.mxu0 0
      %6897 = vmatpush1.bf16.msra.mxu0 0
      %6898 = vmatprep.subr.bf16.mxu0 0
      %6899 = vmatpush1.bf16.msra.mxu0 0
      %6900 = vmatprep.subr.bf16.mxu0 0
      %6901 = vmatpush1.bf16.msra.mxu0 0
      %6902 = vmatprep.mubr.bf16.mxu0 0
      %6903 = vmatmul.mubr.bf16.gmra.mrb[0].mxu0 %v6866
      %v6904 = vpop.f32.mrb[0].mxu0
      %v6905 = vadd.f32 0.0, %v6904
      %v6906 = vpop.f32.mrb[0].mxu0
      %v6907 = vpop.f32.mrb[0].mxu0
      %v6908 = vpop.f32.mrb[0].mxu0
      %6909 = vdwg.mxu0
      %v6911 = vsel %vm4565, %v6746, 0
      %v6913 = vsel %vm5305, %v1624, 0
      %6915 = vmatprep.subr.bf16.mxu0 0
      %6916 = vmatpush1.bf16.msra.mxu0 %v6913
      %6917 = vmatprep.subr.bf16.mxu0 0
      %6918 = vmatpush1.bf16.msra.mxu0 0
      %6919 = vmatprep.subr.bf16.mxu0 0
      %6920 = vmatpush1.bf16.msra.mxu0 0
      %6921 = vmatprep.subr.bf16.mxu0 0
      %6922 = vmatpush1.bf16.msra.mxu0 0
      %6923 = vmatprep.subr.bf16.mxu0 0
      %6924 = vmatpush1.bf16.msra.mxu0 0
      %6925 = vmatprep.subr.bf16.mxu0 0
      %6926 = vmatpush1.bf16.msra.mxu0 0
      %6927 = vmatprep.subr.bf16.mxu0 0
      %6928 = vmatpush1.bf16.msra.mxu0 0
      %6929 = vmatprep.subr.bf16.mxu0 0
      %6930 = vmatpush1.bf16.msra.mxu0 0
      %6931 = vmatprep.subr.bf16.mxu0 0
      %6932 = vmatpush1.bf16.msra.mxu0 0
      %6933 = vmatprep.subr.bf16.mxu0 0
      %6934 = vmatpush1.bf16.msra.mxu0 0
      %6935 = vmatprep.subr.bf16.mxu0 0
      %6936 = vmatpush1.bf16.msra.mxu0 0
      %6937 = vmatprep.subr.bf16.mxu0 0
      %6938 = vmatpush1.bf16.msra.mxu0 0
      %6939 = vmatprep.subr.bf16.mxu0 0
      %6940 = vmatpush1.bf16.msra.mxu0 0
      %6941 = vmatprep.subr.bf16.mxu0 0
      %6942 = vmatpush1.bf16.msra.mxu0 0
      %6943 = vmatprep.subr.bf16.mxu0 0
      %6944 = vmatpush1.bf16.msra.mxu0 0
      %6945 = vmatprep.subr.bf16.mxu0 0
      %6946 = vmatpush1.bf16.msra.mxu0 0
      %6947 = vmatprep.mubr.bf16.mxu0 0
      %6948 = vmatmul.mubr.bf16.gmra.mrb[0].mxu0 %v6911
      %v6949 = vpop.f32.mrb[0].mxu0
      %v6950 = vadd.f32 0.0, %v6949
      %v6951 = vpop.f32.mrb[0].mxu0
      %v6952 = vpop.f32.mrb[0].mxu0
      %v6953 = vpop.f32.mrb[0].mxu0
      %6954 = vdwg.mxu0
      %v6956 = vsel %vm4565, %v6747, 0
      %v6958 = vsel %vm5305, %v1625, 0
      %6960 = vmatprep.subr.bf16.mxu0 0
      %6961 = vmatpush1.bf16.msra.mxu0 %v6958
      %6962 = vmatprep.subr.bf16.mxu0 0
      %6963 = vmatpush1.bf16.msra.mxu0 0
      %6964 = vmatprep.subr.bf16.mxu0 0
      %6965 = vmatpush1.bf16.msra.mxu0 0
      %6966 = vmatprep.subr.bf16.mxu0 0
      %6967 = vmatpush1.bf16.msra.mxu0 0
      %6968 = vmatprep.subr.bf16.mxu0 0
      %6969 = vmatpush1.bf16.msra.mxu0 0
      %6970 = vmatprep.subr.bf16.mxu0 0
      %6971 = vmatpush1.bf16.msra.mxu0 0
      %6972 = vmatprep.subr.bf16.mxu0 0
      %6973 = vmatpush1.bf16.msra.mxu0 0
      %6974 = vmatprep.subr.bf16.mxu0 0
      %6975 = vmatpush1.bf16.msra.mxu0 0
      %6976 = vmatprep.subr.bf16.mxu0 0
      %6977 = vmatpush1.bf16.msra.mxu0 0
      %6978 = vmatprep.subr.bf16.mxu0 0
      %6979 = vmatpush1.bf16.msra.mxu0 0
      %6980 = vmatprep.subr.bf16.mxu0 0
      %6981 = vmatpush1.bf16.msra.mxu0 0
      %6982 = vmatprep.subr.bf16.mxu0 0
      %6983 = vmatpush1.bf16.msra.mxu0 0
      %6984 = vmatprep.subr.bf16.mxu0 0
      %6985 = vmatpush1.bf16.msra.mxu0 0
      %6986 = vmatprep.subr.bf16.mxu0 0
      %6987 = vmatpush1.bf16.msra.mxu0 0
      %6988 = vmatprep.subr.bf16.mxu0 0
      %6989 = vmatpush1.bf16.msra.mxu0 0
      %6990 = vmatprep.subr.bf16.mxu0 0
      %6991 = vmatpush1.bf16.msra.mxu0 0
      %6992 = vmatprep.mubr.bf16.mxu0 0
      %6993 = vmatmul.mubr.bf16.gmra.mrb[0].mxu0 %v6956
      %v6994 = vpop.f32.mrb[0].mxu0
      %v6995 = vadd.f32 0.0, %v6994
      %v6996 = vpop.f32.mrb[0].mxu0
      %v6997 = vpop.f32.mrb[0].mxu0
      %v6998 = vpop.f32.mrb[0].mxu0
      %6999 = vdwg.mxu0
      %v7001 = vsel %vm4565, %v6748, 0
      %v7003 = vsel %vm5305, %v1626, 0
      %7005 = vmatprep.subr.bf16.mxu0 0
      %7006 = vmatpush1.bf16.msra.mxu0 %v7003
      %7007 = vmatprep.subr.bf16.mxu0 0
      %7008 = vmatpush1.bf16.msra.mxu0 0
      %7009 = vmatprep.subr.bf16.mxu0 0
      %7010 = vmatpush1.bf16.msra.mxu0 0
      %7011 = vmatprep.subr.bf16.mxu0 0
      %7012 = vmatpush1.bf16.msra.mxu0 0
      %7013 = vmatprep.subr.bf16.mxu0 0
      %7014 = vmatpush1.bf16.msra.mxu0 0
      %7015 = vmatprep.subr.bf16.mxu0 0
      %7016 = vmatpush1.bf16.msra.mxu0 0
      %7017 = vmatprep.subr.bf16.mxu0 0
      %7018 = vmatpush1.bf16.msra.mxu0 0
      %7019 = vmatprep.subr.bf16.mxu0 0
      %7020 = vmatpush1.bf16.msra.mxu0 0
      %7021 = vmatprep.subr.bf16.mxu0 0
      %7022 = vmatpush1.bf16.msra.mxu0 0
      %7023 = vmatprep.subr.bf16.mxu0 0
      %7024 = vmatpush1.bf16.msra.mxu0 0
      %7025 = vmatprep.subr.bf16.mxu0 0
      %7026 = vmatpush1.bf16.msra.mxu0 0
      %7027 = vmatprep.subr.bf16.mxu0 0
      %7028 = vmatpush1.bf16.msra.mxu0 0
      %7029 = vmatprep.subr.bf16.mxu0 0
      %7030 = vmatpush1.bf16.msra.mxu0 0
      %7031 = vmatprep.subr.bf16.mxu0 0
      %7032 = vmatpush1.bf16.msra.mxu0 0
      %7033 = vmatprep.subr.bf16.mxu0 0
      %7034 = vmatpush1.bf16.msra.mxu0 0
      %7035 = vmatprep.subr.bf16.mxu0 0
      %7036 = vmatpush1.bf16.msra.mxu0 0
      %7037 = vmatprep.mubr.bf16.mxu0 0
      %7038 = vmatmul.mubr.bf16.gmra.mrb[0].mxu0 %v7001
      %v7039 = vpop.f32.mrb[0].mxu0
      %v7040 = vadd.f32 0.0, %v7039
      %v7041 = vpop.f32.mrb[0].mxu0
      %v7042 = vpop.f32.mrb[0].mxu0
      %v7043 = vpop.f32.mrb[0].mxu0
      %7044 = vdwg.mxu0
      %v7046 = vsel %vm4565, %v6749, 0
      %v7048 = vsel %vm5305, %v1627, 0
      %7050 = vmatprep.subr.bf16.mxu0 0
      %7051 = vmatpush1.bf16.msra.mxu0 %v7048
      %7052 = vmatprep.subr.bf16.mxu0 0
      %7053 = vmatpush1.bf16.msra.mxu0 0
      %7054 = vmatprep.subr.bf16.mxu0 0
      %7055 = vmatpush1.bf16.msra.mxu0 0
      %7056 = vmatprep.subr.bf16.mxu0 0
      %7057 = vmatpush1.bf16.msra.mxu0 0
      %7058 = vmatprep.subr.bf16.mxu0 0
      %7059 = vmatpush1.bf16.msra.mxu0 0
      %7060 = vmatprep.subr.bf16.mxu0 0
      %7061 = vmatpush1.bf16.msra.mxu0 0
      %7062 = vmatprep.subr.bf16.mxu0 0
      %7063 = vmatpush1.bf16.msra.mxu0 0
      %7064 = vmatprep.subr.bf16.mxu0 0
      %7065 = vmatpush1.bf16.msra.mxu0 0
      %7066 = vmatprep.subr.bf16.mxu0 0
      %7067 = vmatpush1.bf16.msra.mxu0 0
      %7068 = vmatprep.subr.bf16.mxu0 0
      %7069 = vmatpush1.bf16.msra.mxu0 0
      %7070 = vmatprep.subr.bf16.mxu0 0
      %7071 = vmatpush1.bf16.msra.mxu0 0
      %7072 = vmatprep.subr.bf16.mxu0 0
      %7073 = vmatpush1.bf16.msra.mxu0 0
      %7074 = vmatprep.subr.bf16.mxu0 0
      %7075 = vmatpush1.bf16.msra.mxu0 0
      %7076 = vmatprep.subr.bf16.mxu0 0
      %7077 = vmatpush1.bf16.msra.mxu0 0
      %7078 = vmatprep.subr.bf16.mxu0 0
      %7079 = vmatpush1.bf16.msra.mxu0 0
      %7080 = vmatprep.subr.bf16.mxu0 0
      %7081 = vmatpush1.bf16.msra.mxu0 0
      %7082 = vmatprep.mubr.bf16.mxu0 0
      %7083 = vmatmul.mubr.bf16.gmra.mrb[0].mxu0 %v7046
      %v7084 = vpop.f32.mrb[0].mxu0
      %v7085 = vadd.f32 0.0, %v7084
      %v7086 = vpop.f32.mrb[0].mxu0
      %v7087 = vpop.f32.mrb[0].mxu0
      %v7088 = vpop.f32.mrb[0].mxu0
      %7089 = vdwg.mxu0
      %v7091 = vsel %vm4565, %v6750, 0
      %v7093 = vsel %vm5305, %v1628, 0
      %7095 = vmatprep.subr.bf16.mxu0 0
      %7096 = vmatpush1.bf16.msra.mxu0 %v7093
      %7097 = vmatprep.subr.bf16.mxu0 0
      %7098 = vmatpush1.bf16.msra.mxu0 0
      %7099 = vmatprep.subr.bf16.mxu0 0
      %7100 = vmatpush1.bf16.msra.mxu0 0
      %7101 = vmatprep.subr.bf16.mxu0 0
      %7102 = vmatpush1.bf16.msra.mxu0 0
      %7103 = vmatprep.subr.bf16.mxu0 0
      %7104 = vmatpush1.bf16.msra.mxu0 0
      %7105 = vmatprep.subr.bf16.mxu0 0
      %7106 = vmatpush1.bf16.msra.mxu0 0
      %7107 = vmatprep.subr.bf16.mxu0 0
      %7108 = vmatpush1.bf16.msra.mxu0 0
      %7109 = vmatprep.subr.bf16.mxu0 0
      %7110 = vmatpush1.bf16.msra.mxu0 0
      %7111 = vmatprep.subr.bf16.mxu0 0
      %7112 = vmatpush1.bf16.msra.mxu0 0
      %7113 = vmatprep.subr.bf16.mxu0 0
      %7114 = vmatpush1.bf16.msra.mxu0 0
      %7115 = vmatprep.subr.bf16.mxu0 0
      %7116 = vmatpush1.bf16.msra.mxu0 0
      %7117 = vmatprep.subr.bf16.mxu0 0
      %7118 = vmatpush1.bf16.msra.mxu0 0
      %7119 = vmatprep.subr.bf16.mxu0 0
      %7120 = vmatpush1.bf16.msra.mxu0 0
      %7121 = vmatprep.subr.bf16.mxu0 0
      %7122 = vmatpush1.bf16.msra.mxu0 0
      %7123 = vmatprep.subr.bf16.mxu0 0
      %7124 = vmatpush1.bf16.msra.mxu0 0
      %7125 = vmatprep.subr.bf16.mxu0 0
      %7126 = vmatpush1.bf16.msra.mxu0 0
      %7127 = vmatprep.mubr.bf16.mxu0 0
      %7128 = vmatmul.mubr.bf16.gmra.mrb[0].mxu0 %v7091
      %v7129 = vpop.f32.mrb[0].mxu0
      %v7130 = vadd.f32 0.0, %v7129
      %v7131 = vpop.f32.mrb[0].mxu0
      %v7132 = vpop.f32.mrb[0].mxu0
      %v7133 = vpop.f32.mrb[0].mxu0
      %7134 = vdwg.mxu0
      %v7136 = vsel %vm4565, %v6751, 0
      %v7138 = vsel %vm5305, %v1629, 0
      %7140 = vmatprep.subr.bf16.mxu0 0
      %7141 = vmatpush1.bf16.msra.mxu0 %v7138
      %7142 = vmatprep.subr.bf16.mxu0 0
      %7143 = vmatpush1.bf16.msra.mxu0 0
      %7144 = vmatprep.subr.bf16.mxu0 0
      %7145 = vmatpush1.bf16.msra.mxu0 0
      %7146 = vmatprep.subr.bf16.mxu0 0
      %7147 = vmatpush1.bf16.msra.mxu0 0
      %7148 = vmatprep.subr.bf16.mxu0 0
      %7149 = vmatpush1.bf16.msra.mxu0 0
      %7150 = vmatprep.subr.bf16.mxu0 0
      %7151 = vmatpush1.bf16.msra.mxu0 0
      %7152 = vmatprep.subr.bf16.mxu0 0
      %7153 = vmatpush1.bf16.msra.mxu0 0
      %7154 = vmatprep.subr.bf16.mxu0 0
      %7155 = vmatpush1.bf16.msra.mxu0 0
      %7156 = vmatprep.subr.bf16.mxu0 0
      %7157 = vmatpush1.bf16.msra.mxu0 0
      %7158 = vmatprep.subr.bf16.mxu0 0
      %7159 = vmatpush1.bf16.msra.mxu0 0
      %7160 = vmatprep.subr.bf16.mxu0 0
      %7161 = vmatpush1.bf16.msra.mxu0 0
      %7162 = vmatprep.subr.bf16.mxu0 0
      %7163 = vmatpush1.bf16.msra.mxu0 0
      %7164 = vmatprep.subr.bf16.mxu0 0
      %7165 = vmatpush1.bf16.msra.mxu0 0
      %7166 = vmatprep.subr.bf16.mxu0 0
      %7167 = vmatpush1.bf16.msra.mxu0 0
      %7168 = vmatprep.subr.bf16.mxu0 0
      %7169 = vmatpush1.bf16.msra.mxu0 0
      %7170 = vmatprep.subr.bf16.mxu0 0
      %7171 = vmatpush1.bf16.msra.mxu0 0
      %7172 = vmatprep.mubr.bf16.mxu0 0
      %7173 = vmatmul.mubr.bf16.gmra.mrb[0].mxu0 %v7136
      %v7174 = vpop.f32.mrb[0].mxu0
      %v7175 = vadd.f32 0.0, %v7174
      %v7176 = vpop.f32.mrb[0].mxu0
      %v7177 = vpop.f32.mrb[0].mxu0
      %v7178 = vpop.f32.mrb[0].mxu0
      %7179 = vdwg.mxu0
      %v7181 = vsel %vm4565, %v6752, 0
      %v7183 = vsel %vm5305, %v1630, 0
      %7185 = vmatprep.subr.bf16.mxu0 0
      %7186 = vmatpush1.bf16.msra.mxu0 %v7183
      %7187 = vmatprep.subr.bf16.mxu0 0
      %7188 = vmatpush1.bf16.msra.mxu0 0
      %7189 = vmatprep.subr.bf16.mxu0 0
      %7190 = vmatpush1.bf16.msra.mxu0 0
      %7191 = vmatprep.subr.bf16.mxu0 0
      %7192 = vmatpush1.bf16.msra.mxu0 0
      %7193 = vmatprep.subr.bf16.mxu0 0
      %7194 = vmatpush1.bf16.msra.mxu0 0
      %7195 = vmatprep.subr.bf16.mxu0 0
      %7196 = vmatpush1.bf16.msra.mxu0 0
      %7197 = vmatprep.subr.bf16.mxu0 0
      %7198 = vmatpush1.bf16.msra.mxu0 0
      %7199 = vmatprep.subr.bf16.mxu0 0
      %7200 = vmatpush1.bf16.msra.mxu0 0
      %7201 = vmatprep.subr.bf16.mxu0 0
      %7202 = vmatpush1.bf16.msra.mxu0 0
      %7203 = vmatprep.subr.bf16.mxu0 0
      %7204 = vmatpush1.bf16.msra.mxu0 0
      %7205 = vmatprep.subr.bf16.mxu0 0
      %7206 = vmatpush1.bf16.msra.mxu0 0
      %7207 = vmatprep.subr.bf16.mxu0 0
      %7208 = vmatpush1.bf16.msra.mxu0 0
      %7209 = vmatprep.subr.bf16.mxu0 0
      %7210 = vmatpush1.bf16.msra.mxu0 0
      %7211 = vmatprep.subr.bf16.mxu0 0
      %7212 = vmatpush1.bf16.msra.mxu0 0
      %7213 = vmatprep.subr.bf16.mxu0 0
      %7214 = vmatpush1.bf16.msra.mxu0 0
      %7215 = vmatprep.subr.bf16.mxu0 0
      %7216 = vmatpush1.bf16.msra.mxu0 0
      %7217 = vmatprep.mubr.bf16.mxu0 0
      %7218 = vmatmul.mubr.bf16.gmra.mrb[0].mxu0 %v7181
      %v7219 = vpop.f32.mrb[0].mxu0
      %v7220 = vadd.f32 0.0, %v7219
      %v7221 = vpop.f32.mrb[0].mxu0
      %v7222 = vpop.f32.mrb[0].mxu0
      %v7223 = vpop.f32.mrb[0].mxu0
      %7224 = vdwg.mxu0
      %v7226 = vsel %vm4565, %v6753, 0
      %v7228 = vsel %vm5305, %v1631, 0
      %7230 = vmatprep.subr.bf16.mxu0 0
      %7231 = vmatpush1.bf16.msra.mxu0 %v7228
      %7232 = vmatprep.subr.bf16.mxu0 0
      %7233 = vmatpush1.bf16.msra.mxu0 0
      %7234 = vmatprep.subr.bf16.mxu0 0
      %7235 = vmatpush1.bf16.msra.mxu0 0
      %7236 = vmatprep.subr.bf16.mxu0 0
      %7237 = vmatpush1.bf16.msra.mxu0 0
      %7238 = vmatprep.subr.bf16.mxu0 0
      %7239 = vmatpush1.bf16.msra.mxu0 0
      %7240 = vmatprep.subr.bf16.mxu0 0
      %7241 = vmatpush1.bf16.msra.mxu0 0
      %7242 = vmatprep.subr.bf16.mxu0 0
      %7243 = vmatpush1.bf16.msra.mxu0 0
      %7244 = vmatprep.subr.bf16.mxu0 0
      %7245 = vmatpush1.bf16.msra.mxu0 0
      %7246 = vmatprep.subr.bf16.mxu0 0
      %7247 = vmatpush1.bf16.msra.mxu0 0
      %7248 = vmatprep.subr.bf16.mxu0 0
      %7249 = vmatpush1.bf16.msra.mxu0 0
      %7250 = vmatprep.subr.bf16.mxu0 0
      %7251 = vmatpush1.bf16.msra.mxu0 0
      %7252 = vmatprep.subr.bf16.mxu0 0
      %7253 = vmatpush1.bf16.msra.mxu0 0
      %7254 = vmatprep.subr.bf16.mxu0 0
      %7255 = vmatpush1.bf16.msra.mxu0 0
      %7256 = vmatprep.subr.bf16.mxu0 0
      %7257 = vmatpush1.bf16.msra.mxu0 0
      %7258 = vmatprep.subr.bf16.mxu0 0
      %7259 = vmatpush1.bf16.msra.mxu0 0
      %7260 = vmatprep.subr.bf16.mxu0 0
      %7261 = vmatpush1.bf16.msra.mxu0 0
      %7262 = vmatprep.mubr.bf16.mxu0 0
      %7263 = vmatmul.mubr.bf16.gmra.mrb[0].mxu0 %v7226
      %v7264 = vpop.f32.mrb[0].mxu0
      %v7265 = vadd.f32 0.0, %v7264
      %v7266 = vpop.f32.mrb[0].mxu0
      %v7267 = vpop.f32.mrb[0].mxu0
      %v7268 = vpop.f32.mrb[0].mxu0
      %7269 = vdwg.mxu0
      %v7271 = vsel %vm4565, %v6754, 0
      %v7273 = vsel %vm5305, %v1632, 0
      %7275 = vmatprep.subr.bf16.mxu0 0
      %7276 = vmatpush1.bf16.msra.mxu0 %v7273
      %7277 = vmatprep.subr.bf16.mxu0 0
      %7278 = vmatpush1.bf16.msra.mxu0 0
      %7279 = vmatprep.subr.bf16.mxu0 0
      %7280 = vmatpush1.bf16.msra.mxu0 0
      %7281 = vmatprep.subr.bf16.mxu0 0
      %7282 = vmatpush1.bf16.msra.mxu0 0
      %7283 = vmatprep.subr.bf16.mxu0 0
      %7284 = vmatpush1.bf16.msra.mxu0 0
      %7285 = vmatprep.subr.bf16.mxu0 0
      %7286 = vmatpush1.bf16.msra.mxu0 0
      %7287 = vmatprep.subr.bf16.mxu0 0
      %7288 = vmatpush1.bf16.msra.mxu0 0
      %7289 = vmatprep.subr.bf16.mxu0 0
      %7290 = vmatpush1.bf16.msra.mxu0 0
      %7291 = vmatprep.subr.bf16.mxu0 0
      %7292 = vmatpush1.bf16.msra.mxu0 0
      %7293 = vmatprep.subr.bf16.mxu0 0
      %7294 = vmatpush1.bf16.msra.mxu0 0
      %7295 = vmatprep.subr.bf16.mxu0 0
      %7296 = vmatpush1.bf16.msra.mxu0 0
      %7297 = vmatprep.subr.bf16.mxu0 0
      %7298 = vmatpush1.bf16.msra.mxu0 0
      %7299 = vmatprep.subr.bf16.mxu0 0
      %7300 = vmatpush1.bf16.msra.mxu0 0
      %7301 = vmatprep.subr.bf16.mxu0 0
      %7302 = vmatpush1.bf16.msra.mxu0 0
      %7303 = vmatprep.subr.bf16.mxu0 0
      %7304 = vmatpush1.bf16.msra.mxu0 0
      %7305 = vmatprep.subr.bf16.mxu0 0
      %7306 = vmatpush1.bf16.msra.mxu0 0
      %7307 = vmatprep.mubr.bf16.mxu0 0
      %7308 = vmatmul.mubr.bf16.gmra.mrb[0].mxu0 %v7271
      %v7309 = vpop.f32.mrb[0].mxu0
      %v7310 = vadd.f32 0.0, %v7309
      %v7311 = vpop.f32.mrb[0].mxu0
      %v7312 = vpop.f32.mrb[0].mxu0
      %v7313 = vpop.f32.mrb[0].mxu0
      %7314 = vdwg.mxu0
      %v7316 = vsel %vm4565, %v6755, 0
      %v7318 = vsel %vm5305, %v1633, 0
      %7320 = vmatprep.subr.bf16.mxu0 0
      %7321 = vmatpush1.bf16.msra.mxu0 %v7318
      %7322 = vmatprep.subr.bf16.mxu0 0
      %7323 = vmatpush1.bf16.msra.mxu0 0
      %7324 = vmatprep.subr.bf16.mxu0 0
      %7325 = vmatpush1.bf16.msra.mxu0 0
      %7326 = vmatprep.subr.bf16.mxu0 0
      %7327 = vmatpush1.bf16.msra.mxu0 0
      %7328 = vmatprep.subr.bf16.mxu0 0
      %7329 = vmatpush1.bf16.msra.mxu0 0
      %7330 = vmatprep.subr.bf16.mxu0 0
      %7331 = vmatpush1.bf16.msra.mxu0 0
      %7332 = vmatprep.subr.bf16.mxu0 0
      %7333 = vmatpush1.bf16.msra.mxu0 0
      %7334 = vmatprep.subr.bf16.mxu0 0
      %7335 = vmatpush1.bf16.msra.mxu0 0
      %7336 = vmatprep.subr.bf16.mxu0 0
      %7337 = vmatpush1.bf16.msra.mxu0 0
      %7338 = vmatprep.subr.bf16.mxu0 0
      %7339 = vmatpush1.bf16.msra.mxu0 0
      %7340 = vmatprep.subr.bf16.mxu0 0
      %7341 = vmatpush1.bf16.msra.mxu0 0
      %7342 = vmatprep.subr.bf16.mxu0 0
      %7343 = vmatpush1.bf16.msra.mxu0 0
      %7344 = vmatprep.subr.bf16.mxu0 0
      %7345 = vmatpush1.bf16.msra.mxu0 0
      %7346 = vmatprep.subr.bf16.mxu0 0
      %7347 = vmatpush1.bf16.msra.mxu0 0
      %7348 = vmatprep.subr.bf16.mxu0 0
      %7349 = vmatpush1.bf16.msra.mxu0 0
      %7350 = vmatprep.subr.bf16.mxu0 0
      %7351 = vmatpush1.bf16.msra.mxu0 0
      %7352 = vmatprep.mubr.bf16.mxu0 0
      %7353 = vmatmul.mubr.bf16.gmra.mrb[0].mxu0 %v7316
      %v7354 = vpop.f32.mrb[0].mxu0
      %v7355 = vadd.f32 0.0, %v7354
      %v7356 = vpop.f32.mrb[0].mxu0
      %v7357 = vpop.f32.mrb[0].mxu0
      %v7358 = vpop.f32.mrb[0].mxu0
      %7359 = vdwg.mxu0
      %v7361 = vsel %vm4565, %v6756, 0
      %v7363 = vsel %vm5305, %v1634, 0
      %7365 = vmatprep.subr.bf16.mxu0 0
      %7366 = vmatpush1.bf16.msra.mxu0 %v7363
      %7367 = vmatprep.subr.bf16.mxu0 0
      %7368 = vmatpush1.bf16.msra.mxu0 0
      %7369 = vmatprep.subr.bf16.mxu0 0
      %7370 = vmatpush1.bf16.msra.mxu0 0
      %7371 = vmatprep.subr.bf16.mxu0 0
      %7372 = vmatpush1.bf16.msra.mxu0 0
      %7373 = vmatprep.subr.bf16.mxu0 0
      %7374 = vmatpush1.bf16.msra.mxu0 0
      %7375 = vmatprep.subr.bf16.mxu0 0
      %7376 = vmatpush1.bf16.msra.mxu0 0
      %7377 = vmatprep.subr.bf16.mxu0 0
      %7378 = vmatpush1.bf16.msra.mxu0 0
      %7379 = vmatprep.subr.bf16.mxu0 0
      %7380 = vmatpush1.bf16.msra.mxu0 0
      %7381 = vmatprep.subr.bf16.mxu0 0
      %7382 = vmatpush1.bf16.msra.mxu0 0
      %7383 = vmatprep.subr.bf16.mxu0 0
      %7384 = vmatpush1.bf16.msra.mxu0 0
      %7385 = vmatprep.subr.bf16.mxu0 0
      %7386 = vmatpush1.bf16.msra.mxu0 0
      %7387 = vmatprep.subr.bf16.mxu0 0
      %7388 = vmatpush1.bf16.msra.mxu0 0
      %7389 = vmatprep.subr.bf16.mxu0 0
      %7390 = vmatpush1.bf16.msra.mxu0 0
      %7391 = vmatprep.subr.bf16.mxu0 0
      %7392 = vmatpush1.bf16.msra.mxu0 0
      %7393 = vmatprep.subr.bf16.mxu0 0
      %7394 = vmatpush1.bf16.msra.mxu0 0
      %7395 = vmatprep.subr.bf16.mxu0 0
      %7396 = vmatpush1.bf16.msra.mxu0 0
      %7397 = vmatprep.mubr.bf16.mxu0 0
      %7398 = vmatmul.mubr.bf16.gmra.mrb[0].mxu0 %v7361
      %v7399 = vpop.f32.mrb[0].mxu0
      %v7400 = vadd.f32 0.0, %v7399
      %v7401 = vpop.f32.mrb[0].mxu0
      %v7402 = vpop.f32.mrb[0].mxu0
      %v7403 = vpop.f32.mrb[0].mxu0
      %7404 = vdwg.mxu0
      %v7406 = vsel %vm4565, %v6757, 0
      %v7408 = vsel %vm5305, %v1635, 0
      %7410 = vmatprep.subr.bf16.mxu0 0
      %7411 = vmatpush1.bf16.msra.mxu0 %v7408
      %7412 = vmatprep.subr.bf16.mxu0 0
      %7413 = vmatpush1.bf16.msra.mxu0 0
      %7414 = vmatprep.subr.bf16.mxu0 0
      %7415 = vmatpush1.bf16.msra.mxu0 0
      %7416 = vmatprep.subr.bf16.mxu0 0
      %7417 = vmatpush1.bf16.msra.mxu0 0
      %7418 = vmatprep.subr.bf16.mxu0 0
      %7419 = vmatpush1.bf16.msra.mxu0 0
      %7420 = vmatprep.subr.bf16.mxu0 0
      %7421 = vmatpush1.bf16.msra.mxu0 0
      %7422 = vmatprep.subr.bf16.mxu0 0
      %7423 = vmatpush1.bf16.msra.mxu0 0
      %7424 = vmatprep.subr.bf16.mxu0 0
      %7425 = vmatpush1.bf16.msra.mxu0 0
      %7426 = vmatprep.subr.bf16.mxu0 0
      %7427 = vmatpush1.bf16.msra.mxu0 0
      %7428 = vmatprep.subr.bf16.mxu0 0
      %7429 = vmatpush1.bf16.msra.mxu0 0
      %7430 = vmatprep.subr.bf16.mxu0 0
      %7431 = vmatpush1.bf16.msra.mxu0 0
      %7432 = vmatprep.subr.bf16.mxu0 0
      %7433 = vmatpush1.bf16.msra.mxu0 0
      %7434 = vmatprep.subr.bf16.mxu0 0
      %7435 = vmatpush1.bf16.msra.mxu0 0
      %7436 = vmatprep.subr.bf16.mxu0 0
      %7437 = vmatpush1.bf16.msra.mxu0 0
      %7438 = vmatprep.subr.bf16.mxu0 0
      %7439 = vmatpush1.bf16.msra.mxu0 0
      %7440 = vmatprep.subr.bf16.mxu0 0
      %7441 = vmatpush1.bf16.msra.mxu0 0
      %7442 = vmatprep.mubr.bf16.mxu0 0
      %7443 = vmatmul.mubr.bf16.gmra.mrb[0].mxu0 %v7406
      %v7444 = vpop.f32.mrb[0].mxu0
      %v7445 = vadd.f32 0.0, %v7444
      %v7446 = vpop.f32.mrb[0].mxu0
      %v7447 = vpop.f32.mrb[0].mxu0
      %v7448 = vpop.f32.mrb[0].mxu0
      %7449 = vdwg.mxu0
      %v7451 = vsel %vm4565, %v6758, 0
      %v7453 = vsel %vm5305, %v1636, 0
      %7455 = vmatprep.subr.bf16.mxu0 0
      %7456 = vmatpush1.bf16.msra.mxu0 %v7453
      %7457 = vmatprep.subr.bf16.mxu0 0
      %7458 = vmatpush1.bf16.msra.mxu0 0
      %7459 = vmatprep.subr.bf16.mxu0 0
      %7460 = vmatpush1.bf16.msra.mxu0 0
      %7461 = vmatprep.subr.bf16.mxu0 0
      %7462 = vmatpush1.bf16.msra.mxu0 0
      %7463 = vmatprep.subr.bf16.mxu0 0
      %7464 = vmatpush1.bf16.msra.mxu0 0
      %7465 = vmatprep.subr.bf16.mxu0 0
      %7466 = vmatpush1.bf16.msra.mxu0 0
      %7467 = vmatprep.subr.bf16.mxu0 0
      %7468 = vmatpush1.bf16.msra.mxu0 0
      %7469 = vmatprep.subr.bf16.mxu0 0
      %7470 = vmatpush1.bf16.msra.mxu0 0
      %7471 = vmatprep.subr.bf16.mxu0 0
      %7472 = vmatpush1.bf16.msra.mxu0 0
      %7473 = vmatprep.subr.bf16.mxu0 0
      %7474 = vmatpush1.bf16.msra.mxu0 0
      %7475 = vmatprep.subr.bf16.mxu0 0
      %7476 = vmatpush1.bf16.msra.mxu0 0
      %7477 = vmatprep.subr.bf16.mxu0 0
      %7478 = vmatpush1.bf16.msra.mxu0 0
      %7479 = vmatprep.subr.bf16.mxu0 0
      %7480 = vmatpush1.bf16.msra.mxu0 0
      %7481 = vmatprep.subr.bf16.mxu0 0
      %7482 = vmatpush1.bf16.msra.mxu0 0
      %7483 = vmatprep.subr.bf16.mxu0 0
      %7484 = vmatpush1.bf16.msra.mxu0 0
      %7485 = vmatprep.subr.bf16.mxu0 0
      %7486 = vmatpush1.bf16.msra.mxu0 0
      %7487 = vmatprep.mubr.bf16.mxu0 0
      %7488 = vmatmul.mubr.bf16.gmra.mrb[0].mxu0 %v7451
      %v7489 = vpop.f32.mrb[0].mxu0
      %v7490 = vadd.f32 0.0, %v7489
      %v7491 = vpop.f32.mrb[0].mxu0
      %v7492 = vpop.f32.mrb[0].mxu0
      %v7493 = vpop.f32.mrb[0].mxu0
      %7494 = vdwg.mxu0
      %v7496 = vsel %vm4565, %v6759, 0
      %v7498 = vsel %vm5305, %v1637, 0
      %7500 = vmatprep.subr.bf16.mxu0 0
      %7501 = vmatpush1.bf16.msra.mxu0 %v7498
      %7502 = vmatprep.subr.bf16.mxu0 0
      %7503 = vmatpush1.bf16.msra.mxu0 0
      %7504 = vmatprep.subr.bf16.mxu0 0
      %7505 = vmatpush1.bf16.msra.mxu0 0
      %7506 = vmatprep.subr.bf16.mxu0 0
      %7507 = vmatpush1.bf16.msra.mxu0 0
      %7508 = vmatprep.subr.bf16.mxu0 0
      %7509 = vmatpush1.bf16.msra.mxu0 0
      %7510 = vmatprep.subr.bf16.mxu0 0
      %7511 = vmatpush1.bf16.msra.mxu0 0
      %7512 = vmatprep.subr.bf16.mxu0 0
      %7513 = vmatpush1.bf16.msra.mxu0 0
      %7514 = vmatprep.subr.bf16.mxu0 0
      %7515 = vmatpush1.bf16.msra.mxu0 0
      %7516 = vmatprep.subr.bf16.mxu0 0
      %7517 = vmatpush1.bf16.msra.mxu0 0
      %7518 = vmatprep.subr.bf16.mxu0 0
      %7519 = vmatpush1.bf16.msra.mxu0 0
      %7520 = vmatprep.subr.bf16.mxu0 0
      %7521 = vmatpush1.bf16.msra.mxu0 0
      %7522 = vmatprep.subr.bf16.mxu0 0
      %7523 = vmatpush1.bf16.msra.mxu0 0
      %7524 = vmatprep.subr.bf16.mxu0 0
      %7525 = vmatpush1.bf16.msra.mxu0 0
      %7526 = vmatprep.subr.bf16.mxu0 0
      %7527 = vmatpush1.bf16.msra.mxu0 0
      %7528 = vmatprep.subr.bf16.mxu0 0
      %7529 = vmatpush1.bf16.msra.mxu0 0
      %7530 = vmatprep.subr.bf16.mxu0 0
      %7531 = vmatpush1.bf16.msra.mxu0 0
      %7532 = vmatprep.mubr.bf16.mxu0 0
      %7533 = vmatmul.mubr.bf16.gmra.mrb[0].mxu0 %v7496
      %v7534 = vpop.f32.mrb[0].mxu0
      %v7535 = vadd.f32 0.0, %v7534
      %v7536 = vpop.f32.mrb[0].mxu0
      %v7537 = vpop.f32.mrb[0].mxu0
      %v7538 = vpop.f32.mrb[0].mxu0
      %7539 = vdwg.mxu0
      %v7541 = vsel %vm4565, %v6760, 0
      %v7543 = vsel %vm5305, %v1638, 0
      %7545 = vmatprep.subr.bf16.mxu0 0
      %7546 = vmatpush1.bf16.msra.mxu0 %v7543
      %7547 = vmatprep.subr.bf16.mxu0 0
      %7548 = vmatpush1.bf16.msra.mxu0 0
      %7549 = vmatprep.subr.bf16.mxu0 0
      %7550 = vmatpush1.bf16.msra.mxu0 0
      %7551 = vmatprep.subr.bf16.mxu0 0
      %7552 = vmatpush1.bf16.msra.mxu0 0
      %7553 = vmatprep.subr.bf16.mxu0 0
      %7554 = vmatpush1.bf16.msra.mxu0 0
      %7555 = vmatprep.subr.bf16.mxu0 0
      %7556 = vmatpush1.bf16.msra.mxu0 0
      %7557 = vmatprep.subr.bf16.mxu0 0
      %7558 = vmatpush1.bf16.msra.mxu0 0
      %7559 = vmatprep.subr.bf16.mxu0 0
      %7560 = vmatpush1.bf16.msra.mxu0 0
      %7561 = vmatprep.subr.bf16.mxu0 0
      %7562 = vmatpush1.bf16.msra.mxu0 0
      %7563 = vmatprep.subr.bf16.mxu0 0
      %7564 = vmatpush1.bf16.msra.mxu0 0
      %7565 = vmatprep.subr.bf16.mxu0 0
      %7566 = vmatpush1.bf16.msra.mxu0 0
      %7567 = vmatprep.subr.bf16.mxu0 0
      %7568 = vmatpush1.bf16.msra.mxu0 0
      %7569 = vmatprep.subr.bf16.mxu0 0
      %7570 = vmatpush1.bf16.msra.mxu0 0
      %7571 = vmatprep.subr.bf16.mxu0 0
      %7572 = vmatpush1.bf16.msra.mxu0 0
      %7573 = vmatprep.subr.bf16.mxu0 0
      %7574 = vmatpush1.bf16.msra.mxu0 0
      %7575 = vmatprep.subr.bf16.mxu0 0
      %7576 = vmatpush1.bf16.msra.mxu0 0
      %7577 = vmatprep.mubr.bf16.mxu0 0
      %7578 = vmatmul.mubr.bf16.gmra.mrb[0].mxu0 %v7541
      %v7579 = vpop.f32.mrb[0].mxu0
      %v7580 = vadd.f32 0.0, %v7579
      %v7581 = vpop.f32.mrb[0].mxu0
      %v7582 = vpop.f32.mrb[0].mxu0
      %v7583 = vpop.f32.mrb[0].mxu0
      %7584 = vdwg.mxu0
      %v7586 = vsel %vm4565, %v6761, 0
      %v7588 = vsel %vm5305, %v1639, 0
      %7590 = vmatprep.subr.bf16.mxu0 0
      %7591 = vmatpush1.bf16.msra.mxu0 %v7588
      %7592 = vmatprep.subr.bf16.mxu0 0
      %7593 = vmatpush1.bf16.msra.mxu0 0
      %7594 = vmatprep.subr.bf16.mxu0 0
      %7595 = vmatpush1.bf16.msra.mxu0 0
      %7596 = vmatprep.subr.bf16.mxu0 0
      %7597 = vmatpush1.bf16.msra.mxu0 0
      %7598 = vmatprep.subr.bf16.mxu0 0
      %7599 = vmatpush1.bf16.msra.mxu0 0
      %7600 = vmatprep.subr.bf16.mxu0 0
      %7601 = vmatpush1.bf16.msra.mxu0 0
      %7602 = vmatprep.subr.bf16.mxu0 0
      %7603 = vmatpush1.bf16.msra.mxu0 0
      %7604 = vmatprep.subr.bf16.mxu0 0
      %7605 = vmatpush1.bf16.msra.mxu0 0
      %7606 = vmatprep.subr.bf16.mxu0 0
      %7607 = vmatpush1.bf16.msra.mxu0 0
      %7608 = vmatprep.subr.bf16.mxu0 0
      %7609 = vmatpush1.bf16.msra.mxu0 0
      %7610 = vmatprep.subr.bf16.mxu0 0
      %7611 = vmatpush1.bf16.msra.mxu0 0
      %7612 = vmatprep.subr.bf16.mxu0 0
      %7613 = vmatpush1.bf16.msra.mxu0 0
      %7614 = vmatprep.subr.bf16.mxu0 0
      %7615 = vmatpush1.bf16.msra.mxu0 0
      %7616 = vmatprep.subr.bf16.mxu0 0
      %7617 = vmatpush1.bf16.msra.mxu0 0
      %7618 = vmatprep.subr.bf16.mxu0 0
      %7619 = vmatpush1.bf16.msra.mxu0 0
      %7620 = vmatprep.subr.bf16.mxu0 0
      %7621 = vmatpush1.bf16.msra.mxu0 0
      %7622 = vmatprep.mubr.bf16.mxu0 0
      %7623 = vmatmul.mubr.bf16.gmra.mrb[0].mxu0 %v7586
      %v7624 = vpop.f32.mrb[0].mxu0
      %v7625 = vadd.f32 0.0, %v7624
      %v7626 = vpop.f32.mrb[0].mxu0
      %v7627 = vpop.f32.mrb[0].mxu0
      %v7628 = vpop.f32.mrb[0].mxu0
      %7629 = vdwg.mxu0
      %v7631 = vsel %vm4565, %v6762, 0
      %v7633 = vsel %vm5305, %v1640, 0
      %7635 = vmatprep.subr.bf16.mxu0 0
      %7636 = vmatpush1.bf16.msra.mxu0 %v7633
      %7637 = vmatprep.subr.bf16.mxu0 0
      %7638 = vmatpush1.bf16.msra.mxu0 0
      %7639 = vmatprep.subr.bf16.mxu0 0
      %7640 = vmatpush1.bf16.msra.mxu0 0
      %7641 = vmatprep.subr.bf16.mxu0 0
      %7642 = vmatpush1.bf16.msra.mxu0 0
      %7643 = vmatprep.subr.bf16.mxu0 0
      %7644 = vmatpush1.bf16.msra.mxu0 0
      %7645 = vmatprep.subr.bf16.mxu0 0
      %7646 = vmatpush1.bf16.msra.mxu0 0
      %7647 = vmatprep.subr.bf16.mxu0 0
      %7648 = vmatpush1.bf16.msra.mxu0 0
      %7649 = vmatprep.subr.bf16.mxu0 0
      %7650 = vmatpush1.bf16.msra.mxu0 0
      %7651 = vmatprep.subr.bf16.mxu0 0
      %7652 = vmatpush1.bf16.msra.mxu0 0
      %7653 = vmatprep.subr.bf16.mxu0 0
      %7654 = vmatpush1.bf16.msra.mxu0 0
      %7655 = vmatprep.subr.bf16.mxu0 0
      %7656 = vmatpush1.bf16.msra.mxu0 0
      %7657 = vmatprep.subr.bf16.mxu0 0
      %7658 = vmatpush1.bf16.msra.mxu0 0
      %7659 = vmatprep.subr.bf16.mxu0 0
      %7660 = vmatpush1.bf16.msra.mxu0 0
      %7661 = vmatprep.subr.bf16.mxu0 0
      %7662 = vmatpush1.bf16.msra.mxu0 0
      %7663 = vmatprep.subr.bf16.mxu0 0
      %7664 = vmatpush1.bf16.msra.mxu0 0
      %7665 = vmatprep.subr.bf16.mxu0 0
      %7666 = vmatpush1.bf16.msra.mxu0 0
      %7667 = vmatprep.mubr.bf16.mxu0 0
      %7668 = vmatmul.mubr.bf16.gmra.mrb[0].mxu0 %v7631
      %v7669 = vpop.f32.mrb[0].mxu0
      %v7670 = vadd.f32 0.0, %v7669
      %v7671 = vpop.f32.mrb[0].mxu0
      %v7672 = vpop.f32.mrb[0].mxu0
      %v7673 = vpop.f32.mrb[0].mxu0
      %7674 = vdwg.mxu0
      %v7676 = vsel %vm4565, %v6763, 0
      %v7678 = vsel %vm5305, %v1641, 0
      %7680 = vmatprep.subr.bf16.mxu0 0
      %7681 = vmatpush1.bf16.msra.mxu0 %v7678
      %7682 = vmatprep.subr.bf16.mxu0 0
      %7683 = vmatpush1.bf16.msra.mxu0 0
      %7684 = vmatprep.subr.bf16.mxu0 0
      %7685 = vmatpush1.bf16.msra.mxu0 0
      %7686 = vmatprep.subr.bf16.mxu0 0
      %7687 = vmatpush1.bf16.msra.mxu0 0
      %7688 = vmatprep.subr.bf16.mxu0 0
      %7689 = vmatpush1.bf16.msra.mxu0 0
      %7690 = vmatprep.subr.bf16.mxu0 0
      %7691 = vmatpush1.bf16.msra.mxu0 0
      %7692 = vmatprep.subr.bf16.mxu0 0
      %7693 = vmatpush1.bf16.msra.mxu0 0
      %7694 = vmatprep.subr.bf16.mxu0 0
      %7695 = vmatpush1.bf16.msra.mxu0 0
      %7696 = vmatprep.subr.bf16.mxu0 0
      %7697 = vmatpush1.bf16.msra.mxu0 0
      %7698 = vmatprep.subr.bf16.mxu0 0
      %7699 = vmatpush1.bf16.msra.mxu0 0
      %7700 = vmatprep.subr.bf16.mxu0 0
      %7701 = vmatpush1.bf16.msra.mxu0 0
      %7702 = vmatprep.subr.bf16.mxu0 0
      %7703 = vmatpush1.bf16.msra.mxu0 0
      %7704 = vmatprep.subr.bf16.mxu0 0
      %7705 = vmatpush1.bf16.msra.mxu0 0
      %7706 = vmatprep.subr.bf16.mxu0 0
      %7707 = vmatpush1.bf16.msra.mxu0 0
      %7708 = vmatprep.subr.bf16.mxu0 0
      %7709 = vmatpush1.bf16.msra.mxu0 0
      %7710 = vmatprep.subr.bf16.mxu0 0
      %7711 = vmatpush1.bf16.msra.mxu0 0
      %7712 = vmatprep.mubr.bf16.mxu0 0
      %7713 = vmatmul.mubr.bf16.gmra.mrb[0].mxu0 %v7676
      %v7714 = vpop.f32.mrb[0].mxu0
      %v7715 = vadd.f32 0.0, %v7714
      %v7716 = vpop.f32.mrb[0].mxu0
      %v7717 = vpop.f32.mrb[0].mxu0
      %v7718 = vpop.f32.mrb[0].mxu0
      %7719 = vdwg.mxu0
      %v7721 = vsel %vm4565, %v6764, 0
      %v7723 = vsel %vm5305, %v1642, 0
      %7725 = vmatprep.subr.bf16.mxu0 0
      %7726 = vmatpush1.bf16.msra.mxu0 %v7723
      %7727 = vmatprep.subr.bf16.mxu0 0
      %7728 = vmatpush1.bf16.msra.mxu0 0
      %7729 = vmatprep.subr.bf16.mxu0 0
      %7730 = vmatpush1.bf16.msra.mxu0 0
      %7731 = vmatprep.subr.bf16.mxu0 0
      %7732 = vmatpush1.bf16.msra.mxu0 0
      %7733 = vmatprep.subr.bf16.mxu0 0
      %7734 = vmatpush1.bf16.msra.mxu0 0
      %7735 = vmatprep.subr.bf16.mxu0 0
      %7736 = vmatpush1.bf16.msra.mxu0 0
      %7737 = vmatprep.subr.bf16.mxu0 0
      %7738 = vmatpush1.bf16.msra.mxu0 0
      %7739 = vmatprep.subr.bf16.mxu0 0
      %7740 = vmatpush1.bf16.msra.mxu0 0
      %7741 = vmatprep.subr.bf16.mxu0 0
      %7742 = vmatpush1.bf16.msra.mxu0 0
      %7743 = vmatprep.subr.bf16.mxu0 0
      %7744 = vmatpush1.bf16.msra.mxu0 0
      %7745 = vmatprep.subr.bf16.mxu0 0
      %7746 = vmatpush1.bf16.msra.mxu0 0
      %7747 = vmatprep.subr.bf16.mxu0 0
      %7748 = vmatpush1.bf16.msra.mxu0 0
      %7749 = vmatprep.subr.bf16.mxu0 0
      %7750 = vmatpush1.bf16.msra.mxu0 0
      %7751 = vmatprep.subr.bf16.mxu0 0
      %7752 = vmatpush1.bf16.msra.mxu0 0
      %7753 = vmatprep.subr.bf16.mxu0 0
      %7754 = vmatpush1.bf16.msra.mxu0 0
      %7755 = vmatprep.subr.bf16.mxu0 0
      %7756 = vmatpush1.bf16.msra.mxu0 0
      %7757 = vmatprep.mubr.bf16.mxu0 0
      %7758 = vmatmul.mubr.bf16.gmra.mrb[0].mxu0 %v7721
      %v7759 = vpop.f32.mrb[0].mxu0
      %v7760 = vadd.f32 0.0, %v7759
      %v7761 = vpop.f32.mrb[0].mxu0
      %v7762 = vpop.f32.mrb[0].mxu0
      %v7763 = vpop.f32.mrb[0].mxu0
      %7764 = vdwg.mxu0
      %v7766 = vsel %vm4565, %v6765, 0
      %v7768 = vsel %vm5305, %v1643, 0
      %7770 = vmatprep.subr.bf16.mxu0 0
      %7771 = vmatpush1.bf16.msra.mxu0 %v7768
      %7772 = vmatprep.subr.bf16.mxu0 0
      %7773 = vmatpush1.bf16.msra.mxu0 0
      %7774 = vmatprep.subr.bf16.mxu0 0
      %7775 = vmatpush1.bf16.msra.mxu0 0
      %7776 = vmatprep.subr.bf16.mxu0 0
      %7777 = vmatpush1.bf16.msra.mxu0 0
      %7778 = vmatprep.subr.bf16.mxu0 0
      %7779 = vmatpush1.bf16.msra.mxu0 0
      %7780 = vmatprep.subr.bf16.mxu0 0
      %7781 = vmatpush1.bf16.msra.mxu0 0
      %7782 = vmatprep.subr.bf16.mxu0 0
      %7783 = vmatpush1.bf16.msra.mxu0 0
      %7784 = vmatprep.subr.bf16.mxu0 0
      %7785 = vmatpush1.bf16.msra.mxu0 0
      %7786 = vmatprep.subr.bf16.mxu0 0
      %7787 = vmatpush1.bf16.msra.mxu0 0
      %7788 = vmatprep.subr.bf16.mxu0 0
      %7789 = vmatpush1.bf16.msra.mxu0 0
      %7790 = vmatprep.subr.bf16.mxu0 0
      %7791 = vmatpush1.bf16.msra.mxu0 0
      %7792 = vmatprep.subr.bf16.mxu0 0
      %7793 = vmatpush1.bf16.msra.mxu0 0
      %7794 = vmatprep.subr.bf16.mxu0 0
      %7795 = vmatpush1.bf16.msra.mxu0 0
      %7796 = vmatprep.subr.bf16.mxu0 0
      %7797 = vmatpush1.bf16.msra.mxu0 0
      %7798 = vmatprep.subr.bf16.mxu0 0
      %7799 = vmatpush1.bf16.msra.mxu0 0
      %7800 = vmatprep.subr.bf16.mxu0 0
      %7801 = vmatpush1.bf16.msra.mxu0 0
      %7802 = vmatprep.mubr.bf16.mxu0 0
      %7803 = vmatmul.mubr.bf16.gmra.mrb[0].mxu0 %v7766
      %v7804 = vpop.f32.mrb[0].mxu0
      %v7805 = vadd.f32 0.0, %v7804
      %v7806 = vpop.f32.mrb[0].mxu0
      %v7807 = vpop.f32.mrb[0].mxu0
      %v7808 = vpop.f32.mrb[0].mxu0
      %7809 = vdwg.mxu0
      %v7811 = vsel %vm4565, %v6766, 0
      %v7813 = vsel %vm5305, %v1644, 0
      %7815 = vmatprep.subr.bf16.mxu0 0
      %7816 = vmatpush1.bf16.msra.mxu0 %v7813
      %7817 = vmatprep.subr.bf16.mxu0 0
      %7818 = vmatpush1.bf16.msra.mxu0 0
      %7819 = vmatprep.subr.bf16.mxu0 0
      %7820 = vmatpush1.bf16.msra.mxu0 0
      %7821 = vmatprep.subr.bf16.mxu0 0
      %7822 = vmatpush1.bf16.msra.mxu0 0
      %7823 = vmatprep.subr.bf16.mxu0 0
      %7824 = vmatpush1.bf16.msra.mxu0 0
      %7825 = vmatprep.subr.bf16.mxu0 0
      %7826 = vmatpush1.bf16.msra.mxu0 0
      %7827 = vmatprep.subr.bf16.mxu0 0
      %7828 = vmatpush1.bf16.msra.mxu0 0
      %7829 = vmatprep.subr.bf16.mxu0 0
      %7830 = vmatpush1.bf16.msra.mxu0 0
      %7831 = vmatprep.subr.bf16.mxu0 0
      %7832 = vmatpush1.bf16.msra.mxu0 0
      %7833 = vmatprep.subr.bf16.mxu0 0
      %7834 = vmatpush1.bf16.msra.mxu0 0
      %7835 = vmatprep.subr.bf16.mxu0 0
      %7836 = vmatpush1.bf16.msra.mxu0 0
      %7837 = vmatprep.subr.bf16.mxu0 0
      %7838 = vmatpush1.bf16.msra.mxu0 0
      %7839 = vmatprep.subr.bf16.mxu0 0
      %7840 = vmatpush1.bf16.msra.mxu0 0
      %7841 = vmatprep.subr.bf16.mxu0 0
      %7842 = vmatpush1.bf16.msra.mxu0 0
      %7843 = vmatprep.subr.bf16.mxu0 0
      %7844 = vmatpush1.bf16.msra.mxu0 0
      %7845 = vmatprep.subr.bf16.mxu0 0
      %7846 = vmatpush1.bf16.msra.mxu0 0
      %7847 = vmatprep.mubr.bf16.mxu0 0
      %7848 = vmatmul.mubr.bf16.gmra.mrb[0].mxu0 %v7811
      %v7849 = vpop.f32.mrb[0].mxu0
      %v7850 = vadd.f32 0.0, %v7849
      %v7851 = vpop.f32.mrb[0].mxu0
      %v7852 = vpop.f32.mrb[0].mxu0
      %v7853 = vpop.f32.mrb[0].mxu0
      %7854 = vdwg.mxu0
      %v7856 = vsel %vm4565, %v6767, 0
      %v7858 = vsel %vm5305, %v1645, 0
      %7860 = vmatprep.subr.bf16.mxu0 0
      %7861 = vmatpush1.bf16.msra.mxu0 %v7858
      %7862 = vmatprep.subr.bf16.mxu0 0
      %7863 = vmatpush1.bf16.msra.mxu0 0
      %7864 = vmatprep.subr.bf16.mxu0 0
      %7865 = vmatpush1.bf16.msra.mxu0 0
      %7866 = vmatprep.subr.bf16.mxu0 0
      %7867 = vmatpush1.bf16.msra.mxu0 0
      %7868 = vmatprep.subr.bf16.mxu0 0
      %7869 = vmatpush1.bf16.msra.mxu0 0
      %7870 = vmatprep.subr.bf16.mxu0 0
      %7871 = vmatpush1.bf16.msra.mxu0 0
      %7872 = vmatprep.subr.bf16.mxu0 0
      %7873 = vmatpush1.bf16.msra.mxu0 0
      %7874 = vmatprep.subr.bf16.mxu0 0
      %7875 = vmatpush1.bf16.msra.mxu0 0
      %7876 = vmatprep.subr.bf16.mxu0 0
      %7877 = vmatpush1.bf16.msra.mxu0 0
      %7878 = vmatprep.subr.bf16.mxu0 0
      %7879 = vmatpush1.bf16.msra.mxu0 0
      %7880 = vmatprep.subr.bf16.mxu0 0
      %7881 = vmatpush1.bf16.msra.mxu0 0
      %7882 = vmatprep.subr.bf16.mxu0 0
      %7883 = vmatpush1.bf16.msra.mxu0 0
      %7884 = vmatprep.subr.bf16.mxu0 0
      %7885 = vmatpush1.bf16.msra.mxu0 0
      %7886 = vmatprep.subr.bf16.mxu0 0
      %7887 = vmatpush1.bf16.msra.mxu0 0
      %7888 = vmatprep.subr.bf16.mxu0 0
      %7889 = vmatpush1.bf16.msra.mxu0 0
      %7890 = vmatprep.subr.bf16.mxu0 0
      %7891 = vmatpush1.bf16.msra.mxu0 0
      %7892 = vmatprep.mubr.bf16.mxu0 0
      %7893 = vmatmul.mubr.bf16.gmra.mrb[0].mxu0 %v7856
      %v7894 = vpop.f32.mrb[0].mxu0
      %v7895 = vadd.f32 0.0, %v7894
      %v7896 = vpop.f32.mrb[0].mxu0
      %v7897 = vpop.f32.mrb[0].mxu0
      %v7898 = vpop.f32.mrb[0].mxu0
      %7899 = vdwg.mxu0
      %v7901 = vsel %vm4565, %v6768, 0
      %v7903 = vsel %vm5305, %v1646, 0
      %7905 = vmatprep.subr.bf16.mxu0 0
      %7906 = vmatpush1.bf16.msra.mxu0 %v7903
      %7907 = vmatprep.subr.bf16.mxu0 0
      %7908 = vmatpush1.bf16.msra.mxu0 0
      %7909 = vmatprep.subr.bf16.mxu0 0
      %7910 = vmatpush1.bf16.msra.mxu0 0
      %7911 = vmatprep.subr.bf16.mxu0 0
      %7912 = vmatpush1.bf16.msra.mxu0 0
      %7913 = vmatprep.subr.bf16.mxu0 0
      %7914 = vmatpush1.bf16.msra.mxu0 0
      %7915 = vmatprep.subr.bf16.mxu0 0
      %7916 = vmatpush1.bf16.msra.mxu0 0
      %7917 = vmatprep.subr.bf16.mxu0 0
      %7918 = vmatpush1.bf16.msra.mxu0 0
      %7919 = vmatprep.subr.bf16.mxu0 0
      %7920 = vmatpush1.bf16.msra.mxu0 0
      %7921 = vmatprep.subr.bf16.mxu0 0
      %7922 = vmatpush1.bf16.msra.mxu0 0
      %7923 = vmatprep.subr.bf16.mxu0 0
      %7924 = vmatpush1.bf16.msra.mxu0 0
      %7925 = vmatprep.subr.bf16.mxu0 0
      %7926 = vmatpush1.bf16.msra.mxu0 0
      %7927 = vmatprep.subr.bf16.mxu0 0
      %7928 = vmatpush1.bf16.msra.mxu0 0
      %7929 = vmatprep.subr.bf16.mxu0 0
      %7930 = vmatpush1.bf16.msra.mxu0 0
      %7931 = vmatprep.subr.bf16.mxu0 0
      %7932 = vmatpush1.bf16.msra.mxu0 0
      %7933 = vmatprep.subr.bf16.mxu0 0
      %7934 = vmatpush1.bf16.msra.mxu0 0
      %7935 = vmatprep.subr.bf16.mxu0 0
      %7936 = vmatpush1.bf16.msra.mxu0 0
      %7937 = vmatprep.mubr.bf16.mxu0 0
      %7938 = vmatmul.mubr.bf16.gmra.mrb[0].mxu0 %v7901
      %v7939 = vpop.f32.mrb[0].mxu0
      %v7940 = vadd.f32 0.0, %v7939
      %v7941 = vpop.f32.mrb[0].mxu0
      %v7942 = vpop.f32.mrb[0].mxu0
      %v7943 = vpop.f32.mrb[0].mxu0
      %7944 = vdwg.mxu0
      %v7946 = vsel %vm4565, %v6769, 0
      %v7948 = vsel %vm5305, %v1647, 0
      %7950 = vmatprep.subr.bf16.mxu0 0
      %7951 = vmatpush1.bf16.msra.mxu0 %v7948
      %7952 = vmatprep.subr.bf16.mxu0 0
      %7953 = vmatpush1.bf16.msra.mxu0 0
      %7954 = vmatprep.subr.bf16.mxu0 0
      %7955 = vmatpush1.bf16.msra.mxu0 0
      %7956 = vmatprep.subr.bf16.mxu0 0
      %7957 = vmatpush1.bf16.msra.mxu0 0
      %7958 = vmatprep.subr.bf16.mxu0 0
      %7959 = vmatpush1.bf16.msra.mxu0 0
      %7960 = vmatprep.subr.bf16.mxu0 0
      %7961 = vmatpush1.bf16.msra.mxu0 0
      %7962 = vmatprep.subr.bf16.mxu0 0
      %7963 = vmatpush1.bf16.msra.mxu0 0
      %7964 = vmatprep.subr.bf16.mxu0 0
      %7965 = vmatpush1.bf16.msra.mxu0 0
      %7966 = vmatprep.subr.bf16.mxu0 0
      %7967 = vmatpush1.bf16.msra.mxu0 0
      %7968 = vmatprep.subr.bf16.mxu0 0
      %7969 = vmatpush1.bf16.msra.mxu0 0
      %7970 = vmatprep.subr.bf16.mxu0 0
      %7971 = vmatpush1.bf16.msra.mxu0 0
      %7972 = vmatprep.subr.bf16.mxu0 0
      %7973 = vmatpush1.bf16.msra.mxu0 0
      %7974 = vmatprep.subr.bf16.mxu0 0
      %7975 = vmatpush1.bf16.msra.mxu0 0
      %7976 = vmatprep.subr.bf16.mxu0 0
      %7977 = vmatpush1.bf16.msra.mxu0 0
      %7978 = vmatprep.subr.bf16.mxu0 0
      %7979 = vmatpush1.bf16.msra.mxu0 0
      %7980 = vmatprep.subr.bf16.mxu0 0
      %7981 = vmatpush1.bf16.msra.mxu0 0
      %7982 = vmatprep.mubr.bf16.mxu0 0
      %7983 = vmatmul.mubr.bf16.gmra.mrb[0].mxu0 %v7946
      %v7984 = vpop.f32.mrb[0].mxu0
      %v7985 = vadd.f32 0.0, %v7984
      %v7986 = vpop.f32.mrb[0].mxu0
      %v7987 = vpop.f32.mrb[0].mxu0
      %v7988 = vpop.f32.mrb[0].mxu0
      %7989 = vdwg.mxu0
      %v7991 = vsel %vm4565, %v6770, 0
      %v7993 = vsel %vm5305, %v1648, 0
      %7995 = vmatprep.subr.bf16.mxu0 0
      %7996 = vmatpush1.bf16.msra.mxu0 %v7993
      %7997 = vmatprep.subr.bf16.mxu0 0
      %7998 = vmatpush1.bf16.msra.mxu0 0
      %7999 = vmatprep.subr.bf16.mxu0 0
      %8000 = vmatpush1.bf16.msra.mxu0 0
      %8001 = vmatprep.subr.bf16.mxu0 0
      %8002 = vmatpush1.bf16.msra.mxu0 0
      %8003 = vmatprep.subr.bf16.mxu0 0
      %8004 = vmatpush1.bf16.msra.mxu0 0
      %8005 = vmatprep.subr.bf16.mxu0 0
      %8006 = vmatpush1.bf16.msra.mxu0 0
      %8007 = vmatprep.subr.bf16.mxu0 0
      %8008 = vmatpush1.bf16.msra.mxu0 0
      %8009 = vmatprep.subr.bf16.mxu0 0
      %8010 = vmatpush1.bf16.msra.mxu0 0
      %8011 = vmatprep.subr.bf16.mxu0 0
      %8012 = vmatpush1.bf16.msra.mxu0 0
      %8013 = vmatprep.subr.bf16.mxu0 0
      %8014 = vmatpush1.bf16.msra.mxu0 0
      %8015 = vmatprep.subr.bf16.mxu0 0
      %8016 = vmatpush1.bf16.msra.mxu0 0
      %8017 = vmatprep.subr.bf16.mxu0 0
      %8018 = vmatpush1.bf16.msra.mxu0 0
      %8019 = vmatprep.subr.bf16.mxu0 0
      %8020 = vmatpush1.bf16.msra.mxu0 0
      %8021 = vmatprep.subr.bf16.mxu0 0
      %8022 = vmatpush1.bf16.msra.mxu0 0
      %8023 = vmatprep.subr.bf16.mxu0 0
      %8024 = vmatpush1.bf16.msra.mxu0 0
      %8025 = vmatprep.subr.bf16.mxu0 0
      %8026 = vmatpush1.bf16.msra.mxu0 0
      %8027 = vmatprep.mubr.bf16.mxu0 0
      %8028 = vmatmul.mubr.bf16.gmra.mrb[0].mxu0 %v7991
      %v8029 = vpop.f32.mrb[0].mxu0
      %v8030 = vadd.f32 0.0, %v8029
      %v8031 = vpop.f32.mrb[0].mxu0
      %v8032 = vpop.f32.mrb[0].mxu0
      %v8033 = vpop.f32.mrb[0].mxu0
      %8034 = vdwg.mxu0
      %v8036 = vsel %vm4565, %v6771, 0
      %v8038 = vsel %vm5305, %v1649, 0
      %8040 = vmatprep.subr.bf16.mxu0 0
      %8041 = vmatpush1.bf16.msra.mxu0 %v8038
      %8042 = vmatprep.subr.bf16.mxu0 0
      %8043 = vmatpush1.bf16.msra.mxu0 0
      %8044 = vmatprep.subr.bf16.mxu0 0
      %8045 = vmatpush1.bf16.msra.mxu0 0
      %8046 = vmatprep.subr.bf16.mxu0 0
      %8047 = vmatpush1.bf16.msra.mxu0 0
      %8048 = vmatprep.subr.bf16.mxu0 0
      %8049 = vmatpush1.bf16.msra.mxu0 0
      %8050 = vmatprep.subr.bf16.mxu0 0
      %8051 = vmatpush1.bf16.msra.mxu0 0
      %8052 = vmatprep.subr.bf16.mxu0 0
      %8053 = vmatpush1.bf16.msra.mxu0 0
      %8054 = vmatprep.subr.bf16.mxu0 0
      %8055 = vmatpush1.bf16.msra.mxu0 0
      %8056 = vmatprep.subr.bf16.mxu0 0
      %8057 = vmatpush1.bf16.msra.mxu0 0
      %8058 = vmatprep.subr.bf16.mxu0 0
      %8059 = vmatpush1.bf16.msra.mxu0 0
      %8060 = vmatprep.subr.bf16.mxu0 0
      %8061 = vmatpush1.bf16.msra.mxu0 0
      %8062 = vmatprep.subr.bf16.mxu0 0
      %8063 = vmatpush1.bf16.msra.mxu0 0
      %8064 = vmatprep.subr.bf16.mxu0 0
      %8065 = vmatpush1.bf16.msra.mxu0 0
      %8066 = vmatprep.subr.bf16.mxu0 0
      %8067 = vmatpush1.bf16.msra.mxu0 0
      %8068 = vmatprep.subr.bf16.mxu0 0
      %8069 = vmatpush1.bf16.msra.mxu0 0
      %8070 = vmatprep.subr.bf16.mxu0 0
      %8071 = vmatpush1.bf16.msra.mxu0 0
      %8072 = vmatprep.mubr.bf16.mxu0 0
      %8073 = vmatmul.mubr.bf16.gmra.mrb[0].mxu0 %v8036
      %v8074 = vpop.f32.mrb[0].mxu0
      %v8075 = vadd.f32 0.0, %v8074
      %v8076 = vpop.f32.mrb[0].mxu0
      %v8077 = vpop.f32.mrb[0].mxu0
      %v8078 = vpop.f32.mrb[0].mxu0
      %8079 = vdwg.mxu0
      %v8081 = vsel %vm4565, %v6772, 0
      %v8083 = vsel %vm5305, %v1650, 0
      %8085 = vmatprep.subr.bf16.mxu0 0
      %8086 = vmatpush1.bf16.msra.mxu0 %v8083
      %8087 = vmatprep.subr.bf16.mxu0 0
      %8088 = vmatpush1.bf16.msra.mxu0 0
      %8089 = vmatprep.subr.bf16.mxu0 0
      %8090 = vmatpush1.bf16.msra.mxu0 0
      %8091 = vmatprep.subr.bf16.mxu0 0
      %8092 = vmatpush1.bf16.msra.mxu0 0
      %8093 = vmatprep.subr.bf16.mxu0 0
      %8094 = vmatpush1.bf16.msra.mxu0 0
      %8095 = vmatprep.subr.bf16.mxu0 0
      %8096 = vmatpush1.bf16.msra.mxu0 0
      %8097 = vmatprep.subr.bf16.mxu0 0
      %8098 = vmatpush1.bf16.msra.mxu0 0
      %8099 = vmatprep.subr.bf16.mxu0 0
      %8100 = vmatpush1.bf16.msra.mxu0 0
      %8101 = vmatprep.subr.bf16.mxu0 0
      %8102 = vmatpush1.bf16.msra.mxu0 0
      %8103 = vmatprep.subr.bf16.mxu0 0
      %8104 = vmatpush1.bf16.msra.mxu0 0
      %8105 = vmatprep.subr.bf16.mxu0 0
      %8106 = vmatpush1.bf16.msra.mxu0 0
      %8107 = vmatprep.subr.bf16.mxu0 0
      %8108 = vmatpush1.bf16.msra.mxu0 0
      %8109 = vmatprep.subr.bf16.mxu0 0
      %8110 = vmatpush1.bf16.msra.mxu0 0
      %8111 = vmatprep.subr.bf16.mxu0 0
      %8112 = vmatpush1.bf16.msra.mxu0 0
      %8113 = vmatprep.subr.bf16.mxu0 0
      %8114 = vmatpush1.bf16.msra.mxu0 0
      %8115 = vmatprep.subr.bf16.mxu0 0
      %8116 = vmatpush1.bf16.msra.mxu0 0
      %8117 = vmatprep.mubr.bf16.mxu0 0
      %8118 = vmatmul.mubr.bf16.gmra.mrb[0].mxu0 %v8081
      %v8119 = vpop.f32.mrb[0].mxu0
      %v8120 = vadd.f32 0.0, %v8119
      %v8121 = vpop.f32.mrb[0].mxu0
      %v8122 = vpop.f32.mrb[0].mxu0
      %v8123 = vpop.f32.mrb[0].mxu0
      %8124 = vdwg.mxu0
      %v8126 = vsel %vm4565, %v6773, 0
      %v8128 = vsel %vm5305, %v1651, 0
      %8130 = vmatprep.subr.bf16.mxu0 0
      %8131 = vmatpush1.bf16.msra.mxu0 %v8128
      %8132 = vmatprep.subr.bf16.mxu0 0
      %8133 = vmatpush1.bf16.msra.mxu0 0
      %8134 = vmatprep.subr.bf16.mxu0 0
      %8135 = vmatpush1.bf16.msra.mxu0 0
      %8136 = vmatprep.subr.bf16.mxu0 0
      %8137 = vmatpush1.bf16.msra.mxu0 0
      %8138 = vmatprep.subr.bf16.mxu0 0
      %8139 = vmatpush1.bf16.msra.mxu0 0
      %8140 = vmatprep.subr.bf16.mxu0 0
      %8141 = vmatpush1.bf16.msra.mxu0 0
      %8142 = vmatprep.subr.bf16.mxu0 0
      %8143 = vmatpush1.bf16.msra.mxu0 0
      %8144 = vmatprep.subr.bf16.mxu0 0
      %8145 = vmatpush1.bf16.msra.mxu0 0
      %8146 = vmatprep.subr.bf16.mxu0 0
      %8147 = vmatpush1.bf16.msra.mxu0 0
      %8148 = vmatprep.subr.bf16.mxu0 0
      %8149 = vmatpush1.bf16.msra.mxu0 0
      %8150 = vmatprep.subr.bf16.mxu0 0
      %8151 = vmatpush1.bf16.msra.mxu0 0
      %8152 = vmatprep.subr.bf16.mxu0 0
      %8153 = vmatpush1.bf16.msra.mxu0 0
      %8154 = vmatprep.subr.bf16.mxu0 0
      %8155 = vmatpush1.bf16.msra.mxu0 0
      %8156 = vmatprep.subr.bf16.mxu0 0
      %8157 = vmatpush1.bf16.msra.mxu0 0
      %8158 = vmatprep.subr.bf16.mxu0 0
      %8159 = vmatpush1.bf16.msra.mxu0 0
      %8160 = vmatprep.subr.bf16.mxu0 0
      %8161 = vmatpush1.bf16.msra.mxu0 0
      %8162 = vmatprep.mubr.bf16.mxu0 0
      %8163 = vmatmul.mubr.bf16.gmra.mrb[0].mxu0 %v8126
      %v8164 = vpop.f32.mrb[0].mxu0
      %v8165 = vadd.f32 0.0, %v8164
      %v8166 = vpop.f32.mrb[0].mxu0
      %v8167 = vpop.f32.mrb[0].mxu0
      %v8168 = vpop.f32.mrb[0].mxu0
      %8169 = vdwg.mxu0
      %v8171 = vsel %vm4565, %v6774, 0
      %v8173 = vsel %vm5305, %v1652, 0
      %8175 = vmatprep.subr.bf16.mxu0 0
      %8176 = vmatpush1.bf16.msra.mxu0 %v8173
      %8177 = vmatprep.subr.bf16.mxu0 0
      %8178 = vmatpush1.bf16.msra.mxu0 0
      %8179 = vmatprep.subr.bf16.mxu0 0
      %8180 = vmatpush1.bf16.msra.mxu0 0
      %8181 = vmatprep.subr.bf16.mxu0 0
      %8182 = vmatpush1.bf16.msra.mxu0 0
      %8183 = vmatprep.subr.bf16.mxu0 0
      %8184 = vmatpush1.bf16.msra.mxu0 0
      %8185 = vmatprep.subr.bf16.mxu0 0
      %8186 = vmatpush1.bf16.msra.mxu0 0
      %8187 = vmatprep.subr.bf16.mxu0 0
      %8188 = vmatpush1.bf16.msra.mxu0 0
      %8189 = vmatprep.subr.bf16.mxu0 0
      %8190 = vmatpush1.bf16.msra.mxu0 0
      %8191 = vmatprep.subr.bf16.mxu0 0
      %8192 = vmatpush1.bf16.msra.mxu0 0
      %8193 = vmatprep.subr.bf16.mxu0 0
      %8194 = vmatpush1.bf16.msra.mxu0 0
      %8195 = vmatprep.subr.bf16.mxu0 0
      %8196 = vmatpush1.bf16.msra.mxu0 0
      %8197 = vmatprep.subr.bf16.mxu0 0
      %8198 = vmatpush1.bf16.msra.mxu0 0
      %8199 = vmatprep.subr.bf16.mxu0 0
      %8200 = vmatpush1.bf16.msra.mxu0 0
      %8201 = vmatprep.subr.bf16.mxu0 0
      %8202 = vmatpush1.bf16.msra.mxu0 0
      %8203 = vmatprep.subr.bf16.mxu0 0
      %8204 = vmatpush1.bf16.msra.mxu0 0
      %8205 = vmatprep.subr.bf16.mxu0 0
      %8206 = vmatpush1.bf16.msra.mxu0 0
      %8207 = vmatprep.mubr.bf16.mxu0 0
      %8208 = vmatmul.mubr.bf16.gmra.mrb[0].mxu0 %v8171
      %v8209 = vpop.f32.mrb[0].mxu0
      %v8210 = vadd.f32 0.0, %v8209
      %v8211 = vpop.f32.mrb[0].mxu0
      %v8212 = vpop.f32.mrb[0].mxu0
      %v8213 = vpop.f32.mrb[0].mxu0
      %8214 = vdwg.mxu0
      %8247 = vrot.lane.b32.xlu0 %v6815, 32
      %v8248 = vpop.permute.xlu0 %8247
      %8249 = vrot.lane.b32.xlu0 %v6860, 32
      %v8250 = vpop.permute.xlu0 %8249
      %8251 = vrot.lane.b32.xlu0 %v6905, 32
      %v8252 = vpop.permute.xlu0 %8251
      %8253 = vrot.lane.b32.xlu0 %v6950, 32
      %v8254 = vpop.permute.xlu0 %8253
      %8255 = vrot.lane.b32.xlu0 %v6995, 32
      %v8256 = vpop.permute.xlu0 %8255
      %8257 = vrot.lane.b32.xlu0 %v7040, 32
      %v8258 = vpop.permute.xlu0 %8257
      %8259 = vrot.lane.b32.xlu0 %v7085, 32
      %v8260 = vpop.permute.xlu0 %8259
      %8261 = vrot.lane.b32.xlu0 %v7130, 32
      %v8262 = vpop.permute.xlu0 %8261
      %8263 = vrot.lane.b32.xlu0 %v7175, 32
      %v8264 = vpop.permute.xlu0 %8263
      %8265 = vrot.lane.b32.xlu0 %v7220, 32
      %v8266 = vpop.permute.xlu0 %8265
      %8267 = vrot.lane.b32.xlu0 %v7265, 32
      %v8268 = vpop.permute.xlu0 %8267
      %8269 = vrot.lane.b32.xlu0 %v7310, 32
      %v8270 = vpop.permute.xlu0 %8269
      %8271 = vrot.lane.b32.xlu0 %v7355, 32
      %v8272 = vpop.permute.xlu0 %8271
      %8273 = vrot.lane.b32.xlu0 %v7400, 32
      %v8274 = vpop.permute.xlu0 %8273
      %8275 = vrot.lane.b32.xlu0 %v7445, 32
      %v8276 = vpop.permute.xlu0 %8275
      %8277 = vrot.lane.b32.xlu0 %v7490, 32
      %v8278 = vpop.permute.xlu0 %8277
      %8279 = vrot.lane.b32.xlu0 %v7535, 32
      %v8280 = vpop.permute.xlu0 %8279
      %8281 = vrot.lane.b32.xlu0 %v7580, 32
      %v8282 = vpop.permute.xlu0 %8281
      %8283 = vrot.lane.b32.xlu0 %v7625, 32
      %v8284 = vpop.permute.xlu0 %8283
      %8285 = vrot.lane.b32.xlu0 %v7670, 32
      %v8286 = vpop.permute.xlu0 %8285
      %8287 = vrot.lane.b32.xlu0 %v7715, 32
      %v8288 = vpop.permute.xlu0 %8287
      %8289 = vrot.lane.b32.xlu0 %v7760, 32
      %v8290 = vpop.permute.xlu0 %8289
      %8291 = vrot.lane.b32.xlu0 %v7805, 32
      %v8292 = vpop.permute.xlu0 %8291
      %8293 = vrot.lane.b32.xlu0 %v7850, 32
      %v8294 = vpop.permute.xlu0 %8293
      %8295 = vrot.lane.b32.xlu0 %v7895, 32
      %v8296 = vpop.permute.xlu0 %8295
      %8297 = vrot.lane.b32.xlu0 %v7940, 32
      %v8298 = vpop.permute.xlu0 %8297
      %8299 = vrot.lane.b32.xlu0 %v7985, 32
      %v8300 = vpop.permute.xlu0 %8299
      %8301 = vrot.lane.b32.xlu0 %v8030, 32
      %v8302 = vpop.permute.xlu0 %8301
      %8303 = vrot.lane.b32.xlu0 %v8075, 32
      %v8304 = vpop.permute.xlu0 %8303
      %8305 = vrot.lane.b32.xlu0 %v8120, 32
      %v8306 = vpop.permute.xlu0 %8305
      %8307 = vrot.lane.b32.xlu0 %v8165, 32
      %v8308 = vpop.permute.xlu0 %8307
      %8309 = vrot.lane.b32.xlu0 %v8210, 32
      %v8310 = vpop.permute.xlu0 %8309
      %v8343 = vsel %vm464, %v5343, %v8248
      %v8344 = vsel %vm464, %v5388, %v8250
      %v8345 = vsel %vm464, %v5433, %v8252
      %v8346 = vsel %vm464, %v5478, %v8254
      %v8347 = vsel %vm464, %v5523, %v8256
      %v8348 = vsel %vm464, %v5568, %v8258
      %v8349 = vsel %vm464, %v5613, %v8260
      %v8350 = vsel %vm464, %v5658, %v8262
      %v8351 = vsel %vm464, %v5703, %v8264
      %v8352 = vsel %vm464, %v5748, %v8266
      %v8353 = vsel %vm464, %v5793, %v8268
      %v8354 = vsel %vm464, %v5838, %v8270
      %v8355 = vsel %vm464, %v5883, %v8272
      %v8356 = vsel %vm464, %v5928, %v8274
      %v8357 = vsel %vm464, %v5973, %v8276
      %v8358 = vsel %vm464, %v6018, %v8278
      %v8359 = vsel %vm464, %v6063, %v8280
      %v8360 = vsel %vm464, %v6108, %v8282
      %v8361 = vsel %vm464, %v6153, %v8284
      %v8362 = vsel %vm464, %v6198, %v8286
      %v8363 = vsel %vm464, %v6243, %v8288
      %v8364 = vsel %vm464, %v6288, %v8290
      %v8365 = vsel %vm464, %v6333, %v8292
      %v8366 = vsel %vm464, %v6378, %v8294
      %v8367 = vsel %vm464, %v6423, %v8296
      %v8368 = vsel %vm464, %v6468, %v8298
      %v8369 = vsel %vm464, %v6513, %v8300
      %v8370 = vsel %vm464, %v6558, %v8302
      %v8371 = vsel %vm464, %v6603, %v8304
      %v8372 = vsel %vm464, %v6648, %v8306
      %v8373 = vsel %vm464, %v6693, %v8308
      %v8374 = vsel %vm464, %v6738, %v8310
      %v8375 = vadd.f32 %v1589, %v8343
      %v8376 = vadd.f32 %v1590, %v8344
      %v8377 = vadd.f32 %v1591, %v8345
      %v8378 = vadd.f32 %v1592, %v8346
      %v8379 = vadd.f32 %v1593, %v8347
      %v8380 = vadd.f32 %v1594, %v8348
      %v8381 = vadd.f32 %v1595, %v8349
      %v8382 = vadd.f32 %v1596, %v8350
      %v8383 = vadd.f32 %v1597, %v8351
      %v8384 = vadd.f32 %v1598, %v8352
      %v8385 = vadd.f32 %v1599, %v8353
      %v8386 = vadd.f32 %v1600, %v8354
      %v8387 = vadd.f32 %v1601, %v8355
      %v8388 = vadd.f32 %v1602, %v8356
      %v8389 = vadd.f32 %v1603, %v8357
      %v8390 = vadd.f32 %v1604, %v8358
      %v8391 = vadd.f32 %v1605, %v8359
      %v8392 = vadd.f32 %v1606, %v8360
      %v8393 = vadd.f32 %v1607, %v8361
      %v8394 = vadd.f32 %v1608, %v8362
      %v8395 = vadd.f32 %v1609, %v8363
      %v8396 = vadd.f32 %v1610, %v8364
      %v8397 = vadd.f32 %v1611, %v8365
      %v8398 = vadd.f32 %v1612, %v8366
      %v8399 = vadd.f32 %v1613, %v8367
      %v8400 = vadd.f32 %v1614, %v8368
      %v8401 = vadd.f32 %v1615, %v8369
      %v8402 = vadd.f32 %v1616, %v8370
      %v8403 = vadd.f32 %v1617, %v8371
      %v8404 = vadd.f32 %v1618, %v8372
      %v8405 = vadd.f32 %v1619, %v8373
      %v8406 = vadd.f32 %v1620, %v8374
      %v8407 = vpack.c.bf16 %v8376, %v8375
      %v8408 = vpack.c.bf16 %v8378, %v8377
      %v8409 = vpack.c.bf16 %v8380, %v8379
      %v8410 = vpack.c.bf16 %v8382, %v8381
      %v8411 = vpack.c.bf16 %v8384, %v8383
      %v8412 = vpack.c.bf16 %v8386, %v8385
      %v8413 = vpack.c.bf16 %v8388, %v8387
      %v8414 = vpack.c.bf16 %v8390, %v8389
      %v8415 = vpack.c.bf16 %v8392, %v8391
      %v8416 = vpack.c.bf16 %v8394, %v8393
      %v8417 = vpack.c.bf16 %v8396, %v8395
      %v8418 = vpack.c.bf16 %v8398, %v8397
      %v8419 = vpack.c.bf16 %v8400, %v8399
      %v8420 = vpack.c.bf16 %v8402, %v8401
      %v8421 = vpack.c.bf16 %v8404, %v8403
      %v8422 = vpack.c.bf16 %v8406, %v8405
      %v8423 = vld [vmem:[%s6] sm:$0xf]
      %v8424 = vld [vmem:[%s6 + $0x4] sm:$0xf]
      %v8425 = vld [vmem:[%s6 + $0x8] sm:$0xf]
      %v8426 = vld [vmem:[%s6 + $0xc] sm:$0xf]
      %v8427 = vld [vmem:[%s6 + $0x10] sm:$0xf]
      %v8428 = vld [vmem:[%s6 + $0x14] sm:$0xf]
      %v8429 = vld [vmem:[%s6 + $0x18] sm:$0xf]
      %v8430 = vld [vmem:[%s6 + $0x1c] sm:$0xf]
      %v8431 = vld [vmem:[%s7] sm:$0x1]
      %v8433 = vlaneseq
      %v8434 = vshrl.u32 %v8433, 7
      %v8435 = vsub.s32 0, %v8434
      %v8436 = vrot.slane %v8431, %v8435
      %v8446 = vunpack.c.l.b16 %v8423
      %v8447 = vunpack.c.l.b16 %v8424
      %v8448 = vunpack.c.l.b16 %v8425
      %v8449 = vunpack.c.l.b16 %v8426
      %v8450 = vunpack.c.l.b16 %v8427
      %v8451 = vunpack.c.l.b16 %v8428
      %v8452 = vunpack.c.l.b16 %v8429
      %v8453 = vunpack.c.l.b16 %v8430
      %v8454 = vpack.c.b16 %v8447, %v8446
      %v8455 = vpack.c.b16 %v8449, %v8448
      %v8456 = vpack.c.b16 %v8451, %v8450
      %v8457 = vpack.c.b16 %v8453, %v8452
      %v8463 = vsel %vm1379, %v8407, 0
      %v8466 = vsel %vm1379, %v8408, 0
      %v8469 = vsel %vm1379, %v8409, 0
      %v8472 = vsel %vm1379, %v8410, 0
      %v8475 = vsel %vm1379, %v8411, 0
      %v8478 = vsel %vm1379, %v8412, 0
      %v8481 = vsel %vm1379, %v8413, 0
      %v8484 = vsel %vm1379, %v8414, 0
      %v8487 = vsel %vm1379, %v8415, 0
      %v8490 = vsel %vm1379, %v8416, 0
      %v8493 = vsel %vm1379, %v8417, 0
      %v8496 = vsel %vm1379, %v8418, 0
      %v8499 = vsel %vm1379, %v8419, 0
      %v8502 = vsel %vm1379, %v8420, 0
      %v8505 = vsel %vm1379, %v8421, 0
      %v8508 = vsel %vm1379, %v8422, 0
      %8510 = vmatprep.subr.bf16.mxu0 0
      %8511 = vmatpush1.bf16.msra.mxu0 %v8454
      %8512 = vmatprep.subr.bf16.mxu0 0
      %8513 = vmatpush1.bf16.msra.mxu0 %v8455
      %8514 = vmatprep.subr.bf16.mxu0 0
      %8515 = vmatpush1.bf16.msra.mxu0 %v8456
      %8516 = vmatprep.subr.bf16.mxu0 0
      %8517 = vmatpush1.bf16.msra.mxu0 %v8457
      %8518 = vmatprep.subr.bf16.mxu0 0
      %8519 = vmatpush1.bf16.msra.mxu0 0
      %8520 = vmatprep.subr.bf16.mxu0 0
      %8521 = vmatpush1.bf16.msra.mxu0 0
      %8522 = vmatprep.subr.bf16.mxu0 0
      %8523 = vmatpush1.bf16.msra.mxu0 0
      %8524 = vmatprep.subr.bf16.mxu0 0
      %8525 = vmatpush1.bf16.msra.mxu0 0
      %8526 = vmatprep.subr.bf16.mxu0 0
      %8527 = vmatpush1.bf16.msra.mxu0 0
      %8528 = vmatprep.subr.bf16.mxu0 0
      %8529 = vmatpush1.bf16.msra.mxu0 0
      %8530 = vmatprep.subr.bf16.mxu0 0
      %8531 = vmatpush1.bf16.msra.mxu0 0
      %8532 = vmatprep.subr.bf16.mxu0 0
      %8533 = vmatpush1.bf16.msra.mxu0 0
      %8534 = vmatprep.subr.bf16.mxu0 0
      %8535 = vmatpush1.bf16.msra.mxu0 0
      %8536 = vmatprep.subr.bf16.mxu0 0
      %8537 = vmatpush1.bf16.msra.mxu0 0
      %8538 = vmatprep.subr.bf16.mxu0 0
      %8539 = vmatpush1.bf16.msra.mxu0 0
      %8540 = vmatprep.subr.bf16.mxu0 0
      %8541 = vmatpush1.bf16.msra.mxu0 0
      %8542 = vmatprep.mubr.bf16.mxu0 0
      %8543 = vmatmul.mubr.bf16.gmra.mrb[0].mxu0 %v8463
      %v8544 = vpop.f32.mrb[0].mxu0
      %v8545 = vadd.f32 %v8436, %v8544
      %v8546 = vpop.f32.mrb[0].mxu0
      %v8547 = vpop.f32.mrb[0].mxu0
      %v8548 = vadd.f32 %v8436, %v8547
      %v8549 = vpop.f32.mrb[0].mxu0
      %8550 = vmatprep.mubr.bf16.mxu0 0
      %8551 = vmatmul.mubr.bf16.gmra.mrb[0].mxu0 %v8466
      %v8552 = vpop.f32.mrb[0].mxu0
      %v8553 = vadd.f32 %v8436, %v8552
      %v8554 = vpop.f32.mrb[0].mxu0
      %v8555 = vpop.f32.mrb[0].mxu0
      %v8556 = vadd.f32 %v8436, %v8555
      %v8557 = vpop.f32.mrb[0].mxu0
      %8558 = vmatprep.mubr.bf16.mxu0 0
      %8559 = vmatmul.mubr.bf16.gmra.mrb[0].mxu0 %v8469
      %v8560 = vpop.f32.mrb[0].mxu0
      %v8561 = vadd.f32 %v8436, %v8560
      %v8562 = vpop.f32.mrb[0].mxu0
      %v8563 = vpop.f32.mrb[0].mxu0
      %v8564 = vadd.f32 %v8436, %v8563
      %v8565 = vpop.f32.mrb[0].mxu0
      %8566 = vmatprep.mubr.bf16.mxu0 0
      %8567 = vmatmul.mubr.bf16.gmra.mrb[0].mxu0 %v8472
      %v8568 = vpop.f32.mrb[0].mxu0
      %v8569 = vadd.f32 %v8436, %v8568
      %v8570 = vpop.f32.mrb[0].mxu0
      %v8571 = vpop.f32.mrb[0].mxu0
      %v8572 = vadd.f32 %v8436, %v8571
      %v8573 = vpop.f32.mrb[0].mxu0
      %8574 = vmatprep.mubr.bf16.mxu0 0
      %8575 = vmatmul.mubr.bf16.gmra.mrb[0].mxu0 %v8475
      %v8576 = vpop.f32.mrb[0].mxu0
      %v8577 = vadd.f32 %v8436, %v8576
      %v8578 = vpop.f32.mrb[0].mxu0
      %v8579 = vpop.f32.mrb[0].mxu0
      %v8580 = vadd.f32 %v8436, %v8579
      %v8581 = vpop.f32.mrb[0].mxu0
      %8582 = vmatprep.mubr.bf16.mxu0 0
      %8583 = vmatmul.mubr.bf16.gmra.mrb[0].mxu0 %v8478
      %v8584 = vpop.f32.mrb[0].mxu0
      %v8585 = vadd.f32 %v8436, %v8584
      %v8586 = vpop.f32.mrb[0].mxu0
      %v8587 = vpop.f32.mrb[0].mxu0
      %v8588 = vadd.f32 %v8436, %v8587
      %v8589 = vpop.f32.mrb[0].mxu0
      %8590 = vmatprep.mubr.bf16.mxu0 0
      %8591 = vmatmul.mubr.bf16.gmra.mrb[0].mxu0 %v8481
      %v8592 = vpop.f32.mrb[0].mxu0
      %v8593 = vadd.f32 %v8436, %v8592
      %v8594 = vpop.f32.mrb[0].mxu0
      %v8595 = vpop.f32.mrb[0].mxu0
      %v8596 = vadd.f32 %v8436, %v8595
      %v8597 = vpop.f32.mrb[0].mxu0
      %8598 = vmatprep.mubr.bf16.mxu0 0
      %8599 = vmatmul.mubr.bf16.gmra.mrb[0].mxu0 %v8484
      %v8600 = vpop.f32.mrb[0].mxu0
      %v8601 = vadd.f32 %v8436, %v8600
      %v8602 = vpop.f32.mrb[0].mxu0
      %v8603 = vpop.f32.mrb[0].mxu0
      %v8604 = vadd.f32 %v8436, %v8603
      %v8605 = vpop.f32.mrb[0].mxu0
      %8606 = vmatprep.mubr.bf16.mxu0 0
      %8607 = vmatmul.mubr.bf16.gmra.mrb[0].mxu0 %v8487
      %v8608 = vpop.f32.mrb[0].mxu0
      %v8609 = vadd.f32 %v8436, %v8608
      %v8610 = vpop.f32.mrb[0].mxu0
      %v8611 = vpop.f32.mrb[0].mxu0
      %v8612 = vadd.f32 %v8436, %v8611
      %v8613 = vpop.f32.mrb[0].mxu0
      %8614 = vmatprep.mubr.bf16.mxu0 0
      %8615 = vmatmul.mubr.bf16.gmra.mrb[0].mxu0 %v8490
      %v8616 = vpop.f32.mrb[0].mxu0
      %v8617 = vadd.f32 %v8436, %v8616
      %v8618 = vpop.f32.mrb[0].mxu0
      %v8619 = vpop.f32.mrb[0].mxu0
      %v8620 = vadd.f32 %v8436, %v8619
      %v8621 = vpop.f32.mrb[0].mxu0
      %8622 = vmatprep.mubr.bf16.mxu0 0
      %8623 = vmatmul.mubr.bf16.gmra.mrb[0].mxu0 %v8493
      %v8624 = vpop.f32.mrb[0].mxu0
      %v8625 = vadd.f32 %v8436, %v8624
      %v8626 = vpop.f32.mrb[0].mxu0
      %v8627 = vpop.f32.mrb[0].mxu0
      %v8628 = vadd.f32 %v8436, %v8627
      %v8629 = vpop.f32.mrb[0].mxu0
      %8630 = vmatprep.mubr.bf16.mxu0 0
      %8631 = vmatmul.mubr.bf16.gmra.mrb[0].mxu0 %v8496
      %v8632 = vpop.f32.mrb[0].mxu0
      %v8633 = vadd.f32 %v8436, %v8632
      %v8634 = vpop.f32.mrb[0].mxu0
      %v8635 = vpop.f32.mrb[0].mxu0
      %v8636 = vadd.f32 %v8436, %v8635
      %v8637 = vpop.f32.mrb[0].mxu0
      %8638 = vmatprep.mubr.bf16.mxu0 0
      %8639 = vmatmul.mubr.bf16.gmra.mrb[0].mxu0 %v8499
      %v8640 = vpop.f32.mrb[0].mxu0
      %v8641 = vadd.f32 %v8436, %v8640
      %v8642 = vpop.f32.mrb[0].mxu0
      %v8643 = vpop.f32.mrb[0].mxu0
      %v8644 = vadd.f32 %v8436, %v8643
      %v8645 = vpop.f32.mrb[0].mxu0
      %8646 = vmatprep.mubr.bf16.mxu0 0
      %8647 = vmatmul.mubr.bf16.gmra.mrb[0].mxu0 %v8502
      %v8648 = vpop.f32.mrb[0].mxu0
      %v8649 = vadd.f32 %v8436, %v8648
      %v8650 = vpop.f32.mrb[0].mxu0
      %v8651 = vpop.f32.mrb[0].mxu0
      %v8652 = vadd.f32 %v8436, %v8651
      %v8653 = vpop.f32.mrb[0].mxu0
      %8654 = vmatprep.mubr.bf16.mxu0 0
      %8655 = vmatmul.mubr.bf16.gmra.mrb[0].mxu0 %v8505
      %v8656 = vpop.f32.mrb[0].mxu0
      %v8657 = vadd.f32 %v8436, %v8656
      %v8658 = vpop.f32.mrb[0].mxu0
      %v8659 = vpop.f32.mrb[0].mxu0
      %v8660 = vadd.f32 %v8436, %v8659
      %v8661 = vpop.f32.mrb[0].mxu0
      %8662 = vmatprep.mubr.bf16.mxu0 0
      %8663 = vmatmul.mubr.bf16.gmra.mrb[0].mxu0 %v8508
      %v8664 = vpop.f32.mrb[0].mxu0
      %v8665 = vadd.f32 %v8436, %v8664
      %v8666 = vpop.f32.mrb[0].mxu0
      %v8667 = vpop.f32.mrb[0].mxu0
      %v8668 = vadd.f32 %v8436, %v8667
      %v8669 = vpop.f32.mrb[0].mxu0
      %8670 = vdwg.mxu0
      %vm8671 = vcmask 130048
      %8672 = vst.msk [vmem:[%s326] sm:$0xff] %vm8671, %v8545
      %8673 = vst.msk [vmem:[%s326 + $0x8] sm:$0xff] %vm8671, %v8548
      %8674 = vst.msk [vmem:[%s326 + $0x10] sm:$0xff] %vm8671, %v8553
      %8675 = vst.msk [vmem:[%s326 + $0x18] sm:$0xff] %vm8671, %v8556
      %8676 = vst.msk [vmem:[%s326 + $0x20] sm:$0xff] %vm8671, %v8561
      %8677 = vst.msk [vmem:[%s326 + $0x28] sm:$0xff] %vm8671, %v8564
      %8678 = vst.msk [vmem:[%s326 + $0x30] sm:$0xff] %vm8671, %v8569
      %8679 = vst.msk [vmem:[%s326 + $0x38] sm:$0xff] %vm8671, %v8572
      %8680 = vst.msk [vmem:[%s326 + $0x40] sm:$0xff] %vm8671, %v8577
      %8681 = vst.msk [vmem:[%s326 + $0x48] sm:$0xff] %vm8671, %v8580
      %8682 = vst.msk [vmem:[%s326 + $0x50] sm:$0xff] %vm8671, %v8585
      %8683 = vst.msk [vmem:[%s326 + $0x58] sm:$0xff] %vm8671, %v8588
      %8684 = vst.msk [vmem:[%s326 + $0x60] sm:$0xff] %vm8671, %v8593
      %8685 = vst.msk [vmem:[%s326 + $0x68] sm:$0xff] %vm8671, %v8596
      %8686 = vst.msk [vmem:[%s326 + $0x70] sm:$0xff] %vm8671, %v8601
      %8687 = vst.msk [vmem:[%s326 + $0x78] sm:$0xff] %vm8671, %v8604
      %8688 = vst.msk [vmem:[%s326 + $0x80] sm:$0xff] %vm8671, %v8609
      %8689 = vst.msk [vmem:[%s326 + $0x88] sm:$0xff] %vm8671, %v8612
      %8690 = vst.msk [vmem:[%s326 + $0x90] sm:$0xff] %vm8671, %v8617
      %8691 = vst.msk [vmem:[%s326 + $0x98] sm:$0xff] %vm8671, %v8620
      %8692 = vst.msk [vmem:[%s326 + $0xa0] sm:$0xff] %vm8671, %v8625
      %8693 = vst.msk [vmem:[%s326 + $0xa8] sm:$0xff] %vm8671, %v8628
      %8694 = vst.msk [vmem:[%s326 + $0xb0] sm:$0xff] %vm8671, %v8633
      %8695 = vst.msk [vmem:[%s326 + $0xb8] sm:$0xff] %vm8671, %v8636
      %8696 = vst.msk [vmem:[%s326 + $0xc0] sm:$0xff] %vm8671, %v8641
      %8697 = vst.msk [vmem:[%s326 + $0xc8] sm:$0xff] %vm8671, %v8644
      %8698 = vst.msk [vmem:[%s326 + $0xd0] sm:$0xff] %vm8671, %v8649
      %8699 = vst.msk [vmem:[%s326 + $0xd8] sm:$0xff] %vm8671, %v8652
      %8700 = vst.msk [vmem:[%s326 + $0xe0] sm:$0xff] %vm8671, %v8657
      %8701 = vst.msk [vmem:[%s326 + $0xe8] sm:$0xff] %vm8671, %v8660
      %8702 = vst.msk [vmem:[%s326 + $0xf0] sm:$0xff] %vm8671, %v8665
      %8703 = vst.msk [vmem:[%s326 + $0xf8] sm:$0xff] %vm8671, %v8668
      %8736 = vrot.lane.b32.xlu0 %v4855, 16
      %v8737 = vpop.permute.xlu0 %8736
      %8738 = vrot.lane.b32.xlu0 %v4857, 16
      %v8739 = vpop.permute.xlu0 %8738
      %8740 = vrot.lane.b32.xlu0 %v4859, 16
      %v8741 = vpop.permute.xlu0 %8740
      %8742 = vrot.lane.b32.xlu0 %v4861, 16
      %v8743 = vpop.permute.xlu0 %8742
      %8744 = vrot.lane.b32.xlu0 %v4863, 16
      %v8745 = vpop.permute.xlu0 %8744
      %8746 = vrot.lane.b32.xlu0 %v4865, 16
      %v8747 = vpop.permute.xlu0 %8746
      %8748 = vrot.lane.b32.xlu0 %v4867, 16
      %v8749 = vpop.permute.xlu0 %8748
      %8750 = vrot.lane.b32.xlu0 %v4869, 16
      %v8751 = vpop.permute.xlu0 %8750
      %8752 = vrot.lane.b32.xlu0 %v4871, 16
      %v8753 = vpop.permute.xlu0 %8752
      %8754 = vrot.lane.b32.xlu0 %v4873, 16
      %v8755 = vpop.permute.xlu0 %8754
      %8756 = vrot.lane.b32.xlu0 %v4875, 16
      %v8757 = vpop.permute.xlu0 %8756
      %8758 = vrot.lane.b32.xlu0 %v4877, 16
      %v8759 = vpop.permute.xlu0 %8758
      %8760 = vrot.lane.b32.xlu0 %v4879, 16
      %v8761 = vpop.permute.xlu0 %8760
      %8762 = vrot.lane.b32.xlu0 %v4881, 16
      %v8763 = vpop.permute.xlu0 %8762
      %8764 = vrot.lane.b32.xlu0 %v4883, 16
      %v8765 = vpop.permute.xlu0 %8764
      %8766 = vrot.lane.b32.xlu0 %v4885, 16
      %v8767 = vpop.permute.xlu0 %8766
      %8768 = vrot.lane.b32.xlu0 %v4887, 16
      %v8769 = vpop.permute.xlu0 %8768
      %8770 = vrot.lane.b32.xlu0 %v4889, 16
      %v8771 = vpop.permute.xlu0 %8770
      %8772 = vrot.lane.b32.xlu0 %v4891, 16
      %v8773 = vpop.permute.xlu0 %8772
      %8774 = vrot.lane.b32.xlu0 %v4893, 16
      %v8775 = vpop.permute.xlu0 %8774
      %8776 = vrot.lane.b32.xlu0 %v4895, 16
      %v8777 = vpop.permute.xlu0 %8776
      %8778 = vrot.lane.b32.xlu0 %v4897, 16
      %v8779 = vpop.permute.xlu0 %8778
      %8780 = vrot.lane.b32.xlu0 %v4899, 16
      %v8781 = vpop.permute.xlu0 %8780
      %8782 = vrot.lane.b32.xlu0 %v4901, 16
      %v8783 = vpop.permute.xlu0 %8782
      %8784 = vrot.lane.b32.xlu0 %v4903, 16
      %v8785 = vpop.permute.xlu0 %8784
      %8786 = vrot.lane.b32.xlu0 %v4905, 16
      %v8787 = vpop.permute.xlu0 %8786
      %8788 = vrot.lane.b32.xlu0 %v4907, 16
      %v8789 = vpop.permute.xlu0 %8788
      %8790 = vrot.lane.b32.xlu0 %v4909, 16
      %v8791 = vpop.permute.xlu0 %8790
      %8792 = vrot.lane.b32.xlu0 %v4911, 16
      %v8793 = vpop.permute.xlu0 %8792
      %8794 = vrot.lane.b32.xlu0 %v4913, 16
      %v8795 = vpop.permute.xlu0 %8794
      %8796 = vrot.lane.b32.xlu0 %v4915, 16
      %v8797 = vpop.permute.xlu0 %8796
      %8798 = vrot.lane.b32.xlu0 %v4917, 16
      %v8799 = vpop.permute.xlu0 %8798
      %vm8832 = vcmask 195712
      %8833 = vst.msk [vmem:[%s326] sm:$0xff] %vm8832, %v8737
      %8834 = vst.msk [vmem:[%s326 + $0x8] sm:$0xff] %vm8832, %v8739
      %8835 = vst.msk [vmem:[%s326 + $0x10] sm:$0xff] %vm8832, %v8741
      %8836 = vst.msk [vmem:[%s326 + $0x18] sm:$0xff] %vm8832, %v8743
      %8837 = vst.msk [vmem:[%s326 + $0x20] sm:$0xff] %vm8832, %v8745
      %8838 = vst.msk [vmem:[%s326 + $0x28] sm:$0xff] %vm8832, %v8747
      %8839 = vst.msk [vmem:[%s326 + $0x30] sm:$0xff] %vm8832, %v8749
      %8840 = vst.msk [vmem:[%s326 + $0x38] sm:$0xff] %vm8832, %v8751
      %8841 = vst.msk [vmem:[%s326 + $0x40] sm:$0xff] %vm8832, %v8753
      %8842 = vst.msk [vmem:[%s326 + $0x48] sm:$0xff] %vm8832, %v8755
      %8843 = vst.msk [vmem:[%s326 + $0x50] sm:$0xff] %vm8832, %v8757
      %8844 = vst.msk [vmem:[%s326 + $0x58] sm:$0xff] %vm8832, %v8759
      %8845 = vst.msk [vmem:[%s326 + $0x60] sm:$0xff] %vm8832, %v8761
      %8846 = vst.msk [vmem:[%s326 + $0x68] sm:$0xff] %vm8832, %v8763
      %8847 = vst.msk [vmem:[%s326 + $0x70] sm:$0xff] %vm8832, %v8765
      %8848 = vst.msk [vmem:[%s326 + $0x78] sm:$0xff] %vm8832, %v8767
      %8849 = vst.msk [vmem:[%s326 + $0x80] sm:$0xff] %vm8832, %v8769
      %8850 = vst.msk [vmem:[%s326 + $0x88] sm:$0xff] %vm8832, %v8771
      %8851 = vst.msk [vmem:[%s326 + $0x90] sm:$0xff] %vm8832, %v8773
      %8852 = vst.msk [vmem:[%s326 + $0x98] sm:$0xff] %vm8832, %v8775
      %8853 = vst.msk [vmem:[%s326 + $0xa0] sm:$0xff] %vm8832, %v8777
      %8854 = vst.msk [vmem:[%s326 + $0xa8] sm:$0xff] %vm8832, %v8779
      %8855 = vst.msk [vmem:[%s326 + $0xb0] sm:$0xff] %vm8832, %v8781
      %8856 = vst.msk [vmem:[%s326 + $0xb8] sm:$0xff] %vm8832, %v8783
      %8857 = vst.msk [vmem:[%s326 + $0xc0] sm:$0xff] %vm8832, %v8785
      %8858 = vst.msk [vmem:[%s326 + $0xc8] sm:$0xff] %vm8832, %v8787
      %8859 = vst.msk [vmem:[%s326 + $0xd0] sm:$0xff] %vm8832, %v8789
      %8860 = vst.msk [vmem:[%s326 + $0xd8] sm:$0xff] %vm8832, %v8791
      %8861 = vst.msk [vmem:[%s326 + $0xe0] sm:$0xff] %vm8832, %v8793
      %8862 = vst.msk [vmem:[%s326 + $0xe8] sm:$0xff] %vm8832, %v8795
      %8863 = vst.msk [vmem:[%s326 + $0xf0] sm:$0xff] %vm8832, %v8797
      %8864 = vst.msk [vmem:[%s326 + $0xf8] sm:$0xff] %vm8832, %v8799
      %8897 = vrot.lane.b32.xlu0 %v5207, 24
      %v8898 = vpop.permute.xlu0 %8897
      %8899 = vrot.lane.b32.xlu0 %v5209, 24
      %v8900 = vpop.permute.xlu0 %8899
      %8901 = vrot.lane.b32.xlu0 %v5211, 24
      %v8902 = vpop.permute.xlu0 %8901
      %8903 = vrot.lane.b32.xlu0 %v5213, 24
      %v8904 = vpop.permute.xlu0 %8903
      %8905 = vrot.lane.b32.xlu0 %v5215, 24
      %v8906 = vpop.permute.xlu0 %8905
      %8907 = vrot.lane.b32.xlu0 %v5217, 24
      %v8908 = vpop.permute.xlu0 %8907
      %8909 = vrot.lane.b32.xlu0 %v5219, 24
      %v8910 = vpop.permute.xlu0 %8909
      %8911 = vrot.lane.b32.xlu0 %v5221, 24
      %v8912 = vpop.permute.xlu0 %8911
      %8913 = vrot.lane.b32.xlu0 %v5223, 24
      %v8914 = vpop.permute.xlu0 %8913
      %8915 = vrot.lane.b32.xlu0 %v5225, 24
      %v8916 = vpop.permute.xlu0 %8915
      %8917 = vrot.lane.b32.xlu0 %v5227, 24
      %v8918 = vpop.permute.xlu0 %8917
      %8919 = vrot.lane.b32.xlu0 %v5229, 24
      %v8920 = vpop.permute.xlu0 %8919
      %8921 = vrot.lane.b32.xlu0 %v5231, 24
      %v8922 = vpop.permute.xlu0 %8921
      %8923 = vrot.lane.b32.xlu0 %v5233, 24
      %v8924 = vpop.permute.xlu0 %8923
      %8925 = vrot.lane.b32.xlu0 %v5235, 24
      %v8926 = vpop.permute.xlu0 %8925
      %8927 = vrot.lane.b32.xlu0 %v5237, 24
      %v8928 = vpop.permute.xlu0 %8927
      %8929 = vrot.lane.b32.xlu0 %v5239, 24
      %v8930 = vpop.permute.xlu0 %8929
      %8931 = vrot.lane.b32.xlu0 %v5241, 24
      %v8932 = vpop.permute.xlu0 %8931
      %8933 = vrot.lane.b32.xlu0 %v5243, 24
      %v8934 = vpop.permute.xlu0 %8933
      %8935 = vrot.lane.b32.xlu0 %v5245, 24
      %v8936 = vpop.permute.xlu0 %8935
      %8937 = vrot.lane.b32.xlu0 %v5247, 24
      %v8938 = vpop.permute.xlu0 %8937
      %8939 = vrot.lane.b32.xlu0 %v5249, 24
      %v8940 = vpop.permute.xlu0 %8939
      %8941 = vrot.lane.b32.xlu0 %v5251, 24
      %v8942 = vpop.permute.xlu0 %8941
      %8943 = vrot.lane.b32.xlu0 %v5253, 24
      %v8944 = vpop.permute.xlu0 %8943
      %8945 = vrot.lane.b32.xlu0 %v5255, 24
      %v8946 = vpop.permute.xlu0 %8945
      %8947 = vrot.lane.b32.xlu0 %v5257, 24
      %v8948 = vpop.permute.xlu0 %8947
      %8949 = vrot.lane.b32.xlu0 %v5259, 24
      %v8950 = vpop.permute.xlu0 %8949
      %8951 = vrot.lane.b32.xlu0 %v5261, 24
      %v8952 = vpop.permute.xlu0 %8951
      %8953 = vrot.lane.b32.xlu0 %v5263, 24
      %v8954 = vpop.permute.xlu0 %8953
      %8955 = vrot.lane.b32.xlu0 %v5265, 24
      %v8956 = vpop.permute.xlu0 %8955
      %8957 = vrot.lane.b32.xlu0 %v5267, 24
      %v8958 = vpop.permute.xlu0 %8957
      %8959 = vrot.lane.b32.xlu0 %v5269, 24
      %v8960 = vpop.permute.xlu0 %8959
      %vm8993 = vcmask 261312
      %8994 = vst.msk [vmem:[%s326] sm:$0xff] %vm8993, %v8898
      %8995 = vst.msk [vmem:[%s326 + $0x8] sm:$0xff] %vm8993, %v8900
      %8996 = vst.msk [vmem:[%s326 + $0x10] sm:$0xff] %vm8993, %v8902
      %8997 = vst.msk [vmem:[%s326 + $0x18] sm:$0xff] %vm8993, %v8904
      %8998 = vst.msk [vmem:[%s326 + $0x20] sm:$0xff] %vm8993, %v8906
      %8999 = vst.msk [vmem:[%s326 + $0x28] sm:$0xff] %vm8993, %v8908
      %9000 = vst.msk [vmem:[%s326 + $0x30] sm:$0xff] %vm8993, %v8910
      %9001 = vst.msk [vmem:[%s326 + $0x38] sm:$0xff] %vm8993, %v8912
      %9002 = vst.msk [vmem:[%s326 + $0x40] sm:$0xff] %vm8993, %v8914
      %9003 = vst.msk [vmem:[%s326 + $0x48] sm:$0xff] %vm8993, %v8916
      %9004 = vst.msk [vmem:[%s326 + $0x50] sm:$0xff] %vm8993, %v8918
      %9005 = vst.msk [vmem:[%s326 + $0x58] sm:$0xff] %vm8993, %v8920
      %9006 = vst.msk [vmem:[%s326 + $0x60] sm:$0xff] %vm8993, %v8922
      %9007 = vst.msk [vmem:[%s326 + $0x68] sm:$0xff] %vm8993, %v8924
      %9008 = vst.msk [vmem:[%s326 + $0x70] sm:$0xff] %vm8993, %v8926
      %9009 = vst.msk [vmem:[%s326 + $0x78] sm:$0xff] %vm8993, %v8928
      %9010 = vst.msk [vmem:[%s326 + $0x80] sm:$0xff] %vm8993, %v8930
      %9011 = vst.msk [vmem:[%s326 + $0x88] sm:$0xff] %vm8993, %v8932
      %9012 = vst.msk [vmem:[%s326 + $0x90] sm:$0xff] %vm8993, %v8934
      %9013 = vst.msk [vmem:[%s326 + $0x98] sm:$0xff] %vm8993, %v8936
      %9014 = vst.msk [vmem:[%s326 + $0xa0] sm:$0xff] %vm8993, %v8938
      %9015 = vst.msk [vmem:[%s326 + $0xa8] sm:$0xff] %vm8993, %v8940
      %9016 = vst.msk [vmem:[%s326 + $0xb0] sm:$0xff] %vm8993, %v8942
      %9017 = vst.msk [vmem:[%s326 + $0xb8] sm:$0xff] %vm8993, %v8944
      %9018 = vst.msk [vmem:[%s326 + $0xc0] sm:$0xff] %vm8993, %v8946
      %9019 = vst.msk [vmem:[%s326 + $0xc8] sm:$0xff] %vm8993, %v8948
      %9020 = vst.msk [vmem:[%s326 + $0xd0] sm:$0xff] %vm8993, %v8950
      %9021 = vst.msk [vmem:[%s326 + $0xd8] sm:$0xff] %vm8993, %v8952
      %9022 = vst.msk [vmem:[%s326 + $0xe0] sm:$0xff] %vm8993, %v8954
      %9023 = vst.msk [vmem:[%s326 + $0xe8] sm:$0xff] %vm8993, %v8956
      %9024 = vst.msk [vmem:[%s326 + $0xf0] sm:$0xff] %vm8993, %v8958
      %9025 = vst.msk [vmem:[%s326 + $0xf8] sm:$0xff] %vm8993, %v8960
      %vm9026 = vcmask 1047808
      %9027 = vst.msk [vmem:[%s326] sm:$0xff] %vm9026, 0.0
      %9028 = vst.msk [vmem:[%s326 + $0x8] sm:$0xff] %vm9026, 0.0
      %9029 = vst.msk [vmem:[%s326 + $0x10] sm:$0xff] %vm9026, 0.0
      %9030 = vst.msk [vmem:[%s326 + $0x18] sm:$0xff] %vm9026, 0.0
      %9031 = vst.msk [vmem:[%s326 + $0x20] sm:$0xff] %vm9026, 0.0
      %9032 = vst.msk [vmem:[%s326 + $0x28] sm:$0xff] %vm9026, 0.0
      %9033 = vst.msk [vmem:[%s326 + $0x30] sm:$0xff] %vm9026, 0.0
      %9034 = vst.msk [vmem:[%s326 + $0x38] sm:$0xff] %vm9026, 0.0
      %9035 = vst.msk [vmem:[%s326 + $0x40] sm:$0xff] %vm9026, 0.0
      %9036 = vst.msk [vmem:[%s326 + $0x48] sm:$0xff] %vm9026, 0.0
      %9037 = vst.msk [vmem:[%s326 + $0x50] sm:$0xff] %vm9026, 0.0
      %9038 = vst.msk [vmem:[%s326 + $0x58] sm:$0xff] %vm9026, 0.0
      %9039 = vst.msk [vmem:[%s326 + $0x60] sm:$0xff] %vm9026, 0.0
      %9040 = vst.msk [vmem:[%s326 + $0x68] sm:$0xff] %vm9026, 0.0
      %9041 = vst.msk [vmem:[%s326 + $0x70] sm:$0xff] %vm9026, 0.0
      %9042 = vst.msk [vmem:[%s326 + $0x78] sm:$0xff] %vm9026, 0.0
      %9043 = vst.msk [vmem:[%s326 + $0x80] sm:$0xff] %vm9026, 0.0
      %9044 = vst.msk [vmem:[%s326 + $0x88] sm:$0xff] %vm9026, 0.0
      %9045 = vst.msk [vmem:[%s326 + $0x90] sm:$0xff] %vm9026, 0.0
      %9046 = vst.msk [vmem:[%s326 + $0x98] sm:$0xff] %vm9026, 0.0
      %9047 = vst.msk [vmem:[%s326 + $0xa0] sm:$0xff] %vm9026, 0.0
      %9048 = vst.msk [vmem:[%s326 + $0xa8] sm:$0xff] %vm9026, 0.0
      %9049 = vst.msk [vmem:[%s326 + $0xb0] sm:$0xff] %vm9026, 0.0
      %9050 = vst.msk [vmem:[%s326 + $0xb8] sm:$0xff] %vm9026, 0.0
      %9051 = vst.msk [vmem:[%s326 + $0xc0] sm:$0xff] %vm9026, 0.0
      %9052 = vst.msk [vmem:[%s326 + $0xc8] sm:$0xff] %vm9026, 0.0
      %9053 = vst.msk [vmem:[%s326 + $0xd0] sm:$0xff] %vm9026, 0.0
      %9054 = vst.msk [vmem:[%s326 + $0xd8] sm:$0xff] %vm9026, 0.0
      %9055 = vst.msk [vmem:[%s326 + $0xe0] sm:$0xff] %vm9026, 0.0
      %9056 = vst.msk [vmem:[%s326 + $0xe8] sm:$0xff] %vm9026, 0.0
      %9057 = vst.msk [vmem:[%s326 + $0xf0] sm:$0xff] %vm9026, 0.0
      %9058 = vst.msk [vmem:[%s326 + $0xf8] sm:$0xff] %vm9026, 0.0
      %s9059 = smul.u32 32, %s19
      %p9060 = scmp.lt.s32.totalorder %s9059, 63
      %s9061 = scalar_select %p9060, %s9059, 63
      %s9062 = smul.addr %s9061, 8
      %s9063 = scalar_lea.vmem %s8, %s9062
      // Predicated region
      $region53: #{causal_mtf_forward.1} parent=51 // pred_check
        %p9064 = pneg %p215
      $region54: #{causal_mtf_forward.1} parent=51 // pred_check_branch
        %9066 = sbr.rel (%p9064) target = $region56
      $region55: #{causal_mtf_forward.1} parent=51 // pred_region
        %s9067 = smul.u32 32, %s19
      $region56: #{causal_mtf_forward.1} parent=51 // pred_fallthru
        _
    $region52: #{causal_mtf_forward.1} parent=5 // pred_fallthru
      _
    %p9068 = scmp.le.s32.totalorder 2, %s14
    // Predicated region
    $region57: #{causal_mtf_forward.1} parent=5 // pred_check
      %p9069 = pneg %p9068
    $region58: #{causal_mtf_forward.1} parent=5 // pred_check_branch
      %9071 = sbr.rel (%p9069) target = $region60
    $region59: #{causal_mtf_forward.1} parent=5 // pred_region
      %s9072 = ssub.s32 %s14, 2
      // Predicated region
      $region61: #{causal_mtf_forward.1} parent=59 // pred_check
        %p9073 = pneg %p221
      $region62: #{causal_mtf_forward.1} parent=59 // pred_check_branch
        %9075 = sbr.rel (%p9073) target = $region64
      $region63: #{causal_mtf_forward.1} parent=59 // pred_region
        %s9076 = smul.u32 32, %s20
        %p9077 = scmp.lt.s32.totalorder %s9076, 63
        %s9078 = scalar_select %p9077, %s9076, 63
        %s9079 = smul.addr %s9078, 8
        %s9080 = scalar_lea.vmem %s8, %s9079
      $region64: #{causal_mtf_forward.1} parent=59 // pred_fallthru
        _
    $region60: #{causal_mtf_forward.1} parent=5 // pred_fallthru
      _
  $region6: #{causal_mtf_forward.1} parent=0 // loop_footer
    %s18 = sadd.s32 1, %s14
  $region7: #{causal_mtf_forward.1} parent=0 // loop_footer_branch
    %13 = sbr.rel target = $region3
  $region8: #{causal_mtf_forward.1} parent=0 // loop_exit
    _

</llo_original>
